<compile_context>
chip_gen: v5e
topology: v5e:2x2
jax: 0.10.0
libtpu: 0.0.40
codegen_flags: <defaults>
</compile_context>

<pallas_src>
import math

import numpy as np
import jax
import jax.numpy as jnp
from jax.experimental import pallas as pl
from jax.experimental.pallas import tpu as pltpu


# ----------------------------------------------------------------------------
# padding helper (mirrors the PyTorch same_padding)
# ----------------------------------------------------------------------------
def same_padding(in_size, filter_size, stride_size):
    in_h, in_w = in_size
    if isinstance(filter_size, int):
        f_h, f_w = filter_size, filter_size
    else:
        f_h, f_w = filter_size
    s_h, s_w = stride_size
    out_h = int(math.ceil(float(in_h) / float(s_h)))
    out_w = int(math.ceil(float(in_w) / float(s_w)))
    pad_along_h = int((out_h - 1) * s_h + f_h - in_h)
    pad_along_w = int((out_w - 1) * s_w + f_w - in_w)
    pad_top = pad_along_h // 2
    pad_bottom = pad_along_h - pad_top
    pad_left = pad_along_w // 2
    pad_right = pad_along_w - pad_left
    return (pad_left, pad_right, pad_top, pad_bottom), (out_h, out_w)


# ----------------------------------------------------------------------------
# per-stage constant selection matrices (layout plumbing done on the MXU)
# ----------------------------------------------------------------------------
def _stage_constants(H, W):
    """Builds the 0/1 selection matrices for a stage with input HxW."""
    wp0 = W + 2                       # padded width of the stage input slab
    Lp0 = (H + 2) * wp0               # flat length of the padded input slab
    M0 = (H - 1) * wp0 + W            # flat conv-output length (stage conv)
    (p_l, p_r, p_t, p_b), (Ho, Wo) = same_padding((H, W), 3, [2, 2])
    if p_t != 0 or p_l != 0:
        # TODO(synk): odd spatial sizes (pool pad_top/pad_left > 0) are not
        # wired into the fused flat-lane max-pool; IMPALA sizes are even.
        raise NotImplementedError("odd spatial sizes not supported")
    wpb = Wo + 2                      # padded width inside the residual blocks
    Lpb = (Ho + 2) * wpb              # flat length of the block slabs
    Mb = (Ho - 1) * wpb + Wo          # flat conv-output length (block convs)
    Lmv = H * wp0 - 2                 # flat length of the 3x3 window maxes

    # input -> zero-padded slab:  pin = x_flat @ p0
    p0 = np.zeros((H * W, Lp0), np.float32)
    for h in range(H):
        for w in range(W):
            p0[h * W + w, (h + 1) * wp0 + (w + 1)] = 1.0

    # zero out the wrap-around junk columns of the stage-conv output so they
    # act as the ZeroPad2d zeros for the max-pool.
    mask0 = np.zeros((1, M0), np.float32)
    mask0[0, (np.arange(M0) % wp0) < W] = 1.0

    # s: pool-window maxes -> stride-2 decimated + re-padded block slab
    # r: block conv output   -> re-padded block slab
    # t: block slab interior -> (Ho*Wo) stage output
    s = np.zeros((Lmv, Lpb), np.float32)
    r = np.zeros((Mb, Lpb), np.float32)
    t = np.zeros((Lpb, Ho * Wo), np.float32)
    for u in range(Ho):
        for v in range(Wo):
            s[2 * u * wp0 + 2 * v, (u + 1) * wpb + (v + 1)] = 1.0
            r[u * wpb + v, (u + 1) * wpb + (v + 1)] = 1.0
            t[(u + 1) * wpb + (v + 1), u * Wo + v] = 1.0

    consts = dict(
        p0=jnp.asarray(p0, jnp.bfloat16),
        mask0=jnp.asarray(mask0, jnp.float32),
        s=jnp.asarray(s, jnp.bfloat16),
        r=jnp.asarray(r, jnp.bfloat16),
        t=jnp.asarray(t, jnp.bfloat16),
    )
    return consts, (Ho, Wo)


# ----------------------------------------------------------------------------
# fused per-stage kernel
# ----------------------------------------------------------------------------
def _make_stage_kernel(Cin, Cout, H, W, Ho, Wo, num_blocks, final_relu):
    wp0 = W + 2
    M0 = (H - 1) * wp0 + W
    Lpool = (H + 2) * wp0
    Lh = Lpool - 2
    Lmv = H * wp0 - 2
    wpb = Wo + 2
    Mb = (Ho - 1) * wpb + Wo
    offs0 = [kh * wp0 + kw for kh in range(3) for kw in range(3)]
    offsb = [kh * wpb + kw for kh in range(3) for kw in range(3)]
    f32 = jnp.float32
    bf16 = jnp.bfloat16

    def kernel(x_ref, mask0_ref, wk0_ref, b0_ref, p0_ref, s_ref,
               wkb_ref, bb_ref, r_ref, t_ref, o_ref):
        # ---- zero-padded input slab (Cin, Lp0): one selection matmul --------
        xv = x_ref[0].astype(bf16)                                # (Cin, H*W)
        pin = jnp.dot(xv, p0_ref[...],
                      preferred_element_type=f32).astype(bf16)    # (Cin, Lp0)

        # ---- stage conv: single im2col matmul, K = 9*Cin --------------------
        xcol0 = jnp.concatenate([pin[:, off:off + M0] for off in offs0],
                                axis=0)                           # (9Cin, M0)
        y0 = jnp.dot(wk0_ref[...], xcol0,
                     preferred_element_type=f32) + b0_ref[...]    # (Cout, M0)

        # ---- ZeroPad2d((0,1,0,1)) + MaxPool2d(3, 2) on the flat lane layout -
        y0m = (y0 * mask0_ref[...]).astype(bf16)
        ppool = jnp.concatenate(
            [y0m, jnp.zeros((Cout, Lpool - M0), bf16)], axis=1)   # (Cout, Lpool)
        mh = jnp.maximum(jnp.maximum(ppool[:, 0:Lh], ppool[:, 1:Lh + 1]),
                         ppool[:, 2:Lh + 2])
        mv = jnp.maximum(jnp.maximum(mh[:, 0:Lmv], mh[:, wp0:wp0 + Lmv]),
                         mh[:, 2 * wp0:2 * wp0 + Lmv])
        # stride-2 decimation + re-padding in one selection matmul
        pa = jnp.dot(mv, s_ref[...],
                     preferred_element_type=f32).astype(bf16)     # (Cout, Lpb)

        # ---- residual blocks: relu -> conv1 -> relu -> conv2 -> add ----------
        for j in range(num_blocks):
            wk1 = wkb_ref[2 * j]
            wk2 = wkb_ref[2 * j + 1]
            b1 = bb_ref[2 * j]
            b2 = bb_ref[2 * j + 1]

            xr = jnp.maximum(pa, 0)                               # relu(0)=0 keeps pad
            xcol1 = jnp.concatenate([xr[:, off:off + Mb] for off in offsb],
                                    axis=0)
            h1 = jnp.dot(wk1, xcol1, preferred_element_type=f32) + b1
            h1r = jnp.maximum(h1, 0.0).astype(bf16)
            pb = jnp.dot(h1r, r_ref[...],
                         preferred_element_type=f32).astype(bf16)  # re-padded

            xcol2 = jnp.concatenate([pb[:, off:off + Mb] for off in offsb],
                                    axis=0)
            h2 = jnp.dot(wk2, xcol2, preferred_element_type=f32) + b2
            res = h2 + pa[:, wpb + 1:wpb + 1 + Mb].astype(f32)    # residual add
            if final_relu and j == num_blocks - 1:
                res = jnp.maximum(res, 0.0)                       # final nn.ReLU
            pa = jnp.dot(res.astype(bf16), r_ref[...],
                         preferred_element_type=f32).astype(bf16)

        # ---- stage output: extract the interior with one selection matmul ---
        o_ref[0] = jnp.dot(pa, t_ref[...], preferred_element_type=f32)

    return kernel


def resnet_stage(x_flat, stage, final_relu):
    """x_flat: (N, Cin, H*W) f32.  Returns (N, Cout, Ho*Wo) f32."""
    N, Cin, HW = x_flat.shape
    H, W = stage["in_size"]
    assert HW == H * W
    Cout = stage["cout"]
    Ho, Wo = stage["out_size"]
    num_blocks = stage["num_blocks"]
    assert num_blocks >= 1

    kernel = _make_stage_kernel(Cin, Cout, H, W, Ho, Wo, num_blocks, final_relu)

    args = (x_flat, stage["mask0"], stage["wk0"], stage["b0"], stage["p0"],
            stage["s"], stage["wkb"], stage["bb"], stage["r"], stage["t"])

    def const_spec(a):
        nd = a.ndim
        return pl.BlockSpec(tuple(a.shape), lambda n, _nd=nd: (0,) * _nd)

    in_specs = [pl.BlockSpec((1, Cin, H * W), lambda n: (n, 0, 0))]
    in_specs += [const_spec(a) for a in args[1:]]

    return pl.pallas_call(
        kernel,
        out_shape=jax.ShapeDtypeStruct((N, Cout, Ho * Wo), jnp.float32),
        grid=(N,),
        in_specs=in_specs,
        out_specs=pl.BlockSpec((1, Cout, Ho * Wo), lambda n: (n, 0, 0)),
        compiler_params=pltpu.CompilerParams(
            dimension_semantics=("parallel",)),
    )(*args)


# ----------------------------------------------------------------------------
# parameters (xavier_uniform init, im2col bf16 weight layout)
# ----------------------------------------------------------------------------
def _xavier_conv(key, cin, cout, k=3):
    fan_in = cin * k * k
    fan_out = cout * k * k
    bound = math.sqrt(6.0 / (fan_in + fan_out))
    w = jax.random.uniform(key, (k, k, cin, cout), jnp.float32, -bound, bound)
    # im2col layout (Cout, 9*Cin): tap-major (t = kh*3 + kw), channel-minor.
    wk = jnp.transpose(w.reshape(k * k, cin, cout), (2, 0, 1)).reshape(
        cout, k * k * cin)
    return wk.astype(jnp.bfloat16), jnp.zeros((cout, 1), jnp.float32)


def init_params(key, in_ch, in_size, channel_and_blocks):
    params = []
    ch = in_ch
    H, W = in_size
    for out_ch, num_blocks in channel_and_blocks:
        pad1, _ = same_padding((H, W), 3, [1, 1])
        assert pad1 == (1, 1, 1, 1)             # 3x3 stride-1 SAME padding
        key, k0 = jax.random.split(key)
        wk0, b0 = _xavier_conv(k0, ch, out_ch)
        wkb, bb = [], []
        for _ in range(num_blocks):
            key, k1, k2 = jax.random.split(key, 3)
            w1, bb1 = _xavier_conv(k1, out_ch, out_ch)
            w2, bb2 = _xavier_conv(k2, out_ch, out_ch)
            wkb += [w1, w2]
            bb += [bb1, bb2]
        consts, (Ho, Wo) = _stage_constants(H, W)
        params.append(dict(
            in_size=(H, W), out_size=(Ho, Wo), cout=out_ch,
            num_blocks=num_blocks,
            wk0=wk0, b0=b0,
            wkb=jnp.stack(wkb, axis=0),          # (2*nb, Cout, 9*Cout) bf16
            bb=jnp.stack(bb, axis=0),            # (2*nb, Cout, 1) f32
            **consts))
        H, W = Ho, Wo
        ch = out_ch
    return params


# ----------------------------------------------------------------------------
# full forward pass (NCHW in, NCHW out, like the PyTorch module)
# ----------------------------------------------------------------------------
def resnet_forward(x_nchw, params):
    N, C, H, W = x_nchw.shape
    x = x_nchw.reshape(N, C, H * W).astype(jnp.float32)   # flatten spatial
    n_stages = len(params)
    for si, stage in enumerate(params):
        x = resnet_stage(x, stage, final_relu=(si == n_stages - 1))
    Ho, Wo = params[-1]["out_size"]
    Cl = params[-1]["cout"]
    return x.reshape(N, Cl, Ho, Wo)


if __name__ == "__main__":
    key = jax.random.PRNGKey(0)
    k_x, k_p = jax.random.split(key)

    # Small shapes consistent with the module: N=2, C=4, 16x16 input.
    x = jax.random.normal(k_x, (2, 4, 16, 16), jnp.float32)
    params = init_params(k_p, in_ch=4, in_size=(16, 16),
                         channel_and_blocks=[(16, 2), (32, 2), (32, 2)])

    fwd = jax.jit(lambda xin: resnet_forward(xin, params))
    out = jax.block_until_ready(fwd(x))

    assert out.shape == (2, 32, 2, 2), out.shape
    assert bool(jnp.all(out >= 0.0))        # final ReLU
    assert bool(jnp.all(jnp.isfinite(out)))
    print("KERNEL_OK")
</pallas_src>

<mosaic_0001>
module attributes {stable_mosaic.version = 11 : i64} {
  func.func @kernel(%arg0: i32, %arg1: memref<1x4x256xf32, #tpu.memory_space<vmem>>, %arg2: memref<1x286xf32, #tpu.memory_space<vmem>>, %arg3: memref<16x36xbf16, #tpu.memory_space<vmem>>, %arg4: memref<16x1xf32, #tpu.memory_space<vmem>>, %arg5: memref<256x324xbf16, #tpu.memory_space<vmem>>, %arg6: memref<286x100xbf16, #tpu.memory_space<vmem>>, %arg7: memref<4x16x144xbf16, #tpu.memory_space<vmem>>, %arg8: memref<4x16x1xf32, #tpu.memory_space<vmem>>, %arg9: memref<78x100xbf16, #tpu.memory_space<vmem>>, %arg10: memref<100x64xbf16, #tpu.memory_space<vmem>>, %arg11: memref<1x16x64xf32, #tpu.memory_space<vmem>>) attributes {dimension_semantics = [#tpu.dimension_semantics<parallel>], iteration_bounds = array<i64: 2>, scalar_prefetch = 0 : i64, scratch_operands = 0 : i64, tpu.core_type = #tpu.core_type<tc>, window_params = [{transform_indices = @transform_0, window_bounds = array<i64: 1, 4, 256>}, {pipeline_mode = #tpu.pipeline_mode<synchronous>, transform_indices = @transform_1, window_bounds = array<i64: 1, 286>}, {pipeline_mode = #tpu.pipeline_mode<synchronous>, transform_indices = @transform_2, window_bounds = array<i64: 16, 36>}, {pipeline_mode = #tpu.pipeline_mode<synchronous>, transform_indices = @transform_3, window_bounds = array<i64: 16, 1>}, {pipeline_mode = #tpu.pipeline_mode<synchronous>, transform_indices = @transform_4, window_bounds = array<i64: 256, 324>}, {pipeline_mode = #tpu.pipeline_mode<synchronous>, transform_indices = @transform_5, window_bounds = array<i64: 286, 100>}, {pipeline_mode = #tpu.pipeline_mode<synchronous>, transform_indices = @transform_6, window_bounds = array<i64: 4, 16, 144>}, {pipeline_mode = #tpu.pipeline_mode<synchronous>, transform_indices = @transform_7, window_bounds = array<i64: 4, 16, 1>}, {pipeline_mode = #tpu.pipeline_mode<synchronous>, transform_indices = @transform_8, window_bounds = array<i64: 78, 100>}, {pipeline_mode = #tpu.pipeline_mode<synchronous>, transform_indices = @transform_9, window_bounds = array<i64: 100, 64>}, {transform_indices = @transform_10, window_bounds = array<i64: 1, 16, 64>}]} {
    %c0 = arith.constant 0 : index
    %c0_0 = arith.constant 0 : index
    %c0_1 = arith.constant 0 : index
    %0 = vector.load %arg1[%c0, %c0_0, %c0_1] : memref<1x4x256xf32, #tpu.memory_space<vmem>>, vector<1x4x256xf32>
    %1 = vector.shape_cast %0 : vector<1x4x256xf32> to vector<4x256xf32>
    %2 = arith.truncf %1 : vector<4x256xf32> to vector<4x256xbf16>
    %c0_2 = arith.constant 0 : index
    %c0_3 = arith.constant 0 : index
    %3 = vector.load %arg5[%c0_2, %c0_3] : memref<256x324xbf16, #tpu.memory_space<vmem>>, vector<256x324xbf16>
    %cst = arith.constant dense<0.000000e+00> : vector<4x324xf32>
    %4 = tpu.matmul %2, %3, %cst {dimension_numbers = #tpu.dot_dimension_numbers<[1], [0], [0], [1], [0, 0, 1, 1], [], []>} : vector<4x256xbf16>, vector<256x324xbf16>, vector<4x324xf32> -> vector<4x324xf32>
    %5 = arith.truncf %4 : vector<4x324xf32> to vector<4x324xbf16>
    %6 = vector.extract_strided_slice %5 {offsets = [0, 0], sizes = [4, 286], strides = [1, 1]} : vector<4x324xbf16> to vector<4x286xbf16>
    %7 = vector.extract_strided_slice %5 {offsets = [0, 1], sizes = [4, 286], strides = [1, 1]} : vector<4x324xbf16> to vector<4x286xbf16>
    %8 = vector.extract_strided_slice %5 {offsets = [0, 2], sizes = [4, 286], strides = [1, 1]} : vector<4x324xbf16> to vector<4x286xbf16>
    %9 = vector.extract_strided_slice %5 {offsets = [0, 18], sizes = [4, 286], strides = [1, 1]} : vector<4x324xbf16> to vector<4x286xbf16>
    %10 = vector.extract_strided_slice %5 {offsets = [0, 19], sizes = [4, 286], strides = [1, 1]} : vector<4x324xbf16> to vector<4x286xbf16>
    %11 = vector.extract_strided_slice %5 {offsets = [0, 20], sizes = [4, 286], strides = [1, 1]} : vector<4x324xbf16> to vector<4x286xbf16>
    %12 = vector.extract_strided_slice %5 {offsets = [0, 36], sizes = [4, 286], strides = [1, 1]} : vector<4x324xbf16> to vector<4x286xbf16>
    %13 = vector.extract_strided_slice %5 {offsets = [0, 37], sizes = [4, 286], strides = [1, 1]} : vector<4x324xbf16> to vector<4x286xbf16>
    %14 = vector.extract_strided_slice %5 {offsets = [0, 38], sizes = [4, 286], strides = [1, 1]} : vector<4x324xbf16> to vector<4x286xbf16>
    %15 = tpu.concatenate %6, %7, %8, %9, %10, %11, %12, %13, %14 in 0 : vector<4x286xbf16>, vector<4x286xbf16>, vector<4x286xbf16>, vector<4x286xbf16>, vector<4x286xbf16>, vector<4x286xbf16>, vector<4x286xbf16>, vector<4x286xbf16>, vector<4x286xbf16> -> vector<36x286xbf16>
    %c0_4 = arith.constant 0 : index
    %c0_5 = arith.constant 0 : index
    %16 = vector.load %arg3[%c0_4, %c0_5] : memref<16x36xbf16, #tpu.memory_space<vmem>>, vector<16x36xbf16>
    %cst_6 = arith.constant dense<0.000000e+00> : vector<16x286xf32>
    %17 = tpu.matmul %16, %15, %cst_6 {dimension_numbers = #tpu.dot_dimension_numbers<[1], [0], [0], [1], [0, 0, 1, 1], [], []>} : vector<16x36xbf16>, vector<36x286xbf16>, vector<16x286xf32> -> vector<16x286xf32>
    %c0_7 = arith.constant 0 : index
    %c0_8 = arith.constant 0 : index
    %18 = vector.load %arg4[%c0_7, %c0_8] : memref<16x1xf32, #tpu.memory_space<vmem>>, vector<16x1xf32>
    %19 = vector.broadcast %18 : vector<16x1xf32> to vector<16x286xf32>
    %20 = arith.addf %17, %19 : vector<16x286xf32>
    %c0_9 = arith.constant 0 : index
    %c0_10 = arith.constant 0 : index
    %21 = vector.load %arg2[%c0_9, %c0_10] : memref<1x286xf32, #tpu.memory_space<vmem>>, vector<1x286xf32>
    %22 = vector.broadcast %21 : vector<1x286xf32> to vector<16x286xf32>
    %23 = arith.mulf %20, %22 : vector<16x286xf32>
    %24 = arith.truncf %23 : vector<16x286xf32> to vector<16x286xbf16>
    %cst_11 = arith.constant 0.000000e+00 : bf16
    %25 = vector.broadcast %cst_11 : bf16 to vector<16x38xbf16>
    %26 = tpu.concatenate %24, %25 in 1 : vector<16x286xbf16>, vector<16x38xbf16> -> vector<16x324xbf16>
    %27 = vector.extract_strided_slice %26 {offsets = [0, 0], sizes = [16, 322], strides = [1, 1]} : vector<16x324xbf16> to vector<16x322xbf16>
    %28 = vector.extract_strided_slice %26 {offsets = [0, 1], sizes = [16, 322], strides = [1, 1]} : vector<16x324xbf16> to vector<16x322xbf16>
    %29 = arith.maximumf %27, %28 : vector<16x322xbf16>
    %30 = vector.extract_strided_slice %26 {offsets = [0, 2], sizes = [16, 322], strides = [1, 1]} : vector<16x324xbf16> to vector<16x322xbf16>
    %31 = arith.maximumf %29, %30 : vector<16x322xbf16>
    %32 = vector.extract_strided_slice %31 {offsets = [0, 0], sizes = [16, 286], strides = [1, 1]} : vector<16x322xbf16> to vector<16x286xbf16>
    %33 = vector.extract_strided_slice %31 {offsets = [0, 18], sizes = [16, 286], strides = [1, 1]} : vector<16x322xbf16> to vector<16x286xbf16>
    %34 = arith.maximumf %32, %33 : vector<16x286xbf16>
    %35 = vector.extract_strided_slice %31 {offsets = [0, 36], sizes = [16, 286], strides = [1, 1]} : vector<16x322xbf16> to vector<16x286xbf16>
    %36 = arith.maximumf %34, %35 : vector<16x286xbf16>
    %c0_12 = arith.constant 0 : index
    %c0_13 = arith.constant 0 : index
    %37 = vector.load %arg6[%c0_12, %c0_13] : memref<286x100xbf16, #tpu.memory_space<vmem>>, vector<286x100xbf16>
    %cst_14 = arith.constant dense<0.000000e+00> : vector<16x100xf32>
    %38 = tpu.matmul %36, %37, %cst_14 {dimension_numbers = #tpu.dot_dimension_numbers<[1], [0], [0], [1], [0, 0, 1, 1], [], []>} : vector<16x286xbf16>, vector<286x100xbf16>, vector<16x100xf32> -> vector<16x100xf32>
    %39 = arith.truncf %38 : vector<16x100xf32> to vector<16x100xbf16>
    %c0_15 = arith.constant 0 : index
    %c0_16 = arith.constant 0 : index
    %c0_17 = arith.constant 0 : index
    %40 = vector.load %arg7[%c0_15, %c0_16, %c0_17] : memref<4x16x144xbf16, #tpu.memory_space<vmem>>, vector<1x16x144xbf16>
    %41 = vector.shape_cast %40 : vector<1x16x144xbf16> to vector<16x144xbf16>
    %c1 = arith.constant 1 : index
    %c0_18 = arith.constant 0 : index
    %c0_19 = arith.constant 0 : index
    %42 = vector.load %arg7[%c1, %c0_18, %c0_19] : memref<4x16x144xbf16, #tpu.memory_space<vmem>>, vector<1x16x144xbf16>
    %43 = vector.shape_cast %42 : vector<1x16x144xbf16> to vector<16x144xbf16>
    %c0_20 = arith.constant 0 : index
    %c0_21 = arith.constant 0 : index
    %c0_22 = arith.constant 0 : index
    %44 = vector.load %arg8[%c0_20, %c0_21, %c0_22] : memref<4x16x1xf32, #tpu.memory_space<vmem>>, vector<1x16x1xf32>
    %45 = vector.shape_cast %44 : vector<1x16x1xf32> to vector<16x1xf32>
    %c1_23 = arith.constant 1 : index
    %c0_24 = arith.constant 0 : index
    %c0_25 = arith.constant 0 : index
    %46 = vector.load %arg8[%c1_23, %c0_24, %c0_25] : memref<4x16x1xf32, #tpu.memory_space<vmem>>, vector<1x16x1xf32>
    %47 = vector.shape_cast %46 : vector<1x16x1xf32> to vector<16x1xf32>
    %cst_26 = arith.constant 0.000000e+00 : bf16
    %48 = vector.broadcast %cst_26 : bf16 to vector<16x100xbf16>
    %49 = arith.maximumf %39, %48 : vector<16x100xbf16>
    %50 = vector.extract_strided_slice %49 {offsets = [0, 0], sizes = [16, 78], strides = [1, 1]} : vector<16x100xbf16> to vector<16x78xbf16>
    %51 = vector.extract_strided_slice %49 {offsets = [0, 1], sizes = [16, 78], strides = [1, 1]} : vector<16x100xbf16> to vector<16x78xbf16>
    %52 = vector.extract_strided_slice %49 {offsets = [0, 2], sizes = [16, 78], strides = [1, 1]} : vector<16x100xbf16> to vector<16x78xbf16>
    %53 = vector.extract_strided_slice %49 {offsets = [0, 10], sizes = [16, 78], strides = [1, 1]} : vector<16x100xbf16> to vector<16x78xbf16>
    %54 = vector.extract_strided_slice %49 {offsets = [0, 11], sizes = [16, 78], strides = [1, 1]} : vector<16x100xbf16> to vector<16x78xbf16>
    %55 = vector.extract_strided_slice %49 {offsets = [0, 12], sizes = [16, 78], strides = [1, 1]} : vector<16x100xbf16> to vector<16x78xbf16>
    %56 = vector.extract_strided_slice %49 {offsets = [0, 20], sizes = [16, 78], strides = [1, 1]} : vector<16x100xbf16> to vector<16x78xbf16>
    %57 = vector.extract_strided_slice %49 {offsets = [0, 21], sizes = [16, 78], strides = [1, 1]} : vector<16x100xbf16> to vector<16x78xbf16>
    %58 = vector.extract_strided_slice %49 {offsets = [0, 22], sizes = [16, 78], strides = [1, 1]} : vector<16x100xbf16> to vector<16x78xbf16>
    %59 = tpu.concatenate %50, %51, %52, %53, %54, %55, %56, %57, %58 in 0 : vector<16x78xbf16>, vector<16x78xbf16>, vector<16x78xbf16>, vector<16x78xbf16>, vector<16x78xbf16>, vector<16x78xbf16>, vector<16x78xbf16>, vector<16x78xbf16>, vector<16x78xbf16> -> vector<144x78xbf16>
    %cst_27 = arith.constant dense<0.000000e+00> : vector<16x78xf32>
    %60 = tpu.matmul %41, %59, %cst_27 {dimension_numbers = #tpu.dot_dimension_numbers<[1], [0], [0], [1], [0, 0, 1, 1], [], []>} : vector<16x144xbf16>, vector<144x78xbf16>, vector<16x78xf32> -> vector<16x78xf32>
    %61 = vector.broadcast %45 : vector<16x1xf32> to vector<16x78xf32>
    %62 = arith.addf %60, %61 : vector<16x78xf32>
    %cst_28 = arith.constant 0.000000e+00 : f32
    %63 = vector.broadcast %cst_28 : f32 to vector<16x78xf32>
    %64 = arith.maximumf %62, %63 : vector<16x78xf32>
    %65 = arith.truncf %64 : vector<16x78xf32> to vector<16x78xbf16>
    %c0_29 = arith.constant 0 : index
    %c0_30 = arith.constant 0 : index
    %66 = vector.load %arg9[%c0_29, %c0_30] : memref<78x100xbf16, #tpu.memory_space<vmem>>, vector<78x100xbf16>
    %cst_31 = arith.constant dense<0.000000e+00> : vector<16x100xf32>
    %67 = tpu.matmul %65, %66, %cst_31 {dimension_numbers = #tpu.dot_dimension_numbers<[1], [0], [0], [1], [0, 0, 1, 1], [], []>} : vector<16x78xbf16>, vector<78x100xbf16>, vector<16x100xf32> -> vector<16x100xf32>
    %68 = arith.truncf %67 : vector<16x100xf32> to vector<16x100xbf16>
    %69 = vector.extract_strided_slice %68 {offsets = [0, 0], sizes = [16, 78], strides = [1, 1]} : vector<16x100xbf16> to vector<16x78xbf16>
    %70 = vector.extract_strided_slice %68 {offsets = [0, 1], sizes = [16, 78], strides = [1, 1]} : vector<16x100xbf16> to vector<16x78xbf16>
    %71 = vector.extract_strided_slice %68 {offsets = [0, 2], sizes = [16, 78], strides = [1, 1]} : vector<16x100xbf16> to vector<16x78xbf16>
    %72 = vector.extract_strided_slice %68 {offsets = [0, 10], sizes = [16, 78], strides = [1, 1]} : vector<16x100xbf16> to vector<16x78xbf16>
    %73 = vector.extract_strided_slice %68 {offsets = [0, 11], sizes = [16, 78], strides = [1, 1]} : vector<16x100xbf16> to vector<16x78xbf16>
    %74 = vector.extract_strided_slice %68 {offsets = [0, 12], sizes = [16, 78], strides = [1, 1]} : vector<16x100xbf16> to vector<16x78xbf16>
    %75 = vector.extract_strided_slice %68 {offsets = [0, 20], sizes = [16, 78], strides = [1, 1]} : vector<16x100xbf16> to vector<16x78xbf16>
    %76 = vector.extract_strided_slice %68 {offsets = [0, 21], sizes = [16, 78], strides = [1, 1]} : vector<16x100xbf16> to vector<16x78xbf16>
    %77 = vector.extract_strided_slice %68 {offsets = [0, 22], sizes = [16, 78], strides = [1, 1]} : vector<16x100xbf16> to vector<16x78xbf16>
    %78 = tpu.concatenate %69, %70, %71, %72, %73, %74, %75, %76, %77 in 0 : vector<16x78xbf16>, vector<16x78xbf16>, vector<16x78xbf16>, vector<16x78xbf16>, vector<16x78xbf16>, vector<16x78xbf16>, vector<16x78xbf16>, vector<16x78xbf16>, vector<16x78xbf16> -> vector<144x78xbf16>
    %cst_32 = arith.constant dense<0.000000e+00> : vector<16x78xf32>
    %79 = tpu.matmul %43, %78, %cst_32 {dimension_numbers = #tpu.dot_dimension_numbers<[1], [0], [0], [1], [0, 0, 1, 1], [], []>} : vector<16x144xbf16>, vector<144x78xbf16>, vector<16x78xf32> -> vector<16x78xf32>
    %80 = vector.broadcast %47 : vector<16x1xf32> to vector<16x78xf32>
    %81 = arith.addf %79, %80 : vector<16x78xf32>
    %82 = vector.extract_strided_slice %39 {offsets = [0, 11], sizes = [16, 78], strides = [1, 1]} : vector<16x100xbf16> to vector<16x78xbf16>
    %83 = arith.extf %82 : vector<16x78xbf16> to vector<16x78xf32>
    %84 = arith.addf %81, %83 : vector<16x78xf32>
    %85 = arith.truncf %84 : vector<16x78xf32> to vector<16x78xbf16>
    %c0_33 = arith.constant 0 : index
    %c0_34 = arith.constant 0 : index
    %86 = vector.load %arg9[%c0_33, %c0_34] : memref<78x100xbf16, #tpu.memory_space<vmem>>, vector<78x100xbf16>
    %cst_35 = arith.constant dense<0.000000e+00> : vector<16x100xf32>
    %87 = tpu.matmul %85, %86, %cst_35 {dimension_numbers = #tpu.dot_dimension_numbers<[1], [0], [0], [1], [0, 0, 1, 1], [], []>} : vector<16x78xbf16>, vector<78x100xbf16>, vector<16x100xf32> -> vector<16x100xf32>
    %88 = arith.truncf %87 : vector<16x100xf32> to vector<16x100xbf16>
    %c2 = arith.constant 2 : index
    %c0_36 = arith.constant 0 : index
    %c0_37 = arith.constant 0 : index
    %89 = vector.load %arg7[%c2, %c0_36, %c0_37] : memref<4x16x144xbf16, #tpu.memory_space<vmem>>, vector<1x16x144xbf16>
    %90 = vector.shape_cast %89 : vector<1x16x144xbf16> to vector<16x144xbf16>
    %c3 = arith.constant 3 : index
    %c0_38 = arith.constant 0 : index
    %c0_39 = arith.constant 0 : index
    %91 = vector.load %arg7[%c3, %c0_38, %c0_39] : memref<4x16x144xbf16, #tpu.memory_space<vmem>>, vector<1x16x144xbf16>
    %92 = vector.shape_cast %91 : vector<1x16x144xbf16> to vector<16x144xbf16>
    %c2_40 = arith.constant 2 : index
    %c0_41 = arith.constant 0 : index
    %c0_42 = arith.constant 0 : index
    %93 = vector.load %arg8[%c2_40, %c0_41, %c0_42] : memref<4x16x1xf32, #tpu.memory_space<vmem>>, vector<1x16x1xf32>
    %94 = vector.shape_cast %93 : vector<1x16x1xf32> to vector<16x1xf32>
    %c3_43 = arith.constant 3 : index
    %c0_44 = arith.constant 0 : index
    %c0_45 = arith.constant 0 : index
    %95 = vector.load %arg8[%c3_43, %c0_44, %c0_45] : memref<4x16x1xf32, #tpu.memory_space<vmem>>, vector<1x16x1xf32>
    %96 = vector.shape_cast %95 : vector<1x16x1xf32> to vector<16x1xf32>
    %cst_46 = arith.constant 0.000000e+00 : bf16
    %97 = vector.broadcast %cst_46 : bf16 to vector<16x100xbf16>
    %98 = arith.maximumf %88, %97 : vector<16x100xbf16>
    %99 = vector.extract_strided_slice %98 {offsets = [0, 0], sizes = [16, 78], strides = [1, 1]} : vector<16x100xbf16> to vector<16x78xbf16>
    %100 = vector.extract_strided_slice %98 {offsets = [0, 1], sizes = [16, 78], strides = [1, 1]} : vector<16x100xbf16> to vector<16x78xbf16>
    %101 = vector.extract_strided_slice %98 {offsets = [0, 2], sizes = [16, 78], strides = [1, 1]} : vector<16x100xbf16> to vector<16x78xbf16>
    %102 = vector.extract_strided_slice %98 {offsets = [0, 10], sizes = [16, 78], strides = [1, 1]} : vector<16x100xbf16> to vector<16x78xbf16>
    %103 = vector.extract_strided_slice %98 {offsets = [0, 11], sizes = [16, 78], strides = [1, 1]} : vector<16x100xbf16> to vector<16x78xbf16>
    %104 = vector.extract_strided_slice %98 {offsets = [0, 12], sizes = [16, 78], strides = [1, 1]} : vector<16x100xbf16> to vector<16x78xbf16>
    %105 = vector.extract_strided_slice %98 {offsets = [0, 20], sizes = [16, 78], strides = [1, 1]} : vector<16x100xbf16> to vector<16x78xbf16>
    %106 = vector.extract_strided_slice %98 {offsets = [0, 21], sizes = [16, 78], strides = [1, 1]} : vector<16x100xbf16> to vector<16x78xbf16>
    %107 = vector.extract_strided_slice %98 {offsets = [0, 22], sizes = [16, 78], strides = [1, 1]} : vector<16x100xbf16> to vector<16x78xbf16>
    %108 = tpu.concatenate %99, %100, %101, %102, %103, %104, %105, %106, %107 in 0 : vector<16x78xbf16>, vector<16x78xbf16>, vector<16x78xbf16>, vector<16x78xbf16>, vector<16x78xbf16>, vector<16x78xbf16>, vector<16x78xbf16>, vector<16x78xbf16>, vector<16x78xbf16> -> vector<144x78xbf16>
    %cst_47 = arith.constant dense<0.000000e+00> : vector<16x78xf32>
    %109 = tpu.matmul %90, %108, %cst_47 {dimension_numbers = #tpu.dot_dimension_numbers<[1], [0], [0], [1], [0, 0, 1, 1], [], []>} : vector<16x144xbf16>, vector<144x78xbf16>, vector<16x78xf32> -> vector<16x78xf32>
    %110 = vector.broadcast %94 : vector<16x1xf32> to vector<16x78xf32>
    %111 = arith.addf %109, %110 : vector<16x78xf32>
    %cst_48 = arith.constant 0.000000e+00 : f32
    %112 = vector.broadcast %cst_48 : f32 to vector<16x78xf32>
    %113 = arith.maximumf %111, %112 : vector<16x78xf32>
    %114 = arith.truncf %113 : vector<16x78xf32> to vector<16x78xbf16>
    %c0_49 = arith.constant 0 : index
    %c0_50 = arith.constant 0 : index
    %115 = vector.load %arg9[%c0_49, %c0_50] : memref<78x100xbf16, #tpu.memory_space<vmem>>, vector<78x100xbf16>
    %cst_51 = arith.constant dense<0.000000e+00> : vector<16x100xf32>
    %116 = tpu.matmul %114, %115, %cst_51 {dimension_numbers = #tpu.dot_dimension_numbers<[1], [0], [0], [1], [0, 0, 1, 1], [], []>} : vector<16x78xbf16>, vector<78x100xbf16>, vector<16x100xf32> -> vector<16x100xf32>
    %117 = arith.truncf %116 : vector<16x100xf32> to vector<16x100xbf16>
    %118 = vector.extract_strided_slice %117 {offsets = [0, 0], sizes = [16, 78], strides = [1, 1]} : vector<16x100xbf16> to vector<16x78xbf16>
    %119 = vector.extract_strided_slice %117 {offsets = [0, 1], sizes = [16, 78], strides = [1, 1]} : vector<16x100xbf16> to vector<16x78xbf16>
    %120 = vector.extract_strided_slice %117 {offsets = [0, 2], sizes = [16, 78], strides = [1, 1]} : vector<16x100xbf16> to vector<16x78xbf16>
    %121 = vector.extract_strided_slice %117 {offsets = [0, 10], sizes = [16, 78], strides = [1, 1]} : vector<16x100xbf16> to vector<16x78xbf16>
    %122 = vector.extract_strided_slice %117 {offsets = [0, 11], sizes = [16, 78], strides = [1, 1]} : vector<16x100xbf16> to vector<16x78xbf16>
    %123 = vector.extract_strided_slice %117 {offsets = [0, 12], sizes = [16, 78], strides = [1, 1]} : vector<16x100xbf16> to vector<16x78xbf16>
    %124 = vector.extract_strided_slice %117 {offsets = [0, 20], sizes = [16, 78], strides = [1, 1]} : vector<16x100xbf16> to vector<16x78xbf16>
    %125 = vector.extract_strided_slice %117 {offsets = [0, 21], sizes = [16, 78], strides = [1, 1]} : vector<16x100xbf16> to vector<16x78xbf16>
    %126 = vector.extract_strided_slice %117 {offsets = [0, 22], sizes = [16, 78], strides = [1, 1]} : vector<16x100xbf16> to vector<16x78xbf16>
    %127 = tpu.concatenate %118, %119, %120, %121, %122, %123, %124, %125, %126 in 0 : vector<16x78xbf16>, vector<16x78xbf16>, vector<16x78xbf16>, vector<16x78xbf16>, vector<16x78xbf16>, vector<16x78xbf16>, vector<16x78xbf16>, vector<16x78xbf16>, vector<16x78xbf16> -> vector<144x78xbf16>
    %cst_52 = arith.constant dense<0.000000e+00> : vector<16x78xf32>
    %128 = tpu.matmul %92, %127, %cst_52 {dimension_numbers = #tpu.dot_dimension_numbers<[1], [0], [0], [1], [0, 0, 1, 1], [], []>} : vector<16x144xbf16>, vector<144x78xbf16>, vector<16x78xf32> -> vector<16x78xf32>
    %129 = vector.broadcast %96 : vector<16x1xf32> to vector<16x78xf32>
    %130 = arith.addf %128, %129 : vector<16x78xf32>
    %131 = vector.extract_strided_slice %88 {offsets = [0, 11], sizes = [16, 78], strides = [1, 1]} : vector<16x100xbf16> to vector<16x78xbf16>
    %132 = arith.extf %131 : vector<16x78xbf16> to vector<16x78xf32>
    %133 = arith.addf %130, %132 : vector<16x78xf32>
    %134 = arith.truncf %133 : vector<16x78xf32> to vector<16x78xbf16>
    %c0_53 = arith.constant 0 : index
    %c0_54 = arith.constant 0 : index
    %135 = vector.load %arg9[%c0_53, %c0_54] : memref<78x100xbf16, #tpu.memory_space<vmem>>, vector<78x100xbf16>
    %cst_55 = arith.constant dense<0.000000e+00> : vector<16x100xf32>
    %136 = tpu.matmul %134, %135, %cst_55 {dimension_numbers = #tpu.dot_dimension_numbers<[1], [0], [0], [1], [0, 0, 1, 1], [], []>} : vector<16x78xbf16>, vector<78x100xbf16>, vector<16x100xf32> -> vector<16x100xf32>
    %137 = arith.truncf %136 : vector<16x100xf32> to vector<16x100xbf16>
    %c0_56 = arith.constant 0 : index
    %c0_57 = arith.constant 0 : index
    %138 = vector.load %arg10[%c0_56, %c0_57] : memref<100x64xbf16, #tpu.memory_space<vmem>>, vector<100x64xbf16>
    %cst_58 = arith.constant dense<0.000000e+00> : vector<16x64xf32>
    %139 = tpu.matmul %137, %138, %cst_58 {dimension_numbers = #tpu.dot_dimension_numbers<[1], [0], [0], [1], [0, 0, 1, 1], [], []>} : vector<16x100xbf16>, vector<100x64xbf16>, vector<16x64xf32> -> vector<16x64xf32>
    %c0_59 = arith.constant 0 : index
    %c0_60 = arith.constant 0 : index
    %c0_61 = arith.constant 0 : index
    %140 = vector.load %arg11[%c0_59, %c0_60, %c0_61] : memref<1x16x64xf32, #tpu.memory_space<vmem>>, vector<1x16x64xf32>
    %141 = vector.shape_cast %140 : vector<1x16x64xf32> to vector<16x64xf32>
    %142 = vector.shape_cast %139 : vector<16x64xf32> to vector<1x16x64xf32>
    tpu.vector_store %arg11[%c0_59, %c0_60, %c0_61], %142 {strides = array<i32>} : memref<1x16x64xf32, #tpu.memory_space<vmem>>, vector<1x16x64xf32>,
    return
  }
  func.func @transform_0(%arg0: i32) -> (i32, i32, i32) {
    %c0_i32 = arith.constant 0 : i32
    %c0_i32_0 = arith.constant 0 : i32
    %c0_i32_1 = arith.constant 0 : i32
    return %arg0, %c0_i32, %c0_i32_0 : i32, i32, i32
  }
  func.func @transform_1(%arg0: i32) -> (i32, i32) {
    %c0_i32 = arith.constant 0 : i32
    %c0_i32_0 = arith.constant 0 : i32
    %c0_i32_1 = arith.constant 0 : i32
    return %c0_i32, %c0_i32_0 : i32, i32
  }
  func.func @transform_2(%arg0: i32) -> (i32, i32) {
    %c0_i32 = arith.constant 0 : i32
    %c0_i32_0 = arith.constant 0 : i32
    %c0_i32_1 = arith.constant 0 : i32
    return %c0_i32, %c0_i32_0 : i32, i32
  }
  func.func @transform_3(%arg0: i32) -> (i32, i32) {
    %c0_i32 = arith.constant 0 : i32
    %c0_i32_0 = arith.constant 0 : i32
    %c0_i32_1 = arith.constant 0 : i32
    return %c0_i32, %c0_i32_0 : i32, i32
  }
  func.func @transform_4(%arg0: i32) -> (i32, i32) {
    %c0_i32 = arith.constant 0 : i32
    %c0_i32_0 = arith.constant 0 : i32
    %c0_i32_1 = arith.constant 0 : i32
    return %c0_i32, %c0_i32_0 : i32, i32
  }
  func.func @transform_5(%arg0: i32) -> (i32, i32) {
    %c0_i32 = arith.constant 0 : i32
    %c0_i32_0 = arith.constant 0 : i32
    %c0_i32_1 = arith.constant 0 : i32
    return %c0_i32, %c0_i32_0 : i32, i32
  }
  func.func @transform_6(%arg0: i32) -> (i32, i32, i32) {
    %c0_i32 = arith.constant 0 : i32
    %c0_i32_0 = arith.constant 0 : i32
    %c0_i32_1 = arith.constant 0 : i32
    %c0_i32_2 = arith.constant 0 : i32
    return %c0_i32, %c0_i32_0, %c0_i32_1 : i32, i32, i32
  }
  func.func @transform_7(%arg0: i32) -> (i32, i32, i32) {
    %c0_i32 = arith.constant 0 : i32
    %c0_i32_0 = arith.constant 0 : i32
    %c0_i32_1 = arith.constant 0 : i32
    %c0_i32_2 = arith.constant 0 : i32
    return %c0_i32, %c0_i32_0, %c0_i32_1 : i32, i32, i32
  }
  func.func @transform_8(%arg0: i32) -> (i32, i32) {
    %c0_i32 = arith.constant 0 : i32
    %c0_i32_0 = arith.constant 0 : i32
    %c0_i32_1 = arith.constant 0 : i32
    return %c0_i32, %c0_i32_0 : i32, i32
  }
  func.func @transform_9(%arg0: i32) -> (i32, i32) {
    %c0_i32 = arith.constant 0 : i32
    %c0_i32_0 = arith.constant 0 : i32
    %c0_i32_1 = arith.constant 0 : i32
    return %c0_i32, %c0_i32_0 : i32, i32
  }
  func.func @transform_10(%arg0: i32) -> (i32, i32, i32) {
    %c0_i32 = arith.constant 0 : i32
    %c0_i32_0 = arith.constant 0 : i32
    %c0_i32_1 = arith.constant 0 : i32
    return %arg0, %c0_i32, %c0_i32_0 : i32, i32, i32
  }
}

module attributes {stable_mosaic.version = 11 : i64} {
  func.func @kernel(%arg0: i32, %arg1: memref<1x16x64xf32, #tpu.memory_space<vmem>>, %arg2: memref<1x78xf32, #tpu.memory_space<vmem>>, %arg3: memref<32x144xbf16, #tpu.memory_space<vmem>>, %arg4: memref<32x1xf32, #tpu.memory_space<vmem>>, %arg5: memref<64x100xbf16, #tpu.memory_space<vmem>>, %arg6: memref<78x36xbf16, #tpu.memory_space<vmem>>, %arg7: memref<4x32x288xbf16, #tpu.memory_space<vmem>>, %arg8: memref<4x32x1xf32, #tpu.memory_space<vmem>>, %arg9: memref<22x36xbf16, #tpu.memory_space<vmem>>, %arg10: memref<36x16xbf16, #tpu.memory_space<vmem>>, %arg11: memref<1x32x16xf32, #tpu.memory_space<vmem>>) attributes {dimension_semantics = [#tpu.dimension_semantics<parallel>], iteration_bounds = array<i64: 2>, scalar_prefetch = 0 : i64, scratch_operands = 0 : i64, tpu.core_type = #tpu.core_type<tc>, window_params = [{transform_indices = @transform_0, window_bounds = array<i64: 1, 16, 64>}, {pipeline_mode = #tpu.pipeline_mode<synchronous>, transform_indices = @transform_1, window_bounds = array<i64: 1, 78>}, {pipeline_mode = #tpu.pipeline_mode<synchronous>, transform_indices = @transform_2, window_bounds = array<i64: 32, 144>}, {pipeline_mode = #tpu.pipeline_mode<synchronous>, transform_indices = @transform_3, window_bounds = array<i64: 32, 1>}, {pipeline_mode = #tpu.pipeline_mode<synchronous>, transform_indices = @transform_4, window_bounds = array<i64: 64, 100>}, {pipeline_mode = #tpu.pipeline_mode<synchronous>, transform_indices = @transform_5, window_bounds = array<i64: 78, 36>}, {pipeline_mode = #tpu.pipeline_mode<synchronous>, transform_indices = @transform_6, window_bounds = array<i64: 4, 32, 288>}, {pipeline_mode = #tpu.pipeline_mode<synchronous>, transform_indices = @transform_7, window_bounds = array<i64: 4, 32, 1>}, {pipeline_mode = #tpu.pipeline_mode<synchronous>, transform_indices = @transform_8, window_bounds = array<i64: 22, 36>}, {pipeline_mode = #tpu.pipeline_mode<synchronous>, transform_indices = @transform_9, window_bounds = array<i64: 36, 16>}, {transform_indices = @transform_10, window_bounds = array<i64: 1, 32, 16>}]} {
    %c0 = arith.constant 0 : index
    %c0_0 = arith.constant 0 : index
    %c0_1 = arith.constant 0 : index
    %0 = vector.load %arg1[%c0, %c0_0, %c0_1] : memref<1x16x64xf32, #tpu.memory_space<vmem>>, vector<1x16x64xf32>
    %1 = vector.shape_cast %0 : vector<1x16x64xf32> to vector<16x64xf32>
    %2 = arith.truncf %1 : vector<16x64xf32> to vector<16x64xbf16>
    %c0_2 = arith.constant 0 : index
    %c0_3 = arith.constant 0 : index
    %3 = vector.load %arg5[%c0_2, %c0_3] : memref<64x100xbf16, #tpu.memory_space<vmem>>, vector<64x100xbf16>
    %cst = arith.constant dense<0.000000e+00> : vector<16x100xf32>
    %4 = tpu.matmul %2, %3, %cst {dimension_numbers = #tpu.dot_dimension_numbers<[1], [0], [0], [1], [0, 0, 1, 1], [], []>} : vector<16x64xbf16>, vector<64x100xbf16>, vector<16x100xf32> -> vector<16x100xf32>
    %5 = arith.truncf %4 : vector<16x100xf32> to vector<16x100xbf16>
    %6 = vector.extract_strided_slice %5 {offsets = [0, 0], sizes = [16, 78], strides = [1, 1]} : vector<16x100xbf16> to vector<16x78xbf16>
    %7 = vector.extract_strided_slice %5 {offsets = [0, 1], sizes = [16, 78], strides = [1, 1]} : vector<16x100xbf16> to vector<16x78xbf16>
    %8 = vector.extract_strided_slice %5 {offsets = [0, 2], sizes = [16, 78], strides = [1, 1]} : vector<16x100xbf16> to vector<16x78xbf16>
    %9 = vector.extract_strided_slice %5 {offsets = [0, 10], sizes = [16, 78], strides = [1, 1]} : vector<16x100xbf16> to vector<16x78xbf16>
    %10 = vector.extract_strided_slice %5 {offsets = [0, 11], sizes = [16, 78], strides = [1, 1]} : vector<16x100xbf16> to vector<16x78xbf16>
    %11 = vector.extract_strided_slice %5 {offsets = [0, 12], sizes = [16, 78], strides = [1, 1]} : vector<16x100xbf16> to vector<16x78xbf16>
    %12 = vector.extract_strided_slice %5 {offsets = [0, 20], sizes = [16, 78], strides = [1, 1]} : vector<16x100xbf16> to vector<16x78xbf16>
    %13 = vector.extract_strided_slice %5 {offsets = [0, 21], sizes = [16, 78], strides = [1, 1]} : vector<16x100xbf16> to vector<16x78xbf16>
    %14 = vector.extract_strided_slice %5 {offsets = [0, 22], sizes = [16, 78], strides = [1, 1]} : vector<16x100xbf16> to vector<16x78xbf16>
    %15 = tpu.concatenate %6, %7, %8, %9, %10, %11, %12, %13, %14 in 0 : vector<16x78xbf16>, vector<16x78xbf16>, vector<16x78xbf16>, vector<16x78xbf16>, vector<16x78xbf16>, vector<16x78xbf16>, vector<16x78xbf16>, vector<16x78xbf16>, vector<16x78xbf16> -> vector<144x78xbf16>
    %c0_4 = arith.constant 0 : index
    %c0_5 = arith.constant 0 : index
    %16 = vector.load %arg3[%c0_4, %c0_5] : memref<32x144xbf16, #tpu.memory_space<vmem>>, vector<32x144xbf16>
    %cst_6 = arith.constant dense<0.000000e+00> : vector<32x78xf32>
    %17 = tpu.matmul %16, %15, %cst_6 {dimension_numbers = #tpu.dot_dimension_numbers<[1], [0], [0], [1], [0, 0, 1, 1], [], []>} : vector<32x144xbf16>, vector<144x78xbf16>, vector<32x78xf32> -> vector<32x78xf32>
    %c0_7 = arith.constant 0 : index
    %c0_8 = arith.constant 0 : index
    %18 = vector.load %arg4[%c0_7, %c0_8] : memref<32x1xf32, #tpu.memory_space<vmem>>, vector<32x1xf32>
    %19 = vector.broadcast %18 : vector<32x1xf32> to vector<32x78xf32>
    %20 = arith.addf %17, %19 : vector<32x78xf32>
    %c0_9 = arith.constant 0 : index
    %c0_10 = arith.constant 0 : index
    %21 = vector.load %arg2[%c0_9, %c0_10] : memref<1x78xf32, #tpu.memory_space<vmem>>, vector<1x78xf32>
    %22 = vector.broadcast %21 : vector<1x78xf32> to vector<32x78xf32>
    %23 = arith.mulf %20, %22 : vector<32x78xf32>
    %24 = arith.truncf %23 : vector<32x78xf32> to vector<32x78xbf16>
    %cst_11 = arith.constant 0.000000e+00 : bf16
    %25 = vector.broadcast %cst_11 : bf16 to vector<32x22xbf16>
    %26 = tpu.concatenate %24, %25 in 1 : vector<32x78xbf16>, vector<32x22xbf16> -> vector<32x100xbf16>
    %27 = vector.extract_strided_slice %26 {offsets = [0, 0], sizes = [32, 98], strides = [1, 1]} : vector<32x100xbf16> to vector<32x98xbf16>
    %28 = vector.extract_strided_slice %26 {offsets = [0, 1], sizes = [32, 98], strides = [1, 1]} : vector<32x100xbf16> to vector<32x98xbf16>
    %29 = arith.maximumf %27, %28 : vector<32x98xbf16>
    %30 = vector.extract_strided_slice %26 {offsets = [0, 2], sizes = [32, 98], strides = [1, 1]} : vector<32x100xbf16> to vector<32x98xbf16>
    %31 = arith.maximumf %29, %30 : vector<32x98xbf16>
    %32 = vector.extract_strided_slice %31 {offsets = [0, 0], sizes = [32, 78], strides = [1, 1]} : vector<32x98xbf16> to vector<32x78xbf16>
    %33 = vector.extract_strided_slice %31 {offsets = [0, 10], sizes = [32, 78], strides = [1, 1]} : vector<32x98xbf16> to vector<32x78xbf16>
    %34 = arith.maximumf %32, %33 : vector<32x78xbf16>
    %35 = vector.extract_strided_slice %31 {offsets = [0, 20], sizes = [32, 78], strides = [1, 1]} : vector<32x98xbf16> to vector<32x78xbf16>
    %36 = arith.maximumf %34, %35 : vector<32x78xbf16>
    %c0_12 = arith.constant 0 : index
    %c0_13 = arith.constant 0 : index
    %37 = vector.load %arg6[%c0_12, %c0_13] : memref<78x36xbf16, #tpu.memory_space<vmem>>, vector<78x36xbf16>
    %cst_14 = arith.constant dense<0.000000e+00> : vector<32x36xf32>
    %38 = tpu.matmul %36, %37, %cst_14 {dimension_numbers = #tpu.dot_dimension_numbers<[1], [0], [0], [1], [0, 0, 1, 1], [], []>} : vector<32x78xbf16>, vector<78x36xbf16>, vector<32x36xf32> -> vector<32x36xf32>
    %39 = arith.truncf %38 : vector<32x36xf32> to vector<32x36xbf16>
    %c0_15 = arith.constant 0 : index
    %c0_16 = arith.constant 0 : index
    %c0_17 = arith.constant 0 : index
    %40 = vector.load %arg7[%c0_15, %c0_16, %c0_17] : memref<4x32x288xbf16, #tpu.memory_space<vmem>>, vector<1x32x288xbf16>
    %41 = vector.shape_cast %40 : vector<1x32x288xbf16> to vector<32x288xbf16>
    %c1 = arith.constant 1 : index
    %c0_18 = arith.constant 0 : index
    %c0_19 = arith.constant 0 : index
    %42 = vector.load %arg7[%c1, %c0_18, %c0_19] : memref<4x32x288xbf16, #tpu.memory_space<vmem>>, vector<1x32x288xbf16>
    %43 = vector.shape_cast %42 : vector<1x32x288xbf16> to vector<32x288xbf16>
    %c0_20 = arith.constant 0 : index
    %c0_21 = arith.constant 0 : index
    %c0_22 = arith.constant 0 : index
    %44 = vector.load %arg8[%c0_20, %c0_21, %c0_22] : memref<4x32x1xf32, #tpu.memory_space<vmem>>, vector<1x32x1xf32>
    %45 = vector.shape_cast %44 : vector<1x32x1xf32> to vector<32x1xf32>
    %c1_23 = arith.constant 1 : index
    %c0_24 = arith.constant 0 : index
    %c0_25 = arith.constant 0 : index
    %46 = vector.load %arg8[%c1_23, %c0_24, %c0_25] : memref<4x32x1xf32, #tpu.memory_space<vmem>>, vector<1x32x1xf32>
    %47 = vector.shape_cast %46 : vector<1x32x1xf32> to vector<32x1xf32>
    %cst_26 = arith.constant 0.000000e+00 : bf16
    %48 = vector.broadcast %cst_26 : bf16 to vector<32x36xbf16>
    %49 = arith.maximumf %39, %48 : vector<32x36xbf16>
    %50 = vector.extract_strided_slice %49 {offsets = [0, 0], sizes = [32, 22], strides = [1, 1]} : vector<32x36xbf16> to vector<32x22xbf16>
    %51 = vector.extract_strided_slice %49 {offsets = [0, 1], sizes = [32, 22], strides = [1, 1]} : vector<32x36xbf16> to vector<32x22xbf16>
    %52 = vector.extract_strided_slice %49 {offsets = [0, 2], sizes = [32, 22], strides = [1, 1]} : vector<32x36xbf16> to vector<32x22xbf16>
    %53 = vector.extract_strided_slice %49 {offsets = [0, 6], sizes = [32, 22], strides = [1, 1]} : vector<32x36xbf16> to vector<32x22xbf16>
    %54 = vector.extract_strided_slice %49 {offsets = [0, 7], sizes = [32, 22], strides = [1, 1]} : vector<32x36xbf16> to vector<32x22xbf16>
    %55 = vector.extract_strided_slice %49 {offsets = [0, 8], sizes = [32, 22], strides = [1, 1]} : vector<32x36xbf16> to vector<32x22xbf16>
    %56 = vector.extract_strided_slice %49 {offsets = [0, 12], sizes = [32, 22], strides = [1, 1]} : vector<32x36xbf16> to vector<32x22xbf16>
    %57 = vector.extract_strided_slice %49 {offsets = [0, 13], sizes = [32, 22], strides = [1, 1]} : vector<32x36xbf16> to vector<32x22xbf16>
    %58 = vector.extract_strided_slice %49 {offsets = [0, 14], sizes = [32, 22], strides = [1, 1]} : vector<32x36xbf16> to vector<32x22xbf16>
    %59 = tpu.concatenate %50, %51, %52, %53, %54, %55, %56, %57, %58 in 0 : vector<32x22xbf16>, vector<32x22xbf16>, vector<32x22xbf16>, vector<32x22xbf16>, vector<32x22xbf16>, vector<32x22xbf16>, vector<32x22xbf16>, vector<32x22xbf16>, vector<32x22xbf16> -> vector<288x22xbf16>
    %cst_27 = arith.constant dense<0.000000e+00> : vector<32x22xf32>
    %60 = tpu.matmul %41, %59, %cst_27 {dimension_numbers = #tpu.dot_dimension_numbers<[1], [0], [0], [1], [0, 0, 1, 1], [], []>} : vector<32x288xbf16>, vector<288x22xbf16>, vector<32x22xf32> -> vector<32x22xf32>
    %61 = vector.broadcast %45 : vector<32x1xf32> to vector<32x22xf32>
    %62 = arith.addf %60, %61 : vector<32x22xf32>
    %cst_28 = arith.constant 0.000000e+00 : f32
    %63 = vector.broadcast %cst_28 : f32 to vector<32x22xf32>
    %64 = arith.maximumf %62, %63 : vector<32x22xf32>
    %65 = arith.truncf %64 : vector<32x22xf32> to vector<32x22xbf16>
    %c0_29 = arith.constant 0 : index
    %c0_30 = arith.constant 0 : index
    %66 = vector.load %arg9[%c0_29, %c0_30] : memref<22x36xbf16, #tpu.memory_space<vmem>>, vector<22x36xbf16>
    %cst_31 = arith.constant dense<0.000000e+00> : vector<32x36xf32>
    %67 = tpu.matmul %65, %66, %cst_31 {dimension_numbers = #tpu.dot_dimension_numbers<[1], [0], [0], [1], [0, 0, 1, 1], [], []>} : vector<32x22xbf16>, vector<22x36xbf16>, vector<32x36xf32> -> vector<32x36xf32>
    %68 = arith.truncf %67 : vector<32x36xf32> to vector<32x36xbf16>
    %69 = vector.extract_strided_slice %68 {offsets = [0, 0], sizes = [32, 22], strides = [1, 1]} : vector<32x36xbf16> to vector<32x22xbf16>
    %70 = vector.extract_strided_slice %68 {offsets = [0, 1], sizes = [32, 22], strides = [1, 1]} : vector<32x36xbf16> to vector<32x22xbf16>
    %71 = vector.extract_strided_slice %68 {offsets = [0, 2], sizes = [32, 22], strides = [1, 1]} : vector<32x36xbf16> to vector<32x22xbf16>
    %72 = vector.extract_strided_slice %68 {offsets = [0, 6], sizes = [32, 22], strides = [1, 1]} : vector<32x36xbf16> to vector<32x22xbf16>
    %73 = vector.extract_strided_slice %68 {offsets = [0, 7], sizes = [32, 22], strides = [1, 1]} : vector<32x36xbf16> to vector<32x22xbf16>
    %74 = vector.extract_strided_slice %68 {offsets = [0, 8], sizes = [32, 22], strides = [1, 1]} : vector<32x36xbf16> to vector<32x22xbf16>
    %75 = vector.extract_strided_slice %68 {offsets = [0, 12], sizes = [32, 22], strides = [1, 1]} : vector<32x36xbf16> to vector<32x22xbf16>
    %76 = vector.extract_strided_slice %68 {offsets = [0, 13], sizes = [32, 22], strides = [1, 1]} : vector<32x36xbf16> to vector<32x22xbf16>
    %77 = vector.extract_strided_slice %68 {offsets = [0, 14], sizes = [32, 22], strides = [1, 1]} : vector<32x36xbf16> to vector<32x22xbf16>
    %78 = tpu.concatenate %69, %70, %71, %72, %73, %74, %75, %76, %77 in 0 : vector<32x22xbf16>, vector<32x22xbf16>, vector<32x22xbf16>, vector<32x22xbf16>, vector<32x22xbf16>, vector<32x22xbf16>, vector<32x22xbf16>, vector<32x22xbf16>, vector<32x22xbf16> -> vector<288x22xbf16>
    %cst_32 = arith.constant dense<0.000000e+00> : vector<32x22xf32>
    %79 = tpu.matmul %43, %78, %cst_32 {dimension_numbers = #tpu.dot_dimension_numbers<[1], [0], [0], [1], [0, 0, 1, 1], [], []>} : vector<32x288xbf16>, vector<288x22xbf16>, vector<32x22xf32> -> vector<32x22xf32>
    %80 = vector.broadcast %47 : vector<32x1xf32> to vector<32x22xf32>
    %81 = arith.addf %79, %80 : vector<32x22xf32>
    %82 = vector.extract_strided_slice %39 {offsets = [0, 7], sizes = [32, 22], strides = [1, 1]} : vector<32x36xbf16> to vector<32x22xbf16>
    %83 = arith.extf %82 : vector<32x22xbf16> to vector<32x22xf32>
    %84 = arith.addf %81, %83 : vector<32x22xf32>
    %85 = arith.truncf %84 : vector<32x22xf32> to vector<32x22xbf16>
    %c0_33 = arith.constant 0 : index
    %c0_34 = arith.constant 0 : index
    %86 = vector.load %arg9[%c0_33, %c0_34] : memref<22x36xbf16, #tpu.memory_space<vmem>>, vector<22x36xbf16>
    %cst_35 = arith.constant dense<0.000000e+00> : vector<32x36xf32>
    %87 = tpu.matmul %85, %86, %cst_35 {dimension_numbers = #tpu.dot_dimension_numbers<[1], [0], [0], [1], [0, 0, 1, 1], [], []>} : vector<32x22xbf16>, vector<22x36xbf16>, vector<32x36xf32> -> vector<32x36xf32>
    %88 = arith.truncf %87 : vector<32x36xf32> to vector<32x36xbf16>
    %c2 = arith.constant 2 : index
    %c0_36 = arith.constant 0 : index
    %c0_37 = arith.constant 0 : index
    %89 = vector.load %arg7[%c2, %c0_36, %c0_37] : memref<4x32x288xbf16, #tpu.memory_space<vmem>>, vector<1x32x288xbf16>
    %90 = vector.shape_cast %89 : vector<1x32x288xbf16> to vector<32x288xbf16>
    %c3 = arith.constant 3 : index
    %c0_38 = arith.constant 0 : index
    %c0_39 = arith.constant 0 : index
    %91 = vector.load %arg7[%c3, %c0_38, %c0_39] : memref<4x32x288xbf16, #tpu.memory_space<vmem>>, vector<1x32x288xbf16>
    %92 = vector.shape_cast %91 : vector<1x32x288xbf16> to vector<32x288xbf16>
    %c2_40 = arith.constant 2 : index
    %c0_41 = arith.constant 0 : index
    %c0_42 = arith.constant 0 : index
    %93 = vector.load %arg8[%c2_40, %c0_41, %c0_42] : memref<4x32x1xf32, #tpu.memory_space<vmem>>, vector<1x32x1xf32>
    %94 = vector.shape_cast %93 : vector<1x32x1xf32> to vector<32x1xf32>
    %c3_43 = arith.constant 3 : index
    %c0_44 = arith.constant 0 : index
    %c0_45 = arith.constant 0 : index
    %95 = vector.load %arg8[%c3_43, %c0_44, %c0_45] : memref<4x32x1xf32, #tpu.memory_space<vmem>>, vector<1x32x1xf32>
    %96 = vector.shape_cast %95 : vector<1x32x1xf32> to vector<32x1xf32>
    %cst_46 = arith.constant 0.000000e+00 : bf16
    %97 = vector.broadcast %cst_46 : bf16 to vector<32x36xbf16>
    %98 = arith.maximumf %88, %97 : vector<32x36xbf16>
    %99 = vector.extract_strided_slice %98 {offsets = [0, 0], sizes = [32, 22], strides = [1, 1]} : vector<32x36xbf16> to vector<32x22xbf16>
    %100 = vector.extract_strided_slice %98 {offsets = [0, 1], sizes = [32, 22], strides = [1, 1]} : vector<32x36xbf16> to vector<32x22xbf16>
    %101 = vector.extract_strided_slice %98 {offsets = [0, 2], sizes = [32, 22], strides = [1, 1]} : vector<32x36xbf16> to vector<32x22xbf16>
    %102 = vector.extract_strided_slice %98 {offsets = [0, 6], sizes = [32, 22], strides = [1, 1]} : vector<32x36xbf16> to vector<32x22xbf16>
    %103 = vector.extract_strided_slice %98 {offsets = [0, 7], sizes = [32, 22], strides = [1, 1]} : vector<32x36xbf16> to vector<32x22xbf16>
    %104 = vector.extract_strided_slice %98 {offsets = [0, 8], sizes = [32, 22], strides = [1, 1]} : vector<32x36xbf16> to vector<32x22xbf16>
    %105 = vector.extract_strided_slice %98 {offsets = [0, 12], sizes = [32, 22], strides = [1, 1]} : vector<32x36xbf16> to vector<32x22xbf16>
    %106 = vector.extract_strided_slice %98 {offsets = [0, 13], sizes = [32, 22], strides = [1, 1]} : vector<32x36xbf16> to vector<32x22xbf16>
    %107 = vector.extract_strided_slice %98 {offsets = [0, 14], sizes = [32, 22], strides = [1, 1]} : vector<32x36xbf16> to vector<32x22xbf16>
    %108 = tpu.concatenate %99, %100, %101, %102, %103, %104, %105, %106, %107 in 0 : vector<32x22xbf16>, vector<32x22xbf16>, vector<32x22xbf16>, vector<32x22xbf16>, vector<32x22xbf16>, vector<32x22xbf16>, vector<32x22xbf16>, vector<32x22xbf16>, vector<32x22xbf16> -> vector<288x22xbf16>
    %cst_47 = arith.constant dense<0.000000e+00> : vector<32x22xf32>
    %109 = tpu.matmul %90, %108, %cst_47 {dimension_numbers = #tpu.dot_dimension_numbers<[1], [0], [0], [1], [0, 0, 1, 1], [], []>} : vector<32x288xbf16>, vector<288x22xbf16>, vector<32x22xf32> -> vector<32x22xf32>
    %110 = vector.broadcast %94 : vector<32x1xf32> to vector<32x22xf32>
    %111 = arith.addf %109, %110 : vector<32x22xf32>
    %cst_48 = arith.constant 0.000000e+00 : f32
    %112 = vector.broadcast %cst_48 : f32 to vector<32x22xf32>
    %113 = arith.maximumf %111, %112 : vector<32x22xf32>
    %114 = arith.truncf %113 : vector<32x22xf32> to vector<32x22xbf16>
    %c0_49 = arith.constant 0 : index
    %c0_50 = arith.constant 0 : index
    %115 = vector.load %arg9[%c0_49, %c0_50] : memref<22x36xbf16, #tpu.memory_space<vmem>>, vector<22x36xbf16>
    %cst_51 = arith.constant dense<0.000000e+00> : vector<32x36xf32>
    %116 = tpu.matmul %114, %115, %cst_51 {dimension_numbers = #tpu.dot_dimension_numbers<[1], [0], [0], [1], [0, 0, 1, 1], [], []>} : vector<32x22xbf16>, vector<22x36xbf16>, vector<32x36xf32> -> vector<32x36xf32>
    %117 = arith.truncf %116 : vector<32x36xf32> to vector<32x36xbf16>
    %118 = vector.extract_strided_slice %117 {offsets = [0, 0], sizes = [32, 22], strides = [1, 1]} : vector<32x36xbf16> to vector<32x22xbf16>
    %119 = vector.extract_strided_slice %117 {offsets = [0, 1], sizes = [32, 22], strides = [1, 1]} : vector<32x36xbf16> to vector<32x22xbf16>
    %120 = vector.extract_strided_slice %117 {offsets = [0, 2], sizes = [32, 22], strides = [1, 1]} : vector<32x36xbf16> to vector<32x22xbf16>
    %121 = vector.extract_strided_slice %117 {offsets = [0, 6], sizes = [32, 22], strides = [1, 1]} : vector<32x36xbf16> to vector<32x22xbf16>
    %122 = vector.extract_strided_slice %117 {offsets = [0, 7], sizes = [32, 22], strides = [1, 1]} : vector<32x36xbf16> to vector<32x22xbf16>
    %123 = vector.extract_strided_slice %117 {offsets = [0, 8], sizes = [32, 22], strides = [1, 1]} : vector<32x36xbf16> to vector<32x22xbf16>
    %124 = vector.extract_strided_slice %117 {offsets = [0, 12], sizes = [32, 22], strides = [1, 1]} : vector<32x36xbf16> to vector<32x22xbf16>
    %125 = vector.extract_strided_slice %117 {offsets = [0, 13], sizes = [32, 22], strides = [1, 1]} : vector<32x36xbf16> to vector<32x22xbf16>
    %126 = vector.extract_strided_slice %117 {offsets = [0, 14], sizes = [32, 22], strides = [1, 1]} : vector<32x36xbf16> to vector<32x22xbf16>
    %127 = tpu.concatenate %118, %119, %120, %121, %122, %123, %124, %125, %126 in 0 : vector<32x22xbf16>, vector<32x22xbf16>, vector<32x22xbf16>, vector<32x22xbf16>, vector<32x22xbf16>, vector<32x22xbf16>, vector<32x22xbf16>, vector<32x22xbf16>, vector<32x22xbf16> -> vector<288x22xbf16>
    %cst_52 = arith.constant dense<0.000000e+00> : vector<32x22xf32>
    %128 = tpu.matmul %92, %127, %cst_52 {dimension_numbers = #tpu.dot_dimension_numbers<[1], [0], [0], [1], [0, 0, 1, 1], [], []>} : vector<32x288xbf16>, vector<288x22xbf16>, vector<32x22xf32> -> vector<32x22xf32>
    %129 = vector.broadcast %96 : vector<32x1xf32> to vector<32x22xf32>
    %130 = arith.addf %128, %129 : vector<32x22xf32>
    %131 = vector.extract_strided_slice %88 {offsets = [0, 7], sizes = [32, 22], strides = [1, 1]} : vector<32x36xbf16> to vector<32x22xbf16>
    %132 = arith.extf %131 : vector<32x22xbf16> to vector<32x22xf32>
    %133 = arith.addf %130, %132 : vector<32x22xf32>
    %134 = arith.truncf %133 : vector<32x22xf32> to vector<32x22xbf16>
    %c0_53 = arith.constant 0 : index
    %c0_54 = arith.constant 0 : index
    %135 = vector.load %arg9[%c0_53, %c0_54] : memref<22x36xbf16, #tpu.memory_space<vmem>>, vector<22x36xbf16>
    %cst_55 = arith.constant dense<0.000000e+00> : vector<32x36xf32>
    %136 = tpu.matmul %134, %135, %cst_55 {dimension_numbers = #tpu.dot_dimension_numbers<[1], [0], [0], [1], [0, 0, 1, 1], [], []>} : vector<32x22xbf16>, vector<22x36xbf16>, vector<32x36xf32> -> vector<32x36xf32>
    %137 = arith.truncf %136 : vector<32x36xf32> to vector<32x36xbf16>
    %c0_56 = arith.constant 0 : index
    %c0_57 = arith.constant 0 : index
    %138 = vector.load %arg10[%c0_56, %c0_57] : memref<36x16xbf16, #tpu.memory_space<vmem>>, vector<36x16xbf16>
    %cst_58 = arith.constant dense<0.000000e+00> : vector<32x16xf32>
    %139 = tpu.matmul %137, %138, %cst_58 {dimension_numbers = #tpu.dot_dimension_numbers<[1], [0], [0], [1], [0, 0, 1, 1], [], []>} : vector<32x36xbf16>, vector<36x16xbf16>, vector<32x16xf32> -> vector<32x16xf32>
    %c0_59 = arith.constant 0 : index
    %c0_60 = arith.constant 0 : index
    %c0_61 = arith.constant 0 : index
    %140 = vector.load %arg11[%c0_59, %c0_60, %c0_61] : memref<1x32x16xf32, #tpu.memory_space<vmem>>, vector<1x32x16xf32>
    %141 = vector.shape_cast %140 : vector<1x32x16xf32> to vector<32x16xf32>
    %142 = vector.shape_cast %139 : vector<32x16xf32> to vector<1x32x16xf32>
    tpu.vector_store %arg11[%c0_59, %c0_60, %c0_61], %142 {strides = array<i32>} : memref<1x32x16xf32, #tpu.memory_space<vmem>>, vector<1x32x16xf32>,
    return
  }
  func.func @transform_0(%arg0: i32) -> (i32, i32, i32) {
    %c0_i32 = arith.constant 0 : i32
    %c0_i32_0 = arith.constant 0 : i32
    %c0_i32_1 = arith.constant 0 : i32
    return %arg0, %c0_i32, %c0_i32_0 : i32, i32, i32
  }
  func.func @transform_1(%arg0: i32) -> (i32, i32) {
    %c0_i32 = arith.constant 0 : i32
    %c0_i32_0 = arith.constant 0 : i32
    %c0_i32_1 = arith.constant 0 : i32
    return %c0_i32, %c0_i32_0 : i32, i32
  }
  func.func @transform_2(%arg0: i32) -> (i32, i32) {
    %c0_i32 = arith.constant 0 : i32
    %c0_i32_0 = arith.constant 0 : i32
    %c0_i32_1 = arith.constant 0 : i32
    return %c0_i32, %c0_i32_0 : i32, i32
  }
  func.func @transform_3(%arg0: i32) -> (i32, i32) {
    %c0_i32 = arith.constant 0 : i32
    %c0_i32_0 = arith.constant 0 : i32
    %c0_i32_1 = arith.constant 0 : i32
    return %c0_i32, %c0_i32_0 : i32, i32
  }
  func.func @transform_4(%arg0: i32) -> (i32, i32) {
    %c0_i32 = arith.constant 0 : i32
    %c0_i32_0 = arith.constant 0 : i32
    %c0_i32_1 = arith.constant 0 : i32
    return %c0_i32, %c0_i32_0 : i32, i32
  }
  func.func @transform_5(%arg0: i32) -> (i32, i32) {
    %c0_i32 = arith.constant 0 : i32
    %c0_i32_0 = arith.constant 0 : i32
    %c0_i32_1 = arith.constant 0 : i32
    return %c0_i32, %c0_i32_0 : i32, i32
  }
  func.func @transform_6(%arg0: i32) -> (i32, i32, i32) {
    %c0_i32 = arith.constant 0 : i32
    %c0_i32_0 = arith.constant 0 : i32
    %c0_i32_1 = arith.constant 0 : i32
    %c0_i32_2 = arith.constant 0 : i32
    return %c0_i32, %c0_i32_0, %c0_i32_1 : i32, i32, i32
  }
  func.func @transform_7(%arg0: i32) -> (i32, i32, i32) {
    %c0_i32 = arith.constant 0 : i32
    %c0_i32_0 = arith.constant 0 : i32
    %c0_i32_1 = arith.constant 0 : i32
    %c0_i32_2 = arith.constant 0 : i32
    return %c0_i32, %c0_i32_0, %c0_i32_1 : i32, i32, i32
  }
  func.func @transform_8(%arg0: i32) -> (i32, i32) {
    %c0_i32 = arith.constant 0 : i32
    %c0_i32_0 = arith.constant 0 : i32
    %c0_i32_1 = arith.constant 0 : i32
    return %c0_i32, %c0_i32_0 : i32, i32
  }
  func.func @transform_9(%arg0: i32) -> (i32, i32) {
    %c0_i32 = arith.constant 0 : i32
    %c0_i32_0 = arith.constant 0 : i32
    %c0_i32_1 = arith.constant 0 : i32
    return %c0_i32, %c0_i32_0 : i32, i32
  }
  func.func @transform_10(%arg0: i32) -> (i32, i32, i32) {
    %c0_i32 = arith.constant 0 : i32
    %c0_i32_0 = arith.constant 0 : i32
    %c0_i32_1 = arith.constant 0 : i32
    return %arg0, %c0_i32, %c0_i32_0 : i32, i32, i32
  }
}

module attributes {stable_mosaic.version = 11 : i64} {
  func.func @kernel(%arg0: i32, %arg1: memref<1x32x16xf32, #tpu.memory_space<vmem>>, %arg2: memref<1x22xf32, #tpu.memory_space<vmem>>, %arg3: memref<32x288xbf16, #tpu.memory_space<vmem>>, %arg4: memref<32x1xf32, #tpu.memory_space<vmem>>, %arg5: memref<16x36xbf16, #tpu.memory_space<vmem>>, %arg6: memref<22x16xbf16, #tpu.memory_space<vmem>>, %arg7: memref<4x32x288xbf16, #tpu.memory_space<vmem>>, %arg8: memref<4x32x1xf32, #tpu.memory_space<vmem>>, %arg9: memref<6x16xbf16, #tpu.memory_space<vmem>>, %arg10: memref<16x4xbf16, #tpu.memory_space<vmem>>, %arg11: memref<1x32x4xf32, #tpu.memory_space<vmem>>) attributes {dimension_semantics = [#tpu.dimension_semantics<parallel>], iteration_bounds = array<i64: 2>, scalar_prefetch = 0 : i64, scratch_operands = 0 : i64, tpu.core_type = #tpu.core_type<tc>, window_params = [{transform_indices = @transform_0, window_bounds = array<i64: 1, 32, 16>}, {pipeline_mode = #tpu.pipeline_mode<synchronous>, transform_indices = @transform_1, window_bounds = array<i64: 1, 22>}, {pipeline_mode = #tpu.pipeline_mode<synchronous>, transform_indices = @transform_2, window_bounds = array<i64: 32, 288>}, {pipeline_mode = #tpu.pipeline_mode<synchronous>, transform_indices = @transform_3, window_bounds = array<i64: 32, 1>}, {pipeline_mode = #tpu.pipeline_mode<synchronous>, transform_indices = @transform_4, window_bounds = array<i64: 16, 36>}, {pipeline_mode = #tpu.pipeline_mode<synchronous>, transform_indices = @transform_5, window_bounds = array<i64: 22, 16>}, {pipeline_mode = #tpu.pipeline_mode<synchronous>, transform_indices = @transform_6, window_bounds = array<i64: 4, 32, 288>}, {pipeline_mode = #tpu.pipeline_mode<synchronous>, transform_indices = @transform_7, window_bounds = array<i64: 4, 32, 1>}, {pipeline_mode = #tpu.pipeline_mode<synchronous>, transform_indices = @transform_8, window_bounds = array<i64: 6, 16>}, {pipeline_mode = #tpu.pipeline_mode<synchronous>, transform_indices = @transform_9, window_bounds = array<i64: 16, 4>}, {transform_indices = @transform_10, window_bounds = array<i64: 1, 32, 4>}]} {
    %c0 = arith.constant 0 : index
    %c0_0 = arith.constant 0 : index
    %c0_1 = arith.constant 0 : index
    %0 = vector.load %arg1[%c0, %c0_0, %c0_1] : memref<1x32x16xf32, #tpu.memory_space<vmem>>, vector<1x32x16xf32>
    %1 = vector.shape_cast %0 : vector<1x32x16xf32> to vector<32x16xf32>
    %2 = arith.truncf %1 : vector<32x16xf32> to vector<32x16xbf16>
    %c0_2 = arith.constant 0 : index
    %c0_3 = arith.constant 0 : index
    %3 = vector.load %arg5[%c0_2, %c0_3] : memref<16x36xbf16, #tpu.memory_space<vmem>>, vector<16x36xbf16>
    %cst = arith.constant dense<0.000000e+00> : vector<32x36xf32>
    %4 = tpu.matmul %2, %3, %cst {dimension_numbers = #tpu.dot_dimension_numbers<[1], [0], [0], [1], [0, 0, 1, 1], [], []>} : vector<32x16xbf16>, vector<16x36xbf16>, vector<32x36xf32> -> vector<32x36xf32>
    %5 = arith.truncf %4 : vector<32x36xf32> to vector<32x36xbf16>
    %6 = vector.extract_strided_slice %5 {offsets = [0, 0], sizes = [32, 22], strides = [1, 1]} : vector<32x36xbf16> to vector<32x22xbf16>
    %7 = vector.extract_strided_slice %5 {offsets = [0, 1], sizes = [32, 22], strides = [1, 1]} : vector<32x36xbf16> to vector<32x22xbf16>
    %8 = vector.extract_strided_slice %5 {offsets = [0, 2], sizes = [32, 22], strides = [1, 1]} : vector<32x36xbf16> to vector<32x22xbf16>
    %9 = vector.extract_strided_slice %5 {offsets = [0, 6], sizes = [32, 22], strides = [1, 1]} : vector<32x36xbf16> to vector<32x22xbf16>
    %10 = vector.extract_strided_slice %5 {offsets = [0, 7], sizes = [32, 22], strides = [1, 1]} : vector<32x36xbf16> to vector<32x22xbf16>
    %11 = vector.extract_strided_slice %5 {offsets = [0, 8], sizes = [32, 22], strides = [1, 1]} : vector<32x36xbf16> to vector<32x22xbf16>
    %12 = vector.extract_strided_slice %5 {offsets = [0, 12], sizes = [32, 22], strides = [1, 1]} : vector<32x36xbf16> to vector<32x22xbf16>
    %13 = vector.extract_strided_slice %5 {offsets = [0, 13], sizes = [32, 22], strides = [1, 1]} : vector<32x36xbf16> to vector<32x22xbf16>
    %14 = vector.extract_strided_slice %5 {offsets = [0, 14], sizes = [32, 22], strides = [1, 1]} : vector<32x36xbf16> to vector<32x22xbf16>
    %15 = tpu.concatenate %6, %7, %8, %9, %10, %11, %12, %13, %14 in 0 : vector<32x22xbf16>, vector<32x22xbf16>, vector<32x22xbf16>, vector<32x22xbf16>, vector<32x22xbf16>, vector<32x22xbf16>, vector<32x22xbf16>, vector<32x22xbf16>, vector<32x22xbf16> -> vector<288x22xbf16>
    %c0_4 = arith.constant 0 : index
    %c0_5 = arith.constant 0 : index
    %16 = vector.load %arg3[%c0_4, %c0_5] : memref<32x288xbf16, #tpu.memory_space<vmem>>, vector<32x288xbf16>
    %cst_6 = arith.constant dense<0.000000e+00> : vector<32x22xf32>
    %17 = tpu.matmul %16, %15, %cst_6 {dimension_numbers = #tpu.dot_dimension_numbers<[1], [0], [0], [1], [0, 0, 1, 1], [], []>} : vector<32x288xbf16>, vector<288x22xbf16>, vector<32x22xf32> -> vector<32x22xf32>
    %c0_7 = arith.constant 0 : index
    %c0_8 = arith.constant 0 : index
    %18 = vector.load %arg4[%c0_7, %c0_8] : memref<32x1xf32, #tpu.memory_space<vmem>>, vector<32x1xf32>
    %19 = vector.broadcast %18 : vector<32x1xf32> to vector<32x22xf32>
    %20 = arith.addf %17, %19 : vector<32x22xf32>
    %c0_9 = arith.constant 0 : index
    %c0_10 = arith.constant 0 : index
    %21 = vector.load %arg2[%c0_9, %c0_10] : memref<1x22xf32, #tpu.memory_space<vmem>>, vector<1x22xf32>
    %22 = vector.broadcast %21 : vector<1x22xf32> to vector<32x22xf32>
    %23 = arith.mulf %20, %22 : vector<32x22xf32>
    %24 = arith.truncf %23 : vector<32x22xf32> to vector<32x22xbf16>
    %cst_11 = arith.constant 0.000000e+00 : bf16
    %25 = vector.broadcast %cst_11 : bf16 to vector<32x14xbf16>
    %26 = tpu.concatenate %24, %25 in 1 : vector<32x22xbf16>, vector<32x14xbf16> -> vector<32x36xbf16>
    %27 = vector.extract_strided_slice %26 {offsets = [0, 0], sizes = [32, 34], strides = [1, 1]} : vector<32x36xbf16> to vector<32x34xbf16>
    %28 = vector.extract_strided_slice %26 {offsets = [0, 1], sizes = [32, 34], strides = [1, 1]} : vector<32x36xbf16> to vector<32x34xbf16>
    %29 = arith.maximumf %27, %28 : vector<32x34xbf16>
    %30 = vector.extract_strided_slice %26 {offsets = [0, 2], sizes = [32, 34], strides = [1, 1]} : vector<32x36xbf16> to vector<32x34xbf16>
    %31 = arith.maximumf %29, %30 : vector<32x34xbf16>
    %32 = vector.extract_strided_slice %31 {offsets = [0, 0], sizes = [32, 22], strides = [1, 1]} : vector<32x34xbf16> to vector<32x22xbf16>
    %33 = vector.extract_strided_slice %31 {offsets = [0, 6], sizes = [32, 22], strides = [1, 1]} : vector<32x34xbf16> to vector<32x22xbf16>
    %34 = arith.maximumf %32, %33 : vector<32x22xbf16>
    %35 = vector.extract_strided_slice %31 {offsets = [0, 12], sizes = [32, 22], strides = [1, 1]} : vector<32x34xbf16> to vector<32x22xbf16>
    %36 = arith.maximumf %34, %35 : vector<32x22xbf16>
    %c0_12 = arith.constant 0 : index
    %c0_13 = arith.constant 0 : index
    %37 = vector.load %arg6[%c0_12, %c0_13] : memref<22x16xbf16, #tpu.memory_space<vmem>>, vector<22x16xbf16>
    %cst_14 = arith.constant dense<0.000000e+00> : vector<32x16xf32>
    %38 = tpu.matmul %36, %37, %cst_14 {dimension_numbers = #tpu.dot_dimension_numbers<[1], [0], [0], [1], [0, 0, 1, 1], [], []>} : vector<32x22xbf16>, vector<22x16xbf16>, vector<32x16xf32> -> vector<32x16xf32>
    %39 = arith.truncf %38 : vector<32x16xf32> to vector<32x16xbf16>
    %c0_15 = arith.constant 0 : index
    %c0_16 = arith.constant 0 : index
    %c0_17 = arith.constant 0 : index
    %40 = vector.load %arg7[%c0_15, %c0_16, %c0_17] : memref<4x32x288xbf16, #tpu.memory_space<vmem>>, vector<1x32x288xbf16>
    %41 = vector.shape_cast %40 : vector<1x32x288xbf16> to vector<32x288xbf16>
    %c1 = arith.constant 1 : index
    %c0_18 = arith.constant 0 : index
    %c0_19 = arith.constant 0 : index
    %42 = vector.load %arg7[%c1, %c0_18, %c0_19] : memref<4x32x288xbf16, #tpu.memory_space<vmem>>, vector<1x32x288xbf16>
    %43 = vector.shape_cast %42 : vector<1x32x288xbf16> to vector<32x288xbf16>
    %c0_20 = arith.constant 0 : index
    %c0_21 = arith.constant 0 : index
    %c0_22 = arith.constant 0 : index
    %44 = vector.load %arg8[%c0_20, %c0_21, %c0_22] : memref<4x32x1xf32, #tpu.memory_space<vmem>>, vector<1x32x1xf32>
    %45 = vector.shape_cast %44 : vector<1x32x1xf32> to vector<32x1xf32>
    %c1_23 = arith.constant 1 : index
    %c0_24 = arith.constant 0 : index
    %c0_25 = arith.constant 0 : index
    %46 = vector.load %arg8[%c1_23, %c0_24, %c0_25] : memref<4x32x1xf32, #tpu.memory_space<vmem>>, vector<1x32x1xf32>
    %47 = vector.shape_cast %46 : vector<1x32x1xf32> to vector<32x1xf32>
    %cst_26 = arith.constant 0.000000e+00 : bf16
    %48 = vector.broadcast %cst_26 : bf16 to vector<32x16xbf16>
    %49 = arith.maximumf %39, %48 : vector<32x16xbf16>
    %50 = vector.extract_strided_slice %49 {offsets = [0, 0], sizes = [32, 6], strides = [1, 1]} : vector<32x16xbf16> to vector<32x6xbf16>
    %51 = vector.extract_strided_slice %49 {offsets = [0, 1], sizes = [32, 6], strides = [1, 1]} : vector<32x16xbf16> to vector<32x6xbf16>
    %52 = vector.extract_strided_slice %49 {offsets = [0, 2], sizes = [32, 6], strides = [1, 1]} : vector<32x16xbf16> to vector<32x6xbf16>
    %53 = vector.extract_strided_slice %49 {offsets = [0, 4], sizes = [32, 6], strides = [1, 1]} : vector<32x16xbf16> to vector<32x6xbf16>
    %54 = vector.extract_strided_slice %49 {offsets = [0, 5], sizes = [32, 6], strides = [1, 1]} : vector<32x16xbf16> to vector<32x6xbf16>
    %55 = vector.extract_strided_slice %49 {offsets = [0, 6], sizes = [32, 6], strides = [1, 1]} : vector<32x16xbf16> to vector<32x6xbf16>
    %56 = vector.extract_strided_slice %49 {offsets = [0, 8], sizes = [32, 6], strides = [1, 1]} : vector<32x16xbf16> to vector<32x6xbf16>
    %57 = vector.extract_strided_slice %49 {offsets = [0, 9], sizes = [32, 6], strides = [1, 1]} : vector<32x16xbf16> to vector<32x6xbf16>
    %58 = vector.extract_strided_slice %49 {offsets = [0, 10], sizes = [32, 6], strides = [1, 1]} : vector<32x16xbf16> to vector<32x6xbf16>
    %59 = tpu.concatenate %50, %51, %52, %53, %54, %55, %56, %57, %58 in 0 : vector<32x6xbf16>, vector<32x6xbf16>, vector<32x6xbf16>, vector<32x6xbf16>, vector<32x6xbf16>, vector<32x6xbf16>, vector<32x6xbf16>, vector<32x6xbf16>, vector<32x6xbf16> -> vector<288x6xbf16>
    %cst_27 = arith.constant dense<0.000000e+00> : vector<32x6xf32>
    %60 = tpu.matmul %41, %59, %cst_27 {dimension_numbers = #tpu.dot_dimension_numbers<[1], [0], [0], [1], [0, 0, 1, 1], [], []>} : vector<32x288xbf16>, vector<288x6xbf16>, vector<32x6xf32> -> vector<32x6xf32>
    %61 = vector.broadcast %45 : vector<32x1xf32> to vector<32x6xf32>
    %62 = arith.addf %60, %61 : vector<32x6xf32>
    %cst_28 = arith.constant 0.000000e+00 : f32
    %63 = vector.broadcast %cst_28 : f32 to vector<32x6xf32>
    %64 = arith.maximumf %62, %63 : vector<32x6xf32>
    %65 = arith.truncf %64 : vector<32x6xf32> to vector<32x6xbf16>
    %c0_29 = arith.constant 0 : index
    %c0_30 = arith.constant 0 : index
    %66 = vector.load %arg9[%c0_29, %c0_30] : memref<6x16xbf16, #tpu.memory_space<vmem>>, vector<6x16xbf16>
    %cst_31 = arith.constant dense<0.000000e+00> : vector<32x16xf32>
    %67 = tpu.matmul %65, %66, %cst_31 {dimension_numbers = #tpu.dot_dimension_numbers<[1], [0], [0], [1], [0, 0, 1, 1], [], []>} : vector<32x6xbf16>, vector<6x16xbf16>, vector<32x16xf32> -> vector<32x16xf32>
    %68 = arith.truncf %67 : vector<32x16xf32> to vector<32x16xbf16>
    %69 = vector.extract_strided_slice %68 {offsets = [0, 0], sizes = [32, 6], strides = [1, 1]} : vector<32x16xbf16> to vector<32x6xbf16>
    %70 = vector.extract_strided_slice %68 {offsets = [0, 1], sizes = [32, 6], strides = [1, 1]} : vector<32x16xbf16> to vector<32x6xbf16>
    %71 = vector.extract_strided_slice %68 {offsets = [0, 2], sizes = [32, 6], strides = [1, 1]} : vector<32x16xbf16> to vector<32x6xbf16>
    %72 = vector.extract_strided_slice %68 {offsets = [0, 4], sizes = [32, 6], strides = [1, 1]} : vector<32x16xbf16> to vector<32x6xbf16>
    %73 = vector.extract_strided_slice %68 {offsets = [0, 5], sizes = [32, 6], strides = [1, 1]} : vector<32x16xbf16> to vector<32x6xbf16>
    %74 = vector.extract_strided_slice %68 {offsets = [0, 6], sizes = [32, 6], strides = [1, 1]} : vector<32x16xbf16> to vector<32x6xbf16>
    %75 = vector.extract_strided_slice %68 {offsets = [0, 8], sizes = [32, 6], strides = [1, 1]} : vector<32x16xbf16> to vector<32x6xbf16>
    %76 = vector.extract_strided_slice %68 {offsets = [0, 9], sizes = [32, 6], strides = [1, 1]} : vector<32x16xbf16> to vector<32x6xbf16>
    %77 = vector.extract_strided_slice %68 {offsets = [0, 10], sizes = [32, 6], strides = [1, 1]} : vector<32x16xbf16> to vector<32x6xbf16>
    %78 = tpu.concatenate %69, %70, %71, %72, %73, %74, %75, %76, %77 in 0 : vector<32x6xbf16>, vector<32x6xbf16>, vector<32x6xbf16>, vector<32x6xbf16>, vector<32x6xbf16>, vector<32x6xbf16>, vector<32x6xbf16>, vector<32x6xbf16>, vector<32x6xbf16> -> vector<288x6xbf16>
    %cst_32 = arith.constant dense<0.000000e+00> : vector<32x6xf32>
    %79 = tpu.matmul %43, %78, %cst_32 {dimension_numbers = #tpu.dot_dimension_numbers<[1], [0], [0], [1], [0, 0, 1, 1], [], []>} : vector<32x288xbf16>, vector<288x6xbf16>, vector<32x6xf32> -> vector<32x6xf32>
    %80 = vector.broadcast %47 : vector<32x1xf32> to vector<32x6xf32>
    %81 = arith.addf %79, %80 : vector<32x6xf32>
    %82 = vector.extract_strided_slice %39 {offsets = [0, 5], sizes = [32, 6], strides = [1, 1]} : vector<32x16xbf16> to vector<32x6xbf16>
    %83 = arith.extf %82 : vector<32x6xbf16> to vector<32x6xf32>
    %84 = arith.addf %81, %83 : vector<32x6xf32>
    %85 = arith.truncf %84 : vector<32x6xf32> to vector<32x6xbf16>
    %c0_33 = arith.constant 0 : index
    %c0_34 = arith.constant 0 : index
    %86 = vector.load %arg9[%c0_33, %c0_34] : memref<6x16xbf16, #tpu.memory_space<vmem>>, vector<6x16xbf16>
    %cst_35 = arith.constant dense<0.000000e+00> : vector<32x16xf32>
    %87 = tpu.matmul %85, %86, %cst_35 {dimension_numbers = #tpu.dot_dimension_numbers<[1], [0], [0], [1], [0, 0, 1, 1], [], []>} : vector<32x6xbf16>, vector<6x16xbf16>, vector<32x16xf32> -> vector<32x16xf32>
    %88 = arith.truncf %87 : vector<32x16xf32> to vector<32x16xbf16>
    %c2 = arith.constant 2 : index
    %c0_36 = arith.constant 0 : index
    %c0_37 = arith.constant 0 : index
    %89 = vector.load %arg7[%c2, %c0_36, %c0_37] : memref<4x32x288xbf16, #tpu.memory_space<vmem>>, vector<1x32x288xbf16>
    %90 = vector.shape_cast %89 : vector<1x32x288xbf16> to vector<32x288xbf16>
    %c3 = arith.constant 3 : index
    %c0_38 = arith.constant 0 : index
    %c0_39 = arith.constant 0 : index
    %91 = vector.load %arg7[%c3, %c0_38, %c0_39] : memref<4x32x288xbf16, #tpu.memory_space<vmem>>, vector<1x32x288xbf16>
    %92 = vector.shape_cast %91 : vector<1x32x288xbf16> to vector<32x288xbf16>
    %c2_40 = arith.constant 2 : index
    %c0_41 = arith.constant 0 : index
    %c0_42 = arith.constant 0 : index
    %93 = vector.load %arg8[%c2_40, %c0_41, %c0_42] : memref<4x32x1xf32, #tpu.memory_space<vmem>>, vector<1x32x1xf32>
    %94 = vector.shape_cast %93 : vector<1x32x1xf32> to vector<32x1xf32>
    %c3_43 = arith.constant 3 : index
    %c0_44 = arith.constant 0 : index
    %c0_45 = arith.constant 0 : index
    %95 = vector.load %arg8[%c3_43, %c0_44, %c0_45] : memref<4x32x1xf32, #tpu.memory_space<vmem>>, vector<1x32x1xf32>
    %96 = vector.shape_cast %95 : vector<1x32x1xf32> to vector<32x1xf32>
    %cst_46 = arith.constant 0.000000e+00 : bf16
    %97 = vector.broadcast %cst_46 : bf16 to vector<32x16xbf16>
    %98 = arith.maximumf %88, %97 : vector<32x16xbf16>
    %99 = vector.extract_strided_slice %98 {offsets = [0, 0], sizes = [32, 6], strides = [1, 1]} : vector<32x16xbf16> to vector<32x6xbf16>
    %100 = vector.extract_strided_slice %98 {offsets = [0, 1], sizes = [32, 6], strides = [1, 1]} : vector<32x16xbf16> to vector<32x6xbf16>
    %101 = vector.extract_strided_slice %98 {offsets = [0, 2], sizes = [32, 6], strides = [1, 1]} : vector<32x16xbf16> to vector<32x6xbf16>
    %102 = vector.extract_strided_slice %98 {offsets = [0, 4], sizes = [32, 6], strides = [1, 1]} : vector<32x16xbf16> to vector<32x6xbf16>
    %103 = vector.extract_strided_slice %98 {offsets = [0, 5], sizes = [32, 6], strides = [1, 1]} : vector<32x16xbf16> to vector<32x6xbf16>
    %104 = vector.extract_strided_slice %98 {offsets = [0, 6], sizes = [32, 6], strides = [1, 1]} : vector<32x16xbf16> to vector<32x6xbf16>
    %105 = vector.extract_strided_slice %98 {offsets = [0, 8], sizes = [32, 6], strides = [1, 1]} : vector<32x16xbf16> to vector<32x6xbf16>
    %106 = vector.extract_strided_slice %98 {offsets = [0, 9], sizes = [32, 6], strides = [1, 1]} : vector<32x16xbf16> to vector<32x6xbf16>
    %107 = vector.extract_strided_slice %98 {offsets = [0, 10], sizes = [32, 6], strides = [1, 1]} : vector<32x16xbf16> to vector<32x6xbf16>
    %108 = tpu.concatenate %99, %100, %101, %102, %103, %104, %105, %106, %107 in 0 : vector<32x6xbf16>, vector<32x6xbf16>, vector<32x6xbf16>, vector<32x6xbf16>, vector<32x6xbf16>, vector<32x6xbf16>, vector<32x6xbf16>, vector<32x6xbf16>, vector<32x6xbf16> -> vector<288x6xbf16>
    %cst_47 = arith.constant dense<0.000000e+00> : vector<32x6xf32>
    %109 = tpu.matmul %90, %108, %cst_47 {dimension_numbers = #tpu.dot_dimension_numbers<[1], [0], [0], [1], [0, 0, 1, 1], [], []>} : vector<32x288xbf16>, vector<288x6xbf16>, vector<32x6xf32> -> vector<32x6xf32>
    %110 = vector.broadcast %94 : vector<32x1xf32> to vector<32x6xf32>
    %111 = arith.addf %109, %110 : vector<32x6xf32>
    %cst_48 = arith.constant 0.000000e+00 : f32
    %112 = vector.broadcast %cst_48 : f32 to vector<32x6xf32>
    %113 = arith.maximumf %111, %112 : vector<32x6xf32>
    %114 = arith.truncf %113 : vector<32x6xf32> to vector<32x6xbf16>
    %c0_49 = arith.constant 0 : index
    %c0_50 = arith.constant 0 : index
    %115 = vector.load %arg9[%c0_49, %c0_50] : memref<6x16xbf16, #tpu.memory_space<vmem>>, vector<6x16xbf16>
    %cst_51 = arith.constant dense<0.000000e+00> : vector<32x16xf32>
    %116 = tpu.matmul %114, %115, %cst_51 {dimension_numbers = #tpu.dot_dimension_numbers<[1], [0], [0], [1], [0, 0, 1, 1], [], []>} : vector<32x6xbf16>, vector<6x16xbf16>, vector<32x16xf32> -> vector<32x16xf32>
    %117 = arith.truncf %116 : vector<32x16xf32> to vector<32x16xbf16>
    %118 = vector.extract_strided_slice %117 {offsets = [0, 0], sizes = [32, 6], strides = [1, 1]} : vector<32x16xbf16> to vector<32x6xbf16>
    %119 = vector.extract_strided_slice %117 {offsets = [0, 1], sizes = [32, 6], strides = [1, 1]} : vector<32x16xbf16> to vector<32x6xbf16>
    %120 = vector.extract_strided_slice %117 {offsets = [0, 2], sizes = [32, 6], strides = [1, 1]} : vector<32x16xbf16> to vector<32x6xbf16>
    %121 = vector.extract_strided_slice %117 {offsets = [0, 4], sizes = [32, 6], strides = [1, 1]} : vector<32x16xbf16> to vector<32x6xbf16>
    %122 = vector.extract_strided_slice %117 {offsets = [0, 5], sizes = [32, 6], strides = [1, 1]} : vector<32x16xbf16> to vector<32x6xbf16>
    %123 = vector.extract_strided_slice %117 {offsets = [0, 6], sizes = [32, 6], strides = [1, 1]} : vector<32x16xbf16> to vector<32x6xbf16>
    %124 = vector.extract_strided_slice %117 {offsets = [0, 8], sizes = [32, 6], strides = [1, 1]} : vector<32x16xbf16> to vector<32x6xbf16>
    %125 = vector.extract_strided_slice %117 {offsets = [0, 9], sizes = [32, 6], strides = [1, 1]} : vector<32x16xbf16> to vector<32x6xbf16>
    %126 = vector.extract_strided_slice %117 {offsets = [0, 10], sizes = [32, 6], strides = [1, 1]} : vector<32x16xbf16> to vector<32x6xbf16>
    %127 = tpu.concatenate %118, %119, %120, %121, %122, %123, %124, %125, %126 in 0 : vector<32x6xbf16>, vector<32x6xbf16>, vector<32x6xbf16>, vector<32x6xbf16>, vector<32x6xbf16>, vector<32x6xbf16>, vector<32x6xbf16>, vector<32x6xbf16>, vector<32x6xbf16> -> vector<288x6xbf16>
    %cst_52 = arith.constant dense<0.000000e+00> : vector<32x6xf32>
    %128 = tpu.matmul %92, %127, %cst_52 {dimension_numbers = #tpu.dot_dimension_numbers<[1], [0], [0], [1], [0, 0, 1, 1], [], []>} : vector<32x288xbf16>, vector<288x6xbf16>, vector<32x6xf32> -> vector<32x6xf32>
    %129 = vector.broadcast %96 : vector<32x1xf32> to vector<32x6xf32>
    %130 = arith.addf %128, %129 : vector<32x6xf32>
    %131 = vector.extract_strided_slice %88 {offsets = [0, 5], sizes = [32, 6], strides = [1, 1]} : vector<32x16xbf16> to vector<32x6xbf16>
    %132 = arith.extf %131 : vector<32x6xbf16> to vector<32x6xf32>
    %133 = arith.addf %130, %132 : vector<32x6xf32>
    %cst_53 = arith.constant 0.000000e+00 : f32
    %134 = vector.broadcast %cst_53 : f32 to vector<32x6xf32>
    %135 = arith.maximumf %133, %134 : vector<32x6xf32>
    %136 = arith.truncf %135 : vector<32x6xf32> to vector<32x6xbf16>
    %c0_54 = arith.constant 0 : index
    %c0_55 = arith.constant 0 : index
    %137 = vector.load %arg9[%c0_54, %c0_55] : memref<6x16xbf16, #tpu.memory_space<vmem>>, vector<6x16xbf16>
    %cst_56 = arith.constant dense<0.000000e+00> : vector<32x16xf32>
    %138 = tpu.matmul %136, %137, %cst_56 {dimension_numbers = #tpu.dot_dimension_numbers<[1], [0], [0], [1], [0, 0, 1, 1], [], []>} : vector<32x6xbf16>, vector<6x16xbf16>, vector<32x16xf32> -> vector<32x16xf32>
    %139 = arith.truncf %138 : vector<32x16xf32> to vector<32x16xbf16>
    %c0_57 = arith.constant 0 : index
    %c0_58 = arith.constant 0 : index
    %140 = vector.load %arg10[%c0_57, %c0_58] : memref<16x4xbf16, #tpu.memory_space<vmem>>, vector<16x4xbf16>
    %cst_59 = arith.constant dense<0.000000e+00> : vector<32x4xf32>
    %141 = tpu.matmul %139, %140, %cst_59 {dimension_numbers = #tpu.dot_dimension_numbers<[1], [0], [0], [1], [0, 0, 1, 1], [], []>} : vector<32x16xbf16>, vector<16x4xbf16>, vector<32x4xf32> -> vector<32x4xf32>
    %c0_60 = arith.constant 0 : index
    %c0_61 = arith.constant 0 : index
    %c0_62 = arith.constant 0 : index
    %142 = vector.load %arg11[%c0_60, %c0_61, %c0_62] : memref<1x32x4xf32, #tpu.memory_space<vmem>>, vector<1x32x4xf32>
    %143 = vector.shape_cast %142 : vector<1x32x4xf32> to vector<32x4xf32>
    %144 = vector.shape_cast %141 : vector<32x4xf32> to vector<1x32x4xf32>
    tpu.vector_store %arg11[%c0_60, %c0_61, %c0_62], %144 {strides = array<i32>} : memref<1x32x4xf32, #tpu.memory_space<vmem>>, vector<1x32x4xf32>,
    return
  }
  func.func @transform_0(%arg0: i32) -> (i32, i32, i32) {
    %c0_i32 = arith.constant 0 : i32
    %c0_i32_0 = arith.constant 0 : i32
    %c0_i32_1 = arith.constant 0 : i32
    return %arg0, %c0_i32, %c0_i32_0 : i32, i32, i32
  }
  func.func @transform_1(%arg0: i32) -> (i32, i32) {
    %c0_i32 = arith.constant 0 : i32
    %c0_i32_0 = arith.constant 0 : i32
    %c0_i32_1 = arith.constant 0 : i32
    return %c0_i32, %c0_i32_0 : i32, i32
  }
  func.func @transform_2(%arg0: i32) -> (i32, i32) {
    %c0_i32 = arith.constant 0 : i32
    %c0_i32_0 = arith.constant 0 : i32
    %c0_i32_1 = arith.constant 0 : i32
    return %c0_i32, %c0_i32_0 : i32, i32
  }
  func.func @transform_3(%arg0: i32) -> (i32, i32) {
    %c0_i32 = arith.constant 0 : i32
    %c0_i32_0 = arith.constant 0 : i32
    %c0_i32_1 = arith.constant 0 : i32
    return %c0_i32, %c0_i32_0 : i32, i32
  }
  func.func @transform_4(%arg0: i32) -> (i32, i32) {
    %c0_i32 = arith.constant 0 : i32
    %c0_i32_0 = arith.constant 0 : i32
    %c0_i32_1 = arith.constant 0 : i32
    return %c0_i32, %c0_i32_0 : i32, i32
  }
  func.func @transform_5(%arg0: i32) -> (i32, i32) {
    %c0_i32 = arith.constant 0 : i32
    %c0_i32_0 = arith.constant 0 : i32
    %c0_i32_1 = arith.constant 0 : i32
    return %c0_i32, %c0_i32_0 : i32, i32
  }
  func.func @transform_6(%arg0: i32) -> (i32, i32, i32) {
    %c0_i32 = arith.constant 0 : i32
    %c0_i32_0 = arith.constant 0 : i32
    %c0_i32_1 = arith.constant 0 : i32
    %c0_i32_2 = arith.constant 0 : i32
    return %c0_i32, %c0_i32_0, %c0_i32_1 : i32, i32, i32
  }
  func.func @transform_7(%arg0: i32) -> (i32, i32, i32) {
    %c0_i32 = arith.constant 0 : i32
    %c0_i32_0 = arith.constant 0 : i32
    %c0_i32_1 = arith.constant 0 : i32
    %c0_i32_2 = arith.constant 0 : i32
    return %c0_i32, %c0_i32_0, %c0_i32_1 : i32, i32, i32
  }
  func.func @transform_8(%arg0: i32) -> (i32, i32) {
    %c0_i32 = arith.constant 0 : i32
    %c0_i32_0 = arith.constant 0 : i32
    %c0_i32_1 = arith.constant 0 : i32
    return %c0_i32, %c0_i32_0 : i32, i32
  }
  func.func @transform_9(%arg0: i32) -> (i32, i32) {
    %c0_i32 = arith.constant 0 : i32
    %c0_i32_0 = arith.constant 0 : i32
    %c0_i32_1 = arith.constant 0 : i32
    return %c0_i32, %c0_i32_0 : i32, i32
  }
  func.func @transform_10(%arg0: i32) -> (i32, i32, i32) {
    %c0_i32 = arith.constant 0 : i32
    %c0_i32_0 = arith.constant 0 : i32
    %c0_i32_1 = arith.constant 0 : i32
    return %arg0, %c0_i32, %c0_i32_0 : i32, i32, i32
  }
}

</mosaic_0001>

<llo_original>
// kernel: _lambda_.4
$region0: #{_lambda_.4}
  #allocation0 [shape = 'u32[]', space=smem, size = 0x4, offset = 0x4, fixed_abs, tag = 'smem constant byte address 0x4 - core index']
  #allocation1 [shape = 'u32[72,128]{1,0:T(1,128)}', space=vmem, size = 0x9000, scoped, tag = 'internal scratch']
  %s0 = inlined_call_operand.vmem [shape: f32[2,16,64], index: 0, kind: input, shape index: {}]
  %s1 = inlined_call_operand.vmem [shape: f32[1,78], index: 1, kind: input, shape index: {}]
  %s2 = inlined_call_operand.hbm [shape: bf16[32,144], index: 2, kind: input, shape index: {}]
  %s3 = inlined_call_operand.vmem [shape: f32[32,1], index: 3, kind: input, shape index: {}]
  %s4 = inlined_call_operand.hbm [shape: bf16[64,100], index: 4, kind: input, shape index: {}]
  %s5 = inlined_call_operand.hbm [shape: bf16[78,36], index: 5, kind: input, shape index: {}]
  %s6 = inlined_call_operand.vmem [shape: bf16[4,32,288], index: 6, kind: input, shape index: {}]
  %s7 = inlined_call_operand.vmem [shape: f32[4,32,1], index: 7, kind: input, shape index: {}]
  %s8 = inlined_call_operand.vmem [shape: bf16[22,36], index: 8, kind: input, shape index: {}]
  %s9 = inlined_call_operand.hbm [shape: bf16[36,16], index: 9, kind: input, shape index: {}]
  %s10 = inlined_call_operand.vmem [shape: f32[2,32,16], index: 10, kind: output, shape index: {}]
  %s11 = sld [smem:[#allocation0]]
  $region89: #{_lambda_.4} parent=0
    _
  %s13 = ssub.s32 1, %s11
  %s14 = scalar_select 0, %s13, %s11
  $region1: #{_lambda_.4} parent=0
    #allocation2 [shape = 'u8[16384]{0}', space=vmem, size = 0x4000, scoped, tag = 'input window, operand 2, single buffered']
    #allocation3 [shape = 's32[2]{0}', space=sflag, size = 0x8, scoped, tag = 'scoped memory for _lambda_.4']
    #allocation4 [shape = 'u8[16384]{0}', space=vmem, size = 0x4000, scoped, tag = 'input window, operand 4, single buffered']
    #allocation5 [shape = 's32[1]{0}', space=sflag, size = 0x4, scoped, tag = 'scoped memory for _lambda_.4']
    #allocation6 [shape = 'u8[20480]{0}', space=vmem, size = 0x5000, scoped, tag = 'input window, operand 5, single buffered']
    #allocation7 [shape = 'u8[10240]{0}', space=vmem, size = 0x2800, scoped, tag = 'input window, operand 9, single buffered']
    #allocation8 [shape = 's32[1]{0}', space=sflag, size = 0x4, scoped, tag = 'scoped memory for _lambda_.4']
    %15 = vsyncpa [#allocation3], 0
    %16 = vsyncpa [#allocation5], 0
    %17 = vsyncpa [#allocation8], 0
    loop: start=0, step=1, limit=4
    $region2: #{_lambda_.4} parent=1 // loop_pre_header
      _
    $region3: #{_lambda_.4} parent=1 // loop_header
      %s19 = sphi 0, %s23
      %p20 = scmp.ge.s32.totalorder %s19, 4
      %s29 = sphi 0, %s31
      %s32 = sphi 0, %s29
      %s33 = sphi 0, %s32
      %s49 = sphi 0, %s33
      %s53 = sphi 0, %s53
      %s55 = sphi 0, %s53
      %s56 = sphi 0, %s55
      %s70 = sphi 0, %s56
      %s74 = sphi 0, %s74
      %s76 = sphi 0, %s74
      %s77 = sphi 0, %s76
      %s91 = sphi 0, %s77
      %s95 = sphi 0, %s95
      %s97 = sphi 0, %s95
      %s98 = sphi 0, %s97
      %s112 = sphi 0, %s98
      %s116 = sphi 0, %s116
      %s118 = sphi 0, %s116
      %s119 = sphi 0, %s118
      %s133 = sphi 0, %s119
      %s137 = sphi 0, %s137
      %s139 = sphi 0, %s137
      %s140 = sphi 0, %s139
      %s154 = sphi 0, %s140
      %s158 = sphi 0, %s158
      %s160 = sphi 0, %s158
      %s161 = sphi 0, %s160
      %s175 = sphi 0, %s161
      %s179 = sphi 0, %s179
      %s181 = sphi 0, %s179
      %s182 = sphi 0, %s181
      %s196 = sphi 0, %s182
      %s200 = sphi 0, %s200
      %s202 = sphi 0, %s200
      %s203 = sphi 0, %s202
      %s217 = sphi 0, %s203
      %s221 = sphi 0, %s221
      %s223 = sphi 0, %s221
      %s224 = sphi 0, %s223
      %s238 = sphi 0, %s224
      %s244 = sphi 0, %s246
      %s247 = sphi 0, %s244
      %s248 = sphi 0, %s247
      %s264 = sphi 0, %s248
    $region4: #{_lambda_.4} parent=1 // loop_header_branch
      %22 = sbr.rel (%p20) target = $region8
    $region5: #{_lambda_.4} parent=1 // loop_body
      %s24 = ssub.s32 %s19, 1
      %s25 = ssub.s32 %s19, 2
      %s26 = sadd.s32 %s19, 1
      %s27 = ssub.s32 %s19, %s26
      %p28 = scmp.eq.s32.totalorder %s27, 0
      %s30 = sadd.s32 %s29, 1
      %s31 = scalar_select %p28, %s29, %s30
      %p34 = pneg %p28
      %p35 = scmp.eq.s32.totalorder %s19, 1
      %p36 = por %p34, %p35
      %p37 = scmp.ne.s32.totalorder %s29, %s32
      %p38 = scmp.eq.s32.totalorder %s19, 0
      %p39 = por %p37, %p38
      %p40 = scmp.ne.s32.totalorder %s29, %s32
      %p41 = scmp.eq.s32.totalorder %s24, 1
      %p42 = por %p40, %p41
      %p43 = scmp.ne.s32.totalorder %s32, %s33
      %p44 = scmp.eq.s32.totalorder %s24, 0
      %p45 = por %p43, %p44
      %p46 = scmp.ne.s32.totalorder %s32, %s33
      %p47 = scmp.eq.s32.totalorder %s25, 1
      %p48 = por %p46, %p47
      %p50 = scmp.ne.s32.totalorder %s33, %s49
      %p51 = scmp.eq.s32.totalorder %s25, 0
      %p52 = por %p50, %p51
      %s54 = sadd.s32 %s53, 1
      %p57 = scmp.eq.s32.totalorder %s19, 1
      %p58 = scmp.ne.s32.totalorder %s53, %s55
      %p59 = scmp.eq.s32.totalorder %s19, 0
      %p60 = por %p58, %p59
      %p61 = scmp.ne.s32.totalorder %s53, %s55
      %p62 = scmp.eq.s32.totalorder %s24, 1
      %p63 = por %p61, %p62
      %p64 = scmp.ne.s32.totalorder %s55, %s56
      %p65 = scmp.eq.s32.totalorder %s24, 0
      %p66 = por %p64, %p65
      %p67 = scmp.ne.s32.totalorder %s55, %s56
      %p68 = scmp.eq.s32.totalorder %s25, 1
      %p69 = por %p67, %p68
      %p71 = scmp.ne.s32.totalorder %s56, %s70
      %p72 = scmp.eq.s32.totalorder %s25, 0
      %p73 = por %p71, %p72
      %s75 = sadd.s32 %s74, 1
      %p78 = scmp.eq.s32.totalorder %s19, 1
      %p79 = scmp.ne.s32.totalorder %s74, %s76
      %p80 = scmp.eq.s32.totalorder %s19, 0
      %p81 = por %p79, %p80
      %p82 = scmp.ne.s32.totalorder %s74, %s76
      %p83 = scmp.eq.s32.totalorder %s24, 1
      %p84 = por %p82, %p83
      %p85 = scmp.ne.s32.totalorder %s76, %s77
      %p86 = scmp.eq.s32.totalorder %s24, 0
      %p87 = por %p85, %p86
      %p88 = scmp.ne.s32.totalorder %s76, %s77
      %p89 = scmp.eq.s32.totalorder %s25, 1
      %p90 = por %p88, %p89
      %p92 = scmp.ne.s32.totalorder %s77, %s91
      %p93 = scmp.eq.s32.totalorder %s25, 0
      %p94 = por %p92, %p93
      %s96 = sadd.s32 %s95, 1
      %p99 = scmp.eq.s32.totalorder %s19, 1
      %p100 = scmp.ne.s32.totalorder %s95, %s97
      %p101 = scmp.eq.s32.totalorder %s19, 0
      %p102 = por %p100, %p101
      %p103 = scmp.ne.s32.totalorder %s95, %s97
      %p104 = scmp.eq.s32.totalorder %s24, 1
      %p105 = por %p103, %p104
      %p106 = scmp.ne.s32.totalorder %s97, %s98
      %p107 = scmp.eq.s32.totalorder %s24, 0
      %p108 = por %p106, %p107
      %p109 = scmp.ne.s32.totalorder %s97, %s98
      %p110 = scmp.eq.s32.totalorder %s25, 1
      %p111 = por %p109, %p110
      %p113 = scmp.ne.s32.totalorder %s98, %s112
      %p114 = scmp.eq.s32.totalorder %s25, 0
      %p115 = por %p113, %p114
      %s117 = sadd.s32 %s116, 1
      %p120 = scmp.eq.s32.totalorder %s19, 1
      %p121 = scmp.ne.s32.totalorder %s116, %s118
      %p122 = scmp.eq.s32.totalorder %s19, 0
      %p123 = por %p121, %p122
      %p124 = scmp.ne.s32.totalorder %s116, %s118
      %p125 = scmp.eq.s32.totalorder %s24, 1
      %p126 = por %p124, %p125
      %p127 = scmp.ne.s32.totalorder %s118, %s119
      %p128 = scmp.eq.s32.totalorder %s24, 0
      %p129 = por %p127, %p128
      %p130 = scmp.ne.s32.totalorder %s118, %s119
      %p131 = scmp.eq.s32.totalorder %s25, 1
      %p132 = por %p130, %p131
      %p134 = scmp.ne.s32.totalorder %s119, %s133
      %p135 = scmp.eq.s32.totalorder %s25, 0
      %p136 = por %p134, %p135
      %s138 = sadd.s32 %s137, 1
      %p141 = scmp.eq.s32.totalorder %s19, 1
      %p142 = scmp.ne.s32.totalorder %s137, %s139
      %p143 = scmp.eq.s32.totalorder %s19, 0
      %p144 = por %p142, %p143
      %p145 = scmp.ne.s32.totalorder %s137, %s139
      %p146 = scmp.eq.s32.totalorder %s24, 1
      %p147 = por %p145, %p146
      %p148 = scmp.ne.s32.totalorder %s139, %s140
      %p149 = scmp.eq.s32.totalorder %s24, 0
      %p150 = por %p148, %p149
      %p151 = scmp.ne.s32.totalorder %s139, %s140
      %p152 = scmp.eq.s32.totalorder %s25, 1
      %p153 = por %p151, %p152
      %p155 = scmp.ne.s32.totalorder %s140, %s154
      %p156 = scmp.eq.s32.totalorder %s25, 0
      %p157 = por %p155, %p156
      %s159 = sadd.s32 %s158, 1
      %p162 = scmp.eq.s32.totalorder %s19, 1
      %p163 = scmp.ne.s32.totalorder %s158, %s160
      %p164 = scmp.eq.s32.totalorder %s19, 0
      %p165 = por %p163, %p164
      %p166 = scmp.ne.s32.totalorder %s158, %s160
      %p167 = scmp.eq.s32.totalorder %s24, 1
      %p168 = por %p166, %p167
      %p169 = scmp.ne.s32.totalorder %s160, %s161
      %p170 = scmp.eq.s32.totalorder %s24, 0
      %p171 = por %p169, %p170
      %p172 = scmp.ne.s32.totalorder %s160, %s161
      %p173 = scmp.eq.s32.totalorder %s25, 1
      %p174 = por %p172, %p173
      %p176 = scmp.ne.s32.totalorder %s161, %s175
      %p177 = scmp.eq.s32.totalorder %s25, 0
      %p178 = por %p176, %p177
      %s180 = sadd.s32 %s179, 1
      %p183 = scmp.eq.s32.totalorder %s19, 1
      %p184 = scmp.ne.s32.totalorder %s179, %s181
      %p185 = scmp.eq.s32.totalorder %s19, 0
      %p186 = por %p184, %p185
      %p187 = scmp.ne.s32.totalorder %s179, %s181
      %p188 = scmp.eq.s32.totalorder %s24, 1
      %p189 = por %p187, %p188
      %p190 = scmp.ne.s32.totalorder %s181, %s182
      %p191 = scmp.eq.s32.totalorder %s24, 0
      %p192 = por %p190, %p191
      %p193 = scmp.ne.s32.totalorder %s181, %s182
      %p194 = scmp.eq.s32.totalorder %s25, 1
      %p195 = por %p193, %p194
      %p197 = scmp.ne.s32.totalorder %s182, %s196
      %p198 = scmp.eq.s32.totalorder %s25, 0
      %p199 = por %p197, %p198
      %s201 = sadd.s32 %s200, 1
      %p204 = scmp.eq.s32.totalorder %s19, 1
      %p205 = scmp.ne.s32.totalorder %s200, %s202
      %p206 = scmp.eq.s32.totalorder %s19, 0
      %p207 = por %p205, %p206
      %p208 = scmp.ne.s32.totalorder %s200, %s202
      %p209 = scmp.eq.s32.totalorder %s24, 1
      %p210 = por %p208, %p209
      %p211 = scmp.ne.s32.totalorder %s202, %s203
      %p212 = scmp.eq.s32.totalorder %s24, 0
      %p213 = por %p211, %p212
      %p214 = scmp.ne.s32.totalorder %s202, %s203
      %p215 = scmp.eq.s32.totalorder %s25, 1
      %p216 = por %p214, %p215
      %p218 = scmp.ne.s32.totalorder %s203, %s217
      %p219 = scmp.eq.s32.totalorder %s25, 0
      %p220 = por %p218, %p219
      %s222 = sadd.s32 %s221, 1
      %p225 = scmp.eq.s32.totalorder %s19, 1
      %p226 = scmp.ne.s32.totalorder %s221, %s223
      %p227 = scmp.eq.s32.totalorder %s19, 0
      %p228 = por %p226, %p227
      %p229 = scmp.ne.s32.totalorder %s221, %s223
      %p230 = scmp.eq.s32.totalorder %s24, 1
      %p231 = por %p229, %p230
      %p232 = scmp.ne.s32.totalorder %s223, %s224
      %p233 = scmp.eq.s32.totalorder %s24, 0
      %p234 = por %p232, %p233
      %p235 = scmp.ne.s32.totalorder %s223, %s224
      %p236 = scmp.eq.s32.totalorder %s25, 1
      %p237 = por %p235, %p236
      %p239 = scmp.ne.s32.totalorder %s224, %s238
      %p240 = scmp.eq.s32.totalorder %s25, 0
      %p241 = por %p239, %p240
      %s242 = ssub.s32 %s19, %s26
      %p243 = scmp.eq.s32.totalorder %s242, 0
      %s245 = sadd.s32 %s244, 1
      %s246 = scalar_select %p243, %s244, %s245
      %p249 = pneg %p243
      %p250 = scmp.eq.s32.totalorder %s19, 1
      %p251 = por %p249, %p250
      %p252 = scmp.ne.s32.totalorder %s244, %s247
      %p253 = scmp.eq.s32.totalorder %s19, 0
      %p254 = por %p252, %p253
      %p255 = scmp.ne.s32.totalorder %s244, %s247
      %p256 = scmp.eq.s32.totalorder %s24, 1
      %p257 = por %p255, %p256
      %p258 = scmp.ne.s32.totalorder %s247, %s248
      %p259 = scmp.eq.s32.totalorder %s24, 0
      %p260 = por %p258, %p259
      %p261 = scmp.ne.s32.totalorder %s247, %s248
      %p262 = scmp.eq.s32.totalorder %s25, 1
      %p263 = por %p261, %p262
      %p265 = scmp.ne.s32.totalorder %s248, %s264
      %p266 = scmp.eq.s32.totalorder %s25, 0
      %p267 = por %p265, %p266
      %p268 = scmp.le.s32.totalorder 1, %s19
      %p269 = scmp.lt.s32.totalorder %s19, 3
      %p270 = pnand %p268, %p269
      %p271 = pneg %p270
      // Predicated region
      $region9: #{_lambda_.4} parent=5 // pred_check
        _
      $region10: #{_lambda_.4} parent=5 // pred_check_branch
        %273 = sbr.rel (%p270) target = $region12
      $region11: #{_lambda_.4} parent=5 // pred_region
        %s274 = ssub.s32 %s19, 1
        // Predicated region
        $region13: #{_lambda_.4} parent=11 // pred_check
          %p275 = pneg %p66
        $region14: #{_lambda_.4} parent=11 // pred_check_branch
          %277 = sbr.rel (%p275) target = $region16
        $region15: #{_lambda_.4} parent=11 // pred_region
          _
        $region16: #{_lambda_.4} parent=11 // pred_fallthru
          _
        // Predicated region
        $region17: #{_lambda_.4} parent=11 // pred_check
          %p278 = pneg %p87
        $region18: #{_lambda_.4} parent=11 // pred_check_branch
          %280 = sbr.rel (%p278) target = $region20
        $region19: #{_lambda_.4} parent=11 // pred_region
          %282 = vsyncadd [#allocation3], 0
          %s283 = sshll.u32 %s2, 4
          %s284 = int_to_ptr.hbm [resolvable:$true] %s283
          %s285 = sshll.u32 [#allocation2], 4
          %s286 = int_to_ptr.vmem [resolvable:$true] %s285
          %291 = dma.hbm_to_vmem [thread:$0]  %s284, 512, %s286, [#allocation3], 128, 128, 8
        $region20: #{_lambda_.4} parent=11 // pred_fallthru
          _
        // Predicated region
        $region21: #{_lambda_.4} parent=11 // pred_check
          %p292 = pneg %p108
        $region22: #{_lambda_.4} parent=11 // pred_check_branch
          %294 = sbr.rel (%p292) target = $region24
        $region23: #{_lambda_.4} parent=11 // pred_region
          _
        $region24: #{_lambda_.4} parent=11 // pred_fallthru
          _
        // Predicated region
        $region25: #{_lambda_.4} parent=11 // pred_check
          %p295 = pneg %p129
        $region26: #{_lambda_.4} parent=11 // pred_check_branch
          %297 = sbr.rel (%p295) target = $region28
        $region27: #{_lambda_.4} parent=11 // pred_region
          %299 = vsyncadd [#allocation5], 0
          %s300 = sshll.u32 %s4, 4
          %s301 = int_to_ptr.hbm [resolvable:$true] %s300
          %s302 = sshll.u32 [#allocation4], 4
          %s303 = int_to_ptr.vmem [resolvable:$true] %s302
          %308 = dma.hbm_to_vmem [thread:$0]  %s301, 512, %s303, [#allocation5], 64, 64, 4
        $region28: #{_lambda_.4} parent=11 // pred_fallthru
          _
        // Predicated region
        $region29: #{_lambda_.4} parent=11 // pred_check
          %p309 = pneg %p150
        $region30: #{_lambda_.4} parent=11 // pred_check_branch
          %311 = sbr.rel (%p309) target = $region32
        $region31: #{_lambda_.4} parent=11 // pred_region
          %313 = vsyncadd [#allocation5], 0
          %s314 = sshll.u32 %s5, 4
          %s315 = int_to_ptr.hbm [resolvable:$true] %s314
          %s316 = sshll.u32 [#allocation6], 4
          %s317 = int_to_ptr.vmem [resolvable:$true] %s316
          %322 = dma.hbm_to_vmem [thread:$0]  %s315, 640, %s317, [#allocation5], 64, 64, 4
        $region32: #{_lambda_.4} parent=11 // pred_fallthru
          _
        // Predicated region
        $region33: #{_lambda_.4} parent=11 // pred_check
          %p323 = pneg %p171
        $region34: #{_lambda_.4} parent=11 // pred_check_branch
          %325 = sbr.rel (%p323) target = $region36
        $region35: #{_lambda_.4} parent=11 // pred_region
          _
        $region36: #{_lambda_.4} parent=11 // pred_fallthru
          _
        // Predicated region
        $region37: #{_lambda_.4} parent=11 // pred_check
          %p326 = pneg %p192
        $region38: #{_lambda_.4} parent=11 // pred_check_branch
          %328 = sbr.rel (%p326) target = $region40
        $region39: #{_lambda_.4} parent=11 // pred_region
          _
        $region40: #{_lambda_.4} parent=11 // pred_fallthru
          _
        // Predicated region
        $region41: #{_lambda_.4} parent=11 // pred_check
          %p329 = pneg %p213
        $region42: #{_lambda_.4} parent=11 // pred_check_branch
          %331 = sbr.rel (%p329) target = $region44
        $region43: #{_lambda_.4} parent=11 // pred_region
          _
        $region44: #{_lambda_.4} parent=11 // pred_fallthru
          _
        // Predicated region
        $region45: #{_lambda_.4} parent=11 // pred_check
          %p332 = pneg %p234
        $region46: #{_lambda_.4} parent=11 // pred_check_branch
          %334 = sbr.rel (%p332) target = $region48
        $region47: #{_lambda_.4} parent=11 // pred_region
          %336 = vsyncadd [#allocation8], 0
          %s337 = sshll.u32 %s9, 4
          %s338 = int_to_ptr.hbm [resolvable:$true] %s337
          %s339 = sshll.u32 [#allocation7], 4
          %s340 = int_to_ptr.vmem [resolvable:$true] %s339
          %345 = dma.hbm_to_vmem [thread:$0]  %s338, 320, %s340, [#allocation8], 64, 64, 4
        $region48: #{_lambda_.4} parent=11 // pred_fallthru
          _
      $region12: #{_lambda_.4} parent=5 // pred_fallthru
        _
      %p346 = scmp.lt.s32.totalorder %s19, 2
      // Predicated region
      $region49: #{_lambda_.4} parent=5 // pred_check
        %p347 = pneg %p346
      $region50: #{_lambda_.4} parent=5 // pred_check_branch
        %349 = sbr.rel (%p347) target = $region52
      $region51: #{_lambda_.4} parent=5 // pred_region
        // Predicated region
        $region53: #{_lambda_.4} parent=51 // pred_check
          %p350 = pneg %p39
        $region54: #{_lambda_.4} parent=51 // pred_check_branch
          %352 = sbr.rel (%p350) target = $region56
        $region55: #{_lambda_.4} parent=51 // pred_region
          %p353 = scmp.lt.s32.totalorder %s19, 1
          %s354 = scalar_select %p353, %s19, 1
          %s355 = smul.addr %s354, 2
          %s356 = smul.addr %s355, 8
          %s357 = scalar_lea.vmem %s0, %s356
        $region56: #{_lambda_.4} parent=51 // pred_fallthru
          _
      $region52: #{_lambda_.4} parent=5 // pred_fallthru
        _
      %p358 = scmp.le.s32.totalorder 1, %s19
      %p359 = scmp.lt.s32.totalorder %s19, 3
      %p360 = pnand %p358, %p359
      %p361 = pneg %p360
      // Predicated region
      $region57: #{_lambda_.4} parent=5 // pred_check
        _
      $region58: #{_lambda_.4} parent=5 // pred_check_branch
        %363 = sbr.rel (%p360) target = $region60
      $region59: #{_lambda_.4} parent=5 // pred_region
        %s364 = ssub.s32 %s19, 1
        // Predicated region
        $region61: #{_lambda_.4} parent=59 // pred_check
          %p365 = pneg %p87
        $region62: #{_lambda_.4} parent=59 // pred_check_branch
          %367 = sbr.rel (%p365) target = $region64
        $region63: #{_lambda_.4} parent=59 // pred_region
          %369 = dma.done [#allocation3], 512
        $region64: #{_lambda_.4} parent=59 // pred_fallthru
          _
        // Predicated region
        $region65: #{_lambda_.4} parent=59 // pred_check
          %p370 = pneg %p129
        $region66: #{_lambda_.4} parent=59 // pred_check_branch
          %372 = sbr.rel (%p370) target = $region68
        $region67: #{_lambda_.4} parent=59 // pred_region
          %374 = dma.done [#allocation5], 512
        $region68: #{_lambda_.4} parent=59 // pred_fallthru
          _
        // Predicated region
        $region69: #{_lambda_.4} parent=59 // pred_check
          %p375 = pneg %p150
        $region70: #{_lambda_.4} parent=59 // pred_check_branch
          %377 = sbr.rel (%p375) target = $region72
        $region71: #{_lambda_.4} parent=59 // pred_region
          %379 = dma.done [#allocation5], 640
        $region72: #{_lambda_.4} parent=59 // pred_fallthru
          _
        // Predicated region
        $region73: #{_lambda_.4} parent=59 // pred_check
          %p380 = pneg %p234
        $region74: #{_lambda_.4} parent=59 // pred_check_branch
          %382 = sbr.rel (%p380) target = $region76
        $region75: #{_lambda_.4} parent=59 // pred_region
          %384 = dma.done [#allocation8], 320
        $region76: #{_lambda_.4} parent=59 // pred_fallthru
          _
        %p385 = scmp.lt.s32.totalorder %s24, 1
        %s386 = scalar_select %p385, %s24, 1
        %s387 = smul.addr %s386, 2
        %s388 = smul.addr %s387, 8
        %s389 = scalar_lea.vmem %s0, %s388
        %p390 = pneg %p45
        %p391 = pneg %p42
        %p392 = pneg %p66
        %p393 = pneg %p63
        %p394 = pneg %p87
        %p395 = pneg %p84
        %p396 = pneg %p108
        %p397 = pneg %p105
        %p398 = pneg %p129
        %p399 = pneg %p126
        %p400 = pneg %p150
        %p401 = pneg %p147
        %p402 = pneg %p171
        %p403 = pneg %p168
        %p404 = pneg %p192
        %p405 = pneg %p189
        %p406 = pneg %p213
        %p407 = pneg %p210
        %p408 = pneg %p234
        %p409 = pneg %p231
        %p410 = pneg %p260
        %p411 = pneg %p257
        %p412 = scmp.lt.s32.totalorder %s24, 1
        %s413 = scalar_select %p412, %s24, 1
        %s414 = smul.addr %s413, 4
        %s415 = smul.addr %s414, 8
        %s416 = scalar_lea.vmem %s10, %s415
        %p417 = scmp.lt.s32.totalorder %s24, 1
        %s418 = scalar_select %p417, %s24, 1
        %s419 = smul.addr %s418, 2
        %s420 = smul.addr %s419, 8
        %s421 = scalar_lea.vmem %s0, %s420
        %p422 = scmp.lt.s32.totalorder %s24, 1
        %s423 = scalar_select %p422, %s24, 1
        %s424 = smul.addr %s423, 4
        %s425 = smul.addr %s424, 8
        %s426 = scalar_lea.vmem %s10, %s425
        %v428 = vld [vmem:[%s421] sm:$0xff]
        %v429 = vld [vmem:[%s421 + $0x8] sm:$0xff]
        %v430 = vpack.c.bf16 %v429, %v428
        %v431 = vld [vmem:[#allocation4] sm:$0xf]
        %v432 = vld [vmem:[#allocation4 + $0x4] sm:$0xf]
        %v433 = vld [vmem:[#allocation4 + $0x8] sm:$0xf]
        %v434 = vld [vmem:[#allocation4 + $0xc] sm:$0xf]
        %v435 = vld [vmem:[#allocation4 + $0x10] sm:$0xf]
        %v436 = vld [vmem:[#allocation4 + $0x14] sm:$0xf]
        %v437 = vld [vmem:[#allocation4 + $0x18] sm:$0xf]
        %v438 = vld [vmem:[#allocation4 + $0x1c] sm:$0xf]
        %v447 = vunpack.c.l.b16 %v431
        %v448 = vunpack.c.l.b16 %v432
        %v449 = vunpack.c.l.b16 %v433
        %v450 = vunpack.c.l.b16 %v434
        %v451 = vunpack.c.l.b16 %v435
        %v452 = vunpack.c.l.b16 %v436
        %v453 = vunpack.c.l.b16 %v437
        %v454 = vunpack.c.l.b16 %v438
        %v455 = vpack.c.b16 %v448, %v447
        %v456 = vpack.c.b16 %v450, %v449
        %v457 = vpack.c.b16 %v452, %v451
        %v458 = vpack.c.b16 %v454, %v453
        %vm463 = vcmask 523264
        %v465 = vsel %vm463, %v430, 0
        %467 = vmatpush.bf16.msra.mxu0 0
        %468 = vmatpush.bf16.msra.mxu0 0
        %469 = vmatpush.bf16.msra.mxu0 0
        %470 = vmatpush.bf16.msra.mxu0 0
        %471 = vmatpush.bf16.msra.mxu0 %v458
        %472 = vmatpush.bf16.msra.mxu0 %v457
        %473 = vmatpush.bf16.msra.mxu0 %v456
        %474 = vmatpush.bf16.msra.mxu0 %v455
        %475 = vmatmul.bf16.gmra.mxu0 %v465
        %v476 = vpop.f32.mrf.mxu0
        %v477 = vadd.f32 0.0, %v476
        %v478 = vpop.f32.mrf.mxu0
        %v479 = vadd.f32 0.0, %v478
        %480 = vdwg.mxu0
        %v481 = vpack.c.bf16 %v477, %v477
        %v482 = vpack.c.bf16 %v479, %v479
        %v485 = vunpack.c.l.b16 %v481
        %v486 = vunpack.c.l.b16 %v482
        %v487 = vpack.c.b16 %v486, %v485
        %489 = vrot.lane.b32.xlu0 %v487, 127
        %v490 = vpop.permute.xlu0 %489
        %492 = vrot.lane.b32.xlu0 %v487, 126
        %v493 = vpop.permute.xlu0 %492
        %495 = vrot.lane.b32.xlu0 %v487, 118
        %v496 = vpop.permute.xlu0 %495
        %498 = vrot.lane.b32.xlu0 %v487, 117
        %v499 = vpop.permute.xlu0 %498
        %501 = vrot.lane.b32.xlu0 %v487, 116
        %v502 = vpop.permute.xlu0 %501
        %504 = vrot.lane.b32.xlu0 %v487, 108
        %v505 = vpop.permute.xlu0 %504
        %507 = vrot.lane.b32.xlu0 %v487, 107
        %v508 = vpop.permute.xlu0 %507
        %510 = vrot.lane.b32.xlu0 %v487, 106
        %v511 = vpop.permute.xlu0 %510
        %v513 = vld [vmem:[#allocation2] sm:$0xff]
        %v514 = vld [vmem:[#allocation2 + $0x8] sm:$0xff]
        %v515 = vld [vmem:[#allocation2 + $0x10] sm:$0xff]
        %v516 = vld [vmem:[#allocation2 + $0x18] sm:$0xff]
        %v517 = vld [vmem:[%s3] sm:$0xff]
        %v518 = vld [vmem:[%s3 + $0x8] sm:$0xff]
        %v519 = vld [vmem:[%s3 + $0x10] sm:$0xff]
        %v520 = vld [vmem:[%s3 + $0x18] sm:$0xff]
        %522 = vset.pattern.permute.xlu0 0
        %523 = vperm.xlu0 %522, %v517
        %v524 = vpop.permute.xlu0 %523
        %527 = vset.pattern.permute.xlu0 0
        %528 = vperm.xlu0 %527, %v518
        %v529 = vpop.permute.xlu0 %528
        %532 = vset.pattern.permute.xlu0 0
        %533 = vperm.xlu0 %532, %v519
        %v534 = vpop.permute.xlu0 %533
        %537 = vset.pattern.permute.xlu0 0
        %538 = vperm.xlu0 %537, %v520
        %v539 = vpop.permute.xlu0 %538
        %v545 = vunpack.c.l.b16 %v513
        %v546 = vunpack.c.h.b16 %v513
        %v547 = vunpack.c.l.b16 %v514
        %v548 = vunpack.c.h.b16 %v514
        %v549 = vunpack.c.l.b16 %v515
        %v550 = vunpack.c.h.b16 %v515
        %v551 = vunpack.c.l.b16 %v516
        %v552 = vunpack.c.h.b16 %v516
        %v553 = vpack.c.b16 %v547, %v545
        %v554 = vpack.c.b16 %v548, %v546
        %v555 = vpack.c.b16 %v551, %v549
        %v556 = vpack.c.b16 %v552, %v550
        %vm559 = vcmask 130048
        %v561 = vsel %vm559, %v554, 0
        %v564 = vsel %vm559, %v556, 0
        %566 = vmatpush.bf16.msra.mxu0 %v508
        %567 = vmatpush.bf16.msra.mxu0 %v505
        %568 = vmatpush.bf16.msra.mxu0 %v502
        %569 = vmatpush.bf16.msra.mxu0 %v499
        %570 = vmatpush.bf16.msra.mxu0 %v496
        %571 = vmatpush.bf16.msra.mxu0 %v493
        %572 = vmatpush.bf16.msra.mxu0 %v490
        %573 = vmatpush.bf16.msra.mxu0 %v487
        %574 = vmatmul.bf16.gmra.mxu0 %v553
        %v575 = vpop.f32.mrf.mxu0
        %v576 = vadd.f32 %v524, %v575
        %v577 = vpop.f32.mrf.mxu0
        %v578 = vadd.f32 %v529, %v577
        %579 = vmatmul.bf16.gmra.mxu0 %v555
        %v580 = vpop.f32.mrf.mxu0
        %v581 = vadd.f32 %v534, %v580
        %v582 = vpop.f32.mrf.mxu0
        %v583 = vadd.f32 %v539, %v582
        %584 = vdwg.mxu0
        %585 = vmatpush.bf16.msra.mxu0 0
        %586 = vmatpush.bf16.msra.mxu0 0
        %587 = vmatpush.bf16.msra.mxu0 0
        %588 = vmatpush.bf16.msra.mxu0 0
        %589 = vmatpush.bf16.msra.mxu0 0
        %590 = vmatpush.bf16.msra.mxu0 0
        %591 = vmatpush.bf16.msra.mxu0 0
        %592 = vmatpush.bf16.msra.mxu0 %v511
        %593 = vmatmul.bf16.gmra.mxu0 %v561
        %v594 = vpop.f32.mrf.mxu0
        %v595 = vadd.f32 %v576, %v594
        %v596 = vpop.f32.mrf.mxu0
        %v597 = vadd.f32 %v578, %v596
        %598 = vmatmul.bf16.gmra.mxu0 %v564
        %v599 = vpop.f32.mrf.mxu0
        %v600 = vadd.f32 %v581, %v599
        %v601 = vpop.f32.mrf.mxu0
        %v602 = vadd.f32 %v583, %v601
        %603 = vdwg.mxu0
        %v604 = vld [vmem:[%s1] sm:$0x1]
        %v606 = vperm.slane %v604, 0
        %v608 = vmul.f32 %v595, %v606
        %v609 = vmul.f32 %v597, %v606
        %v610 = vmul.f32 %v600, %v606
        %v611 = vmul.f32 %v602, %v606
        %v612 = vpack.c.bf16 %v608, %v608
        %v613 = vpack.c.bf16 %v609, %v609
        %v614 = vpack.c.bf16 %v610, %v610
        %v615 = vpack.c.bf16 %v611, %v611
        %v620 = vunpack.c.l.b16 %v612
        %v621 = vunpack.c.l.b16 %v613
        %v622 = vunpack.c.l.b16 %v614
        %v623 = vunpack.c.l.b16 %v615
        %v624 = vpack.c.b16 %v621, %v620
        %v625 = vpack.c.b16 %v623, %v622
        %vm626 = vcmask 637952
        %v629 = vsel %vm626, %v624, 0
        %v632 = vsel %vm626, %v625, 0
        %v634 = vunpack.c.l.bf16 %v629
        %v635 = vunpack.c.h.bf16 %v629
        %v636 = vunpack.c.l.bf16 %v632
        %v637 = vunpack.c.h.bf16 %v632
        %642 = vrot.lane.b32.xlu0 %v634, 127
        %v643 = vpop.permute.xlu0 %642
        %644 = vrot.lane.b32.xlu0 %v635, 127
        %v645 = vpop.permute.xlu0 %644
        %646 = vrot.lane.b32.xlu0 %v636, 127
        %v647 = vpop.permute.xlu0 %646
        %648 = vrot.lane.b32.xlu0 %v637, 127
        %v649 = vpop.permute.xlu0 %648
        %v654 = vmax.f32 %v634, %v643
        %v655 = vmax.f32 %v635, %v645
        %v656 = vmax.f32 %v636, %v647
        %v657 = vmax.f32 %v637, %v649
        %v658 = vpack.c.bf16 %v654, %v654
        %v659 = vpack.c.bf16 %v655, %v655
        %v660 = vpack.c.bf16 %v656, %v656
        %v661 = vpack.c.bf16 %v657, %v657
        %v662 = vunpack.c.l.bf16 %v658
        %v663 = vunpack.c.l.bf16 %v659
        %v664 = vunpack.c.l.bf16 %v660
        %v665 = vunpack.c.l.bf16 %v661
        %666 = vrot.lane.b32.xlu0 %v634, 126
        %v667 = vpop.permute.xlu0 %666
        %668 = vrot.lane.b32.xlu0 %v635, 126
        %v669 = vpop.permute.xlu0 %668
        %670 = vrot.lane.b32.xlu0 %v636, 126
        %v671 = vpop.permute.xlu0 %670
        %672 = vrot.lane.b32.xlu0 %v637, 126
        %v673 = vpop.permute.xlu0 %672
        %v678 = vmax.f32 %v662, %v667
        %v679 = vmax.f32 %v663, %v669
        %v680 = vmax.f32 %v664, %v671
        %v681 = vmax.f32 %v665, %v673
        %v682 = vpack.c.bf16 %v678, %v678
        %v683 = vpack.c.bf16 %v679, %v679
        %v684 = vpack.c.bf16 %v680, %v680
        %v685 = vpack.c.bf16 %v681, %v681
        %v686 = vunpack.c.l.bf16 %v682
        %v687 = vunpack.c.l.bf16 %v683
        %v688 = vunpack.c.l.bf16 %v684
        %v689 = vunpack.c.l.bf16 %v685
        %694 = vrot.lane.b32.xlu0 %v686, 118
        %v695 = vpop.permute.xlu0 %694
        %696 = vrot.lane.b32.xlu0 %v687, 118
        %v697 = vpop.permute.xlu0 %696
        %698 = vrot.lane.b32.xlu0 %v688, 118
        %v699 = vpop.permute.xlu0 %698
        %700 = vrot.lane.b32.xlu0 %v689, 118
        %v701 = vpop.permute.xlu0 %700
        %v706 = vmax.f32 %v686, %v695
        %v707 = vmax.f32 %v687, %v697
        %v708 = vmax.f32 %v688, %v699
        %v709 = vmax.f32 %v689, %v701
        %v710 = vpack.c.bf16 %v706, %v706
        %v711 = vpack.c.bf16 %v707, %v707
        %v712 = vpack.c.bf16 %v708, %v708
        %v713 = vpack.c.bf16 %v709, %v709
        %v714 = vunpack.c.l.bf16 %v710
        %v715 = vunpack.c.l.bf16 %v711
        %v716 = vunpack.c.l.bf16 %v712
        %v717 = vunpack.c.l.bf16 %v713
        %718 = vrot.lane.b32.xlu0 %v686, 108
        %v719 = vpop.permute.xlu0 %718
        %720 = vrot.lane.b32.xlu0 %v687, 108
        %v721 = vpop.permute.xlu0 %720
        %722 = vrot.lane.b32.xlu0 %v688, 108
        %v723 = vpop.permute.xlu0 %722
        %724 = vrot.lane.b32.xlu0 %v689, 108
        %v725 = vpop.permute.xlu0 %724
        %v730 = vmax.f32 %v714, %v719
        %v731 = vmax.f32 %v715, %v721
        %v732 = vmax.f32 %v716, %v723
        %v733 = vmax.f32 %v717, %v725
        %v734 = vpack.c.bf16 %v731, %v730
        %v735 = vpack.c.bf16 %v733, %v732
        %v736 = vld [vmem:[#allocation6] sm:$0xf]
        %v737 = vld [vmem:[#allocation6 + $0x4] sm:$0xf]
        %v738 = vld [vmem:[#allocation6 + $0x8] sm:$0xf]
        %v739 = vld [vmem:[#allocation6 + $0xc] sm:$0xf]
        %v740 = vld [vmem:[#allocation6 + $0x10] sm:$0xf]
        %v741 = vld [vmem:[#allocation6 + $0x14] sm:$0xf]
        %v742 = vld [vmem:[#allocation6 + $0x18] sm:$0xf]
        %v743 = vld [vmem:[#allocation6 + $0x1c] sm:$0xf]
        %v744 = vld [vmem:[#allocation6 + $0x20] sm:$0xf]
        %v745 = vld [vmem:[#allocation6 + $0x24] sm:$0x7]
        %v756 = vunpack.c.l.b16 %v736
        %v757 = vunpack.c.l.b16 %v737
        %v758 = vunpack.c.l.b16 %v738
        %v759 = vunpack.c.l.b16 %v739
        %v760 = vunpack.c.l.b16 %v740
        %v761 = vunpack.c.l.b16 %v741
        %v762 = vunpack.c.l.b16 %v742
        %v763 = vunpack.c.l.b16 %v743
        %v764 = vunpack.c.l.b16 %v744
        %v765 = vunpack.c.l.b16 %v745
        %v766 = vpack.c.b16 %v757, %v756
        %v767 = vpack.c.b16 %v759, %v758
        %v768 = vpack.c.b16 %v761, %v760
        %v769 = vpack.c.b16 %v763, %v762
        %v770 = vpack.c.b16 %v765, %v764
        %v776 = vsel %vm626, %v734, 0
        %v779 = vsel %vm626, %v735, 0
        %vm781 = vcmask 1046528
        %v783 = vsel %vm781, %v770, 0
        %785 = vmatpush.bf16.msra.mxu0 0
        %786 = vmatpush.bf16.msra.mxu0 0
        %787 = vmatpush.bf16.msra.mxu0 0
        %788 = vmatpush.bf16.msra.mxu0 %v783
        %789 = vmatpush.bf16.msra.mxu0 %v769
        %790 = vmatpush.bf16.msra.mxu0 %v768
        %791 = vmatpush.bf16.msra.mxu0 %v767
        %792 = vmatpush.bf16.msra.mxu0 %v766
        %793 = vmatmul.bf16.gmra.mxu0 %v776
        %v794 = vpop.f32.mrf.mxu0
        %v795 = vadd.f32 0.0, %v794
        %v796 = vpop.f32.mrf.mxu0
        %v797 = vadd.f32 0.0, %v796
        %798 = vmatmul.bf16.gmra.mxu0 %v779
        %v799 = vpop.f32.mrf.mxu0
        %v800 = vadd.f32 0.0, %v799
        %v801 = vpop.f32.mrf.mxu0
        %v802 = vadd.f32 0.0, %v801
        %803 = vdwg.mxu0
        %v804 = vpack.c.bf16 %v795, %v795
        %v805 = vpack.c.bf16 %v797, %v797
        %v806 = vpack.c.bf16 %v800, %v800
        %v807 = vpack.c.bf16 %v802, %v802
        %v808 = vld [vmem:[%s6] sm:$0xff]
        %v809 = vld [vmem:[%s6 + $0x8] sm:$0xf]
        %v810 = vld [vmem:[%s6 + $0xc] sm:$0xff]
        %v811 = vld [vmem:[%s6 + $0x14] sm:$0xf]
        %v812 = vld [vmem:[%s6 + $0x18] sm:$0xff]
        %v813 = vld [vmem:[%s6 + $0x20] sm:$0xf]
        %v814 = vld [vmem:[%s6 + $0x24] sm:$0xff]
        %v815 = vld [vmem:[%s6 + $0x2c] sm:$0xf]
        %s816 = scalar_lea.vmem %s6, 48
        %v817 = vld [vmem:[%s816] sm:$0xff]
        %v818 = vld [vmem:[%s816 + $0x8] sm:$0xf]
        %v819 = vld [vmem:[%s816 + $0xc] sm:$0xff]
        %v820 = vld [vmem:[%s816 + $0x14] sm:$0xf]
        %v821 = vld [vmem:[%s816 + $0x18] sm:$0xff]
        %v822 = vld [vmem:[%s816 + $0x20] sm:$0xf]
        %v823 = vld [vmem:[%s816 + $0x24] sm:$0xff]
        %v824 = vld [vmem:[%s816 + $0x2c] sm:$0xf]
        %v825 = vld [vmem:[%s7] sm:$0xff]
        %v826 = vld [vmem:[%s7 + $0x8] sm:$0xff]
        %v827 = vld [vmem:[%s7 + $0x10] sm:$0xff]
        %v828 = vld [vmem:[%s7 + $0x18] sm:$0xff]
        %s829 = scalar_lea.vmem %s7, 32
        %v830 = vld [vmem:[%s829] sm:$0xff]
        %v831 = vld [vmem:[%s829 + $0x8] sm:$0xff]
        %v832 = vld [vmem:[%s829 + $0x10] sm:$0xff]
        %v833 = vld [vmem:[%s829 + $0x18] sm:$0xff]
        %v834 = vunpack.c.l.bf16 %v804
        %v835 = vunpack.c.l.bf16 %v805
        %v836 = vunpack.c.l.bf16 %v806
        %v837 = vunpack.c.l.bf16 %v807
        %v838 = vmax.f32 %v834, 0.0
        %v839 = vmax.f32 %v835, 0.0
        %v840 = vmax.f32 %v836, 0.0
        %v841 = vmax.f32 %v837, 0.0
        %v842 = vpack.c.bf16 %v838, %v838
        %v843 = vpack.c.bf16 %v839, %v839
        %v844 = vpack.c.bf16 %v840, %v840
        %v845 = vpack.c.bf16 %v841, %v841
        %v850 = vunpack.c.l.b16 %v842
        %v851 = vunpack.c.l.b16 %v843
        %v852 = vunpack.c.l.b16 %v844
        %v853 = vunpack.c.l.b16 %v845
        %v854 = vpack.c.b16 %v851, %v850
        %v855 = vpack.c.b16 %v853, %v852
        %858 = vrot.lane.b32.xlu0 %v854, 127
        %v859 = vpop.permute.xlu0 %858
        %860 = vrot.lane.b32.xlu0 %v855, 127
        %v861 = vpop.permute.xlu0 %860
        %864 = vrot.lane.b32.xlu0 %v854, 126
        %v865 = vpop.permute.xlu0 %864
        %866 = vrot.lane.b32.xlu0 %v855, 126
        %v867 = vpop.permute.xlu0 %866
        %870 = vrot.lane.b32.xlu0 %v854, 122
        %v871 = vpop.permute.xlu0 %870
        %872 = vrot.lane.b32.xlu0 %v855, 122
        %v873 = vpop.permute.xlu0 %872
        %876 = vrot.lane.b32.xlu0 %v854, 121
        %v877 = vpop.permute.xlu0 %876
        %878 = vrot.lane.b32.xlu0 %v855, 121
        %v879 = vpop.permute.xlu0 %878
        %882 = vrot.lane.b32.xlu0 %v854, 120
        %v883 = vpop.permute.xlu0 %882
        %884 = vrot.lane.b32.xlu0 %v855, 120
        %v885 = vpop.permute.xlu0 %884
        %888 = vrot.lane.b32.xlu0 %v854, 116
        %v889 = vpop.permute.xlu0 %888
        %890 = vrot.lane.b32.xlu0 %v855, 116
        %v891 = vpop.permute.xlu0 %890
        %894 = vrot.lane.b32.xlu0 %v854, 115
        %v895 = vpop.permute.xlu0 %894
        %896 = vrot.lane.b32.xlu0 %v855, 115
        %v897 = vpop.permute.xlu0 %896
        %900 = vrot.lane.b32.xlu0 %v854, 114
        %v901 = vpop.permute.xlu0 %900
        %902 = vrot.lane.b32.xlu0 %v855, 114
        %v903 = vpop.permute.xlu0 %902
        %907 = vset.pattern.permute.xlu0 0
        %908 = vperm.xlu0 %907, %v825
        %v909 = vpop.permute.xlu0 %908
        %912 = vset.pattern.permute.xlu0 0
        %913 = vperm.xlu0 %912, %v826
        %v914 = vpop.permute.xlu0 %913
        %917 = vset.pattern.permute.xlu0 0
        %918 = vperm.xlu0 %917, %v827
        %v919 = vpop.permute.xlu0 %918
        %922 = vset.pattern.permute.xlu0 0
        %923 = vperm.xlu0 %922, %v828
        %v924 = vpop.permute.xlu0 %923
        %v934 = vunpack.c.l.b16 %v808
        %v935 = vunpack.c.h.b16 %v808
        %v936 = vunpack.c.l.b16 %v809
        %v937 = vunpack.c.l.b16 %v810
        %v938 = vunpack.c.h.b16 %v810
        %v939 = vunpack.c.l.b16 %v811
        %v940 = vunpack.c.l.b16 %v812
        %v941 = vunpack.c.h.b16 %v812
        %v942 = vunpack.c.l.b16 %v813
        %v943 = vunpack.c.l.b16 %v814
        %v944 = vunpack.c.h.b16 %v814
        %v945 = vunpack.c.l.b16 %v815
        %v946 = vpack.c.b16 %v937, %v934
        %v947 = vpack.c.b16 %v938, %v935
        %v948 = vpack.c.b16 %v939, %v936
        %v949 = vpack.c.b16 %v943, %v940
        %v950 = vpack.c.b16 %v944, %v941
        %v951 = vpack.c.b16 %v945, %v942
        %vm956 = vcmask 261120
        %v958 = vsel %vm956, %v948, 0
        %v961 = vsel %vm956, %v951, 0
        %963 = vmatpush.bf16.msra.mxu0 %v873
        %964 = vmatpush.bf16.msra.mxu0 %v871
        %965 = vmatpush.bf16.msra.mxu0 %v867
        %966 = vmatpush.bf16.msra.mxu0 %v865
        %967 = vmatpush.bf16.msra.mxu0 %v861
        %968 = vmatpush.bf16.msra.mxu0 %v859
        %969 = vmatpush.bf16.msra.mxu0 %v855
        %970 = vmatpush.bf16.msra.mxu0 %v854
        %971 = vmatmul.bf16.gmra.mxu0 %v946
        %v972 = vpop.f32.mrf.mxu0
        %v973 = vadd.f32 %v909, %v972
        %v974 = vpop.f32.mrf.mxu0
        %v975 = vadd.f32 %v914, %v974
        %976 = vmatmul.bf16.gmra.mxu0 %v949
        %v977 = vpop.f32.mrf.mxu0
        %v978 = vadd.f32 %v919, %v977
        %v979 = vpop.f32.mrf.mxu0
        %v980 = vadd.f32 %v924, %v979
        %981 = vdwg.mxu0
        %982 = vmatpush.bf16.msra.mxu0 %v897
        %983 = vmatpush.bf16.msra.mxu0 %v895
        %984 = vmatpush.bf16.msra.mxu0 %v891
        %985 = vmatpush.bf16.msra.mxu0 %v889
        %986 = vmatpush.bf16.msra.mxu0 %v885
        %987 = vmatpush.bf16.msra.mxu0 %v883
        %988 = vmatpush.bf16.msra.mxu0 %v879
        %989 = vmatpush.bf16.msra.mxu0 %v877
        %990 = vmatmul.bf16.gmra.mxu0 %v947
        %v991 = vpop.f32.mrf.mxu0
        %v992 = vadd.f32 %v973, %v991
        %v993 = vpop.f32.mrf.mxu0
        %v994 = vadd.f32 %v975, %v993
        %995 = vmatmul.bf16.gmra.mxu0 %v950
        %v996 = vpop.f32.mrf.mxu0
        %v997 = vadd.f32 %v978, %v996
        %v998 = vpop.f32.mrf.mxu0
        %v999 = vadd.f32 %v980, %v998
        %1000 = vdwg.mxu0
        %1001 = vmatpush.bf16.msra.mxu0 0
        %1002 = vmatpush.bf16.msra.mxu0 0
        %1003 = vmatpush.bf16.msra.mxu0 0
        %1004 = vmatpush.bf16.msra.mxu0 0
        %1005 = vmatpush.bf16.msra.mxu0 0
        %1006 = vmatpush.bf16.msra.mxu0 0
        %1007 = vmatpush.bf16.msra.mxu0 %v903
        %1008 = vmatpush.bf16.msra.mxu0 %v901
        %1009 = vmatmul.bf16.gmra.mxu0 %v958
        %v1010 = vpop.f32.mrf.mxu0
        %v1011 = vadd.f32 %v992, %v1010
        %v1012 = vpop.f32.mrf.mxu0
        %v1013 = vadd.f32 %v994, %v1012
        %1014 = vmatmul.bf16.gmra.mxu0 %v961
        %v1015 = vpop.f32.mrf.mxu0
        %v1016 = vadd.f32 %v997, %v1015
        %v1017 = vpop.f32.mrf.mxu0
        %v1018 = vadd.f32 %v999, %v1017
        %1019 = vdwg.mxu0
        %v1020 = vmax.f32 %v1011, 0.0
        %v1021 = vmax.f32 %v1013, 0.0
        %v1022 = vmax.f32 %v1016, 0.0
        %v1023 = vmax.f32 %v1018, 0.0
        %v1024 = vpack.c.bf16 %v1021, %v1020
        %v1025 = vpack.c.bf16 %v1023, %v1022
        %v1026 = vld [vmem:[%s8] sm:$0xf]
        %v1027 = vld [vmem:[%s8 + $0x4] sm:$0xf]
        %v1028 = vld [vmem:[%s8 + $0x8] sm:$0x7]
        %v1032 = vunpack.c.l.b16 %v1026
        %v1033 = vunpack.c.l.b16 %v1027
        %v1034 = vunpack.c.l.b16 %v1028
        %v1035 = vpack.c.b16 %v1033, %v1032
        %v1036 = vpack.c.b16 %v1034, %v1034
        %vm1038 = vcmask 179200
        %v1040 = vsel %vm1038, %v1024, 0
        %v1043 = vsel %vm1038, %v1025, 0
        %vm1045 = vcmask 1042432
        %v1047 = vsel %vm1045, %v1036, 0
        %1049 = vmatpush.bf16.msra.mxu0 0
        %1050 = vmatpush.bf16.msra.mxu0 0
        %1051 = vmatpush.bf16.msra.mxu0 0
        %1052 = vmatpush.bf16.msra.mxu0 0
        %1053 = vmatpush.bf16.msra.mxu0 0
        %1054 = vmatpush.bf16.msra.mxu0 0
        %1055 = vmatpush.bf16.msra.mxu0 %v1047
        %1056 = vmatpush.bf16.msra.mxu0 %v1035
        %1057 = vmatmul.bf16.gmra.mxu0 %v1040
        %v1058 = vpop.f32.mrf.mxu0
        %v1059 = vadd.f32 0.0, %v1058
        %v1060 = vpop.f32.mrf.mxu0
        %v1061 = vadd.f32 0.0, %v1060
        %1062 = vmatmul.bf16.gmra.mxu0 %v1043
        %v1063 = vpop.f32.mrf.mxu0
        %v1064 = vadd.f32 0.0, %v1063
        %v1065 = vpop.f32.mrf.mxu0
        %v1066 = vadd.f32 0.0, %v1065
        %1067 = vdwg.mxu0
        %v1068 = vpack.c.bf16 %v1059, %v1059
        %v1069 = vpack.c.bf16 %v1061, %v1061
        %v1070 = vpack.c.bf16 %v1064, %v1064
        %v1071 = vpack.c.bf16 %v1066, %v1066
        %v1076 = vunpack.c.l.b16 %v1068
        %v1077 = vunpack.c.l.b16 %v1069
        %v1078 = vunpack.c.l.b16 %v1070
        %v1079 = vunpack.c.l.b16 %v1071
        %v1080 = vpack.c.b16 %v1077, %v1076
        %v1081 = vpack.c.b16 %v1079, %v1078
        %1084 = vrot.lane.b32.xlu0 %v1080, 127
        %v1085 = vpop.permute.xlu0 %1084
        %1086 = vrot.lane.b32.xlu0 %v1081, 127
        %v1087 = vpop.permute.xlu0 %1086
        %1090 = vrot.lane.b32.xlu0 %v1080, 126
        %v1091 = vpop.permute.xlu0 %1090
        %1092 = vrot.lane.b32.xlu0 %v1081, 126
        %v1093 = vpop.permute.xlu0 %1092
        %1096 = vrot.lane.b32.xlu0 %v1080, 122
        %v1097 = vpop.permute.xlu0 %1096
        %1098 = vrot.lane.b32.xlu0 %v1081, 122
        %v1099 = vpop.permute.xlu0 %1098
        %1102 = vrot.lane.b32.xlu0 %v1080, 121
        %v1103 = vpop.permute.xlu0 %1102
        %1104 = vrot.lane.b32.xlu0 %v1081, 121
        %v1105 = vpop.permute.xlu0 %1104
        %1108 = vrot.lane.b32.xlu0 %v1080, 120
        %v1109 = vpop.permute.xlu0 %1108
        %1110 = vrot.lane.b32.xlu0 %v1081, 120
        %v1111 = vpop.permute.xlu0 %1110
        %1114 = vrot.lane.b32.xlu0 %v1080, 116
        %v1115 = vpop.permute.xlu0 %1114
        %1116 = vrot.lane.b32.xlu0 %v1081, 116
        %v1117 = vpop.permute.xlu0 %1116
        %1120 = vrot.lane.b32.xlu0 %v1080, 115
        %v1121 = vpop.permute.xlu0 %1120
        %1122 = vrot.lane.b32.xlu0 %v1081, 115
        %v1123 = vpop.permute.xlu0 %1122
        %1126 = vrot.lane.b32.xlu0 %v1080, 114
        %v1127 = vpop.permute.xlu0 %1126
        %1128 = vrot.lane.b32.xlu0 %v1081, 114
        %v1129 = vpop.permute.xlu0 %1128
        %1133 = vset.pattern.permute.xlu0 0
        %1134 = vperm.xlu0 %1133, %v830
        %v1135 = vpop.permute.xlu0 %1134
        %1138 = vset.pattern.permute.xlu0 0
        %1139 = vperm.xlu0 %1138, %v831
        %v1140 = vpop.permute.xlu0 %1139
        %1143 = vset.pattern.permute.xlu0 0
        %1144 = vperm.xlu0 %1143, %v832
        %v1145 = vpop.permute.xlu0 %1144
        %1148 = vset.pattern.permute.xlu0 0
        %1149 = vperm.xlu0 %1148, %v833
        %v1150 = vpop.permute.xlu0 %1149
        %v1160 = vunpack.c.l.b16 %v817
        %v1161 = vunpack.c.h.b16 %v817
        %v1162 = vunpack.c.l.b16 %v818
        %v1163 = vunpack.c.l.b16 %v819
        %v1164 = vunpack.c.h.b16 %v819
        %v1165 = vunpack.c.l.b16 %v820
        %v1166 = vunpack.c.l.b16 %v821
        %v1167 = vunpack.c.h.b16 %v821
        %v1168 = vunpack.c.l.b16 %v822
        %v1169 = vunpack.c.l.b16 %v823
        %v1170 = vunpack.c.h.b16 %v823
        %v1171 = vunpack.c.l.b16 %v824
        %v1172 = vpack.c.b16 %v1163, %v1160
        %v1173 = vpack.c.b16 %v1164, %v1161
        %v1174 = vpack.c.b16 %v1165, %v1162
        %v1175 = vpack.c.b16 %v1169, %v1166
        %v1176 = vpack.c.b16 %v1170, %v1167
        %v1177 = vpack.c.b16 %v1171, %v1168
        %v1183 = vsel %vm956, %v1174, 0
        %v1186 = vsel %vm956, %v1177, 0
        %1188 = vmatpush.bf16.msra.mxu0 %v1099
        %1189 = vmatpush.bf16.msra.mxu0 %v1097
        %1190 = vmatpush.bf16.msra.mxu0 %v1093
        %1191 = vmatpush.bf16.msra.mxu0 %v1091
        %1192 = vmatpush.bf16.msra.mxu0 %v1087
        %1193 = vmatpush.bf16.msra.mxu0 %v1085
        %1194 = vmatpush.bf16.msra.mxu0 %v1081
        %1195 = vmatpush.bf16.msra.mxu0 %v1080
        %1196 = vmatmul.bf16.gmra.mxu0 %v1172
        %v1197 = vpop.f32.mrf.mxu0
        %v1198 = vadd.f32 %v1135, %v1197
        %v1199 = vpop.f32.mrf.mxu0
        %v1200 = vadd.f32 %v1140, %v1199
        %1201 = vmatmul.bf16.gmra.mxu0 %v1175
        %v1202 = vpop.f32.mrf.mxu0
        %v1203 = vadd.f32 %v1145, %v1202
        %v1204 = vpop.f32.mrf.mxu0
        %v1205 = vadd.f32 %v1150, %v1204
        %1206 = vdwg.mxu0
        %1207 = vmatpush.bf16.msra.mxu0 %v1123
        %1208 = vmatpush.bf16.msra.mxu0 %v1121
        %1209 = vmatpush.bf16.msra.mxu0 %v1117
        %1210 = vmatpush.bf16.msra.mxu0 %v1115
        %1211 = vmatpush.bf16.msra.mxu0 %v1111
        %1212 = vmatpush.bf16.msra.mxu0 %v1109
        %1213 = vmatpush.bf16.msra.mxu0 %v1105
        %1214 = vmatpush.bf16.msra.mxu0 %v1103
        %1215 = vmatmul.bf16.gmra.mxu0 %v1173
        %v1216 = vpop.f32.mrf.mxu0
        %v1217 = vadd.f32 %v1198, %v1216
        %v1218 = vpop.f32.mrf.mxu0
        %v1219 = vadd.f32 %v1200, %v1218
        %1220 = vmatmul.bf16.gmra.mxu0 %v1176
        %v1221 = vpop.f32.mrf.mxu0
        %v1222 = vadd.f32 %v1203, %v1221
        %v1223 = vpop.f32.mrf.mxu0
        %v1224 = vadd.f32 %v1205, %v1223
        %1225 = vdwg.mxu0
        %1226 = vmatpush.bf16.msra.mxu0 0
        %1227 = vmatpush.bf16.msra.mxu0 0
        %1228 = vmatpush.bf16.msra.mxu0 0
        %1229 = vmatpush.bf16.msra.mxu0 0
        %1230 = vmatpush.bf16.msra.mxu0 0
        %1231 = vmatpush.bf16.msra.mxu0 0
        %1232 = vmatpush.bf16.msra.mxu0 %v1129
        %1233 = vmatpush.bf16.msra.mxu0 %v1127
        %1234 = vmatmul.bf16.gmra.mxu0 %v1183
        %v1235 = vpop.f32.mrf.mxu0
        %v1236 = vadd.f32 %v1217, %v1235
        %v1237 = vpop.f32.mrf.mxu0
        %v1238 = vadd.f32 %v1219, %v1237
        %1239 = vmatmul.bf16.gmra.mxu0 %v1186
        %v1240 = vpop.f32.mrf.mxu0
        %v1241 = vadd.f32 %v1222, %v1240
        %v1242 = vpop.f32.mrf.mxu0
        %v1243 = vadd.f32 %v1224, %v1242
        %1244 = vdwg.mxu0
        %1249 = vrot.lane.b32.xlu0 %v834, 121
        %v1250 = vpop.permute.xlu0 %1249
        %1251 = vrot.lane.b32.xlu0 %v835, 121
        %v1252 = vpop.permute.xlu0 %1251
        %1253 = vrot.lane.b32.xlu0 %v836, 121
        %v1254 = vpop.permute.xlu0 %1253
        %1255 = vrot.lane.b32.xlu0 %v837, 121
        %v1256 = vpop.permute.xlu0 %1255
        %v1261 = vadd.f32 %v1236, %v1250
        %v1262 = vadd.f32 %v1238, %v1252
        %v1263 = vadd.f32 %v1241, %v1254
        %v1264 = vadd.f32 %v1243, %v1256
        %v1265 = vpack.c.bf16 %v1262, %v1261
        %v1266 = vpack.c.bf16 %v1264, %v1263
        %v1268 = vsel %vm1038, %v1265, 0
        %v1271 = vsel %vm1038, %v1266, 0
        %1273 = vmatpush.bf16.msra.mxu0 0
        %1274 = vmatpush.bf16.msra.mxu0 0
        %1275 = vmatpush.bf16.msra.mxu0 0
        %1276 = vmatpush.bf16.msra.mxu0 0
        %1277 = vmatpush.bf16.msra.mxu0 0
        %1278 = vmatpush.bf16.msra.mxu0 0
        %1279 = vmatpush.bf16.msra.mxu0 %v1047
        %1280 = vmatpush.bf16.msra.mxu0 %v1035
        %1281 = vmatmul.bf16.gmra.mxu0 %v1268
        %v1282 = vpop.f32.mrf.mxu0
        %v1283 = vadd.f32 0.0, %v1282
        %v1284 = vpop.f32.mrf.mxu0
        %v1285 = vadd.f32 0.0, %v1284
        %1286 = vmatmul.bf16.gmra.mxu0 %v1271
        %v1287 = vpop.f32.mrf.mxu0
        %v1288 = vadd.f32 0.0, %v1287
        %v1289 = vpop.f32.mrf.mxu0
        %v1290 = vadd.f32 0.0, %v1289
        %1291 = vdwg.mxu0
        %v1292 = vpack.c.bf16 %v1283, %v1283
        %v1293 = vpack.c.bf16 %v1285, %v1285
        %v1294 = vpack.c.bf16 %v1288, %v1288
        %v1295 = vpack.c.bf16 %v1290, %v1290
        %s1296 = scalar_lea.vmem %s6, 96
        %v1297 = vld [vmem:[%s1296] sm:$0xff]
        %v1298 = vld [vmem:[%s1296 + $0x8] sm:$0xf]
        %v1299 = vld [vmem:[%s1296 + $0xc] sm:$0xff]
        %v1300 = vld [vmem:[%s1296 + $0x14] sm:$0xf]
        %v1301 = vld [vmem:[%s1296 + $0x18] sm:$0xff]
        %v1302 = vld [vmem:[%s1296 + $0x20] sm:$0xf]
        %v1303 = vld [vmem:[%s1296 + $0x24] sm:$0xff]
        %v1304 = vld [vmem:[%s1296 + $0x2c] sm:$0xf]
        %s1305 = scalar_lea.vmem %s6, 144
        %v1306 = vld [vmem:[%s1305] sm:$0xff]
        %v1307 = vld [vmem:[%s1305 + $0x8] sm:$0xf]
        %v1308 = vld [vmem:[%s1305 + $0xc] sm:$0xff]
        %v1309 = vld [vmem:[%s1305 + $0x14] sm:$0xf]
        %v1310 = vld [vmem:[%s1305 + $0x18] sm:$0xff]
        %v1311 = vld [vmem:[%s1305 + $0x20] sm:$0xf]
        %v1312 = vld [vmem:[%s1305 + $0x24] sm:$0xff]
        %v1313 = vld [vmem:[%s1305 + $0x2c] sm:$0xf]
        %s1314 = scalar_lea.vmem %s7, 64
        %v1315 = vld [vmem:[%s1314] sm:$0xff]
        %v1316 = vld [vmem:[%s1314 + $0x8] sm:$0xff]
        %v1317 = vld [vmem:[%s1314 + $0x10] sm:$0xff]
        %v1318 = vld [vmem:[%s1314 + $0x18] sm:$0xff]
        %s1319 = scalar_lea.vmem %s7, 96
        %v1320 = vld [vmem:[%s1319] sm:$0xff]
        %v1321 = vld [vmem:[%s1319 + $0x8] sm:$0xff]
        %v1322 = vld [vmem:[%s1319 + $0x10] sm:$0xff]
        %v1323 = vld [vmem:[%s1319 + $0x18] sm:$0xff]
        %v1324 = vunpack.c.l.bf16 %v1292
        %v1325 = vunpack.c.l.bf16 %v1293
        %v1326 = vunpack.c.l.bf16 %v1294
        %v1327 = vunpack.c.l.bf16 %v1295
        %v1328 = vmax.f32 %v1324, 0.0
        %v1329 = vmax.f32 %v1325, 0.0
        %v1330 = vmax.f32 %v1326, 0.0
        %v1331 = vmax.f32 %v1327, 0.0
        %v1332 = vpack.c.bf16 %v1328, %v1328
        %v1333 = vpack.c.bf16 %v1329, %v1329
        %v1334 = vpack.c.bf16 %v1330, %v1330
        %v1335 = vpack.c.bf16 %v1331, %v1331
        %v1340 = vunpack.c.l.b16 %v1332
        %v1341 = vunpack.c.l.b16 %v1333
        %v1342 = vunpack.c.l.b16 %v1334
        %v1343 = vunpack.c.l.b16 %v1335
        %v1344 = vpack.c.b16 %v1341, %v1340
        %v1345 = vpack.c.b16 %v1343, %v1342
        %1348 = vrot.lane.b32.xlu0 %v1344, 127
        %v1349 = vpop.permute.xlu0 %1348
        %1350 = vrot.lane.b32.xlu0 %v1345, 127
        %v1351 = vpop.permute.xlu0 %1350
        %1354 = vrot.lane.b32.xlu0 %v1344, 126
        %v1355 = vpop.permute.xlu0 %1354
        %1356 = vrot.lane.b32.xlu0 %v1345, 126
        %v1357 = vpop.permute.xlu0 %1356
        %1360 = vrot.lane.b32.xlu0 %v1344, 122
        %v1361 = vpop.permute.xlu0 %1360
        %1362 = vrot.lane.b32.xlu0 %v1345, 122
        %v1363 = vpop.permute.xlu0 %1362
        %1366 = vrot.lane.b32.xlu0 %v1344, 121
        %v1367 = vpop.permute.xlu0 %1366
        %1368 = vrot.lane.b32.xlu0 %v1345, 121
        %v1369 = vpop.permute.xlu0 %1368
        %1372 = vrot.lane.b32.xlu0 %v1344, 120
        %v1373 = vpop.permute.xlu0 %1372
        %1374 = vrot.lane.b32.xlu0 %v1345, 120
        %v1375 = vpop.permute.xlu0 %1374
        %1378 = vrot.lane.b32.xlu0 %v1344, 116
        %v1379 = vpop.permute.xlu0 %1378
        %1380 = vrot.lane.b32.xlu0 %v1345, 116
        %v1381 = vpop.permute.xlu0 %1380
        %1384 = vrot.lane.b32.xlu0 %v1344, 115
        %v1385 = vpop.permute.xlu0 %1384
        %1386 = vrot.lane.b32.xlu0 %v1345, 115
        %v1387 = vpop.permute.xlu0 %1386
        %1390 = vrot.lane.b32.xlu0 %v1344, 114
        %v1391 = vpop.permute.xlu0 %1390
        %1392 = vrot.lane.b32.xlu0 %v1345, 114
        %v1393 = vpop.permute.xlu0 %1392
        %1397 = vset.pattern.permute.xlu0 0
        %1398 = vperm.xlu0 %1397, %v1315
        %v1399 = vpop.permute.xlu0 %1398
        %1402 = vset.pattern.permute.xlu0 0
        %1403 = vperm.xlu0 %1402, %v1316
        %v1404 = vpop.permute.xlu0 %1403
        %1407 = vset.pattern.permute.xlu0 0
        %1408 = vperm.xlu0 %1407, %v1317
        %v1409 = vpop.permute.xlu0 %1408
        %1412 = vset.pattern.permute.xlu0 0
        %1413 = vperm.xlu0 %1412, %v1318
        %v1414 = vpop.permute.xlu0 %1413
        %v1424 = vunpack.c.l.b16 %v1297
        %v1425 = vunpack.c.h.b16 %v1297
        %v1426 = vunpack.c.l.b16 %v1298
        %v1427 = vunpack.c.l.b16 %v1299
        %v1428 = vunpack.c.h.b16 %v1299
        %v1429 = vunpack.c.l.b16 %v1300
        %v1430 = vunpack.c.l.b16 %v1301
        %v1431 = vunpack.c.h.b16 %v1301
        %v1432 = vunpack.c.l.b16 %v1302
        %v1433 = vunpack.c.l.b16 %v1303
        %v1434 = vunpack.c.h.b16 %v1303
        %v1435 = vunpack.c.l.b16 %v1304
        %v1436 = vpack.c.b16 %v1427, %v1424
        %v1437 = vpack.c.b16 %v1428, %v1425
        %v1438 = vpack.c.b16 %v1429, %v1426
        %v1439 = vpack.c.b16 %v1433, %v1430
        %v1440 = vpack.c.b16 %v1434, %v1431
        %v1441 = vpack.c.b16 %v1435, %v1432
        %v1447 = vsel %vm956, %v1438, 0
        %v1450 = vsel %vm956, %v1441, 0
        %1452 = vmatpush.bf16.msra.mxu0 %v1363
        %1453 = vmatpush.bf16.msra.mxu0 %v1361
        %1454 = vmatpush.bf16.msra.mxu0 %v1357
        %1455 = vmatpush.bf16.msra.mxu0 %v1355
        %1456 = vmatpush.bf16.msra.mxu0 %v1351
        %1457 = vmatpush.bf16.msra.mxu0 %v1349
        %1458 = vmatpush.bf16.msra.mxu0 %v1345
        %1459 = vmatpush.bf16.msra.mxu0 %v1344
        %1460 = vmatmul.bf16.gmra.mxu0 %v1436
        %v1461 = vpop.f32.mrf.mxu0
        %v1462 = vadd.f32 %v1399, %v1461
        %v1463 = vpop.f32.mrf.mxu0
        %v1464 = vadd.f32 %v1404, %v1463
        %1465 = vmatmul.bf16.gmra.mxu0 %v1439
        %v1466 = vpop.f32.mrf.mxu0
        %v1467 = vadd.f32 %v1409, %v1466
        %v1468 = vpop.f32.mrf.mxu0
        %v1469 = vadd.f32 %v1414, %v1468
        %1470 = vdwg.mxu0
        %1471 = vmatpush.bf16.msra.mxu0 %v1387
        %1472 = vmatpush.bf16.msra.mxu0 %v1385
        %1473 = vmatpush.bf16.msra.mxu0 %v1381
        %1474 = vmatpush.bf16.msra.mxu0 %v1379
        %1475 = vmatpush.bf16.msra.mxu0 %v1375
        %1476 = vmatpush.bf16.msra.mxu0 %v1373
        %1477 = vmatpush.bf16.msra.mxu0 %v1369
        %1478 = vmatpush.bf16.msra.mxu0 %v1367
        %1479 = vmatmul.bf16.gmra.mxu0 %v1437
        %v1480 = vpop.f32.mrf.mxu0
        %v1481 = vadd.f32 %v1462, %v1480
        %v1482 = vpop.f32.mrf.mxu0
        %v1483 = vadd.f32 %v1464, %v1482
        %1484 = vmatmul.bf16.gmra.mxu0 %v1440
        %v1485 = vpop.f32.mrf.mxu0
        %v1486 = vadd.f32 %v1467, %v1485
        %v1487 = vpop.f32.mrf.mxu0
        %v1488 = vadd.f32 %v1469, %v1487
        %1489 = vdwg.mxu0
        %1490 = vmatpush.bf16.msra.mxu0 0
        %1491 = vmatpush.bf16.msra.mxu0 0
        %1492 = vmatpush.bf16.msra.mxu0 0
        %1493 = vmatpush.bf16.msra.mxu0 0
        %1494 = vmatpush.bf16.msra.mxu0 0
        %1495 = vmatpush.bf16.msra.mxu0 0
        %1496 = vmatpush.bf16.msra.mxu0 %v1393
        %1497 = vmatpush.bf16.msra.mxu0 %v1391
        %1498 = vmatmul.bf16.gmra.mxu0 %v1447
        %v1499 = vpop.f32.mrf.mxu0
        %v1500 = vadd.f32 %v1481, %v1499
        %v1501 = vpop.f32.mrf.mxu0
        %v1502 = vadd.f32 %v1483, %v1501
        %1503 = vmatmul.bf16.gmra.mxu0 %v1450
        %v1504 = vpop.f32.mrf.mxu0
        %v1505 = vadd.f32 %v1486, %v1504
        %v1506 = vpop.f32.mrf.mxu0
        %v1507 = vadd.f32 %v1488, %v1506
        %1508 = vdwg.mxu0
        %v1509 = vmax.f32 %v1500, 0.0
        %v1510 = vmax.f32 %v1502, 0.0
        %v1511 = vmax.f32 %v1505, 0.0
        %v1512 = vmax.f32 %v1507, 0.0
        %v1513 = vpack.c.bf16 %v1510, %v1509
        %v1514 = vpack.c.bf16 %v1512, %v1511
        %v1516 = vsel %vm1038, %v1513, 0
        %v1519 = vsel %vm1038, %v1514, 0
        %1521 = vmatpush.bf16.msra.mxu0 0
        %1522 = vmatpush.bf16.msra.mxu0 0
        %1523 = vmatpush.bf16.msra.mxu0 0
        %1524 = vmatpush.bf16.msra.mxu0 0
        %1525 = vmatpush.bf16.msra.mxu0 0
        %1526 = vmatpush.bf16.msra.mxu0 0
        %1527 = vmatpush.bf16.msra.mxu0 %v1047
        %1528 = vmatpush.bf16.msra.mxu0 %v1035
        %1529 = vmatmul.bf16.gmra.mxu0 %v1516
        %v1530 = vpop.f32.mrf.mxu0
        %v1531 = vadd.f32 0.0, %v1530
        %v1532 = vpop.f32.mrf.mxu0
        %v1533 = vadd.f32 0.0, %v1532
        %1534 = vmatmul.bf16.gmra.mxu0 %v1519
        %v1535 = vpop.f32.mrf.mxu0
        %v1536 = vadd.f32 0.0, %v1535
        %v1537 = vpop.f32.mrf.mxu0
        %v1538 = vadd.f32 0.0, %v1537
        %1539 = vdwg.mxu0
        %v1540 = vpack.c.bf16 %v1531, %v1531
        %v1541 = vpack.c.bf16 %v1533, %v1533
        %v1542 = vpack.c.bf16 %v1536, %v1536
        %v1543 = vpack.c.bf16 %v1538, %v1538
        %v1548 = vunpack.c.l.b16 %v1540
        %v1549 = vunpack.c.l.b16 %v1541
        %v1550 = vunpack.c.l.b16 %v1542
        %v1551 = vunpack.c.l.b16 %v1543
        %v1552 = vpack.c.b16 %v1549, %v1548
        %v1553 = vpack.c.b16 %v1551, %v1550
        %1556 = vrot.lane.b32.xlu0 %v1552, 127
        %v1557 = vpop.permute.xlu0 %1556
        %1558 = vrot.lane.b32.xlu0 %v1553, 127
        %v1559 = vpop.permute.xlu0 %1558
        %1562 = vrot.lane.b32.xlu0 %v1552, 126
        %v1563 = vpop.permute.xlu0 %1562
        %1564 = vrot.lane.b32.xlu0 %v1553, 126
        %v1565 = vpop.permute.xlu0 %1564
        %1568 = vrot.lane.b32.xlu0 %v1552, 122
        %v1569 = vpop.permute.xlu0 %1568
        %1570 = vrot.lane.b32.xlu0 %v1553, 122
        %v1571 = vpop.permute.xlu0 %1570
        %1574 = vrot.lane.b32.xlu0 %v1552, 121
        %v1575 = vpop.permute.xlu0 %1574
        %1576 = vrot.lane.b32.xlu0 %v1553, 121
        %v1577 = vpop.permute.xlu0 %1576
        %1580 = vrot.lane.b32.xlu0 %v1552, 120
        %v1581 = vpop.permute.xlu0 %1580
        %1582 = vrot.lane.b32.xlu0 %v1553, 120
        %v1583 = vpop.permute.xlu0 %1582
        %1586 = vrot.lane.b32.xlu0 %v1552, 116
        %v1587 = vpop.permute.xlu0 %1586
        %1588 = vrot.lane.b32.xlu0 %v1553, 116
        %v1589 = vpop.permute.xlu0 %1588
        %1592 = vrot.lane.b32.xlu0 %v1552, 115
        %v1593 = vpop.permute.xlu0 %1592
        %1594 = vrot.lane.b32.xlu0 %v1553, 115
        %v1595 = vpop.permute.xlu0 %1594
        %1598 = vrot.lane.b32.xlu0 %v1552, 114
        %v1599 = vpop.permute.xlu0 %1598
        %1600 = vrot.lane.b32.xlu0 %v1553, 114
        %v1601 = vpop.permute.xlu0 %1600
        %1605 = vset.pattern.permute.xlu0 0
        %1606 = vperm.xlu0 %1605, %v1320
        %v1607 = vpop.permute.xlu0 %1606
        %1610 = vset.pattern.permute.xlu0 0
        %1611 = vperm.xlu0 %1610, %v1321
        %v1612 = vpop.permute.xlu0 %1611
        %1615 = vset.pattern.permute.xlu0 0
        %1616 = vperm.xlu0 %1615, %v1322
        %v1617 = vpop.permute.xlu0 %1616
        %1620 = vset.pattern.permute.xlu0 0
        %1621 = vperm.xlu0 %1620, %v1323
        %v1622 = vpop.permute.xlu0 %1621
        %v1632 = vunpack.c.l.b16 %v1306
        %v1633 = vunpack.c.h.b16 %v1306
        %v1634 = vunpack.c.l.b16 %v1307
        %v1635 = vunpack.c.l.b16 %v1308
        %v1636 = vunpack.c.h.b16 %v1308
        %v1637 = vunpack.c.l.b16 %v1309
        %v1638 = vunpack.c.l.b16 %v1310
        %v1639 = vunpack.c.h.b16 %v1310
        %v1640 = vunpack.c.l.b16 %v1311
        %v1641 = vunpack.c.l.b16 %v1312
        %v1642 = vunpack.c.h.b16 %v1312
        %v1643 = vunpack.c.l.b16 %v1313
        %v1644 = vpack.c.b16 %v1635, %v1632
        %v1645 = vpack.c.b16 %v1636, %v1633
        %v1646 = vpack.c.b16 %v1637, %v1634
        %v1647 = vpack.c.b16 %v1641, %v1638
        %v1648 = vpack.c.b16 %v1642, %v1639
        %v1649 = vpack.c.b16 %v1643, %v1640
        %v1655 = vsel %vm956, %v1646, 0
        %v1658 = vsel %vm956, %v1649, 0
        %1660 = vmatpush.bf16.msra.mxu0 %v1571
        %1661 = vmatpush.bf16.msra.mxu0 %v1569
        %1662 = vmatpush.bf16.msra.mxu0 %v1565
        %1663 = vmatpush.bf16.msra.mxu0 %v1563
        %1664 = vmatpush.bf16.msra.mxu0 %v1559
        %1665 = vmatpush.bf16.msra.mxu0 %v1557
        %1666 = vmatpush.bf16.msra.mxu0 %v1553
        %1667 = vmatpush.bf16.msra.mxu0 %v1552
        %1668 = vmatmul.bf16.gmra.mxu0 %v1644
        %v1669 = vpop.f32.mrf.mxu0
        %v1670 = vadd.f32 %v1607, %v1669
        %v1671 = vpop.f32.mrf.mxu0
        %v1672 = vadd.f32 %v1612, %v1671
        %1673 = vmatmul.bf16.gmra.mxu0 %v1647
        %v1674 = vpop.f32.mrf.mxu0
        %v1675 = vadd.f32 %v1617, %v1674
        %v1676 = vpop.f32.mrf.mxu0
        %v1677 = vadd.f32 %v1622, %v1676
        %1678 = vdwg.mxu0
        %1679 = vmatpush.bf16.msra.mxu0 %v1595
        %1680 = vmatpush.bf16.msra.mxu0 %v1593
        %1681 = vmatpush.bf16.msra.mxu0 %v1589
        %1682 = vmatpush.bf16.msra.mxu0 %v1587
        %1683 = vmatpush.bf16.msra.mxu0 %v1583
        %1684 = vmatpush.bf16.msra.mxu0 %v1581
        %1685 = vmatpush.bf16.msra.mxu0 %v1577
        %1686 = vmatpush.bf16.msra.mxu0 %v1575
        %1687 = vmatmul.bf16.gmra.mxu0 %v1645
        %v1688 = vpop.f32.mrf.mxu0
        %v1689 = vadd.f32 %v1670, %v1688
        %v1690 = vpop.f32.mrf.mxu0
        %v1691 = vadd.f32 %v1672, %v1690
        %1692 = vmatmul.bf16.gmra.mxu0 %v1648
        %v1693 = vpop.f32.mrf.mxu0
        %v1694 = vadd.f32 %v1675, %v1693
        %v1695 = vpop.f32.mrf.mxu0
        %v1696 = vadd.f32 %v1677, %v1695
        %1697 = vdwg.mxu0
        %1698 = vmatpush.bf16.msra.mxu0 0
        %1699 = vmatpush.bf16.msra.mxu0 0
        %1700 = vmatpush.bf16.msra.mxu0 0
        %1701 = vmatpush.bf16.msra.mxu0 0
        %1702 = vmatpush.bf16.msra.mxu0 0
        %1703 = vmatpush.bf16.msra.mxu0 0
        %1704 = vmatpush.bf16.msra.mxu0 %v1601
        %1705 = vmatpush.bf16.msra.mxu0 %v1599
        %1706 = vmatmul.bf16.gmra.mxu0 %v1655
        %v1707 = vpop.f32.mrf.mxu0
        %v1708 = vadd.f32 %v1689, %v1707
        %v1709 = vpop.f32.mrf.mxu0
        %v1710 = vadd.f32 %v1691, %v1709
        %1711 = vmatmul.bf16.gmra.mxu0 %v1658
        %v1712 = vpop.f32.mrf.mxu0
        %v1713 = vadd.f32 %v1694, %v1712
        %v1714 = vpop.f32.mrf.mxu0
        %v1715 = vadd.f32 %v1696, %v1714
        %1716 = vdwg.mxu0
        %1721 = vrot.lane.b32.xlu0 %v1324, 121
        %v1722 = vpop.permute.xlu0 %1721
        %1723 = vrot.lane.b32.xlu0 %v1325, 121
        %v1724 = vpop.permute.xlu0 %1723
        %1725 = vrot.lane.b32.xlu0 %v1326, 121
        %v1726 = vpop.permute.xlu0 %1725
        %1727 = vrot.lane.b32.xlu0 %v1327, 121
        %v1728 = vpop.permute.xlu0 %1727
        %v1733 = vadd.f32 %v1708, %v1722
        %v1734 = vadd.f32 %v1710, %v1724
        %v1735 = vadd.f32 %v1713, %v1726
        %v1736 = vadd.f32 %v1715, %v1728
        %v1737 = vpack.c.bf16 %v1734, %v1733
        %v1738 = vpack.c.bf16 %v1736, %v1735
        %v1740 = vsel %vm1038, %v1737, 0
        %v1743 = vsel %vm1038, %v1738, 0
        %1745 = vmatpush.bf16.msra.mxu0 0
        %1746 = vmatpush.bf16.msra.mxu0 0
        %1747 = vmatpush.bf16.msra.mxu0 0
        %1748 = vmatpush.bf16.msra.mxu0 0
        %1749 = vmatpush.bf16.msra.mxu0 0
        %1750 = vmatpush.bf16.msra.mxu0 0
        %1751 = vmatpush.bf16.msra.mxu0 %v1047
        %1752 = vmatpush.bf16.msra.mxu0 %v1035
        %1753 = vmatmul.bf16.gmra.mxu0 %v1740
        %v1754 = vpop.f32.mrf.mxu0
        %v1755 = vadd.f32 0.0, %v1754
        %v1756 = vpop.f32.mrf.mxu0
        %v1757 = vadd.f32 0.0, %v1756
        %1758 = vmatmul.bf16.gmra.mxu0 %v1743
        %v1759 = vpop.f32.mrf.mxu0
        %v1760 = vadd.f32 0.0, %v1759
        %v1761 = vpop.f32.mrf.mxu0
        %v1762 = vadd.f32 0.0, %v1761
        %1763 = vdwg.mxu0
        %v1764 = vpack.c.bf16 %v1757, %v1755
        %v1765 = vpack.c.bf16 %v1762, %v1760
        %v1766 = vld [vmem:[#allocation7] sm:$0xf]
        %v1767 = vld [vmem:[#allocation7 + $0x4] sm:$0xf]
        %v1768 = vld [vmem:[#allocation7 + $0x8] sm:$0xf]
        %v1769 = vld [vmem:[#allocation7 + $0xc] sm:$0xf]
        %v1770 = vld [vmem:[#allocation7 + $0x10] sm:$0x3]
        %v1776 = vunpack.c.l.b16 %v1766
        %v1777 = vunpack.c.l.b16 %v1767
        %v1778 = vunpack.c.l.b16 %v1768
        %v1779 = vunpack.c.l.b16 %v1769
        %v1780 = vunpack.c.l.b16 %v1770
        %v1781 = vpack.c.b16 %v1777, %v1776
        %v1782 = vpack.c.b16 %v1779, %v1778
        %v1783 = vpack.c.b16 %v1780, %v1780
        %vm1786 = vcmask 293888
        %v1788 = vsel %vm1786, %v1764, 0
        %v1791 = vsel %vm1786, %v1765, 0
        %vm1793 = vcmask 1041408
        %v1795 = vsel %vm1793, %v1783, 0
        %1797 = vmatpush.bf16.msra.mxu0 0
        %1798 = vmatpush.bf16.msra.mxu0 0
        %1799 = vmatpush.bf16.msra.mxu0 0
        %1800 = vmatpush.bf16.msra.mxu0 0
        %1801 = vmatpush.bf16.msra.mxu0 0
        %1802 = vmatpush.bf16.msra.mxu0 %v1795
        %1803 = vmatpush.bf16.msra.mxu0 %v1782
        %1804 = vmatpush.bf16.msra.mxu0 %v1781
        %1805 = vmatmul.bf16.gmra.mxu0 %v1788
        %v1806 = vpop.f32.mrf.mxu0
        %v1807 = vadd.f32 0.0, %v1806
        %v1808 = vpop.f32.mrf.mxu0
        %v1809 = vadd.f32 0.0, %v1808
        %1810 = vmatmul.bf16.gmra.mxu0 %v1791
        %v1811 = vpop.f32.mrf.mxu0
        %v1812 = vadd.f32 0.0, %v1811
        %v1813 = vpop.f32.mrf.mxu0
        %v1814 = vadd.f32 0.0, %v1813
        %1815 = vdwg.mxu0
        %1816 = vst.msk [vmem:[%s426] sm:$0xff] %vm559, %v1807
        %1817 = vst.msk [vmem:[%s426 + $0x8] sm:$0xff] %vm559, %v1809
        %1818 = vst.msk [vmem:[%s426 + $0x10] sm:$0xff] %vm559, %v1812
        %1819 = vst.msk [vmem:[%s426 + $0x18] sm:$0xff] %vm559, %v1814
        %p1820 = scmp.lt.s32.totalorder %s24, 1
        %s1821 = scalar_select %p1820, %s24, 1
        %s1822 = smul.addr %s1821, 4
        %s1823 = smul.addr %s1822, 8
        %s1824 = scalar_lea.vmem %s10, %s1823
        // Predicated region
        $region77: #{_lambda_.4} parent=59 // pred_check
          %p1825 = pneg %p257
        $region78: #{_lambda_.4} parent=59 // pred_check_branch
          %1827 = sbr.rel (%p1825) target = $region80
        $region79: #{_lambda_.4} parent=59 // pred_region
          _
        $region80: #{_lambda_.4} parent=59 // pred_fallthru
          _
      $region60: #{_lambda_.4} parent=5 // pred_fallthru
        _
      %p1828 = scmp.le.s32.totalorder 2, %s19
      // Predicated region
      $region81: #{_lambda_.4} parent=5 // pred_check
        %p1829 = pneg %p1828
      $region82: #{_lambda_.4} parent=5 // pred_check_branch
        %1831 = sbr.rel (%p1829) target = $region84
      $region83: #{_lambda_.4} parent=5 // pred_region
        %s1832 = ssub.s32 %s19, 2
        // Predicated region
        $region85: #{_lambda_.4} parent=83 // pred_check
          %p1833 = pneg %p263
        $region86: #{_lambda_.4} parent=83 // pred_check_branch
          %1835 = sbr.rel (%p1833) target = $region88
        $region87: #{_lambda_.4} parent=83 // pred_region
          %p1836 = scmp.lt.s32.totalorder %s25, 1
          %s1837 = scalar_select %p1836, %s25, 1
          %s1838 = smul.addr %s1837, 4
          %s1839 = smul.addr %s1838, 8
          %s1840 = scalar_lea.vmem %s10, %s1839
        $region88: #{_lambda_.4} parent=83 // pred_fallthru
          _
      $region84: #{_lambda_.4} parent=5 // pred_fallthru
        _
    $region6: #{_lambda_.4} parent=1 // loop_footer
      %s23 = sadd.s32 1, %s19
    $region7: #{_lambda_.4} parent=1 // loop_footer_branch
      %18 = sbr.rel target = $region3
    $region8: #{_lambda_.4} parent=1 // loop_exit
      _
    %1841 = vsyncpa [#allocation3], 1
    %s1842 = scalar_lea.sflag [#allocation3], 1
    %1843 = vsyncpa %s1842, 1
    %1844 = vsyncpa [#allocation5], 1
    %1845 = vsyncpa [#allocation8], 1

// kernel: _lambda_.5
$region0: #{_lambda_.5}
  #allocation0 [shape = 'u32[]', space=smem, size = 0x4, offset = 0x4, fixed_abs, tag = 'smem constant byte address 0x4 - core index']
  #allocation1 [shape = 'u32[72,128]{1,0:T(1,128)}', space=vmem, size = 0x9000, scoped, tag = 'internal scratch']
  %s0 = inlined_call_operand.vmem [shape: f32[2,32,16], index: 0, kind: input, shape index: {}]
  %s1 = inlined_call_operand.vmem [shape: f32[1,22], index: 1, kind: input, shape index: {}]
  %s2 = inlined_call_operand.hbm [shape: bf16[32,288], index: 2, kind: input, shape index: {}]
  %s3 = inlined_call_operand.vmem [shape: f32[32,1], index: 3, kind: input, shape index: {}]
  %s4 = inlined_call_operand.hbm [shape: bf16[16,36], index: 4, kind: input, shape index: {}]
  %s5 = inlined_call_operand.hbm [shape: bf16[22,16], index: 5, kind: input, shape index: {}]
  %s6 = inlined_call_operand.vmem [shape: bf16[4,32,288], index: 6, kind: input, shape index: {}]
  %s7 = inlined_call_operand.vmem [shape: f32[4,32,1], index: 7, kind: input, shape index: {}]
  %s8 = inlined_call_operand.hbm [shape: bf16[6,16], index: 8, kind: input, shape index: {}]
  %s9 = inlined_call_operand.hbm [shape: bf16[16,4], index: 9, kind: input, shape index: {}]
  %s10 = inlined_call_operand.vmem [shape: f32[2,32,4], index: 10, kind: output, shape index: {}]
  %s11 = sld [smem:[#allocation0]]
  $region93: #{_lambda_.5} parent=0
    _
  %s13 = ssub.s32 1, %s11
  %s14 = scalar_select 0, %s13, %s11
  $region1: #{_lambda_.5} parent=0
    #allocation2 [shape = 'u8[24576]{0}', space=vmem, size = 0x6000, scoped, tag = 'input window, operand 2, single buffered']
    #allocation3 [shape = 's32[2]{0}', space=sflag, size = 0x8, scoped, tag = 'scoped memory for _lambda_.5']
    #allocation4 [shape = 'u8[4096]{0}', space=vmem, size = 0x1000, scoped, tag = 'input window, operand 4, single buffered']
    #allocation5 [shape = 's32[1]{0}', space=sflag, size = 0x4, scoped, tag = 'scoped memory for _lambda_.5']
    #allocation6 [shape = 'u8[6144]{0}', space=vmem, size = 0x1800, scoped, tag = 'input window, operand 5, single buffered']
    #allocation7 [shape = 'u8[2048]{0}', space=vmem, size = 0x800, scoped, tag = 'input window, operand 8, single buffered']
    #allocation8 [shape = 's32[1]{0}', space=sflag, size = 0x4, scoped, tag = 'scoped memory for _lambda_.5']
    #allocation9 [shape = 'u8[4096]{0}', space=vmem, size = 0x1000, scoped, tag = 'input window, operand 9, single buffered']
    %15 = vsyncpa [#allocation3], 0
    %16 = vsyncpa [#allocation5], 0
    %17 = vsyncpa [#allocation8], 0
    loop: start=0, step=1, limit=4
    $region2: #{_lambda_.5} parent=1 // loop_pre_header
      _
    $region3: #{_lambda_.5} parent=1 // loop_header
      %s19 = sphi 0, %s23
      %p20 = scmp.ge.s32.totalorder %s19, 4
      %s29 = sphi 0, %s31
      %s32 = sphi 0, %s29
      %s33 = sphi 0, %s32
      %s49 = sphi 0, %s33
      %s53 = sphi 0, %s53
      %s55 = sphi 0, %s53
      %s56 = sphi 0, %s55
      %s70 = sphi 0, %s56
      %s74 = sphi 0, %s74
      %s76 = sphi 0, %s74
      %s77 = sphi 0, %s76
      %s91 = sphi 0, %s77
      %s95 = sphi 0, %s95
      %s97 = sphi 0, %s95
      %s98 = sphi 0, %s97
      %s112 = sphi 0, %s98
      %s116 = sphi 0, %s116
      %s118 = sphi 0, %s116
      %s119 = sphi 0, %s118
      %s133 = sphi 0, %s119
      %s137 = sphi 0, %s137
      %s139 = sphi 0, %s137
      %s140 = sphi 0, %s139
      %s154 = sphi 0, %s140
      %s158 = sphi 0, %s158
      %s160 = sphi 0, %s158
      %s161 = sphi 0, %s160
      %s175 = sphi 0, %s161
      %s179 = sphi 0, %s179
      %s181 = sphi 0, %s179
      %s182 = sphi 0, %s181
      %s196 = sphi 0, %s182
      %s200 = sphi 0, %s200
      %s202 = sphi 0, %s200
      %s203 = sphi 0, %s202
      %s217 = sphi 0, %s203
      %s221 = sphi 0, %s221
      %s223 = sphi 0, %s221
      %s224 = sphi 0, %s223
      %s238 = sphi 0, %s224
      %s244 = sphi 0, %s246
      %s247 = sphi 0, %s244
      %s248 = sphi 0, %s247
      %s264 = sphi 0, %s248
    $region4: #{_lambda_.5} parent=1 // loop_header_branch
      %22 = sbr.rel (%p20) target = $region8
    $region5: #{_lambda_.5} parent=1 // loop_body
      %s24 = ssub.s32 %s19, 1
      %s25 = ssub.s32 %s19, 2
      %s26 = sadd.s32 %s19, 1
      %s27 = ssub.s32 %s19, %s26
      %p28 = scmp.eq.s32.totalorder %s27, 0
      %s30 = sadd.s32 %s29, 1
      %s31 = scalar_select %p28, %s29, %s30
      %p34 = pneg %p28
      %p35 = scmp.eq.s32.totalorder %s19, 1
      %p36 = por %p34, %p35
      %p37 = scmp.ne.s32.totalorder %s29, %s32
      %p38 = scmp.eq.s32.totalorder %s19, 0
      %p39 = por %p37, %p38
      %p40 = scmp.ne.s32.totalorder %s29, %s32
      %p41 = scmp.eq.s32.totalorder %s24, 1
      %p42 = por %p40, %p41
      %p43 = scmp.ne.s32.totalorder %s32, %s33
      %p44 = scmp.eq.s32.totalorder %s24, 0
      %p45 = por %p43, %p44
      %p46 = scmp.ne.s32.totalorder %s32, %s33
      %p47 = scmp.eq.s32.totalorder %s25, 1
      %p48 = por %p46, %p47
      %p50 = scmp.ne.s32.totalorder %s33, %s49
      %p51 = scmp.eq.s32.totalorder %s25, 0
      %p52 = por %p50, %p51
      %s54 = sadd.s32 %s53, 1
      %p57 = scmp.eq.s32.totalorder %s19, 1
      %p58 = scmp.ne.s32.totalorder %s53, %s55
      %p59 = scmp.eq.s32.totalorder %s19, 0
      %p60 = por %p58, %p59
      %p61 = scmp.ne.s32.totalorder %s53, %s55
      %p62 = scmp.eq.s32.totalorder %s24, 1
      %p63 = por %p61, %p62
      %p64 = scmp.ne.s32.totalorder %s55, %s56
      %p65 = scmp.eq.s32.totalorder %s24, 0
      %p66 = por %p64, %p65
      %p67 = scmp.ne.s32.totalorder %s55, %s56
      %p68 = scmp.eq.s32.totalorder %s25, 1
      %p69 = por %p67, %p68
      %p71 = scmp.ne.s32.totalorder %s56, %s70
      %p72 = scmp.eq.s32.totalorder %s25, 0
      %p73 = por %p71, %p72
      %s75 = sadd.s32 %s74, 1
      %p78 = scmp.eq.s32.totalorder %s19, 1
      %p79 = scmp.ne.s32.totalorder %s74, %s76
      %p80 = scmp.eq.s32.totalorder %s19, 0
      %p81 = por %p79, %p80
      %p82 = scmp.ne.s32.totalorder %s74, %s76
      %p83 = scmp.eq.s32.totalorder %s24, 1
      %p84 = por %p82, %p83
      %p85 = scmp.ne.s32.totalorder %s76, %s77
      %p86 = scmp.eq.s32.totalorder %s24, 0
      %p87 = por %p85, %p86
      %p88 = scmp.ne.s32.totalorder %s76, %s77
      %p89 = scmp.eq.s32.totalorder %s25, 1
      %p90 = por %p88, %p89
      %p92 = scmp.ne.s32.totalorder %s77, %s91
      %p93 = scmp.eq.s32.totalorder %s25, 0
      %p94 = por %p92, %p93
      %s96 = sadd.s32 %s95, 1
      %p99 = scmp.eq.s32.totalorder %s19, 1
      %p100 = scmp.ne.s32.totalorder %s95, %s97
      %p101 = scmp.eq.s32.totalorder %s19, 0
      %p102 = por %p100, %p101
      %p103 = scmp.ne.s32.totalorder %s95, %s97
      %p104 = scmp.eq.s32.totalorder %s24, 1
      %p105 = por %p103, %p104
      %p106 = scmp.ne.s32.totalorder %s97, %s98
      %p107 = scmp.eq.s32.totalorder %s24, 0
      %p108 = por %p106, %p107
      %p109 = scmp.ne.s32.totalorder %s97, %s98
      %p110 = scmp.eq.s32.totalorder %s25, 1
      %p111 = por %p109, %p110
      %p113 = scmp.ne.s32.totalorder %s98, %s112
      %p114 = scmp.eq.s32.totalorder %s25, 0
      %p115 = por %p113, %p114
      %s117 = sadd.s32 %s116, 1
      %p120 = scmp.eq.s32.totalorder %s19, 1
      %p121 = scmp.ne.s32.totalorder %s116, %s118
      %p122 = scmp.eq.s32.totalorder %s19, 0
      %p123 = por %p121, %p122
      %p124 = scmp.ne.s32.totalorder %s116, %s118
      %p125 = scmp.eq.s32.totalorder %s24, 1
      %p126 = por %p124, %p125
      %p127 = scmp.ne.s32.totalorder %s118, %s119
      %p128 = scmp.eq.s32.totalorder %s24, 0
      %p129 = por %p127, %p128
      %p130 = scmp.ne.s32.totalorder %s118, %s119
      %p131 = scmp.eq.s32.totalorder %s25, 1
      %p132 = por %p130, %p131
      %p134 = scmp.ne.s32.totalorder %s119, %s133
      %p135 = scmp.eq.s32.totalorder %s25, 0
      %p136 = por %p134, %p135
      %s138 = sadd.s32 %s137, 1
      %p141 = scmp.eq.s32.totalorder %s19, 1
      %p142 = scmp.ne.s32.totalorder %s137, %s139
      %p143 = scmp.eq.s32.totalorder %s19, 0
      %p144 = por %p142, %p143
      %p145 = scmp.ne.s32.totalorder %s137, %s139
      %p146 = scmp.eq.s32.totalorder %s24, 1
      %p147 = por %p145, %p146
      %p148 = scmp.ne.s32.totalorder %s139, %s140
      %p149 = scmp.eq.s32.totalorder %s24, 0
      %p150 = por %p148, %p149
      %p151 = scmp.ne.s32.totalorder %s139, %s140
      %p152 = scmp.eq.s32.totalorder %s25, 1
      %p153 = por %p151, %p152
      %p155 = scmp.ne.s32.totalorder %s140, %s154
      %p156 = scmp.eq.s32.totalorder %s25, 0
      %p157 = por %p155, %p156
      %s159 = sadd.s32 %s158, 1
      %p162 = scmp.eq.s32.totalorder %s19, 1
      %p163 = scmp.ne.s32.totalorder %s158, %s160
      %p164 = scmp.eq.s32.totalorder %s19, 0
      %p165 = por %p163, %p164
      %p166 = scmp.ne.s32.totalorder %s158, %s160
      %p167 = scmp.eq.s32.totalorder %s24, 1
      %p168 = por %p166, %p167
      %p169 = scmp.ne.s32.totalorder %s160, %s161
      %p170 = scmp.eq.s32.totalorder %s24, 0
      %p171 = por %p169, %p170
      %p172 = scmp.ne.s32.totalorder %s160, %s161
      %p173 = scmp.eq.s32.totalorder %s25, 1
      %p174 = por %p172, %p173
      %p176 = scmp.ne.s32.totalorder %s161, %s175
      %p177 = scmp.eq.s32.totalorder %s25, 0
      %p178 = por %p176, %p177
      %s180 = sadd.s32 %s179, 1
      %p183 = scmp.eq.s32.totalorder %s19, 1
      %p184 = scmp.ne.s32.totalorder %s179, %s181
      %p185 = scmp.eq.s32.totalorder %s19, 0
      %p186 = por %p184, %p185
      %p187 = scmp.ne.s32.totalorder %s179, %s181
      %p188 = scmp.eq.s32.totalorder %s24, 1
      %p189 = por %p187, %p188
      %p190 = scmp.ne.s32.totalorder %s181, %s182
      %p191 = scmp.eq.s32.totalorder %s24, 0
      %p192 = por %p190, %p191
      %p193 = scmp.ne.s32.totalorder %s181, %s182
      %p194 = scmp.eq.s32.totalorder %s25, 1
      %p195 = por %p193, %p194
      %p197 = scmp.ne.s32.totalorder %s182, %s196
      %p198 = scmp.eq.s32.totalorder %s25, 0
      %p199 = por %p197, %p198
      %s201 = sadd.s32 %s200, 1
      %p204 = scmp.eq.s32.totalorder %s19, 1
      %p205 = scmp.ne.s32.totalorder %s200, %s202
      %p206 = scmp.eq.s32.totalorder %s19, 0
      %p207 = por %p205, %p206
      %p208 = scmp.ne.s32.totalorder %s200, %s202
      %p209 = scmp.eq.s32.totalorder %s24, 1
      %p210 = por %p208, %p209
      %p211 = scmp.ne.s32.totalorder %s202, %s203
      %p212 = scmp.eq.s32.totalorder %s24, 0
      %p213 = por %p211, %p212
      %p214 = scmp.ne.s32.totalorder %s202, %s203
      %p215 = scmp.eq.s32.totalorder %s25, 1
      %p216 = por %p214, %p215
      %p218 = scmp.ne.s32.totalorder %s203, %s217
      %p219 = scmp.eq.s32.totalorder %s25, 0
      %p220 = por %p218, %p219
      %s222 = sadd.s32 %s221, 1
      %p225 = scmp.eq.s32.totalorder %s19, 1
      %p226 = scmp.ne.s32.totalorder %s221, %s223
      %p227 = scmp.eq.s32.totalorder %s19, 0
      %p228 = por %p226, %p227
      %p229 = scmp.ne.s32.totalorder %s221, %s223
      %p230 = scmp.eq.s32.totalorder %s24, 1
      %p231 = por %p229, %p230
      %p232 = scmp.ne.s32.totalorder %s223, %s224
      %p233 = scmp.eq.s32.totalorder %s24, 0
      %p234 = por %p232, %p233
      %p235 = scmp.ne.s32.totalorder %s223, %s224
      %p236 = scmp.eq.s32.totalorder %s25, 1
      %p237 = por %p235, %p236
      %p239 = scmp.ne.s32.totalorder %s224, %s238
      %p240 = scmp.eq.s32.totalorder %s25, 0
      %p241 = por %p239, %p240
      %s242 = ssub.s32 %s19, %s26
      %p243 = scmp.eq.s32.totalorder %s242, 0
      %s245 = sadd.s32 %s244, 1
      %s246 = scalar_select %p243, %s244, %s245
      %p249 = pneg %p243
      %p250 = scmp.eq.s32.totalorder %s19, 1
      %p251 = por %p249, %p250
      %p252 = scmp.ne.s32.totalorder %s244, %s247
      %p253 = scmp.eq.s32.totalorder %s19, 0
      %p254 = por %p252, %p253
      %p255 = scmp.ne.s32.totalorder %s244, %s247
      %p256 = scmp.eq.s32.totalorder %s24, 1
      %p257 = por %p255, %p256
      %p258 = scmp.ne.s32.totalorder %s247, %s248
      %p259 = scmp.eq.s32.totalorder %s24, 0
      %p260 = por %p258, %p259
      %p261 = scmp.ne.s32.totalorder %s247, %s248
      %p262 = scmp.eq.s32.totalorder %s25, 1
      %p263 = por %p261, %p262
      %p265 = scmp.ne.s32.totalorder %s248, %s264
      %p266 = scmp.eq.s32.totalorder %s25, 0
      %p267 = por %p265, %p266
      %p268 = scmp.le.s32.totalorder 1, %s19
      %p269 = scmp.lt.s32.totalorder %s19, 3
      %p270 = pnand %p268, %p269
      %p271 = pneg %p270
      // Predicated region
      $region9: #{_lambda_.5} parent=5 // pred_check
        _
      $region10: #{_lambda_.5} parent=5 // pred_check_branch
        %273 = sbr.rel (%p270) target = $region12
      $region11: #{_lambda_.5} parent=5 // pred_region
        %s274 = ssub.s32 %s19, 1
        // Predicated region
        $region13: #{_lambda_.5} parent=11 // pred_check
          %p275 = pneg %p66
        $region14: #{_lambda_.5} parent=11 // pred_check_branch
          %277 = sbr.rel (%p275) target = $region16
        $region15: #{_lambda_.5} parent=11 // pred_region
          _
        $region16: #{_lambda_.5} parent=11 // pred_fallthru
          _
        // Predicated region
        $region17: #{_lambda_.5} parent=11 // pred_check
          %p278 = pneg %p87
        $region18: #{_lambda_.5} parent=11 // pred_check_branch
          %280 = sbr.rel (%p278) target = $region20
        $region19: #{_lambda_.5} parent=11 // pred_region
          %282 = vsyncadd [#allocation3], 0
          %s283 = sshll.u32 %s2, 4
          %s284 = int_to_ptr.hbm [resolvable:$true] %s283
          %s285 = sshll.u32 [#allocation2], 4
          %s286 = int_to_ptr.vmem [resolvable:$true] %s285
          %291 = dma.hbm_to_vmem [thread:$0]  %s284, 768, %s286, [#allocation3], 192, 192, 12
        $region20: #{_lambda_.5} parent=11 // pred_fallthru
          _
        // Predicated region
        $region21: #{_lambda_.5} parent=11 // pred_check
          %p292 = pneg %p108
        $region22: #{_lambda_.5} parent=11 // pred_check_branch
          %294 = sbr.rel (%p292) target = $region24
        $region23: #{_lambda_.5} parent=11 // pred_region
          _
        $region24: #{_lambda_.5} parent=11 // pred_fallthru
          _
        // Predicated region
        $region25: #{_lambda_.5} parent=11 // pred_check
          %p295 = pneg %p129
        $region26: #{_lambda_.5} parent=11 // pred_check_branch
          %297 = sbr.rel (%p295) target = $region28
        $region27: #{_lambda_.5} parent=11 // pred_region
          %299 = vsyncadd [#allocation5], 0
          %s300 = sshll.u32 %s4, 4
          %s301 = int_to_ptr.hbm [resolvable:$true] %s300
          %s302 = sshll.u32 [#allocation4], 4
          %s303 = int_to_ptr.vmem [resolvable:$true] %s302
          %308 = dma.hbm_to_vmem [thread:$0]  %s301, 128, %s303, [#allocation5], 64, 64, 4
        $region28: #{_lambda_.5} parent=11 // pred_fallthru
          _
        // Predicated region
        $region29: #{_lambda_.5} parent=11 // pred_check
          %p309 = pneg %p150
        $region30: #{_lambda_.5} parent=11 // pred_check_branch
          %311 = sbr.rel (%p309) target = $region32
        $region31: #{_lambda_.5} parent=11 // pred_region
          %313 = vsyncadd [#allocation5], 0
          %s314 = sshll.u32 %s5, 4
          %s315 = int_to_ptr.hbm [resolvable:$true] %s314
          %s316 = sshll.u32 [#allocation6], 4
          %s317 = int_to_ptr.vmem [resolvable:$true] %s316
          %322 = dma.hbm_to_vmem [thread:$0]  %s315, 192, %s317, [#allocation5], 64, 64, 4
        $region32: #{_lambda_.5} parent=11 // pred_fallthru
          _
        // Predicated region
        $region33: #{_lambda_.5} parent=11 // pred_check
          %p323 = pneg %p171
        $region34: #{_lambda_.5} parent=11 // pred_check_branch
          %325 = sbr.rel (%p323) target = $region36
        $region35: #{_lambda_.5} parent=11 // pred_region
          _
        $region36: #{_lambda_.5} parent=11 // pred_fallthru
          _
        // Predicated region
        $region37: #{_lambda_.5} parent=11 // pred_check
          %p326 = pneg %p192
        $region38: #{_lambda_.5} parent=11 // pred_check_branch
          %328 = sbr.rel (%p326) target = $region40
        $region39: #{_lambda_.5} parent=11 // pred_region
          _
        $region40: #{_lambda_.5} parent=11 // pred_fallthru
          _
        // Predicated region
        $region41: #{_lambda_.5} parent=11 // pred_check
          %p329 = pneg %p213
        $region42: #{_lambda_.5} parent=11 // pred_check_branch
          %331 = sbr.rel (%p329) target = $region44
        $region43: #{_lambda_.5} parent=11 // pred_region
          %333 = vsyncadd [#allocation8], 0
          %s335 = sshll.u32 %s8, 4
          %s336 = int_to_ptr.hbm [resolvable:$true] %s335
          %s337 = sshll.u32 [#allocation7], 4
          %s338 = int_to_ptr.vmem [resolvable:$true] %s337
          %340 = dma.hbm_to_vmem [thread:$0]  %s336, 64, %s338, [#allocation8]
        $region44: #{_lambda_.5} parent=11 // pred_fallthru
          _
        // Predicated region
        $region45: #{_lambda_.5} parent=11 // pred_check
          %p341 = pneg %p234
        $region46: #{_lambda_.5} parent=11 // pred_check_branch
          %343 = sbr.rel (%p341) target = $region48
        $region47: #{_lambda_.5} parent=11 // pred_region
          %345 = vsyncadd [#allocation8], 0
          %s346 = sshll.u32 %s9, 4
          %s347 = int_to_ptr.hbm [resolvable:$true] %s346
          %s348 = sshll.u32 [#allocation9], 4
          %s349 = int_to_ptr.vmem [resolvable:$true] %s348
          %354 = dma.hbm_to_vmem [thread:$0]  %s347, 128, %s349, [#allocation8], 64, 64, 4
        $region48: #{_lambda_.5} parent=11 // pred_fallthru
          _
      $region12: #{_lambda_.5} parent=5 // pred_fallthru
        _
      %p355 = scmp.lt.s32.totalorder %s19, 2
      // Predicated region
      $region49: #{_lambda_.5} parent=5 // pred_check
        %p356 = pneg %p355
      $region50: #{_lambda_.5} parent=5 // pred_check_branch
        %358 = sbr.rel (%p356) target = $region52
      $region51: #{_lambda_.5} parent=5 // pred_region
        // Predicated region
        $region53: #{_lambda_.5} parent=51 // pred_check
          %p359 = pneg %p39
        $region54: #{_lambda_.5} parent=51 // pred_check_branch
          %361 = sbr.rel (%p359) target = $region56
        $region55: #{_lambda_.5} parent=51 // pred_region
          %p362 = scmp.lt.s32.totalorder %s19, 1
          %s363 = scalar_select %p362, %s19, 1
          %s364 = smul.addr %s363, 4
          %s365 = smul.addr %s364, 8
          %s366 = scalar_lea.vmem %s0, %s365
        $region56: #{_lambda_.5} parent=51 // pred_fallthru
          _
      $region52: #{_lambda_.5} parent=5 // pred_fallthru
        _
      %p367 = scmp.le.s32.totalorder 1, %s19
      %p368 = scmp.lt.s32.totalorder %s19, 3
      %p369 = pnand %p367, %p368
      %p370 = pneg %p369
      // Predicated region
      $region57: #{_lambda_.5} parent=5 // pred_check
        _
      $region58: #{_lambda_.5} parent=5 // pred_check_branch
        %372 = sbr.rel (%p369) target = $region60
      $region59: #{_lambda_.5} parent=5 // pred_region
        %s373 = ssub.s32 %s19, 1
        // Predicated region
        $region61: #{_lambda_.5} parent=59 // pred_check
          %p374 = pneg %p87
        $region62: #{_lambda_.5} parent=59 // pred_check_branch
          %376 = sbr.rel (%p374) target = $region64
        $region63: #{_lambda_.5} parent=59 // pred_region
          %378 = dma.done [#allocation3], 768
        $region64: #{_lambda_.5} parent=59 // pred_fallthru
          _
        // Predicated region
        $region65: #{_lambda_.5} parent=59 // pred_check
          %p379 = pneg %p129
        $region66: #{_lambda_.5} parent=59 // pred_check_branch
          %381 = sbr.rel (%p379) target = $region68
        $region67: #{_lambda_.5} parent=59 // pred_region
          %383 = dma.done [#allocation5], 128
        $region68: #{_lambda_.5} parent=59 // pred_fallthru
          _
        // Predicated region
        $region69: #{_lambda_.5} parent=59 // pred_check
          %p384 = pneg %p150
        $region70: #{_lambda_.5} parent=59 // pred_check_branch
          %386 = sbr.rel (%p384) target = $region72
        $region71: #{_lambda_.5} parent=59 // pred_region
          %388 = dma.done [#allocation5], 192
        $region72: #{_lambda_.5} parent=59 // pred_fallthru
          _
        // Predicated region
        $region73: #{_lambda_.5} parent=59 // pred_check
          %p389 = pneg %p213
        $region74: #{_lambda_.5} parent=59 // pred_check_branch
          %391 = sbr.rel (%p389) target = $region76
        $region75: #{_lambda_.5} parent=59 // pred_region
          %393 = dma.done [#allocation8], 64
        $region76: #{_lambda_.5} parent=59 // pred_fallthru
          _
        // Predicated region
        $region77: #{_lambda_.5} parent=59 // pred_check
          %p394 = pneg %p234
        $region78: #{_lambda_.5} parent=59 // pred_check_branch
          %396 = sbr.rel (%p394) target = $region80
        $region79: #{_lambda_.5} parent=59 // pred_region
          %398 = dma.done [#allocation8], 128
        $region80: #{_lambda_.5} parent=59 // pred_fallthru
          _
        %p399 = scmp.lt.s32.totalorder %s24, 1
        %s400 = scalar_select %p399, %s24, 1
        %s401 = smul.addr %s400, 4
        %s402 = smul.addr %s401, 8
        %s403 = scalar_lea.vmem %s0, %s402
        %p404 = pneg %p45
        %p405 = pneg %p42
        %p406 = pneg %p66
        %p407 = pneg %p63
        %p408 = pneg %p87
        %p409 = pneg %p84
        %p410 = pneg %p108
        %p411 = pneg %p105
        %p412 = pneg %p129
        %p413 = pneg %p126
        %p414 = pneg %p150
        %p415 = pneg %p147
        %p416 = pneg %p171
        %p417 = pneg %p168
        %p418 = pneg %p192
        %p419 = pneg %p189
        %p420 = pneg %p213
        %p421 = pneg %p210
        %p422 = pneg %p234
        %p423 = pneg %p231
        %p424 = pneg %p260
        %p425 = pneg %p257
        %p426 = scmp.lt.s32.totalorder %s24, 1
        %s427 = scalar_select %p426, %s24, 1
        %s428 = smul.addr %s427, 4
        %s429 = smul.addr %s428, 8
        %s430 = scalar_lea.vmem %s10, %s429
        %p431 = scmp.lt.s32.totalorder %s24, 1
        %s432 = scalar_select %p431, %s24, 1
        %s433 = smul.addr %s432, 4
        %s434 = smul.addr %s433, 8
        %s435 = scalar_lea.vmem %s0, %s434
        %p436 = scmp.lt.s32.totalorder %s24, 1
        %s437 = scalar_select %p436, %s24, 1
        %s438 = smul.addr %s437, 4
        %s439 = smul.addr %s438, 8
        %s440 = scalar_lea.vmem %s10, %s439
        %v442 = vld [vmem:[%s435] sm:$0xff]
        %v443 = vld [vmem:[%s435 + $0x8] sm:$0xff]
        %v444 = vld [vmem:[%s435 + $0x10] sm:$0xff]
        %v445 = vld [vmem:[%s435 + $0x18] sm:$0xff]
        %v446 = vpack.c.bf16 %v443, %v442
        %v447 = vpack.c.bf16 %v445, %v444
        %v448 = vld [vmem:[#allocation4] sm:$0xf]
        %v449 = vld [vmem:[#allocation4 + $0x4] sm:$0xf]
        %v452 = vunpack.c.l.b16 %v448
        %v453 = vunpack.c.l.b16 %v449
        %v454 = vpack.c.b16 %v453, %v452
        %vm456 = vcmask 130048
        %v458 = vsel %vm456, %v446, 0
        %v461 = vsel %vm456, %v447, 0
        %463 = vmatpush.bf16.msra.mxu0 0
        %464 = vmatpush.bf16.msra.mxu0 0
        %465 = vmatpush.bf16.msra.mxu0 0
        %466 = vmatpush.bf16.msra.mxu0 0
        %467 = vmatpush.bf16.msra.mxu0 0
        %468 = vmatpush.bf16.msra.mxu0 0
        %469 = vmatpush.bf16.msra.mxu0 0
        %470 = vmatpush.bf16.msra.mxu0 %v454
        %471 = vmatmul.bf16.gmra.mxu0 %v458
        %v472 = vpop.f32.mrf.mxu0
        %v473 = vadd.f32 0.0, %v472
        %v474 = vpop.f32.mrf.mxu0
        %v475 = vadd.f32 0.0, %v474
        %476 = vmatmul.bf16.gmra.mxu0 %v461
        %v477 = vpop.f32.mrf.mxu0
        %v478 = vadd.f32 0.0, %v477
        %v479 = vpop.f32.mrf.mxu0
        %v480 = vadd.f32 0.0, %v479
        %481 = vdwg.mxu0
        %v482 = vpack.c.bf16 %v473, %v473
        %v483 = vpack.c.bf16 %v475, %v475
        %v484 = vpack.c.bf16 %v478, %v478
        %v485 = vpack.c.bf16 %v480, %v480
        %v490 = vunpack.c.l.b16 %v482
        %v491 = vunpack.c.l.b16 %v483
        %v492 = vunpack.c.l.b16 %v484
        %v493 = vunpack.c.l.b16 %v485
        %v494 = vpack.c.b16 %v491, %v490
        %v495 = vpack.c.b16 %v493, %v492
        %498 = vrot.lane.b32.xlu0 %v494, 127
        %v499 = vpop.permute.xlu0 %498
        %500 = vrot.lane.b32.xlu0 %v495, 127
        %v501 = vpop.permute.xlu0 %500
        %504 = vrot.lane.b32.xlu0 %v494, 126
        %v505 = vpop.permute.xlu0 %504
        %506 = vrot.lane.b32.xlu0 %v495, 126
        %v507 = vpop.permute.xlu0 %506
        %510 = vrot.lane.b32.xlu0 %v494, 122
        %v511 = vpop.permute.xlu0 %510
        %512 = vrot.lane.b32.xlu0 %v495, 122
        %v513 = vpop.permute.xlu0 %512
        %516 = vrot.lane.b32.xlu0 %v494, 121
        %v517 = vpop.permute.xlu0 %516
        %518 = vrot.lane.b32.xlu0 %v495, 121
        %v519 = vpop.permute.xlu0 %518
        %522 = vrot.lane.b32.xlu0 %v494, 120
        %v523 = vpop.permute.xlu0 %522
        %524 = vrot.lane.b32.xlu0 %v495, 120
        %v525 = vpop.permute.xlu0 %524
        %528 = vrot.lane.b32.xlu0 %v494, 116
        %v529 = vpop.permute.xlu0 %528
        %530 = vrot.lane.b32.xlu0 %v495, 116
        %v531 = vpop.permute.xlu0 %530
        %534 = vrot.lane.b32.xlu0 %v494, 115
        %v535 = vpop.permute.xlu0 %534
        %536 = vrot.lane.b32.xlu0 %v495, 115
        %v537 = vpop.permute.xlu0 %536
        %540 = vrot.lane.b32.xlu0 %v494, 114
        %v541 = vpop.permute.xlu0 %540
        %542 = vrot.lane.b32.xlu0 %v495, 114
        %v543 = vpop.permute.xlu0 %542
        %v546 = vld [vmem:[#allocation2] sm:$0xff]
        %v547 = vld [vmem:[#allocation2 + $0x8] sm:$0xf]
        %v548 = vld [vmem:[#allocation2 + $0xc] sm:$0xff]
        %v549 = vld [vmem:[#allocation2 + $0x14] sm:$0xf]
        %v550 = vld [vmem:[#allocation2 + $0x18] sm:$0xff]
        %v551 = vld [vmem:[#allocation2 + $0x20] sm:$0xf]
        %v552 = vld [vmem:[#allocation2 + $0x24] sm:$0xff]
        %v553 = vld [vmem:[#allocation2 + $0x2c] sm:$0xf]
        %v554 = vld [vmem:[%s3] sm:$0xff]
        %v555 = vld [vmem:[%s3 + $0x8] sm:$0xff]
        %v556 = vld [vmem:[%s3 + $0x10] sm:$0xff]
        %v557 = vld [vmem:[%s3 + $0x18] sm:$0xff]
        %559 = vset.pattern.permute.xlu0 0
        %560 = vperm.xlu0 %559, %v554
        %v561 = vpop.permute.xlu0 %560
        %564 = vset.pattern.permute.xlu0 0
        %565 = vperm.xlu0 %564, %v555
        %v566 = vpop.permute.xlu0 %565
        %569 = vset.pattern.permute.xlu0 0
        %570 = vperm.xlu0 %569, %v556
        %v571 = vpop.permute.xlu0 %570
        %574 = vset.pattern.permute.xlu0 0
        %575 = vperm.xlu0 %574, %v557
        %v576 = vpop.permute.xlu0 %575
        %v586 = vunpack.c.l.b16 %v546
        %v587 = vunpack.c.h.b16 %v546
        %v588 = vunpack.c.l.b16 %v547
        %v589 = vunpack.c.l.b16 %v548
        %v590 = vunpack.c.h.b16 %v548
        %v591 = vunpack.c.l.b16 %v549
        %v592 = vunpack.c.l.b16 %v550
        %v593 = vunpack.c.h.b16 %v550
        %v594 = vunpack.c.l.b16 %v551
        %v595 = vunpack.c.l.b16 %v552
        %v596 = vunpack.c.h.b16 %v552
        %v597 = vunpack.c.l.b16 %v553
        %v598 = vpack.c.b16 %v589, %v586
        %v599 = vpack.c.b16 %v590, %v587
        %v600 = vpack.c.b16 %v591, %v588
        %v601 = vpack.c.b16 %v595, %v592
        %v602 = vpack.c.b16 %v596, %v593
        %v603 = vpack.c.b16 %v597, %v594
        %vm608 = vcmask 261120
        %v610 = vsel %vm608, %v600, 0
        %v613 = vsel %vm608, %v603, 0
        %615 = vmatpush.bf16.msra.mxu0 %v513
        %616 = vmatpush.bf16.msra.mxu0 %v511
        %617 = vmatpush.bf16.msra.mxu0 %v507
        %618 = vmatpush.bf16.msra.mxu0 %v505
        %619 = vmatpush.bf16.msra.mxu0 %v501
        %620 = vmatpush.bf16.msra.mxu0 %v499
        %621 = vmatpush.bf16.msra.mxu0 %v495
        %622 = vmatpush.bf16.msra.mxu0 %v494
        %623 = vmatmul.bf16.gmra.mxu0 %v598
        %v624 = vpop.f32.mrf.mxu0
        %v625 = vadd.f32 %v561, %v624
        %v626 = vpop.f32.mrf.mxu0
        %v627 = vadd.f32 %v566, %v626
        %628 = vmatmul.bf16.gmra.mxu0 %v601
        %v629 = vpop.f32.mrf.mxu0
        %v630 = vadd.f32 %v571, %v629
        %v631 = vpop.f32.mrf.mxu0
        %v632 = vadd.f32 %v576, %v631
        %633 = vdwg.mxu0
        %634 = vmatpush.bf16.msra.mxu0 %v537
        %635 = vmatpush.bf16.msra.mxu0 %v535
        %636 = vmatpush.bf16.msra.mxu0 %v531
        %637 = vmatpush.bf16.msra.mxu0 %v529
        %638 = vmatpush.bf16.msra.mxu0 %v525
        %639 = vmatpush.bf16.msra.mxu0 %v523
        %640 = vmatpush.bf16.msra.mxu0 %v519
        %641 = vmatpush.bf16.msra.mxu0 %v517
        %642 = vmatmul.bf16.gmra.mxu0 %v599
        %v643 = vpop.f32.mrf.mxu0
        %v644 = vadd.f32 %v625, %v643
        %v645 = vpop.f32.mrf.mxu0
        %v646 = vadd.f32 %v627, %v645
        %647 = vmatmul.bf16.gmra.mxu0 %v602
        %v648 = vpop.f32.mrf.mxu0
        %v649 = vadd.f32 %v630, %v648
        %v650 = vpop.f32.mrf.mxu0
        %v651 = vadd.f32 %v632, %v650
        %652 = vdwg.mxu0
        %653 = vmatpush.bf16.msra.mxu0 0
        %654 = vmatpush.bf16.msra.mxu0 0
        %655 = vmatpush.bf16.msra.mxu0 0
        %656 = vmatpush.bf16.msra.mxu0 0
        %657 = vmatpush.bf16.msra.mxu0 0
        %658 = vmatpush.bf16.msra.mxu0 0
        %659 = vmatpush.bf16.msra.mxu0 %v543
        %660 = vmatpush.bf16.msra.mxu0 %v541
        %661 = vmatmul.bf16.gmra.mxu0 %v610
        %v662 = vpop.f32.mrf.mxu0
        %v663 = vadd.f32 %v644, %v662
        %v664 = vpop.f32.mrf.mxu0
        %v665 = vadd.f32 %v646, %v664
        %666 = vmatmul.bf16.gmra.mxu0 %v613
        %v667 = vpop.f32.mrf.mxu0
        %v668 = vadd.f32 %v649, %v667
        %v669 = vpop.f32.mrf.mxu0
        %v670 = vadd.f32 %v651, %v669
        %671 = vdwg.mxu0
        %v672 = vld [vmem:[%s1] sm:$0x1]
        %v674 = vperm.slane %v672, 0
        %v676 = vmul.f32 %v663, %v674
        %v677 = vmul.f32 %v665, %v674
        %v678 = vmul.f32 %v668, %v674
        %v679 = vmul.f32 %v670, %v674
        %v680 = vpack.c.bf16 %v676, %v676
        %v681 = vpack.c.bf16 %v677, %v677
        %v682 = vpack.c.bf16 %v678, %v678
        %v683 = vpack.c.bf16 %v679, %v679
        %v688 = vunpack.c.l.b16 %v680
        %v689 = vunpack.c.l.b16 %v681
        %v690 = vunpack.c.l.b16 %v682
        %v691 = vunpack.c.l.b16 %v683
        %v692 = vpack.c.b16 %v689, %v688
        %v693 = vpack.c.b16 %v691, %v690
        %vm694 = vcmask 179200
        %v697 = vsel %vm694, %v692, 0
        %v700 = vsel %vm694, %v693, 0
        %v702 = vunpack.c.l.bf16 %v697
        %v703 = vunpack.c.h.bf16 %v697
        %v704 = vunpack.c.l.bf16 %v700
        %v705 = vunpack.c.h.bf16 %v700
        %710 = vrot.lane.b32.xlu0 %v702, 127
        %v711 = vpop.permute.xlu0 %710
        %712 = vrot.lane.b32.xlu0 %v703, 127
        %v713 = vpop.permute.xlu0 %712
        %714 = vrot.lane.b32.xlu0 %v704, 127
        %v715 = vpop.permute.xlu0 %714
        %716 = vrot.lane.b32.xlu0 %v705, 127
        %v717 = vpop.permute.xlu0 %716
        %v722 = vmax.f32 %v702, %v711
        %v723 = vmax.f32 %v703, %v713
        %v724 = vmax.f32 %v704, %v715
        %v725 = vmax.f32 %v705, %v717
        %v726 = vpack.c.bf16 %v722, %v722
        %v727 = vpack.c.bf16 %v723, %v723
        %v728 = vpack.c.bf16 %v724, %v724
        %v729 = vpack.c.bf16 %v725, %v725
        %v730 = vunpack.c.l.bf16 %v726
        %v731 = vunpack.c.l.bf16 %v727
        %v732 = vunpack.c.l.bf16 %v728
        %v733 = vunpack.c.l.bf16 %v729
        %734 = vrot.lane.b32.xlu0 %v702, 126
        %v735 = vpop.permute.xlu0 %734
        %736 = vrot.lane.b32.xlu0 %v703, 126
        %v737 = vpop.permute.xlu0 %736
        %738 = vrot.lane.b32.xlu0 %v704, 126
        %v739 = vpop.permute.xlu0 %738
        %740 = vrot.lane.b32.xlu0 %v705, 126
        %v741 = vpop.permute.xlu0 %740
        %v746 = vmax.f32 %v730, %v735
        %v747 = vmax.f32 %v731, %v737
        %v748 = vmax.f32 %v732, %v739
        %v749 = vmax.f32 %v733, %v741
        %v750 = vpack.c.bf16 %v746, %v746
        %v751 = vpack.c.bf16 %v747, %v747
        %v752 = vpack.c.bf16 %v748, %v748
        %v753 = vpack.c.bf16 %v749, %v749
        %v754 = vunpack.c.l.bf16 %v750
        %v755 = vunpack.c.l.bf16 %v751
        %v756 = vunpack.c.l.bf16 %v752
        %v757 = vunpack.c.l.bf16 %v753
        %762 = vrot.lane.b32.xlu0 %v754, 122
        %v763 = vpop.permute.xlu0 %762
        %764 = vrot.lane.b32.xlu0 %v755, 122
        %v765 = vpop.permute.xlu0 %764
        %766 = vrot.lane.b32.xlu0 %v756, 122
        %v767 = vpop.permute.xlu0 %766
        %768 = vrot.lane.b32.xlu0 %v757, 122
        %v769 = vpop.permute.xlu0 %768
        %v774 = vmax.f32 %v754, %v763
        %v775 = vmax.f32 %v755, %v765
        %v776 = vmax.f32 %v756, %v767
        %v777 = vmax.f32 %v757, %v769
        %v778 = vpack.c.bf16 %v774, %v774
        %v779 = vpack.c.bf16 %v775, %v775
        %v780 = vpack.c.bf16 %v776, %v776
        %v781 = vpack.c.bf16 %v777, %v777
        %v782 = vunpack.c.l.bf16 %v778
        %v783 = vunpack.c.l.bf16 %v779
        %v784 = vunpack.c.l.bf16 %v780
        %v785 = vunpack.c.l.bf16 %v781
        %786 = vrot.lane.b32.xlu0 %v754, 116
        %v787 = vpop.permute.xlu0 %786
        %788 = vrot.lane.b32.xlu0 %v755, 116
        %v789 = vpop.permute.xlu0 %788
        %790 = vrot.lane.b32.xlu0 %v756, 116
        %v791 = vpop.permute.xlu0 %790
        %792 = vrot.lane.b32.xlu0 %v757, 116
        %v793 = vpop.permute.xlu0 %792
        %v798 = vmax.f32 %v782, %v787
        %v799 = vmax.f32 %v783, %v789
        %v800 = vmax.f32 %v784, %v791
        %v801 = vmax.f32 %v785, %v793
        %v802 = vpack.c.bf16 %v799, %v798
        %v803 = vpack.c.bf16 %v801, %v800
        %v804 = vld [vmem:[#allocation6] sm:$0xf]
        %v805 = vld [vmem:[#allocation6 + $0x4] sm:$0xf]
        %v806 = vld [vmem:[#allocation6 + $0x8] sm:$0x7]
        %v810 = vunpack.c.l.b16 %v804
        %v811 = vunpack.c.l.b16 %v805
        %v812 = vunpack.c.l.b16 %v806
        %v813 = vpack.c.b16 %v811, %v810
        %v814 = vpack.c.b16 %v812, %v812
        %v817 = vsel %vm694, %v802, 0
        %v820 = vsel %vm694, %v803, 0
        %vm822 = vcmask 1042432
        %v824 = vsel %vm822, %v814, 0
        %826 = vmatpush.bf16.msra.mxu0 0
        %827 = vmatpush.bf16.msra.mxu0 0
        %828 = vmatpush.bf16.msra.mxu0 0
        %829 = vmatpush.bf16.msra.mxu0 0
        %830 = vmatpush.bf16.msra.mxu0 0
        %831 = vmatpush.bf16.msra.mxu0 0
        %832 = vmatpush.bf16.msra.mxu0 %v824
        %833 = vmatpush.bf16.msra.mxu0 %v813
        %834 = vmatmul.bf16.gmra.mxu0 %v817
        %v835 = vpop.f32.mrf.mxu0
        %v836 = vadd.f32 0.0, %v835
        %v837 = vpop.f32.mrf.mxu0
        %v838 = vadd.f32 0.0, %v837
        %839 = vmatmul.bf16.gmra.mxu0 %v820
        %v840 = vpop.f32.mrf.mxu0
        %v841 = vadd.f32 0.0, %v840
        %v842 = vpop.f32.mrf.mxu0
        %v843 = vadd.f32 0.0, %v842
        %844 = vdwg.mxu0
        %v845 = vpack.c.bf16 %v836, %v836
        %v846 = vpack.c.bf16 %v838, %v838
        %v847 = vpack.c.bf16 %v841, %v841
        %v848 = vpack.c.bf16 %v843, %v843
        %v849 = vld [vmem:[%s6] sm:$0xff]
        %v850 = vld [vmem:[%s6 + $0x8] sm:$0xf]
        %v851 = vld [vmem:[%s6 + $0xc] sm:$0xff]
        %v852 = vld [vmem:[%s6 + $0x14] sm:$0xf]
        %v853 = vld [vmem:[%s6 + $0x18] sm:$0xff]
        %v854 = vld [vmem:[%s6 + $0x20] sm:$0xf]
        %v855 = vld [vmem:[%s6 + $0x24] sm:$0xff]
        %v856 = vld [vmem:[%s6 + $0x2c] sm:$0xf]
        %s857 = scalar_lea.vmem %s6, 48
        %v858 = vld [vmem:[%s857] sm:$0xff]
        %v859 = vld [vmem:[%s857 + $0x8] sm:$0xf]
        %v860 = vld [vmem:[%s857 + $0xc] sm:$0xff]
        %v861 = vld [vmem:[%s857 + $0x14] sm:$0xf]
        %v862 = vld [vmem:[%s857 + $0x18] sm:$0xff]
        %v863 = vld [vmem:[%s857 + $0x20] sm:$0xf]
        %v864 = vld [vmem:[%s857 + $0x24] sm:$0xff]
        %v865 = vld [vmem:[%s857 + $0x2c] sm:$0xf]
        %v866 = vld [vmem:[%s7] sm:$0xff]
        %v867 = vld [vmem:[%s7 + $0x8] sm:$0xff]
        %v868 = vld [vmem:[%s7 + $0x10] sm:$0xff]
        %v869 = vld [vmem:[%s7 + $0x18] sm:$0xff]
        %s870 = scalar_lea.vmem %s7, 32
        %v871 = vld [vmem:[%s870] sm:$0xff]
        %v872 = vld [vmem:[%s870 + $0x8] sm:$0xff]
        %v873 = vld [vmem:[%s870 + $0x10] sm:$0xff]
        %v874 = vld [vmem:[%s870 + $0x18] sm:$0xff]
        %v875 = vunpack.c.l.bf16 %v845
        %v876 = vunpack.c.l.bf16 %v846
        %v877 = vunpack.c.l.bf16 %v847
        %v878 = vunpack.c.l.bf16 %v848
        %v879 = vmax.f32 %v875, 0.0
        %v880 = vmax.f32 %v876, 0.0
        %v881 = vmax.f32 %v877, 0.0
        %v882 = vmax.f32 %v878, 0.0
        %v883 = vpack.c.bf16 %v879, %v879
        %v884 = vpack.c.bf16 %v880, %v880
        %v885 = vpack.c.bf16 %v881, %v881
        %v886 = vpack.c.bf16 %v882, %v882
        %v891 = vunpack.c.l.b16 %v883
        %v892 = vunpack.c.l.b16 %v884
        %v893 = vunpack.c.l.b16 %v885
        %v894 = vunpack.c.l.b16 %v886
        %v895 = vpack.c.b16 %v892, %v891
        %v896 = vpack.c.b16 %v894, %v893
        %899 = vrot.lane.b32.xlu0 %v895, 127
        %v900 = vpop.permute.xlu0 %899
        %901 = vrot.lane.b32.xlu0 %v896, 127
        %v902 = vpop.permute.xlu0 %901
        %905 = vrot.lane.b32.xlu0 %v895, 126
        %v906 = vpop.permute.xlu0 %905
        %907 = vrot.lane.b32.xlu0 %v896, 126
        %v908 = vpop.permute.xlu0 %907
        %911 = vrot.lane.b32.xlu0 %v895, 124
        %v912 = vpop.permute.xlu0 %911
        %913 = vrot.lane.b32.xlu0 %v896, 124
        %v914 = vpop.permute.xlu0 %913
        %917 = vrot.lane.b32.xlu0 %v895, 123
        %v918 = vpop.permute.xlu0 %917
        %919 = vrot.lane.b32.xlu0 %v896, 123
        %v920 = vpop.permute.xlu0 %919
        %923 = vrot.lane.b32.xlu0 %v895, 122
        %v924 = vpop.permute.xlu0 %923
        %925 = vrot.lane.b32.xlu0 %v896, 122
        %v926 = vpop.permute.xlu0 %925
        %929 = vrot.lane.b32.xlu0 %v895, 120
        %v930 = vpop.permute.xlu0 %929
        %931 = vrot.lane.b32.xlu0 %v896, 120
        %v932 = vpop.permute.xlu0 %931
        %935 = vrot.lane.b32.xlu0 %v895, 119
        %v936 = vpop.permute.xlu0 %935
        %937 = vrot.lane.b32.xlu0 %v896, 119
        %v938 = vpop.permute.xlu0 %937
        %941 = vrot.lane.b32.xlu0 %v895, 118
        %v942 = vpop.permute.xlu0 %941
        %943 = vrot.lane.b32.xlu0 %v896, 118
        %v944 = vpop.permute.xlu0 %943
        %948 = vset.pattern.permute.xlu0 0
        %949 = vperm.xlu0 %948, %v866
        %v950 = vpop.permute.xlu0 %949
        %953 = vset.pattern.permute.xlu0 0
        %954 = vperm.xlu0 %953, %v867
        %v955 = vpop.permute.xlu0 %954
        %958 = vset.pattern.permute.xlu0 0
        %959 = vperm.xlu0 %958, %v868
        %v960 = vpop.permute.xlu0 %959
        %963 = vset.pattern.permute.xlu0 0
        %964 = vperm.xlu0 %963, %v869
        %v965 = vpop.permute.xlu0 %964
        %v975 = vunpack.c.l.b16 %v849
        %v976 = vunpack.c.h.b16 %v849
        %v977 = vunpack.c.l.b16 %v850
        %v978 = vunpack.c.l.b16 %v851
        %v979 = vunpack.c.h.b16 %v851
        %v980 = vunpack.c.l.b16 %v852
        %v981 = vunpack.c.l.b16 %v853
        %v982 = vunpack.c.h.b16 %v853
        %v983 = vunpack.c.l.b16 %v854
        %v984 = vunpack.c.l.b16 %v855
        %v985 = vunpack.c.h.b16 %v855
        %v986 = vunpack.c.l.b16 %v856
        %v987 = vpack.c.b16 %v978, %v975
        %v988 = vpack.c.b16 %v979, %v976
        %v989 = vpack.c.b16 %v980, %v977
        %v990 = vpack.c.b16 %v984, %v981
        %v991 = vpack.c.b16 %v985, %v982
        %v992 = vpack.c.b16 %v986, %v983
        %v998 = vsel %vm608, %v989, 0
        %v1001 = vsel %vm608, %v992, 0
        %1003 = vmatpush.bf16.msra.mxu0 %v914
        %1004 = vmatpush.bf16.msra.mxu0 %v912
        %1005 = vmatpush.bf16.msra.mxu0 %v908
        %1006 = vmatpush.bf16.msra.mxu0 %v906
        %1007 = vmatpush.bf16.msra.mxu0 %v902
        %1008 = vmatpush.bf16.msra.mxu0 %v900
        %1009 = vmatpush.bf16.msra.mxu0 %v896
        %1010 = vmatpush.bf16.msra.mxu0 %v895
        %1011 = vmatmul.bf16.gmra.mxu0 %v987
        %v1012 = vpop.f32.mrf.mxu0
        %v1013 = vadd.f32 %v950, %v1012
        %v1014 = vpop.f32.mrf.mxu0
        %v1015 = vadd.f32 %v955, %v1014
        %1016 = vmatmul.bf16.gmra.mxu0 %v990
        %v1017 = vpop.f32.mrf.mxu0
        %v1018 = vadd.f32 %v960, %v1017
        %v1019 = vpop.f32.mrf.mxu0
        %v1020 = vadd.f32 %v965, %v1019
        %1021 = vdwg.mxu0
        %1022 = vmatpush.bf16.msra.mxu0 %v938
        %1023 = vmatpush.bf16.msra.mxu0 %v936
        %1024 = vmatpush.bf16.msra.mxu0 %v932
        %1025 = vmatpush.bf16.msra.mxu0 %v930
        %1026 = vmatpush.bf16.msra.mxu0 %v926
        %1027 = vmatpush.bf16.msra.mxu0 %v924
        %1028 = vmatpush.bf16.msra.mxu0 %v920
        %1029 = vmatpush.bf16.msra.mxu0 %v918
        %1030 = vmatmul.bf16.gmra.mxu0 %v988
        %v1031 = vpop.f32.mrf.mxu0
        %v1032 = vadd.f32 %v1013, %v1031
        %v1033 = vpop.f32.mrf.mxu0
        %v1034 = vadd.f32 %v1015, %v1033
        %1035 = vmatmul.bf16.gmra.mxu0 %v991
        %v1036 = vpop.f32.mrf.mxu0
        %v1037 = vadd.f32 %v1018, %v1036
        %v1038 = vpop.f32.mrf.mxu0
        %v1039 = vadd.f32 %v1020, %v1038
        %1040 = vdwg.mxu0
        %1041 = vmatpush.bf16.msra.mxu0 0
        %1042 = vmatpush.bf16.msra.mxu0 0
        %1043 = vmatpush.bf16.msra.mxu0 0
        %1044 = vmatpush.bf16.msra.mxu0 0
        %1045 = vmatpush.bf16.msra.mxu0 0
        %1046 = vmatpush.bf16.msra.mxu0 0
        %1047 = vmatpush.bf16.msra.mxu0 %v944
        %1048 = vmatpush.bf16.msra.mxu0 %v942
        %1049 = vmatmul.bf16.gmra.mxu0 %v998
        %v1050 = vpop.f32.mrf.mxu0
        %v1051 = vadd.f32 %v1032, %v1050
        %v1052 = vpop.f32.mrf.mxu0
        %v1053 = vadd.f32 %v1034, %v1052
        %1054 = vmatmul.bf16.gmra.mxu0 %v1001
        %v1055 = vpop.f32.mrf.mxu0
        %v1056 = vadd.f32 %v1037, %v1055
        %v1057 = vpop.f32.mrf.mxu0
        %v1058 = vadd.f32 %v1039, %v1057
        %1059 = vdwg.mxu0
        %v1060 = vmax.f32 %v1051, 0.0
        %v1061 = vmax.f32 %v1053, 0.0
        %v1062 = vmax.f32 %v1056, 0.0
        %v1063 = vmax.f32 %v1058, 0.0
        %v1064 = vpack.c.bf16 %v1061, %v1060
        %v1065 = vpack.c.bf16 %v1063, %v1062
        %v1066 = vld [vmem:[#allocation7] sm:$0x7]
        %vm1067 = vcmask 48128
        %v1069 = vsel %vm1067, %v1064, 0
        %v1072 = vsel %vm1067, %v1065, 0
        %v1075 = vsel %vm822, %v1066, 0
        %1077 = vmatpush.bf16.msra.mxu0 0
        %1078 = vmatpush.bf16.msra.mxu0 0
        %1079 = vmatpush.bf16.msra.mxu0 0
        %1080 = vmatpush.bf16.msra.mxu0 0
        %1081 = vmatpush.bf16.msra.mxu0 0
        %1082 = vmatpush.bf16.msra.mxu0 0
        %1083 = vmatpush.bf16.msra.mxu0 0
        %1084 = vmatpush.bf16.msra.mxu0 %v1075
        %1085 = vmatmul.bf16.gmra.mxu0 %v1069
        %v1086 = vpop.f32.mrf.mxu0
        %v1087 = vadd.f32 0.0, %v1086
        %v1088 = vpop.f32.mrf.mxu0
        %v1089 = vadd.f32 0.0, %v1088
        %1090 = vmatmul.bf16.gmra.mxu0 %v1072
        %v1091 = vpop.f32.mrf.mxu0
        %v1092 = vadd.f32 0.0, %v1091
        %v1093 = vpop.f32.mrf.mxu0
        %v1094 = vadd.f32 0.0, %v1093
        %1095 = vdwg.mxu0
        %v1096 = vpack.c.bf16 %v1087, %v1087
        %v1097 = vpack.c.bf16 %v1089, %v1089
        %v1098 = vpack.c.bf16 %v1092, %v1092
        %v1099 = vpack.c.bf16 %v1094, %v1094
        %v1104 = vunpack.c.l.b16 %v1096
        %v1105 = vunpack.c.l.b16 %v1097
        %v1106 = vunpack.c.l.b16 %v1098
        %v1107 = vunpack.c.l.b16 %v1099
        %v1108 = vpack.c.b16 %v1105, %v1104
        %v1109 = vpack.c.b16 %v1107, %v1106
        %1112 = vrot.lane.b32.xlu0 %v1108, 127
        %v1113 = vpop.permute.xlu0 %1112
        %1114 = vrot.lane.b32.xlu0 %v1109, 127
        %v1115 = vpop.permute.xlu0 %1114
        %1118 = vrot.lane.b32.xlu0 %v1108, 126
        %v1119 = vpop.permute.xlu0 %1118
        %1120 = vrot.lane.b32.xlu0 %v1109, 126
        %v1121 = vpop.permute.xlu0 %1120
        %1124 = vrot.lane.b32.xlu0 %v1108, 124
        %v1125 = vpop.permute.xlu0 %1124
        %1126 = vrot.lane.b32.xlu0 %v1109, 124
        %v1127 = vpop.permute.xlu0 %1126
        %1130 = vrot.lane.b32.xlu0 %v1108, 123
        %v1131 = vpop.permute.xlu0 %1130
        %1132 = vrot.lane.b32.xlu0 %v1109, 123
        %v1133 = vpop.permute.xlu0 %1132
        %1136 = vrot.lane.b32.xlu0 %v1108, 122
        %v1137 = vpop.permute.xlu0 %1136
        %1138 = vrot.lane.b32.xlu0 %v1109, 122
        %v1139 = vpop.permute.xlu0 %1138
        %1142 = vrot.lane.b32.xlu0 %v1108, 120
        %v1143 = vpop.permute.xlu0 %1142
        %1144 = vrot.lane.b32.xlu0 %v1109, 120
        %v1145 = vpop.permute.xlu0 %1144
        %1148 = vrot.lane.b32.xlu0 %v1108, 119
        %v1149 = vpop.permute.xlu0 %1148
        %1150 = vrot.lane.b32.xlu0 %v1109, 119
        %v1151 = vpop.permute.xlu0 %1150
        %1154 = vrot.lane.b32.xlu0 %v1108, 118
        %v1155 = vpop.permute.xlu0 %1154
        %1156 = vrot.lane.b32.xlu0 %v1109, 118
        %v1157 = vpop.permute.xlu0 %1156
        %1161 = vset.pattern.permute.xlu0 0
        %1162 = vperm.xlu0 %1161, %v871
        %v1163 = vpop.permute.xlu0 %1162
        %1166 = vset.pattern.permute.xlu0 0
        %1167 = vperm.xlu0 %1166, %v872
        %v1168 = vpop.permute.xlu0 %1167
        %1171 = vset.pattern.permute.xlu0 0
        %1172 = vperm.xlu0 %1171, %v873
        %v1173 = vpop.permute.xlu0 %1172
        %1176 = vset.pattern.permute.xlu0 0
        %1177 = vperm.xlu0 %1176, %v874
        %v1178 = vpop.permute.xlu0 %1177
        %v1188 = vunpack.c.l.b16 %v858
        %v1189 = vunpack.c.h.b16 %v858
        %v1190 = vunpack.c.l.b16 %v859
        %v1191 = vunpack.c.l.b16 %v860
        %v1192 = vunpack.c.h.b16 %v860
        %v1193 = vunpack.c.l.b16 %v861
        %v1194 = vunpack.c.l.b16 %v862
        %v1195 = vunpack.c.h.b16 %v862
        %v1196 = vunpack.c.l.b16 %v863
        %v1197 = vunpack.c.l.b16 %v864
        %v1198 = vunpack.c.h.b16 %v864
        %v1199 = vunpack.c.l.b16 %v865
        %v1200 = vpack.c.b16 %v1191, %v1188
        %v1201 = vpack.c.b16 %v1192, %v1189
        %v1202 = vpack.c.b16 %v1193, %v1190
        %v1203 = vpack.c.b16 %v1197, %v1194
        %v1204 = vpack.c.b16 %v1198, %v1195
        %v1205 = vpack.c.b16 %v1199, %v1196
        %v1211 = vsel %vm608, %v1202, 0
        %v1214 = vsel %vm608, %v1205, 0
        %1216 = vmatpush.bf16.msra.mxu0 %v1127
        %1217 = vmatpush.bf16.msra.mxu0 %v1125
        %1218 = vmatpush.bf16.msra.mxu0 %v1121
        %1219 = vmatpush.bf16.msra.mxu0 %v1119
        %1220 = vmatpush.bf16.msra.mxu0 %v1115
        %1221 = vmatpush.bf16.msra.mxu0 %v1113
        %1222 = vmatpush.bf16.msra.mxu0 %v1109
        %1223 = vmatpush.bf16.msra.mxu0 %v1108
        %1224 = vmatmul.bf16.gmra.mxu0 %v1200
        %v1225 = vpop.f32.mrf.mxu0
        %v1226 = vadd.f32 %v1163, %v1225
        %v1227 = vpop.f32.mrf.mxu0
        %v1228 = vadd.f32 %v1168, %v1227
        %1229 = vmatmul.bf16.gmra.mxu0 %v1203
        %v1230 = vpop.f32.mrf.mxu0
        %v1231 = vadd.f32 %v1173, %v1230
        %v1232 = vpop.f32.mrf.mxu0
        %v1233 = vadd.f32 %v1178, %v1232
        %1234 = vdwg.mxu0
        %1235 = vmatpush.bf16.msra.mxu0 %v1151
        %1236 = vmatpush.bf16.msra.mxu0 %v1149
        %1237 = vmatpush.bf16.msra.mxu0 %v1145
        %1238 = vmatpush.bf16.msra.mxu0 %v1143
        %1239 = vmatpush.bf16.msra.mxu0 %v1139
        %1240 = vmatpush.bf16.msra.mxu0 %v1137
        %1241 = vmatpush.bf16.msra.mxu0 %v1133
        %1242 = vmatpush.bf16.msra.mxu0 %v1131
        %1243 = vmatmul.bf16.gmra.mxu0 %v1201
        %v1244 = vpop.f32.mrf.mxu0
        %v1245 = vadd.f32 %v1226, %v1244
        %v1246 = vpop.f32.mrf.mxu0
        %v1247 = vadd.f32 %v1228, %v1246
        %1248 = vmatmul.bf16.gmra.mxu0 %v1204
        %v1249 = vpop.f32.mrf.mxu0
        %v1250 = vadd.f32 %v1231, %v1249
        %v1251 = vpop.f32.mrf.mxu0
        %v1252 = vadd.f32 %v1233, %v1251
        %1253 = vdwg.mxu0
        %1254 = vmatpush.bf16.msra.mxu0 0
        %1255 = vmatpush.bf16.msra.mxu0 0
        %1256 = vmatpush.bf16.msra.mxu0 0
        %1257 = vmatpush.bf16.msra.mxu0 0
        %1258 = vmatpush.bf16.msra.mxu0 0
        %1259 = vmatpush.bf16.msra.mxu0 0
        %1260 = vmatpush.bf16.msra.mxu0 %v1157
        %1261 = vmatpush.bf16.msra.mxu0 %v1155
        %1262 = vmatmul.bf16.gmra.mxu0 %v1211
        %v1263 = vpop.f32.mrf.mxu0
        %v1264 = vadd.f32 %v1245, %v1263
        %v1265 = vpop.f32.mrf.mxu0
        %v1266 = vadd.f32 %v1247, %v1265
        %1267 = vmatmul.bf16.gmra.mxu0 %v1214
        %v1268 = vpop.f32.mrf.mxu0
        %v1269 = vadd.f32 %v1250, %v1268
        %v1270 = vpop.f32.mrf.mxu0
        %v1271 = vadd.f32 %v1252, %v1270
        %1272 = vdwg.mxu0
        %1277 = vrot.lane.b32.xlu0 %v875, 123
        %v1278 = vpop.permute.xlu0 %1277
        %1279 = vrot.lane.b32.xlu0 %v876, 123
        %v1280 = vpop.permute.xlu0 %1279
        %1281 = vrot.lane.b32.xlu0 %v877, 123
        %v1282 = vpop.permute.xlu0 %1281
        %1283 = vrot.lane.b32.xlu0 %v878, 123
        %v1284 = vpop.permute.xlu0 %1283
        %v1289 = vadd.f32 %v1264, %v1278
        %v1290 = vadd.f32 %v1266, %v1280
        %v1291 = vadd.f32 %v1269, %v1282
        %v1292 = vadd.f32 %v1271, %v1284
        %v1293 = vpack.c.bf16 %v1290, %v1289
        %v1294 = vpack.c.bf16 %v1292, %v1291
        %v1296 = vsel %vm1067, %v1293, 0
        %v1299 = vsel %vm1067, %v1294, 0
        %1301 = vmatpush.bf16.msra.mxu0 0
        %1302 = vmatpush.bf16.msra.mxu0 0
        %1303 = vmatpush.bf16.msra.mxu0 0
        %1304 = vmatpush.bf16.msra.mxu0 0
        %1305 = vmatpush.bf16.msra.mxu0 0
        %1306 = vmatpush.bf16.msra.mxu0 0
        %1307 = vmatpush.bf16.msra.mxu0 0
        %1308 = vmatpush.bf16.msra.mxu0 %v1075
        %1309 = vmatmul.bf16.gmra.mxu0 %v1296
        %v1310 = vpop.f32.mrf.mxu0
        %v1311 = vadd.f32 0.0, %v1310
        %v1312 = vpop.f32.mrf.mxu0
        %v1313 = vadd.f32 0.0, %v1312
        %1314 = vmatmul.bf16.gmra.mxu0 %v1299
        %v1315 = vpop.f32.mrf.mxu0
        %v1316 = vadd.f32 0.0, %v1315
        %v1317 = vpop.f32.mrf.mxu0
        %v1318 = vadd.f32 0.0, %v1317
        %1319 = vdwg.mxu0
        %v1320 = vpack.c.bf16 %v1311, %v1311
        %v1321 = vpack.c.bf16 %v1313, %v1313
        %v1322 = vpack.c.bf16 %v1316, %v1316
        %v1323 = vpack.c.bf16 %v1318, %v1318
        %s1324 = scalar_lea.vmem %s6, 96
        %v1325 = vld [vmem:[%s1324] sm:$0xff]
        %v1326 = vld [vmem:[%s1324 + $0x8] sm:$0xf]
        %v1327 = vld [vmem:[%s1324 + $0xc] sm:$0xff]
        %v1328 = vld [vmem:[%s1324 + $0x14] sm:$0xf]
        %v1329 = vld [vmem:[%s1324 + $0x18] sm:$0xff]
        %v1330 = vld [vmem:[%s1324 + $0x20] sm:$0xf]
        %v1331 = vld [vmem:[%s1324 + $0x24] sm:$0xff]
        %v1332 = vld [vmem:[%s1324 + $0x2c] sm:$0xf]
        %s1333 = scalar_lea.vmem %s6, 144
        %v1334 = vld [vmem:[%s1333] sm:$0xff]
        %v1335 = vld [vmem:[%s1333 + $0x8] sm:$0xf]
        %v1336 = vld [vmem:[%s1333 + $0xc] sm:$0xff]
        %v1337 = vld [vmem:[%s1333 + $0x14] sm:$0xf]
        %v1338 = vld [vmem:[%s1333 + $0x18] sm:$0xff]
        %v1339 = vld [vmem:[%s1333 + $0x20] sm:$0xf]
        %v1340 = vld [vmem:[%s1333 + $0x24] sm:$0xff]
        %v1341 = vld [vmem:[%s1333 + $0x2c] sm:$0xf]
        %s1342 = scalar_lea.vmem %s7, 64
        %v1343 = vld [vmem:[%s1342] sm:$0xff]
        %v1344 = vld [vmem:[%s1342 + $0x8] sm:$0xff]
        %v1345 = vld [vmem:[%s1342 + $0x10] sm:$0xff]
        %v1346 = vld [vmem:[%s1342 + $0x18] sm:$0xff]
        %s1347 = scalar_lea.vmem %s7, 96
        %v1348 = vld [vmem:[%s1347] sm:$0xff]
        %v1349 = vld [vmem:[%s1347 + $0x8] sm:$0xff]
        %v1350 = vld [vmem:[%s1347 + $0x10] sm:$0xff]
        %v1351 = vld [vmem:[%s1347 + $0x18] sm:$0xff]
        %v1352 = vunpack.c.l.bf16 %v1320
        %v1353 = vunpack.c.l.bf16 %v1321
        %v1354 = vunpack.c.l.bf16 %v1322
        %v1355 = vunpack.c.l.bf16 %v1323
        %v1356 = vmax.f32 %v1352, 0.0
        %v1357 = vmax.f32 %v1353, 0.0
        %v1358 = vmax.f32 %v1354, 0.0
        %v1359 = vmax.f32 %v1355, 0.0
        %v1360 = vpack.c.bf16 %v1356, %v1356
        %v1361 = vpack.c.bf16 %v1357, %v1357
        %v1362 = vpack.c.bf16 %v1358, %v1358
        %v1363 = vpack.c.bf16 %v1359, %v1359
        %v1368 = vunpack.c.l.b16 %v1360
        %v1369 = vunpack.c.l.b16 %v1361
        %v1370 = vunpack.c.l.b16 %v1362
        %v1371 = vunpack.c.l.b16 %v1363
        %v1372 = vpack.c.b16 %v1369, %v1368
        %v1373 = vpack.c.b16 %v1371, %v1370
        %1376 = vrot.lane.b32.xlu0 %v1372, 127
        %v1377 = vpop.permute.xlu0 %1376
        %1378 = vrot.lane.b32.xlu0 %v1373, 127
        %v1379 = vpop.permute.xlu0 %1378
        %1382 = vrot.lane.b32.xlu0 %v1372, 126
        %v1383 = vpop.permute.xlu0 %1382
        %1384 = vrot.lane.b32.xlu0 %v1373, 126
        %v1385 = vpop.permute.xlu0 %1384
        %1388 = vrot.lane.b32.xlu0 %v1372, 124
        %v1389 = vpop.permute.xlu0 %1388
        %1390 = vrot.lane.b32.xlu0 %v1373, 124
        %v1391 = vpop.permute.xlu0 %1390
        %1394 = vrot.lane.b32.xlu0 %v1372, 123
        %v1395 = vpop.permute.xlu0 %1394
        %1396 = vrot.lane.b32.xlu0 %v1373, 123
        %v1397 = vpop.permute.xlu0 %1396
        %1400 = vrot.lane.b32.xlu0 %v1372, 122
        %v1401 = vpop.permute.xlu0 %1400
        %1402 = vrot.lane.b32.xlu0 %v1373, 122
        %v1403 = vpop.permute.xlu0 %1402
        %1406 = vrot.lane.b32.xlu0 %v1372, 120
        %v1407 = vpop.permute.xlu0 %1406
        %1408 = vrot.lane.b32.xlu0 %v1373, 120
        %v1409 = vpop.permute.xlu0 %1408
        %1412 = vrot.lane.b32.xlu0 %v1372, 119
        %v1413 = vpop.permute.xlu0 %1412
        %1414 = vrot.lane.b32.xlu0 %v1373, 119
        %v1415 = vpop.permute.xlu0 %1414
        %1418 = vrot.lane.b32.xlu0 %v1372, 118
        %v1419 = vpop.permute.xlu0 %1418
        %1420 = vrot.lane.b32.xlu0 %v1373, 118
        %v1421 = vpop.permute.xlu0 %1420
        %1425 = vset.pattern.permute.xlu0 0
        %1426 = vperm.xlu0 %1425, %v1343
        %v1427 = vpop.permute.xlu0 %1426
        %1430 = vset.pattern.permute.xlu0 0
        %1431 = vperm.xlu0 %1430, %v1344
        %v1432 = vpop.permute.xlu0 %1431
        %1435 = vset.pattern.permute.xlu0 0
        %1436 = vperm.xlu0 %1435, %v1345
        %v1437 = vpop.permute.xlu0 %1436
        %1440 = vset.pattern.permute.xlu0 0
        %1441 = vperm.xlu0 %1440, %v1346
        %v1442 = vpop.permute.xlu0 %1441
        %v1452 = vunpack.c.l.b16 %v1325
        %v1453 = vunpack.c.h.b16 %v1325
        %v1454 = vunpack.c.l.b16 %v1326
        %v1455 = vunpack.c.l.b16 %v1327
        %v1456 = vunpack.c.h.b16 %v1327
        %v1457 = vunpack.c.l.b16 %v1328
        %v1458 = vunpack.c.l.b16 %v1329
        %v1459 = vunpack.c.h.b16 %v1329
        %v1460 = vunpack.c.l.b16 %v1330
        %v1461 = vunpack.c.l.b16 %v1331
        %v1462 = vunpack.c.h.b16 %v1331
        %v1463 = vunpack.c.l.b16 %v1332
        %v1464 = vpack.c.b16 %v1455, %v1452
        %v1465 = vpack.c.b16 %v1456, %v1453
        %v1466 = vpack.c.b16 %v1457, %v1454
        %v1467 = vpack.c.b16 %v1461, %v1458
        %v1468 = vpack.c.b16 %v1462, %v1459
        %v1469 = vpack.c.b16 %v1463, %v1460
        %v1475 = vsel %vm608, %v1466, 0
        %v1478 = vsel %vm608, %v1469, 0
        %1480 = vmatpush.bf16.msra.mxu0 %v1391
        %1481 = vmatpush.bf16.msra.mxu0 %v1389
        %1482 = vmatpush.bf16.msra.mxu0 %v1385
        %1483 = vmatpush.bf16.msra.mxu0 %v1383
        %1484 = vmatpush.bf16.msra.mxu0 %v1379
        %1485 = vmatpush.bf16.msra.mxu0 %v1377
        %1486 = vmatpush.bf16.msra.mxu0 %v1373
        %1487 = vmatpush.bf16.msra.mxu0 %v1372
        %1488 = vmatmul.bf16.gmra.mxu0 %v1464
        %v1489 = vpop.f32.mrf.mxu0
        %v1490 = vadd.f32 %v1427, %v1489
        %v1491 = vpop.f32.mrf.mxu0
        %v1492 = vadd.f32 %v1432, %v1491
        %1493 = vmatmul.bf16.gmra.mxu0 %v1467
        %v1494 = vpop.f32.mrf.mxu0
        %v1495 = vadd.f32 %v1437, %v1494
        %v1496 = vpop.f32.mrf.mxu0
        %v1497 = vadd.f32 %v1442, %v1496
        %1498 = vdwg.mxu0
        %1499 = vmatpush.bf16.msra.mxu0 %v1415
        %1500 = vmatpush.bf16.msra.mxu0 %v1413
        %1501 = vmatpush.bf16.msra.mxu0 %v1409
        %1502 = vmatpush.bf16.msra.mxu0 %v1407
        %1503 = vmatpush.bf16.msra.mxu0 %v1403
        %1504 = vmatpush.bf16.msra.mxu0 %v1401
        %1505 = vmatpush.bf16.msra.mxu0 %v1397
        %1506 = vmatpush.bf16.msra.mxu0 %v1395
        %1507 = vmatmul.bf16.gmra.mxu0 %v1465
        %v1508 = vpop.f32.mrf.mxu0
        %v1509 = vadd.f32 %v1490, %v1508
        %v1510 = vpop.f32.mrf.mxu0
        %v1511 = vadd.f32 %v1492, %v1510
        %1512 = vmatmul.bf16.gmra.mxu0 %v1468
        %v1513 = vpop.f32.mrf.mxu0
        %v1514 = vadd.f32 %v1495, %v1513
        %v1515 = vpop.f32.mrf.mxu0
        %v1516 = vadd.f32 %v1497, %v1515
        %1517 = vdwg.mxu0
        %1518 = vmatpush.bf16.msra.mxu0 0
        %1519 = vmatpush.bf16.msra.mxu0 0
        %1520 = vmatpush.bf16.msra.mxu0 0
        %1521 = vmatpush.bf16.msra.mxu0 0
        %1522 = vmatpush.bf16.msra.mxu0 0
        %1523 = vmatpush.bf16.msra.mxu0 0
        %1524 = vmatpush.bf16.msra.mxu0 %v1421
        %1525 = vmatpush.bf16.msra.mxu0 %v1419
        %1526 = vmatmul.bf16.gmra.mxu0 %v1475
        %v1527 = vpop.f32.mrf.mxu0
        %v1528 = vadd.f32 %v1509, %v1527
        %v1529 = vpop.f32.mrf.mxu0
        %v1530 = vadd.f32 %v1511, %v1529
        %1531 = vmatmul.bf16.gmra.mxu0 %v1478
        %v1532 = vpop.f32.mrf.mxu0
        %v1533 = vadd.f32 %v1514, %v1532
        %v1534 = vpop.f32.mrf.mxu0
        %v1535 = vadd.f32 %v1516, %v1534
        %1536 = vdwg.mxu0
        %v1537 = vmax.f32 %v1528, 0.0
        %v1538 = vmax.f32 %v1530, 0.0
        %v1539 = vmax.f32 %v1533, 0.0
        %v1540 = vmax.f32 %v1535, 0.0
        %v1541 = vpack.c.bf16 %v1538, %v1537
        %v1542 = vpack.c.bf16 %v1540, %v1539
        %v1544 = vsel %vm1067, %v1541, 0
        %v1547 = vsel %vm1067, %v1542, 0
        %1549 = vmatpush.bf16.msra.mxu0 0
        %1550 = vmatpush.bf16.msra.mxu0 0
        %1551 = vmatpush.bf16.msra.mxu0 0
        %1552 = vmatpush.bf16.msra.mxu0 0
        %1553 = vmatpush.bf16.msra.mxu0 0
        %1554 = vmatpush.bf16.msra.mxu0 0
        %1555 = vmatpush.bf16.msra.mxu0 0
        %1556 = vmatpush.bf16.msra.mxu0 %v1075
        %1557 = vmatmul.bf16.gmra.mxu0 %v1544
        %v1558 = vpop.f32.mrf.mxu0
        %v1559 = vadd.f32 0.0, %v1558
        %v1560 = vpop.f32.mrf.mxu0
        %v1561 = vadd.f32 0.0, %v1560
        %1562 = vmatmul.bf16.gmra.mxu0 %v1547
        %v1563 = vpop.f32.mrf.mxu0
        %v1564 = vadd.f32 0.0, %v1563
        %v1565 = vpop.f32.mrf.mxu0
        %v1566 = vadd.f32 0.0, %v1565
        %1567 = vdwg.mxu0
        %v1568 = vpack.c.bf16 %v1559, %v1559
        %v1569 = vpack.c.bf16 %v1561, %v1561
        %v1570 = vpack.c.bf16 %v1564, %v1564
        %v1571 = vpack.c.bf16 %v1566, %v1566
        %v1576 = vunpack.c.l.b16 %v1568
        %v1577 = vunpack.c.l.b16 %v1569
        %v1578 = vunpack.c.l.b16 %v1570
        %v1579 = vunpack.c.l.b16 %v1571
        %v1580 = vpack.c.b16 %v1577, %v1576
        %v1581 = vpack.c.b16 %v1579, %v1578
        %1584 = vrot.lane.b32.xlu0 %v1580, 127
        %v1585 = vpop.permute.xlu0 %1584
        %1586 = vrot.lane.b32.xlu0 %v1581, 127
        %v1587 = vpop.permute.xlu0 %1586
        %1590 = vrot.lane.b32.xlu0 %v1580, 126
        %v1591 = vpop.permute.xlu0 %1590
        %1592 = vrot.lane.b32.xlu0 %v1581, 126
        %v1593 = vpop.permute.xlu0 %1592
        %1596 = vrot.lane.b32.xlu0 %v1580, 124
        %v1597 = vpop.permute.xlu0 %1596
        %1598 = vrot.lane.b32.xlu0 %v1581, 124
        %v1599 = vpop.permute.xlu0 %1598
        %1602 = vrot.lane.b32.xlu0 %v1580, 123
        %v1603 = vpop.permute.xlu0 %1602
        %1604 = vrot.lane.b32.xlu0 %v1581, 123
        %v1605 = vpop.permute.xlu0 %1604
        %1608 = vrot.lane.b32.xlu0 %v1580, 122
        %v1609 = vpop.permute.xlu0 %1608
        %1610 = vrot.lane.b32.xlu0 %v1581, 122
        %v1611 = vpop.permute.xlu0 %1610
        %1614 = vrot.lane.b32.xlu0 %v1580, 120
        %v1615 = vpop.permute.xlu0 %1614
        %1616 = vrot.lane.b32.xlu0 %v1581, 120
        %v1617 = vpop.permute.xlu0 %1616
        %1620 = vrot.lane.b32.xlu0 %v1580, 119
        %v1621 = vpop.permute.xlu0 %1620
        %1622 = vrot.lane.b32.xlu0 %v1581, 119
        %v1623 = vpop.permute.xlu0 %1622
        %1626 = vrot.lane.b32.xlu0 %v1580, 118
        %v1627 = vpop.permute.xlu0 %1626
        %1628 = vrot.lane.b32.xlu0 %v1581, 118
        %v1629 = vpop.permute.xlu0 %1628
        %1633 = vset.pattern.permute.xlu0 0
        %1634 = vperm.xlu0 %1633, %v1348
        %v1635 = vpop.permute.xlu0 %1634
        %1638 = vset.pattern.permute.xlu0 0
        %1639 = vperm.xlu0 %1638, %v1349
        %v1640 = vpop.permute.xlu0 %1639
        %1643 = vset.pattern.permute.xlu0 0
        %1644 = vperm.xlu0 %1643, %v1350
        %v1645 = vpop.permute.xlu0 %1644
        %1648 = vset.pattern.permute.xlu0 0
        %1649 = vperm.xlu0 %1648, %v1351
        %v1650 = vpop.permute.xlu0 %1649
        %v1660 = vunpack.c.l.b16 %v1334
        %v1661 = vunpack.c.h.b16 %v1334
        %v1662 = vunpack.c.l.b16 %v1335
        %v1663 = vunpack.c.l.b16 %v1336
        %v1664 = vunpack.c.h.b16 %v1336
        %v1665 = vunpack.c.l.b16 %v1337
        %v1666 = vunpack.c.l.b16 %v1338
        %v1667 = vunpack.c.h.b16 %v1338
        %v1668 = vunpack.c.l.b16 %v1339
        %v1669 = vunpack.c.l.b16 %v1340
        %v1670 = vunpack.c.h.b16 %v1340
        %v1671 = vunpack.c.l.b16 %v1341
        %v1672 = vpack.c.b16 %v1663, %v1660
        %v1673 = vpack.c.b16 %v1664, %v1661
        %v1674 = vpack.c.b16 %v1665, %v1662
        %v1675 = vpack.c.b16 %v1669, %v1666
        %v1676 = vpack.c.b16 %v1670, %v1667
        %v1677 = vpack.c.b16 %v1671, %v1668
        %v1683 = vsel %vm608, %v1674, 0
        %v1686 = vsel %vm608, %v1677, 0
        %1688 = vmatpush.bf16.msra.mxu0 %v1599
        %1689 = vmatpush.bf16.msra.mxu0 %v1597
        %1690 = vmatpush.bf16.msra.mxu0 %v1593
        %1691 = vmatpush.bf16.msra.mxu0 %v1591
        %1692 = vmatpush.bf16.msra.mxu0 %v1587
        %1693 = vmatpush.bf16.msra.mxu0 %v1585
        %1694 = vmatpush.bf16.msra.mxu0 %v1581
        %1695 = vmatpush.bf16.msra.mxu0 %v1580
        %1696 = vmatmul.bf16.gmra.mxu0 %v1672
        %v1697 = vpop.f32.mrf.mxu0
        %v1698 = vadd.f32 %v1635, %v1697
        %v1699 = vpop.f32.mrf.mxu0
        %v1700 = vadd.f32 %v1640, %v1699
        %1701 = vmatmul.bf16.gmra.mxu0 %v1675
        %v1702 = vpop.f32.mrf.mxu0
        %v1703 = vadd.f32 %v1645, %v1702
        %v1704 = vpop.f32.mrf.mxu0
        %v1705 = vadd.f32 %v1650, %v1704
        %1706 = vdwg.mxu0
        %1707 = vmatpush.bf16.msra.mxu0 %v1623
        %1708 = vmatpush.bf16.msra.mxu0 %v1621
        %1709 = vmatpush.bf16.msra.mxu0 %v1617
        %1710 = vmatpush.bf16.msra.mxu0 %v1615
        %1711 = vmatpush.bf16.msra.mxu0 %v1611
        %1712 = vmatpush.bf16.msra.mxu0 %v1609
        %1713 = vmatpush.bf16.msra.mxu0 %v1605
        %1714 = vmatpush.bf16.msra.mxu0 %v1603
        %1715 = vmatmul.bf16.gmra.mxu0 %v1673
        %v1716 = vpop.f32.mrf.mxu0
        %v1717 = vadd.f32 %v1698, %v1716
        %v1718 = vpop.f32.mrf.mxu0
        %v1719 = vadd.f32 %v1700, %v1718
        %1720 = vmatmul.bf16.gmra.mxu0 %v1676
        %v1721 = vpop.f32.mrf.mxu0
        %v1722 = vadd.f32 %v1703, %v1721
        %v1723 = vpop.f32.mrf.mxu0
        %v1724 = vadd.f32 %v1705, %v1723
        %1725 = vdwg.mxu0
        %1726 = vmatpush.bf16.msra.mxu0 0
        %1727 = vmatpush.bf16.msra.mxu0 0
        %1728 = vmatpush.bf16.msra.mxu0 0
        %1729 = vmatpush.bf16.msra.mxu0 0
        %1730 = vmatpush.bf16.msra.mxu0 0
        %1731 = vmatpush.bf16.msra.mxu0 0
        %1732 = vmatpush.bf16.msra.mxu0 %v1629
        %1733 = vmatpush.bf16.msra.mxu0 %v1627
        %1734 = vmatmul.bf16.gmra.mxu0 %v1683
        %v1735 = vpop.f32.mrf.mxu0
        %v1736 = vadd.f32 %v1717, %v1735
        %v1737 = vpop.f32.mrf.mxu0
        %v1738 = vadd.f32 %v1719, %v1737
        %1739 = vmatmul.bf16.gmra.mxu0 %v1686
        %v1740 = vpop.f32.mrf.mxu0
        %v1741 = vadd.f32 %v1722, %v1740
        %v1742 = vpop.f32.mrf.mxu0
        %v1743 = vadd.f32 %v1724, %v1742
        %1744 = vdwg.mxu0
        %1749 = vrot.lane.b32.xlu0 %v1352, 123
        %v1750 = vpop.permute.xlu0 %1749
        %1751 = vrot.lane.b32.xlu0 %v1353, 123
        %v1752 = vpop.permute.xlu0 %1751
        %1753 = vrot.lane.b32.xlu0 %v1354, 123
        %v1754 = vpop.permute.xlu0 %1753
        %1755 = vrot.lane.b32.xlu0 %v1355, 123
        %v1756 = vpop.permute.xlu0 %1755
        %v1761 = vadd.f32 %v1736, %v1750
        %v1762 = vadd.f32 %v1738, %v1752
        %v1763 = vadd.f32 %v1741, %v1754
        %v1764 = vadd.f32 %v1743, %v1756
        %v1765 = vmax.f32 %v1761, 0.0
        %v1766 = vmax.f32 %v1762, 0.0
        %v1767 = vmax.f32 %v1763, 0.0
        %v1768 = vmax.f32 %v1764, 0.0
        %v1769 = vpack.c.bf16 %v1766, %v1765
        %v1770 = vpack.c.bf16 %v1768, %v1767
        %v1772 = vsel %vm1067, %v1769, 0
        %v1775 = vsel %vm1067, %v1770, 0
        %1777 = vmatpush.bf16.msra.mxu0 0
        %1778 = vmatpush.bf16.msra.mxu0 0
        %1779 = vmatpush.bf16.msra.mxu0 0
        %1780 = vmatpush.bf16.msra.mxu0 0
        %1781 = vmatpush.bf16.msra.mxu0 0
        %1782 = vmatpush.bf16.msra.mxu0 0
        %1783 = vmatpush.bf16.msra.mxu0 0
        %1784 = vmatpush.bf16.msra.mxu0 %v1075
        %1785 = vmatmul.bf16.gmra.mxu0 %v1772
        %v1786 = vpop.f32.mrf.mxu0
        %v1787 = vadd.f32 0.0, %v1786
        %v1788 = vpop.f32.mrf.mxu0
        %v1789 = vadd.f32 0.0, %v1788
        %1790 = vmatmul.bf16.gmra.mxu0 %v1775
        %v1791 = vpop.f32.mrf.mxu0
        %v1792 = vadd.f32 0.0, %v1791
        %v1793 = vpop.f32.mrf.mxu0
        %v1794 = vadd.f32 0.0, %v1793
        %1795 = vdwg.mxu0
        %v1796 = vpack.c.bf16 %v1789, %v1787
        %v1797 = vpack.c.bf16 %v1794, %v1792
        %v1798 = vld [vmem:[#allocation9] sm:$0xf]
        %v1799 = vld [vmem:[#allocation9 + $0x4] sm:$0xf]
        %v1802 = vunpack.c.l.b16 %v1798
        %v1803 = vunpack.c.l.b16 %v1799
        %v1804 = vpack.c.b16 %v1803, %v1802
        %v1807 = vsel %vm456, %v1796, 0
        %v1810 = vsel %vm456, %v1797, 0
        %1812 = vmatpush.bf16.msra.mxu0 0
        %1813 = vmatpush.bf16.msra.mxu0 0
        %1814 = vmatpush.bf16.msra.mxu0 0
        %1815 = vmatpush.bf16.msra.mxu0 0
        %1816 = vmatpush.bf16.msra.mxu0 0
        %1817 = vmatpush.bf16.msra.mxu0 0
        %1818 = vmatpush.bf16.msra.mxu0 0
        %1819 = vmatpush.bf16.msra.mxu0 %v1804
        %1820 = vmatmul.bf16.gmra.mxu0 %v1807
        %v1821 = vpop.f32.mrf.mxu0
        %v1822 = vadd.f32 0.0, %v1821
        %v1823 = vpop.f32.mrf.mxu0
        %v1824 = vadd.f32 0.0, %v1823
        %1825 = vmatmul.bf16.gmra.mxu0 %v1810
        %v1826 = vpop.f32.mrf.mxu0
        %v1827 = vadd.f32 0.0, %v1826
        %v1828 = vpop.f32.mrf.mxu0
        %v1829 = vadd.f32 0.0, %v1828
        %1830 = vdwg.mxu0
        %vm1831 = vcmask 31744
        %1832 = vst.msk [vmem:[%s440] sm:$0xff] %vm1831, %v1822
        %1833 = vst.msk [vmem:[%s440 + $0x8] sm:$0xff] %vm1831, %v1824
        %1834 = vst.msk [vmem:[%s440 + $0x10] sm:$0xff] %vm1831, %v1827
        %1835 = vst.msk [vmem:[%s440 + $0x18] sm:$0xff] %vm1831, %v1829
        %p1836 = scmp.lt.s32.totalorder %s24, 1
        %s1837 = scalar_select %p1836, %s24, 1
        %s1838 = smul.addr %s1837, 4
        %s1839 = smul.addr %s1838, 8
        %s1840 = scalar_lea.vmem %s10, %s1839
        // Predicated region
        $region81: #{_lambda_.5} parent=59 // pred_check
          %p1841 = pneg %p257
        $region82: #{_lambda_.5} parent=59 // pred_check_branch
          %1843 = sbr.rel (%p1841) target = $region84
        $region83: #{_lambda_.5} parent=59 // pred_region
          _
        $region84: #{_lambda_.5} parent=59 // pred_fallthru
          _
      $region60: #{_lambda_.5} parent=5 // pred_fallthru
        _
      %p1844 = scmp.le.s32.totalorder 2, %s19
      // Predicated region
      $region85: #{_lambda_.5} parent=5 // pred_check
        %p1845 = pneg %p1844
      $region86: #{_lambda_.5} parent=5 // pred_check_branch
        %1847 = sbr.rel (%p1845) target = $region88
      $region87: #{_lambda_.5} parent=5 // pred_region
        %s1848 = ssub.s32 %s19, 2
        // Predicated region
        $region89: #{_lambda_.5} parent=87 // pred_check
          %p1849 = pneg %p263
        $region90: #{_lambda_.5} parent=87 // pred_check_branch
          %1851 = sbr.rel (%p1849) target = $region92
        $region91: #{_lambda_.5} parent=87 // pred_region
          %p1852 = scmp.lt.s32.totalorder %s25, 1
          %s1853 = scalar_select %p1852, %s25, 1
          %s1854 = smul.addr %s1853, 4
          %s1855 = smul.addr %s1854, 8
          %s1856 = scalar_lea.vmem %s10, %s1855
        $region92: #{_lambda_.5} parent=87 // pred_fallthru
          _
      $region88: #{_lambda_.5} parent=5 // pred_fallthru
        _
    $region6: #{_lambda_.5} parent=1 // loop_footer
      %s23 = sadd.s32 1, %s19
    $region7: #{_lambda_.5} parent=1 // loop_footer_branch
      %18 = sbr.rel target = $region3
    $region8: #{_lambda_.5} parent=1 // loop_exit
      _
    %1857 = vsyncpa [#allocation3], 1
    %s1858 = scalar_lea.sflag [#allocation3], 1
    %1859 = vsyncpa %s1858, 1
    %1860 = vsyncpa [#allocation5], 1
    %1861 = vsyncpa [#allocation8], 1

// kernel: _lambda_.3
$region0: #{_lambda_.3}
  #allocation0 [shape = 'u32[]', space=smem, size = 0x4, offset = 0x4, fixed_abs, tag = 'smem constant byte address 0x4 - core index']
  #allocation1 [shape = 'u32[72,128]{1,0:T(1,128)}', space=vmem, size = 0x9000, scoped, tag = 'internal scratch']
  %s0 = inlined_call_operand.vmem [shape: f32[2,4,256], index: 0, kind: input, shape index: {}]
  %s1 = inlined_call_operand.vmem [shape: f32[1,286], index: 1, kind: input, shape index: {}]
  %s2 = inlined_call_operand.hbm [shape: bf16[16,36], index: 2, kind: input, shape index: {}]
  %s3 = inlined_call_operand.vmem [shape: f32[16,1], index: 3, kind: input, shape index: {}]
  %s4 = inlined_call_operand.hbm [shape: bf16[256,324], index: 4, kind: input, shape index: {}]
  %s5 = inlined_call_operand.hbm [shape: bf16[286,100], index: 5, kind: input, shape index: {}]
  %s6 = inlined_call_operand.hbm [shape: bf16[4,16,144], index: 6, kind: input, shape index: {}]
  %s7 = inlined_call_operand.vmem [shape: f32[4,16,1], index: 7, kind: input, shape index: {}]
  %s8 = inlined_call_operand.hbm [shape: bf16[78,100], index: 8, kind: input, shape index: {}]
  %s9 = inlined_call_operand.hbm [shape: bf16[100,64], index: 9, kind: input, shape index: {}]
  %s10 = inlined_call_operand.vmem [shape: f32[2,16,64], index: 10, kind: output, shape index: {}]
  %s11 = sld [smem:[#allocation0]]
  $region97: #{_lambda_.3} parent=0
    _
  %s13 = ssub.s32 1, %s11
  %s14 = scalar_select 0, %s13, %s11
  $region1: #{_lambda_.3} parent=0
    #allocation2 [shape = 'u8[4096]{0}', space=vmem, size = 0x1000, scoped, tag = 'input window, operand 2, single buffered']
    #allocation3 [shape = 's32[2]{0}', space=sflag, size = 0x8, scoped, tag = 'scoped memory for _lambda_.3']
    #allocation4 [shape = 'u8[196608]{0}', space=vmem, size = 0x30000, scoped, tag = 'input window, operand 4, single buffered']
    #allocation5 [shape = 's32[1]{0}', space=sflag, size = 0x4, scoped, tag = 'scoped memory for _lambda_.3']
    #allocation6 [shape = 'u8[73728]{0}', space=vmem, size = 0x12000, scoped, tag = 'input window, operand 5, single buffered']
    #allocation7 [shape = 'u8[32768]{0}', space=vmem, size = 0x8000, scoped, tag = 'input window, operand 6, single buffered']
    #allocation8 [shape = 's32[1]{0}', space=sflag, size = 0x4, scoped, tag = 'scoped memory for _lambda_.3']
    #allocation9 [shape = 'u8[20480]{0}', space=vmem, size = 0x5000, scoped, tag = 'input window, operand 8, single buffered']
    #allocation10 [shape = 'u8[26624]{0}', space=vmem, size = 0x6800, scoped, tag = 'input window, operand 9, single buffered']
    #allocation11 [shape = 's32[1]{0}', space=sflag, size = 0x4, scoped, tag = 'scoped memory for _lambda_.3']
    %15 = vsyncpa [#allocation3], 0
    %16 = vsyncpa [#allocation5], 0
    %17 = vsyncpa [#allocation8], 0
    %18 = vsyncpa [#allocation11], 0
    loop: start=0, step=1, limit=4
    $region2: #{_lambda_.3} parent=1 // loop_pre_header
      _
    $region3: #{_lambda_.3} parent=1 // loop_header
      %s20 = sphi 0, %s24
      %p21 = scmp.ge.s32.totalorder %s20, 4
      %s30 = sphi 0, %s32
      %s33 = sphi 0, %s30
      %s34 = sphi 0, %s33
      %s50 = sphi 0, %s34
      %s54 = sphi 0, %s54
      %s56 = sphi 0, %s54
      %s57 = sphi 0, %s56
      %s71 = sphi 0, %s57
      %s75 = sphi 0, %s75
      %s77 = sphi 0, %s75
      %s78 = sphi 0, %s77
      %s92 = sphi 0, %s78
      %s96 = sphi 0, %s96
      %s98 = sphi 0, %s96
      %s99 = sphi 0, %s98
      %s113 = sphi 0, %s99
      %s117 = sphi 0, %s117
      %s119 = sphi 0, %s117
      %s120 = sphi 0, %s119
      %s134 = sphi 0, %s120
      %s138 = sphi 0, %s138
      %s140 = sphi 0, %s138
      %s141 = sphi 0, %s140
      %s155 = sphi 0, %s141
      %s159 = sphi 0, %s159
      %s161 = sphi 0, %s159
      %s162 = sphi 0, %s161
      %s176 = sphi 0, %s162
      %s180 = sphi 0, %s180
      %s182 = sphi 0, %s180
      %s183 = sphi 0, %s182
      %s197 = sphi 0, %s183
      %s201 = sphi 0, %s201
      %s203 = sphi 0, %s201
      %s204 = sphi 0, %s203
      %s218 = sphi 0, %s204
      %s222 = sphi 0, %s222
      %s224 = sphi 0, %s222
      %s225 = sphi 0, %s224
      %s239 = sphi 0, %s225
      %s245 = sphi 0, %s247
      %s248 = sphi 0, %s245
      %s249 = sphi 0, %s248
      %s265 = sphi 0, %s249
    $region4: #{_lambda_.3} parent=1 // loop_header_branch
      %23 = sbr.rel (%p21) target = $region8
    $region5: #{_lambda_.3} parent=1 // loop_body
      %s25 = ssub.s32 %s20, 1
      %s26 = ssub.s32 %s20, 2
      %s27 = sadd.s32 %s20, 1
      %s28 = ssub.s32 %s20, %s27
      %p29 = scmp.eq.s32.totalorder %s28, 0
      %s31 = sadd.s32 %s30, 1
      %s32 = scalar_select %p29, %s30, %s31
      %p35 = pneg %p29
      %p36 = scmp.eq.s32.totalorder %s20, 1
      %p37 = por %p35, %p36
      %p38 = scmp.ne.s32.totalorder %s30, %s33
      %p39 = scmp.eq.s32.totalorder %s20, 0
      %p40 = por %p38, %p39
      %p41 = scmp.ne.s32.totalorder %s30, %s33
      %p42 = scmp.eq.s32.totalorder %s25, 1
      %p43 = por %p41, %p42
      %p44 = scmp.ne.s32.totalorder %s33, %s34
      %p45 = scmp.eq.s32.totalorder %s25, 0
      %p46 = por %p44, %p45
      %p47 = scmp.ne.s32.totalorder %s33, %s34
      %p48 = scmp.eq.s32.totalorder %s26, 1
      %p49 = por %p47, %p48
      %p51 = scmp.ne.s32.totalorder %s34, %s50
      %p52 = scmp.eq.s32.totalorder %s26, 0
      %p53 = por %p51, %p52
      %s55 = sadd.s32 %s54, 1
      %p58 = scmp.eq.s32.totalorder %s20, 1
      %p59 = scmp.ne.s32.totalorder %s54, %s56
      %p60 = scmp.eq.s32.totalorder %s20, 0
      %p61 = por %p59, %p60
      %p62 = scmp.ne.s32.totalorder %s54, %s56
      %p63 = scmp.eq.s32.totalorder %s25, 1
      %p64 = por %p62, %p63
      %p65 = scmp.ne.s32.totalorder %s56, %s57
      %p66 = scmp.eq.s32.totalorder %s25, 0
      %p67 = por %p65, %p66
      %p68 = scmp.ne.s32.totalorder %s56, %s57
      %p69 = scmp.eq.s32.totalorder %s26, 1
      %p70 = por %p68, %p69
      %p72 = scmp.ne.s32.totalorder %s57, %s71
      %p73 = scmp.eq.s32.totalorder %s26, 0
      %p74 = por %p72, %p73
      %s76 = sadd.s32 %s75, 1
      %p79 = scmp.eq.s32.totalorder %s20, 1
      %p80 = scmp.ne.s32.totalorder %s75, %s77
      %p81 = scmp.eq.s32.totalorder %s20, 0
      %p82 = por %p80, %p81
      %p83 = scmp.ne.s32.totalorder %s75, %s77
      %p84 = scmp.eq.s32.totalorder %s25, 1
      %p85 = por %p83, %p84
      %p86 = scmp.ne.s32.totalorder %s77, %s78
      %p87 = scmp.eq.s32.totalorder %s25, 0
      %p88 = por %p86, %p87
      %p89 = scmp.ne.s32.totalorder %s77, %s78
      %p90 = scmp.eq.s32.totalorder %s26, 1
      %p91 = por %p89, %p90
      %p93 = scmp.ne.s32.totalorder %s78, %s92
      %p94 = scmp.eq.s32.totalorder %s26, 0
      %p95 = por %p93, %p94
      %s97 = sadd.s32 %s96, 1
      %p100 = scmp.eq.s32.totalorder %s20, 1
      %p101 = scmp.ne.s32.totalorder %s96, %s98
      %p102 = scmp.eq.s32.totalorder %s20, 0
      %p103 = por %p101, %p102
      %p104 = scmp.ne.s32.totalorder %s96, %s98
      %p105 = scmp.eq.s32.totalorder %s25, 1
      %p106 = por %p104, %p105
      %p107 = scmp.ne.s32.totalorder %s98, %s99
      %p108 = scmp.eq.s32.totalorder %s25, 0
      %p109 = por %p107, %p108
      %p110 = scmp.ne.s32.totalorder %s98, %s99
      %p111 = scmp.eq.s32.totalorder %s26, 1
      %p112 = por %p110, %p111
      %p114 = scmp.ne.s32.totalorder %s99, %s113
      %p115 = scmp.eq.s32.totalorder %s26, 0
      %p116 = por %p114, %p115
      %s118 = sadd.s32 %s117, 1
      %p121 = scmp.eq.s32.totalorder %s20, 1
      %p122 = scmp.ne.s32.totalorder %s117, %s119
      %p123 = scmp.eq.s32.totalorder %s20, 0
      %p124 = por %p122, %p123
      %p125 = scmp.ne.s32.totalorder %s117, %s119
      %p126 = scmp.eq.s32.totalorder %s25, 1
      %p127 = por %p125, %p126
      %p128 = scmp.ne.s32.totalorder %s119, %s120
      %p129 = scmp.eq.s32.totalorder %s25, 0
      %p130 = por %p128, %p129
      %p131 = scmp.ne.s32.totalorder %s119, %s120
      %p132 = scmp.eq.s32.totalorder %s26, 1
      %p133 = por %p131, %p132
      %p135 = scmp.ne.s32.totalorder %s120, %s134
      %p136 = scmp.eq.s32.totalorder %s26, 0
      %p137 = por %p135, %p136
      %s139 = sadd.s32 %s138, 1
      %p142 = scmp.eq.s32.totalorder %s20, 1
      %p143 = scmp.ne.s32.totalorder %s138, %s140
      %p144 = scmp.eq.s32.totalorder %s20, 0
      %p145 = por %p143, %p144
      %p146 = scmp.ne.s32.totalorder %s138, %s140
      %p147 = scmp.eq.s32.totalorder %s25, 1
      %p148 = por %p146, %p147
      %p149 = scmp.ne.s32.totalorder %s140, %s141
      %p150 = scmp.eq.s32.totalorder %s25, 0
      %p151 = por %p149, %p150
      %p152 = scmp.ne.s32.totalorder %s140, %s141
      %p153 = scmp.eq.s32.totalorder %s26, 1
      %p154 = por %p152, %p153
      %p156 = scmp.ne.s32.totalorder %s141, %s155
      %p157 = scmp.eq.s32.totalorder %s26, 0
      %p158 = por %p156, %p157
      %s160 = sadd.s32 %s159, 1
      %p163 = scmp.eq.s32.totalorder %s20, 1
      %p164 = scmp.ne.s32.totalorder %s159, %s161
      %p165 = scmp.eq.s32.totalorder %s20, 0
      %p166 = por %p164, %p165
      %p167 = scmp.ne.s32.totalorder %s159, %s161
      %p168 = scmp.eq.s32.totalorder %s25, 1
      %p169 = por %p167, %p168
      %p170 = scmp.ne.s32.totalorder %s161, %s162
      %p171 = scmp.eq.s32.totalorder %s25, 0
      %p172 = por %p170, %p171
      %p173 = scmp.ne.s32.totalorder %s161, %s162
      %p174 = scmp.eq.s32.totalorder %s26, 1
      %p175 = por %p173, %p174
      %p177 = scmp.ne.s32.totalorder %s162, %s176
      %p178 = scmp.eq.s32.totalorder %s26, 0
      %p179 = por %p177, %p178
      %s181 = sadd.s32 %s180, 1
      %p184 = scmp.eq.s32.totalorder %s20, 1
      %p185 = scmp.ne.s32.totalorder %s180, %s182
      %p186 = scmp.eq.s32.totalorder %s20, 0
      %p187 = por %p185, %p186
      %p188 = scmp.ne.s32.totalorder %s180, %s182
      %p189 = scmp.eq.s32.totalorder %s25, 1
      %p190 = por %p188, %p189
      %p191 = scmp.ne.s32.totalorder %s182, %s183
      %p192 = scmp.eq.s32.totalorder %s25, 0
      %p193 = por %p191, %p192
      %p194 = scmp.ne.s32.totalorder %s182, %s183
      %p195 = scmp.eq.s32.totalorder %s26, 1
      %p196 = por %p194, %p195
      %p198 = scmp.ne.s32.totalorder %s183, %s197
      %p199 = scmp.eq.s32.totalorder %s26, 0
      %p200 = por %p198, %p199
      %s202 = sadd.s32 %s201, 1
      %p205 = scmp.eq.s32.totalorder %s20, 1
      %p206 = scmp.ne.s32.totalorder %s201, %s203
      %p207 = scmp.eq.s32.totalorder %s20, 0
      %p208 = por %p206, %p207
      %p209 = scmp.ne.s32.totalorder %s201, %s203
      %p210 = scmp.eq.s32.totalorder %s25, 1
      %p211 = por %p209, %p210
      %p212 = scmp.ne.s32.totalorder %s203, %s204
      %p213 = scmp.eq.s32.totalorder %s25, 0
      %p214 = por %p212, %p213
      %p215 = scmp.ne.s32.totalorder %s203, %s204
      %p216 = scmp.eq.s32.totalorder %s26, 1
      %p217 = por %p215, %p216
      %p219 = scmp.ne.s32.totalorder %s204, %s218
      %p220 = scmp.eq.s32.totalorder %s26, 0
      %p221 = por %p219, %p220
      %s223 = sadd.s32 %s222, 1
      %p226 = scmp.eq.s32.totalorder %s20, 1
      %p227 = scmp.ne.s32.totalorder %s222, %s224
      %p228 = scmp.eq.s32.totalorder %s20, 0
      %p229 = por %p227, %p228
      %p230 = scmp.ne.s32.totalorder %s222, %s224
      %p231 = scmp.eq.s32.totalorder %s25, 1
      %p232 = por %p230, %p231
      %p233 = scmp.ne.s32.totalorder %s224, %s225
      %p234 = scmp.eq.s32.totalorder %s25, 0
      %p235 = por %p233, %p234
      %p236 = scmp.ne.s32.totalorder %s224, %s225
      %p237 = scmp.eq.s32.totalorder %s26, 1
      %p238 = por %p236, %p237
      %p240 = scmp.ne.s32.totalorder %s225, %s239
      %p241 = scmp.eq.s32.totalorder %s26, 0
      %p242 = por %p240, %p241
      %s243 = ssub.s32 %s20, %s27
      %p244 = scmp.eq.s32.totalorder %s243, 0
      %s246 = sadd.s32 %s245, 1
      %s247 = scalar_select %p244, %s245, %s246
      %p250 = pneg %p244
      %p251 = scmp.eq.s32.totalorder %s20, 1
      %p252 = por %p250, %p251
      %p253 = scmp.ne.s32.totalorder %s245, %s248
      %p254 = scmp.eq.s32.totalorder %s20, 0
      %p255 = por %p253, %p254
      %p256 = scmp.ne.s32.totalorder %s245, %s248
      %p257 = scmp.eq.s32.totalorder %s25, 1
      %p258 = por %p256, %p257
      %p259 = scmp.ne.s32.totalorder %s248, %s249
      %p260 = scmp.eq.s32.totalorder %s25, 0
      %p261 = por %p259, %p260
      %p262 = scmp.ne.s32.totalorder %s248, %s249
      %p263 = scmp.eq.s32.totalorder %s26, 1
      %p264 = por %p262, %p263
      %p266 = scmp.ne.s32.totalorder %s249, %s265
      %p267 = scmp.eq.s32.totalorder %s26, 0
      %p268 = por %p266, %p267
      %p269 = scmp.le.s32.totalorder 1, %s20
      %p270 = scmp.lt.s32.totalorder %s20, 3
      %p271 = pnand %p269, %p270
      %p272 = pneg %p271
      // Predicated region
      $region9: #{_lambda_.3} parent=5 // pred_check
        _
      $region10: #{_lambda_.3} parent=5 // pred_check_branch
        %274 = sbr.rel (%p271) target = $region12
      $region11: #{_lambda_.3} parent=5 // pred_region
        %s275 = ssub.s32 %s20, 1
        // Predicated region
        $region13: #{_lambda_.3} parent=11 // pred_check
          %p276 = pneg %p67
        $region14: #{_lambda_.3} parent=11 // pred_check_branch
          %278 = sbr.rel (%p276) target = $region16
        $region15: #{_lambda_.3} parent=11 // pred_region
          _
        $region16: #{_lambda_.3} parent=11 // pred_fallthru
          _
        // Predicated region
        $region17: #{_lambda_.3} parent=11 // pred_check
          %p279 = pneg %p88
        $region18: #{_lambda_.3} parent=11 // pred_check_branch
          %281 = sbr.rel (%p279) target = $region20
        $region19: #{_lambda_.3} parent=11 // pred_region
          %283 = vsyncadd [#allocation3], 0
          %s284 = sshll.u32 %s2, 4
          %s285 = int_to_ptr.hbm [resolvable:$true] %s284
          %s286 = sshll.u32 [#allocation2], 4
          %s287 = int_to_ptr.vmem [resolvable:$true] %s286
          %292 = dma.hbm_to_vmem [thread:$0]  %s285, 128, %s287, [#allocation3], 64, 64, 4
        $region20: #{_lambda_.3} parent=11 // pred_fallthru
          _
        // Predicated region
        $region21: #{_lambda_.3} parent=11 // pred_check
          %p293 = pneg %p109
        $region22: #{_lambda_.3} parent=11 // pred_check_branch
          %295 = sbr.rel (%p293) target = $region24
        $region23: #{_lambda_.3} parent=11 // pred_region
          _
        $region24: #{_lambda_.3} parent=11 // pred_fallthru
          _
        // Predicated region
        $region25: #{_lambda_.3} parent=11 // pred_check
          %p296 = pneg %p130
        $region26: #{_lambda_.3} parent=11 // pred_check_branch
          %298 = sbr.rel (%p296) target = $region28
        $region27: #{_lambda_.3} parent=11 // pred_region
          %300 = vsyncadd [#allocation5], 0
          %s301 = sshll.u32 %s4, 4
          %s302 = int_to_ptr.hbm [resolvable:$true] %s301
          %s303 = sshll.u32 [#allocation4], 4
          %s304 = int_to_ptr.vmem [resolvable:$true] %s303
          %309 = dma.hbm_to_vmem [thread:$0]  %s302, 6144, %s304, [#allocation5], 192, 192, 12
        $region28: #{_lambda_.3} parent=11 // pred_fallthru
          _
        // Predicated region
        $region29: #{_lambda_.3} parent=11 // pred_check
          %p310 = pneg %p151
        $region30: #{_lambda_.3} parent=11 // pred_check_branch
          %312 = sbr.rel (%p310) target = $region32
        $region31: #{_lambda_.3} parent=11 // pred_region
          %314 = vsyncadd [#allocation5], 0
          %s315 = sshll.u32 %s5, 4
          %s316 = int_to_ptr.hbm [resolvable:$true] %s315
          %s317 = sshll.u32 [#allocation6], 4
          %s318 = int_to_ptr.vmem [resolvable:$true] %s317
          %323 = dma.hbm_to_vmem [thread:$0]  %s316, 2304, %s318, [#allocation5], 64, 64, 4
        $region32: #{_lambda_.3} parent=11 // pred_fallthru
          _
        // Predicated region
        $region33: #{_lambda_.3} parent=11 // pred_check
          %p324 = pneg %p172
        $region34: #{_lambda_.3} parent=11 // pred_check_branch
          %326 = sbr.rel (%p324) target = $region36
        $region35: #{_lambda_.3} parent=11 // pred_region
          %328 = vsyncadd [#allocation8], 0
          %s329 = sshll.u32 %s6, 4
          %s330 = int_to_ptr.hbm [resolvable:$true] %s329
          %s331 = sshll.u32 [#allocation7], 4
          %s332 = int_to_ptr.vmem [resolvable:$true] %s331
          %337 = dma.hbm_to_vmem [thread:$0]  %s330, 1024, %s332, [#allocation8], 128, 128, 8
        $region36: #{_lambda_.3} parent=11 // pred_fallthru
          _
        // Predicated region
        $region37: #{_lambda_.3} parent=11 // pred_check
          %p338 = pneg %p193
        $region38: #{_lambda_.3} parent=11 // pred_check_branch
          %340 = sbr.rel (%p338) target = $region40
        $region39: #{_lambda_.3} parent=11 // pred_region
          _
        $region40: #{_lambda_.3} parent=11 // pred_fallthru
          _
        // Predicated region
        $region41: #{_lambda_.3} parent=11 // pred_check
          %p341 = pneg %p214
        $region42: #{_lambda_.3} parent=11 // pred_check_branch
          %343 = sbr.rel (%p341) target = $region44
        $region43: #{_lambda_.3} parent=11 // pred_region
          %345 = vsyncadd [#allocation8], 0
          %s346 = sshll.u32 %s8, 4
          %s347 = int_to_ptr.hbm [resolvable:$true] %s346
          %s348 = sshll.u32 [#allocation9], 4
          %s349 = int_to_ptr.vmem [resolvable:$true] %s348
          %354 = dma.hbm_to_vmem [thread:$0]  %s347, 640, %s349, [#allocation8], 64, 64, 4
        $region44: #{_lambda_.3} parent=11 // pred_fallthru
          _
        // Predicated region
        $region45: #{_lambda_.3} parent=11 // pred_check
          %p355 = pneg %p235
        $region46: #{_lambda_.3} parent=11 // pred_check_branch
          %357 = sbr.rel (%p355) target = $region48
        $region47: #{_lambda_.3} parent=11 // pred_region
          %359 = vsyncadd [#allocation11], 0
          %s360 = sshll.u32 %s9, 4
          %s361 = int_to_ptr.hbm [resolvable:$true] %s360
          %s362 = sshll.u32 [#allocation10], 4
          %s363 = int_to_ptr.vmem [resolvable:$true] %s362
          %368 = dma.hbm_to_vmem [thread:$0]  %s361, 832, %s363, [#allocation11], 64, 64, 4
        $region48: #{_lambda_.3} parent=11 // pred_fallthru
          _
      $region12: #{_lambda_.3} parent=5 // pred_fallthru
        _
      %p369 = scmp.lt.s32.totalorder %s20, 2
      // Predicated region
      $region49: #{_lambda_.3} parent=5 // pred_check
        %p370 = pneg %p369
      $region50: #{_lambda_.3} parent=5 // pred_check_branch
        %372 = sbr.rel (%p370) target = $region52
      $region51: #{_lambda_.3} parent=5 // pred_region
        // Predicated region
        $region53: #{_lambda_.3} parent=51 // pred_check
          %p373 = pneg %p40
        $region54: #{_lambda_.3} parent=51 // pred_check_branch
          %375 = sbr.rel (%p373) target = $region56
        $region55: #{_lambda_.3} parent=51 // pred_region
          %p376 = scmp.lt.s32.totalorder %s20, 1
          %s377 = scalar_select %p376, %s20, 1
          %s378 = smul.addr %s377, 2
          %s379 = smul.addr %s378, 4
          %s380 = scalar_lea.vmem %s0, %s379
        $region56: #{_lambda_.3} parent=51 // pred_fallthru
          _
      $region52: #{_lambda_.3} parent=5 // pred_fallthru
        _
      %p381 = scmp.le.s32.totalorder 1, %s20
      %p382 = scmp.lt.s32.totalorder %s20, 3
      %p383 = pnand %p381, %p382
      %p384 = pneg %p383
      // Predicated region
      $region57: #{_lambda_.3} parent=5 // pred_check
        _
      $region58: #{_lambda_.3} parent=5 // pred_check_branch
        %386 = sbr.rel (%p383) target = $region60
      $region59: #{_lambda_.3} parent=5 // pred_region
        %s387 = ssub.s32 %s20, 1
        // Predicated region
        $region61: #{_lambda_.3} parent=59 // pred_check
          %p388 = pneg %p88
        $region62: #{_lambda_.3} parent=59 // pred_check_branch
          %390 = sbr.rel (%p388) target = $region64
        $region63: #{_lambda_.3} parent=59 // pred_region
          %392 = dma.done [#allocation3], 128
        $region64: #{_lambda_.3} parent=59 // pred_fallthru
          _
        // Predicated region
        $region65: #{_lambda_.3} parent=59 // pred_check
          %p393 = pneg %p130
        $region66: #{_lambda_.3} parent=59 // pred_check_branch
          %395 = sbr.rel (%p393) target = $region68
        $region67: #{_lambda_.3} parent=59 // pred_region
          %397 = dma.done [#allocation5], 6144
        $region68: #{_lambda_.3} parent=59 // pred_fallthru
          _
        // Predicated region
        $region69: #{_lambda_.3} parent=59 // pred_check
          %p398 = pneg %p151
        $region70: #{_lambda_.3} parent=59 // pred_check_branch
          %400 = sbr.rel (%p398) target = $region72
        $region71: #{_lambda_.3} parent=59 // pred_region
          %402 = dma.done [#allocation5], 2304
        $region72: #{_lambda_.3} parent=59 // pred_fallthru
          _
        // Predicated region
        $region73: #{_lambda_.3} parent=59 // pred_check
          %p403 = pneg %p172
        $region74: #{_lambda_.3} parent=59 // pred_check_branch
          %405 = sbr.rel (%p403) target = $region76
        $region75: #{_lambda_.3} parent=59 // pred_region
          %407 = dma.done [#allocation8], 1024
        $region76: #{_lambda_.3} parent=59 // pred_fallthru
          _
        // Predicated region
        $region77: #{_lambda_.3} parent=59 // pred_check
          %p408 = pneg %p214
        $region78: #{_lambda_.3} parent=59 // pred_check_branch
          %410 = sbr.rel (%p408) target = $region80
        $region79: #{_lambda_.3} parent=59 // pred_region
          %412 = dma.done [#allocation8], 640
        $region80: #{_lambda_.3} parent=59 // pred_fallthru
          _
        // Predicated region
        $region81: #{_lambda_.3} parent=59 // pred_check
          %p413 = pneg %p235
        $region82: #{_lambda_.3} parent=59 // pred_check_branch
          %415 = sbr.rel (%p413) target = $region84
        $region83: #{_lambda_.3} parent=59 // pred_region
          %417 = dma.done [#allocation11], 832
        $region84: #{_lambda_.3} parent=59 // pred_fallthru
          _
        %p418 = scmp.lt.s32.totalorder %s25, 1
        %s419 = scalar_select %p418, %s25, 1
        %s420 = smul.addr %s419, 2
        %s421 = smul.addr %s420, 4
        %s422 = scalar_lea.vmem %s0, %s421
        %p423 = pneg %p46
        %p424 = pneg %p43
        %p425 = pneg %p67
        %p426 = pneg %p64
        %p427 = pneg %p88
        %p428 = pneg %p85
        %p429 = pneg %p109
        %p430 = pneg %p106
        %p431 = pneg %p130
        %p432 = pneg %p127
        %p433 = pneg %p151
        %p434 = pneg %p148
        %p435 = pneg %p172
        %p436 = pneg %p169
        %p437 = pneg %p193
        %p438 = pneg %p190
        %p439 = pneg %p214
        %p440 = pneg %p211
        %p441 = pneg %p235
        %p442 = pneg %p232
        %p443 = pneg %p261
        %p444 = pneg %p258
        %p445 = scmp.lt.s32.totalorder %s25, 1
        %s446 = scalar_select %p445, %s25, 1
        %s447 = smul.addr %s446, 2
        %s448 = smul.addr %s447, 8
        %s449 = scalar_lea.vmem %s10, %s448
        %p450 = scmp.lt.s32.totalorder %s25, 1
        %s451 = scalar_select %p450, %s25, 1
        %s452 = smul.addr %s451, 2
        %s453 = smul.addr %s452, 4
        %s454 = scalar_lea.vmem %s0, %s453
        %p455 = scmp.lt.s32.totalorder %s25, 1
        %s456 = scalar_select %p455, %s25, 1
        %s457 = smul.addr %s456, 2
        %s458 = smul.addr %s457, 8
        %s459 = scalar_lea.vmem %s10, %s458
        %v461 = vld [vmem:[%s454] sm:$0xff]
        %463 = vst [vmem:[#allocation1] ss:$2 sm:$0xff] %v461
        %v464 = vld.sshfl [vmem:[#allocation1] sm:$0xff pattern:$0x75316420]
        %v465 = vld.sshfl [vmem:[#allocation1 + $0x8] sm:$0xff pattern:$0x75316420]
        %v468 = vpack.c.bf16 %v464, %v464
        %v469 = vpack.c.bf16 %v465, %v465
        %v470 = vld [vmem:[#allocation4] sm:$0xff]
        %v471 = vld [vmem:[#allocation4 + $0x8] sm:$0xf]
        %v472 = vld [vmem:[#allocation4 + $0xc] sm:$0xff]
        %v473 = vld [vmem:[#allocation4 + $0x14] sm:$0xf]
        %v474 = vld [vmem:[#allocation4 + $0x18] sm:$0xff]
        %v475 = vld [vmem:[#allocation4 + $0x20] sm:$0xf]
        %v476 = vld [vmem:[#allocation4 + $0x24] sm:$0xff]
        %v477 = vld [vmem:[#allocation4 + $0x2c] sm:$0xf]
        %v478 = vld [vmem:[#allocation4 + $0x30] sm:$0xff]
        %v479 = vld [vmem:[#allocation4 + $0x38] sm:$0xf]
        %v480 = vld [vmem:[#allocation4 + $0x3c] sm:$0xff]
        %v481 = vld [vmem:[#allocation4 + $0x44] sm:$0xf]
        %v482 = vld [vmem:[#allocation4 + $0x48] sm:$0xff]
        %v483 = vld [vmem:[#allocation4 + $0x50] sm:$0xf]
        %v484 = vld [vmem:[#allocation4 + $0x54] sm:$0xff]
        %v485 = vld [vmem:[#allocation4 + $0x5c] sm:$0xf]
        %v486 = vld [vmem:[#allocation4 + $0x60] sm:$0xff]
        %v487 = vld [vmem:[#allocation4 + $0x68] sm:$0xf]
        %v488 = vld [vmem:[#allocation4 + $0x6c] sm:$0xff]
        %v489 = vld [vmem:[#allocation4 + $0x74] sm:$0xf]
        %v490 = vld [vmem:[#allocation4 + $0x78] sm:$0xff]
        %v491 = vld [vmem:[#allocation4 + $0x80] sm:$0xf]
        %v492 = vld [vmem:[#allocation4 + $0x84] sm:$0xff]
        %v493 = vld [vmem:[#allocation4 + $0x8c] sm:$0xf]
        %v494 = vld [vmem:[#allocation4 + $0x90] sm:$0xff]
        %v495 = vld [vmem:[#allocation4 + $0x98] sm:$0xf]
        %v496 = vld [vmem:[#allocation4 + $0x9c] sm:$0xff]
        %v497 = vld [vmem:[#allocation4 + $0xa4] sm:$0xf]
        %v498 = vld [vmem:[#allocation4 + $0xa8] sm:$0xff]
        %v499 = vld [vmem:[#allocation4 + $0xb0] sm:$0xf]
        %v500 = vld [vmem:[#allocation4 + $0xb4] sm:$0xff]
        %v501 = vld [vmem:[#allocation4 + $0xbc] sm:$0xf]
        %v502 = vld [vmem:[#allocation4 + $0xc0] sm:$0xff]
        %v503 = vld [vmem:[#allocation4 + $0xc8] sm:$0xf]
        %v504 = vld [vmem:[#allocation4 + $0xcc] sm:$0xff]
        %v505 = vld [vmem:[#allocation4 + $0xd4] sm:$0xf]
        %v506 = vld [vmem:[#allocation4 + $0xd8] sm:$0xff]
        %v507 = vld [vmem:[#allocation4 + $0xe0] sm:$0xf]
        %v508 = vld [vmem:[#allocation4 + $0xe4] sm:$0xff]
        %v509 = vld [vmem:[#allocation4 + $0xec] sm:$0xf]
        %v510 = vld [vmem:[#allocation4 + $0xf0] sm:$0xff]
        %v511 = vld [vmem:[#allocation4 + $0xf8] sm:$0xf]
        %v512 = vld [vmem:[#allocation4 + $0xfc] sm:$0xff]
        %v513 = vld [vmem:[#allocation4 + $0x104] sm:$0xf]
        %v514 = vld [vmem:[#allocation4 + $0x108] sm:$0xff]
        %v515 = vld [vmem:[#allocation4 + $0x110] sm:$0xf]
        %v516 = vld [vmem:[#allocation4 + $0x114] sm:$0xff]
        %v517 = vld [vmem:[#allocation4 + $0x11c] sm:$0xf]
        %v518 = vld [vmem:[#allocation4 + $0x120] sm:$0xff]
        %v519 = vld [vmem:[#allocation4 + $0x128] sm:$0xf]
        %v520 = vld [vmem:[#allocation4 + $0x12c] sm:$0xff]
        %v521 = vld [vmem:[#allocation4 + $0x134] sm:$0xf]
        %v522 = vld [vmem:[#allocation4 + $0x138] sm:$0xff]
        %v523 = vld [vmem:[#allocation4 + $0x140] sm:$0xf]
        %v524 = vld [vmem:[#allocation4 + $0x144] sm:$0xff]
        %v525 = vld [vmem:[#allocation4 + $0x14c] sm:$0xf]
        %v526 = vld [vmem:[#allocation4 + $0x150] sm:$0xff]
        %v527 = vld [vmem:[#allocation4 + $0x158] sm:$0xf]
        %v528 = vld [vmem:[#allocation4 + $0x15c] sm:$0xff]
        %v529 = vld [vmem:[#allocation4 + $0x164] sm:$0xf]
        %v530 = vld [vmem:[#allocation4 + $0x168] sm:$0xff]
        %v531 = vld [vmem:[#allocation4 + $0x170] sm:$0xf]
        %v532 = vld [vmem:[#allocation4 + $0x174] sm:$0xff]
        %v533 = vld [vmem:[#allocation4 + $0x17c] sm:$0xf]
        %v598 = vunpack.c.l.b16 %v470
        %v599 = vunpack.c.h.b16 %v470
        %v600 = vunpack.c.l.b16 %v471
        %v601 = vunpack.c.l.b16 %v472
        %v602 = vunpack.c.h.b16 %v472
        %v603 = vunpack.c.l.b16 %v473
        %v604 = vunpack.c.l.b16 %v474
        %v605 = vunpack.c.h.b16 %v474
        %v606 = vunpack.c.l.b16 %v475
        %v607 = vunpack.c.l.b16 %v476
        %v608 = vunpack.c.h.b16 %v476
        %v609 = vunpack.c.l.b16 %v477
        %v610 = vunpack.c.l.b16 %v478
        %v611 = vunpack.c.h.b16 %v478
        %v612 = vunpack.c.l.b16 %v479
        %v613 = vunpack.c.l.b16 %v480
        %v614 = vunpack.c.h.b16 %v480
        %v615 = vunpack.c.l.b16 %v481
        %v616 = vunpack.c.l.b16 %v482
        %v617 = vunpack.c.h.b16 %v482
        %v618 = vunpack.c.l.b16 %v483
        %v619 = vunpack.c.l.b16 %v484
        %v620 = vunpack.c.h.b16 %v484
        %v621 = vunpack.c.l.b16 %v485
        %v622 = vunpack.c.l.b16 %v486
        %v623 = vunpack.c.h.b16 %v486
        %v624 = vunpack.c.l.b16 %v487
        %v625 = vunpack.c.l.b16 %v488
        %v626 = vunpack.c.h.b16 %v488
        %v627 = vunpack.c.l.b16 %v489
        %v628 = vunpack.c.l.b16 %v490
        %v629 = vunpack.c.h.b16 %v490
        %v630 = vunpack.c.l.b16 %v491
        %v631 = vunpack.c.l.b16 %v492
        %v632 = vunpack.c.h.b16 %v492
        %v633 = vunpack.c.l.b16 %v493
        %v634 = vunpack.c.l.b16 %v494
        %v635 = vunpack.c.h.b16 %v494
        %v636 = vunpack.c.l.b16 %v495
        %v637 = vunpack.c.l.b16 %v496
        %v638 = vunpack.c.h.b16 %v496
        %v639 = vunpack.c.l.b16 %v497
        %v640 = vunpack.c.l.b16 %v498
        %v641 = vunpack.c.h.b16 %v498
        %v642 = vunpack.c.l.b16 %v499
        %v643 = vunpack.c.l.b16 %v500
        %v644 = vunpack.c.h.b16 %v500
        %v645 = vunpack.c.l.b16 %v501
        %v646 = vunpack.c.l.b16 %v502
        %v647 = vunpack.c.h.b16 %v502
        %v648 = vunpack.c.l.b16 %v503
        %v649 = vunpack.c.l.b16 %v504
        %v650 = vunpack.c.h.b16 %v504
        %v651 = vunpack.c.l.b16 %v505
        %v652 = vunpack.c.l.b16 %v506
        %v653 = vunpack.c.h.b16 %v506
        %v654 = vunpack.c.l.b16 %v507
        %v655 = vunpack.c.l.b16 %v508
        %v656 = vunpack.c.h.b16 %v508
        %v657 = vunpack.c.l.b16 %v509
        %v658 = vunpack.c.l.b16 %v510
        %v659 = vunpack.c.h.b16 %v510
        %v660 = vunpack.c.l.b16 %v511
        %v661 = vunpack.c.l.b16 %v512
        %v662 = vunpack.c.h.b16 %v512
        %v663 = vunpack.c.l.b16 %v513
        %v664 = vunpack.c.l.b16 %v514
        %v665 = vunpack.c.h.b16 %v514
        %v666 = vunpack.c.l.b16 %v515
        %v667 = vunpack.c.l.b16 %v516
        %v668 = vunpack.c.h.b16 %v516
        %v669 = vunpack.c.l.b16 %v517
        %v670 = vunpack.c.l.b16 %v518
        %v671 = vunpack.c.h.b16 %v518
        %v672 = vunpack.c.l.b16 %v519
        %v673 = vunpack.c.l.b16 %v520
        %v674 = vunpack.c.h.b16 %v520
        %v675 = vunpack.c.l.b16 %v521
        %v676 = vunpack.c.l.b16 %v522
        %v677 = vunpack.c.h.b16 %v522
        %v678 = vunpack.c.l.b16 %v523
        %v679 = vunpack.c.l.b16 %v524
        %v680 = vunpack.c.h.b16 %v524
        %v681 = vunpack.c.l.b16 %v525
        %v682 = vunpack.c.l.b16 %v526
        %v683 = vunpack.c.h.b16 %v526
        %v684 = vunpack.c.l.b16 %v527
        %v685 = vunpack.c.l.b16 %v528
        %v686 = vunpack.c.h.b16 %v528
        %v687 = vunpack.c.l.b16 %v529
        %v688 = vunpack.c.l.b16 %v530
        %v689 = vunpack.c.h.b16 %v530
        %v690 = vunpack.c.l.b16 %v531
        %v691 = vunpack.c.l.b16 %v532
        %v692 = vunpack.c.h.b16 %v532
        %v693 = vunpack.c.l.b16 %v533
        %v694 = vpack.c.b16 %v601, %v598
        %v695 = vpack.c.b16 %v602, %v599
        %v696 = vpack.c.b16 %v603, %v600
        %v697 = vpack.c.b16 %v607, %v604
        %v698 = vpack.c.b16 %v608, %v605
        %v699 = vpack.c.b16 %v609, %v606
        %v700 = vpack.c.b16 %v613, %v610
        %v701 = vpack.c.b16 %v614, %v611
        %v702 = vpack.c.b16 %v615, %v612
        %v703 = vpack.c.b16 %v619, %v616
        %v704 = vpack.c.b16 %v620, %v617
        %v705 = vpack.c.b16 %v621, %v618
        %v706 = vpack.c.b16 %v625, %v622
        %v707 = vpack.c.b16 %v626, %v623
        %v708 = vpack.c.b16 %v627, %v624
        %v709 = vpack.c.b16 %v631, %v628
        %v710 = vpack.c.b16 %v632, %v629
        %v711 = vpack.c.b16 %v633, %v630
        %v712 = vpack.c.b16 %v637, %v634
        %v713 = vpack.c.b16 %v638, %v635
        %v714 = vpack.c.b16 %v639, %v636
        %v715 = vpack.c.b16 %v643, %v640
        %v716 = vpack.c.b16 %v644, %v641
        %v717 = vpack.c.b16 %v645, %v642
        %v718 = vpack.c.b16 %v649, %v646
        %v719 = vpack.c.b16 %v650, %v647
        %v720 = vpack.c.b16 %v651, %v648
        %v721 = vpack.c.b16 %v655, %v652
        %v722 = vpack.c.b16 %v656, %v653
        %v723 = vpack.c.b16 %v657, %v654
        %v724 = vpack.c.b16 %v661, %v658
        %v725 = vpack.c.b16 %v662, %v659
        %v726 = vpack.c.b16 %v663, %v660
        %v727 = vpack.c.b16 %v667, %v664
        %v728 = vpack.c.b16 %v668, %v665
        %v729 = vpack.c.b16 %v669, %v666
        %v730 = vpack.c.b16 %v673, %v670
        %v731 = vpack.c.b16 %v674, %v671
        %v732 = vpack.c.b16 %v675, %v672
        %v733 = vpack.c.b16 %v679, %v676
        %v734 = vpack.c.b16 %v680, %v677
        %v735 = vpack.c.b16 %v681, %v678
        %v736 = vpack.c.b16 %v685, %v682
        %v737 = vpack.c.b16 %v686, %v683
        %v738 = vpack.c.b16 %v687, %v684
        %v739 = vpack.c.b16 %v691, %v688
        %v740 = vpack.c.b16 %v692, %v689
        %v741 = vpack.c.b16 %v693, %v690
        %790 = vmatpush.bf16.msra.mxu0 %v715
        %791 = vmatpush.bf16.msra.mxu0 %v712
        %792 = vmatpush.bf16.msra.mxu0 %v709
        %793 = vmatpush.bf16.msra.mxu0 %v706
        %794 = vmatpush.bf16.msra.mxu0 %v703
        %795 = vmatpush.bf16.msra.mxu0 %v700
        %796 = vmatpush.bf16.msra.mxu0 %v697
        %797 = vmatpush.bf16.msra.mxu0 %v694
        %798 = vmatmul.bf16.gmra.mxu0 %v468
        %v799 = vpop.f32.mrf.mxu0
        %v800 = vadd.f32 0.0, %v799
        %v801 = vpop.f32.mrf.mxu0
        %802 = vdwg.mxu0
        %803 = vmatpush.bf16.msra.mxu0 %v739
        %804 = vmatpush.bf16.msra.mxu0 %v736
        %805 = vmatpush.bf16.msra.mxu0 %v733
        %806 = vmatpush.bf16.msra.mxu0 %v730
        %807 = vmatpush.bf16.msra.mxu0 %v727
        %808 = vmatpush.bf16.msra.mxu0 %v724
        %809 = vmatpush.bf16.msra.mxu0 %v721
        %810 = vmatpush.bf16.msra.mxu0 %v718
        %811 = vmatmul.bf16.gmra.mxu0 %v469
        %v812 = vpop.f32.mrf.mxu0
        %v813 = vadd.f32 %v800, %v812
        %v814 = vpop.f32.mrf.mxu0
        %815 = vdwg.mxu0
        %816 = vmatpush.bf16.msra.mxu0 %v716
        %817 = vmatpush.bf16.msra.mxu0 %v713
        %818 = vmatpush.bf16.msra.mxu0 %v710
        %819 = vmatpush.bf16.msra.mxu0 %v707
        %820 = vmatpush.bf16.msra.mxu0 %v704
        %821 = vmatpush.bf16.msra.mxu0 %v701
        %822 = vmatpush.bf16.msra.mxu0 %v698
        %823 = vmatpush.bf16.msra.mxu0 %v695
        %824 = vmatmul.bf16.gmra.mxu0 %v468
        %v825 = vpop.f32.mrf.mxu0
        %v826 = vadd.f32 0.0, %v825
        %v827 = vpop.f32.mrf.mxu0
        %828 = vdwg.mxu0
        %829 = vmatpush.bf16.msra.mxu0 %v740
        %830 = vmatpush.bf16.msra.mxu0 %v737
        %831 = vmatpush.bf16.msra.mxu0 %v734
        %832 = vmatpush.bf16.msra.mxu0 %v731
        %833 = vmatpush.bf16.msra.mxu0 %v728
        %834 = vmatpush.bf16.msra.mxu0 %v725
        %835 = vmatpush.bf16.msra.mxu0 %v722
        %836 = vmatpush.bf16.msra.mxu0 %v719
        %837 = vmatmul.bf16.gmra.mxu0 %v469
        %v838 = vpop.f32.mrf.mxu0
        %v839 = vadd.f32 %v826, %v838
        %v840 = vpop.f32.mrf.mxu0
        %841 = vdwg.mxu0
        %842 = vmatpush.bf16.msra.mxu0 %v717
        %843 = vmatpush.bf16.msra.mxu0 %v714
        %844 = vmatpush.bf16.msra.mxu0 %v711
        %845 = vmatpush.bf16.msra.mxu0 %v708
        %846 = vmatpush.bf16.msra.mxu0 %v705
        %847 = vmatpush.bf16.msra.mxu0 %v702
        %848 = vmatpush.bf16.msra.mxu0 %v699
        %849 = vmatpush.bf16.msra.mxu0 %v696
        %850 = vmatmul.bf16.gmra.mxu0 %v468
        %v851 = vpop.f32.mrf.mxu0
        %v852 = vadd.f32 0.0, %v851
        %v853 = vpop.f32.mrf.mxu0
        %854 = vdwg.mxu0
        %855 = vmatpush.bf16.msra.mxu0 %v741
        %856 = vmatpush.bf16.msra.mxu0 %v738
        %857 = vmatpush.bf16.msra.mxu0 %v735
        %858 = vmatpush.bf16.msra.mxu0 %v732
        %859 = vmatpush.bf16.msra.mxu0 %v729
        %860 = vmatpush.bf16.msra.mxu0 %v726
        %861 = vmatpush.bf16.msra.mxu0 %v723
        %862 = vmatpush.bf16.msra.mxu0 %v720
        %863 = vmatmul.bf16.gmra.mxu0 %v469
        %v864 = vpop.f32.mrf.mxu0
        %v865 = vadd.f32 %v852, %v864
        %v866 = vpop.f32.mrf.mxu0
        %867 = vdwg.mxu0
        %v868 = vpack.c.bf16 %v839, %v813
        %v869 = vpack.c.bf16 %v865, %v865
        %v872 = vunpack.c.l.b16 %v868
        %v873 = vunpack.c.h.b16 %v868
        %v874 = vunpack.c.l.b16 %v869
        %v875 = vpack.c.b16 %v872, %v872
        %v876 = vpack.c.b16 %v873, %v873
        %v877 = vpack.c.b16 %v874, %v874
        %v878 = vrot.slane %v875, 6
        %v879 = vrot.slane %v876, 6
        %v880 = vrot.slane %v877, 6
        %881 = vrot.lane.b32.xlu0 %v878, 127
        %v882 = vpop.permute.xlu0 %881
        %883 = vrot.lane.b32.xlu0 %v879, 127
        %v884 = vpop.permute.xlu0 %883
        %885 = vrot.lane.b32.xlu0 %v880, 127
        %v886 = vpop.permute.xlu0 %885
        %vm887 = vcmask 1039360
        %v888 = vsel %vm887, %v882, %v884
        %v889 = vsel %vm887, %v884, %v886
        %890 = vrot.lane.b32.xlu0 %v875, 126
        %v891 = vpop.permute.xlu0 %890
        %892 = vrot.lane.b32.xlu0 %v876, 126
        %v893 = vpop.permute.xlu0 %892
        %894 = vrot.lane.b32.xlu0 %v877, 126
        %v895 = vpop.permute.xlu0 %894
        %vm896 = vcmask 1031168
        %v897 = vsel %vm896, %v891, %v893
        %v898 = vsel %vm896, %v893, %v895
        %v899 = vrot.slane %v875, 2
        %v900 = vrot.slane %v876, 2
        %v901 = vrot.slane %v877, 2
        %902 = vrot.lane.b32.xlu0 %v899, 110
        %v903 = vpop.permute.xlu0 %902
        %904 = vrot.lane.b32.xlu0 %v900, 110
        %v905 = vpop.permute.xlu0 %904
        %906 = vrot.lane.b32.xlu0 %v901, 110
        %v907 = vpop.permute.xlu0 %906
        %vm908 = vcmask 900096
        %v909 = vsel %vm908, %v903, %v905
        %v910 = vsel %vm908, %v905, %v907
        %911 = vrot.lane.b32.xlu0 %v875, 109
        %v912 = vpop.permute.xlu0 %911
        %913 = vrot.lane.b32.xlu0 %v876, 109
        %v914 = vpop.permute.xlu0 %913
        %915 = vrot.lane.b32.xlu0 %v877, 109
        %v916 = vpop.permute.xlu0 %915
        %vm917 = vcmask 891904
        %v918 = vsel %vm917, %v912, %v914
        %v919 = vsel %vm917, %v914, %v916
        %920 = vrot.lane.b32.xlu0 %v878, 108
        %v921 = vpop.permute.xlu0 %920
        %922 = vrot.lane.b32.xlu0 %v879, 108
        %v923 = vpop.permute.xlu0 %922
        %924 = vrot.lane.b32.xlu0 %v880, 108
        %v925 = vpop.permute.xlu0 %924
        %vm926 = vcmask 883712
        %v927 = vsel %vm926, %v921, %v923
        %v928 = vsel %vm926, %v923, %v925
        %929 = vrot.lane.b32.xlu0 %v875, 92
        %v930 = vpop.permute.xlu0 %929
        %931 = vrot.lane.b32.xlu0 %v876, 92
        %v932 = vpop.permute.xlu0 %931
        %933 = vrot.lane.b32.xlu0 %v877, 92
        %v934 = vpop.permute.xlu0 %933
        %vm935 = vcmask 752640
        %v936 = vsel %vm935, %v930, %v932
        %v937 = vsel %vm935, %v932, %v934
        %938 = vrot.lane.b32.xlu0 %v899, 91
        %v939 = vpop.permute.xlu0 %938
        %940 = vrot.lane.b32.xlu0 %v900, 91
        %v941 = vpop.permute.xlu0 %940
        %942 = vrot.lane.b32.xlu0 %v901, 91
        %v943 = vpop.permute.xlu0 %942
        %vm944 = vcmask 744448
        %v945 = vsel %vm944, %v939, %v941
        %v946 = vsel %vm944, %v941, %v943
        %947 = vrot.lane.b32.xlu0 %v875, 90
        %v948 = vpop.permute.xlu0 %947
        %949 = vrot.lane.b32.xlu0 %v876, 90
        %v950 = vpop.permute.xlu0 %949
        %951 = vrot.lane.b32.xlu0 %v877, 90
        %v952 = vpop.permute.xlu0 %951
        %vm953 = vcmask 736256
        %v954 = vsel %vm953, %v948, %v950
        %v955 = vsel %vm953, %v950, %v952
        %vm956 = vcmask 1041408
        %v959 = vsel %vm956, %v875, %v888
        %v962 = vsel %vm956, %v876, %v889
        %v965 = vsel %vm956, %v877, %v886
        %vm966 = vcmask 1043456
        %v968 = vsel %vm966, %v959, %v897
        %v970 = vsel %vm966, %v962, %v898
        %v972 = vsel %vm966, %v965, %v895
        %vm973 = vcmask 1045504
        %v975 = vsel %vm973, %v968, %v909
        %v978 = vsel %vm973, %v970, %v910
        %v981 = vsel %vm973, %v972, %v907
        %v985 = vsel %vm956, %v918, %v927
        %v988 = vsel %vm956, %v919, %v928
        %v991 = vsel %vm956, %v916, %v925
        %v993 = vsel %vm966, %v985, %v936
        %v995 = vsel %vm966, %v988, %v937
        %v997 = vsel %vm966, %v991, %v934
        %v999 = vsel %vm973, %v993, %v945
        %v1002 = vsel %vm973, %v995, %v946
        %v1005 = vsel %vm973, %v997, %v943
        %v1007 = vld [vmem:[#allocation2] sm:$0xf]
        %v1008 = vld [vmem:[#allocation2 + $0x4] sm:$0xf]
        %v1009 = vld [vmem:[%s3] sm:$0xff]
        %v1010 = vld [vmem:[%s3 + $0x8] sm:$0xff]
        %1012 = vset.pattern.permute.xlu0 0
        %1013 = vperm.xlu0 %1012, %v1009
        %v1014 = vpop.permute.xlu0 %1013
        %1017 = vset.pattern.permute.xlu0 0
        %1018 = vperm.xlu0 %1017, %v1010
        %v1019 = vpop.permute.xlu0 %1018
        %v1023 = vunpack.c.l.b16 %v1007
        %v1024 = vunpack.c.l.b16 %v1008
        %v1025 = vpack.c.b16 %v1024, %v1023
        %vm1026 = vcmask 293888
        %v1028 = vsel %vm1026, %v1025, 0
        %v1031 = vsel %vm956, %v954, 0
        %v1034 = vsel %vm956, %v955, 0
        %v1037 = vsel %vm956, %v952, 0
        %1039 = vmatpush.bf16.msra.mxu0 0
        %1040 = vmatpush.bf16.msra.mxu0 0
        %1041 = vmatpush.bf16.msra.mxu0 0
        %1042 = vmatpush.bf16.msra.mxu0 0
        %1043 = vmatpush.bf16.msra.mxu0 0
        %1044 = vmatpush.bf16.msra.mxu0 %v1031
        %1045 = vmatpush.bf16.msra.mxu0 %v999
        %1046 = vmatpush.bf16.msra.mxu0 %v975
        %1047 = vmatmul.bf16.gmra.mxu0 %v1028
        %v1048 = vpop.f32.mrf.mxu0
        %v1049 = vadd.f32 %v1014, %v1048
        %v1050 = vpop.f32.mrf.mxu0
        %v1051 = vadd.f32 %v1019, %v1050
        %1052 = vdwg.mxu0
        %1053 = vmatpush.bf16.msra.mxu0 0
        %1054 = vmatpush.bf16.msra.mxu0 0
        %1055 = vmatpush.bf16.msra.mxu0 0
        %1056 = vmatpush.bf16.msra.mxu0 0
        %1057 = vmatpush.bf16.msra.mxu0 0
        %1058 = vmatpush.bf16.msra.mxu0 %v1034
        %1059 = vmatpush.bf16.msra.mxu0 %v1002
        %1060 = vmatpush.bf16.msra.mxu0 %v978
        %1061 = vmatmul.bf16.gmra.mxu0 %v1028
        %v1062 = vpop.f32.mrf.mxu0
        %v1063 = vadd.f32 %v1014, %v1062
        %v1064 = vpop.f32.mrf.mxu0
        %v1065 = vadd.f32 %v1019, %v1064
        %1066 = vdwg.mxu0
        %1067 = vmatpush.bf16.msra.mxu0 0
        %1068 = vmatpush.bf16.msra.mxu0 0
        %1069 = vmatpush.bf16.msra.mxu0 0
        %1070 = vmatpush.bf16.msra.mxu0 0
        %1071 = vmatpush.bf16.msra.mxu0 0
        %1072 = vmatpush.bf16.msra.mxu0 %v1037
        %1073 = vmatpush.bf16.msra.mxu0 %v1005
        %1074 = vmatpush.bf16.msra.mxu0 %v981
        %1075 = vmatmul.bf16.gmra.mxu0 %v1028
        %v1076 = vpop.f32.mrf.mxu0
        %v1077 = vadd.f32 %v1014, %v1076
        %v1078 = vpop.f32.mrf.mxu0
        %v1079 = vadd.f32 %v1019, %v1078
        %1080 = vdwg.mxu0
        %v1081 = vld [vmem:[%s1] sm:$0x7]
        %v1083 = vperm.slane %v1081, 0
        %v1084 = vperm.slane %v1081, 1
        %v1085 = vperm.slane %v1081, 2
        %v1089 = vmul.f32 %v1049, %v1083
        %v1090 = vmul.f32 %v1063, %v1084
        %v1091 = vmul.f32 %v1077, %v1085
        %v1092 = vmul.f32 %v1051, %v1083
        %v1093 = vmul.f32 %v1065, %v1084
        %v1094 = vmul.f32 %v1079, %v1085
        %v1095 = vpack.c.bf16 %v1090, %v1089
        %v1096 = vpack.c.bf16 %v1091, %v1091
        %v1097 = vpack.c.bf16 %v1093, %v1092
        %v1098 = vpack.c.bf16 %v1094, %v1094
        %v1103 = vunpack.c.l.b16 %v1095
        %v1104 = vunpack.c.h.b16 %v1095
        %v1105 = vunpack.c.l.b16 %v1096
        %v1106 = vunpack.c.l.b16 %v1097
        %v1107 = vunpack.c.h.b16 %v1097
        %v1108 = vunpack.c.l.b16 %v1098
        %v1109 = vpack.c.b16 %v1106, %v1103
        %v1110 = vpack.c.b16 %v1107, %v1104
        %v1111 = vpack.c.b16 %v1108, %v1105
        %vm1114 = vcmask 244736
        %v1117 = vsel %vm1114, %v1111, 0
        %v1119 = vunpack.c.l.bf16 %v1109
        %v1120 = vunpack.c.l.bf16 %v1110
        %v1121 = vunpack.c.l.bf16 %v1117
        %v1122 = vunpack.c.h.bf16 %v1109
        %v1123 = vunpack.c.h.bf16 %v1110
        %v1124 = vunpack.c.h.bf16 %v1117
        %1131 = vrot.lane.b32.xlu0 %v1119, 127
        %v1132 = vpop.permute.xlu0 %1131
        %1133 = vrot.lane.b32.xlu0 %v1120, 127
        %v1134 = vpop.permute.xlu0 %1133
        %1135 = vrot.lane.b32.xlu0 %v1121, 127
        %v1136 = vpop.permute.xlu0 %1135
        %1137 = vrot.lane.b32.xlu0 %v1122, 127
        %v1138 = vpop.permute.xlu0 %1137
        %1139 = vrot.lane.b32.xlu0 %v1123, 127
        %v1140 = vpop.permute.xlu0 %1139
        %1141 = vrot.lane.b32.xlu0 %v1124, 127
        %v1142 = vpop.permute.xlu0 %1141
        %vm1143 = vcmask 1039360
        %v1144 = vsel %vm1143, %v1132, %v1134
        %v1145 = vsel %vm1143, %v1134, %v1136
        %v1146 = vsel %vm1143, %v1138, %v1140
        %v1147 = vsel %vm1143, %v1140, %v1142
        %v1154 = vmax.f32 %v1119, %v1144
        %v1155 = vmax.f32 %v1120, %v1145
        %v1156 = vmax.f32 %v1121, %v1136
        %v1157 = vmax.f32 %v1122, %v1146
        %v1158 = vmax.f32 %v1123, %v1147
        %v1159 = vmax.f32 %v1124, %v1142
        %v1160 = vpack.c.bf16 %v1155, %v1154
        %v1161 = vpack.c.bf16 %v1156, %v1156
        %v1162 = vpack.c.bf16 %v1158, %v1157
        %v1163 = vpack.c.bf16 %v1159, %v1159
        %v1164 = vunpack.c.l.bf16 %v1160
        %v1165 = vunpack.c.h.bf16 %v1160
        %v1166 = vunpack.c.l.bf16 %v1161
        %v1167 = vunpack.c.l.bf16 %v1162
        %v1168 = vunpack.c.h.bf16 %v1162
        %v1169 = vunpack.c.l.bf16 %v1163
        %1170 = vrot.lane.b32.xlu0 %v1119, 126
        %v1171 = vpop.permute.xlu0 %1170
        %1172 = vrot.lane.b32.xlu0 %v1120, 126
        %v1173 = vpop.permute.xlu0 %1172
        %1174 = vrot.lane.b32.xlu0 %v1121, 126
        %v1175 = vpop.permute.xlu0 %1174
        %1176 = vrot.lane.b32.xlu0 %v1122, 126
        %v1177 = vpop.permute.xlu0 %1176
        %1178 = vrot.lane.b32.xlu0 %v1123, 126
        %v1179 = vpop.permute.xlu0 %1178
        %1180 = vrot.lane.b32.xlu0 %v1124, 126
        %v1181 = vpop.permute.xlu0 %1180
        %vm1182 = vcmask 1031168
        %v1183 = vsel %vm1182, %v1171, %v1173
        %v1184 = vsel %vm1182, %v1173, %v1175
        %v1185 = vsel %vm1182, %v1177, %v1179
        %v1186 = vsel %vm1182, %v1179, %v1181
        %v1193 = vmax.f32 %v1164, %v1183
        %v1194 = vmax.f32 %v1165, %v1184
        %v1195 = vmax.f32 %v1166, %v1175
        %v1196 = vmax.f32 %v1167, %v1185
        %v1197 = vmax.f32 %v1168, %v1186
        %v1198 = vmax.f32 %v1169, %v1181
        %v1199 = vpack.c.bf16 %v1194, %v1193
        %v1200 = vpack.c.bf16 %v1195, %v1195
        %v1201 = vpack.c.bf16 %v1197, %v1196
        %v1202 = vpack.c.bf16 %v1198, %v1198
        %v1203 = vunpack.c.l.bf16 %v1199
        %v1204 = vunpack.c.h.bf16 %v1199
        %v1205 = vunpack.c.l.bf16 %v1200
        %v1206 = vunpack.c.l.bf16 %v1201
        %v1207 = vunpack.c.h.bf16 %v1201
        %v1208 = vunpack.c.l.bf16 %v1202
        %1215 = vrot.lane.b32.xlu0 %v1203, 110
        %v1216 = vpop.permute.xlu0 %1215
        %1217 = vrot.lane.b32.xlu0 %v1204, 110
        %v1218 = vpop.permute.xlu0 %1217
        %1219 = vrot.lane.b32.xlu0 %v1205, 110
        %v1220 = vpop.permute.xlu0 %1219
        %1221 = vrot.lane.b32.xlu0 %v1206, 110
        %v1222 = vpop.permute.xlu0 %1221
        %1223 = vrot.lane.b32.xlu0 %v1207, 110
        %v1224 = vpop.permute.xlu0 %1223
        %1225 = vrot.lane.b32.xlu0 %v1208, 110
        %v1226 = vpop.permute.xlu0 %1225
        %vm1227 = vcmask 900096
        %v1228 = vsel %vm1227, %v1216, %v1218
        %v1229 = vsel %vm1227, %v1218, %v1220
        %v1230 = vsel %vm1227, %v1222, %v1224
        %v1231 = vsel %vm1227, %v1224, %v1226
        %v1238 = vmax.f32 %v1203, %v1228
        %v1239 = vmax.f32 %v1204, %v1229
        %v1240 = vmax.f32 %v1205, %v1220
        %v1241 = vmax.f32 %v1206, %v1230
        %v1242 = vmax.f32 %v1207, %v1231
        %v1243 = vmax.f32 %v1208, %v1226
        %v1244 = vpack.c.bf16 %v1239, %v1238
        %v1245 = vpack.c.bf16 %v1240, %v1240
        %v1246 = vpack.c.bf16 %v1242, %v1241
        %v1247 = vpack.c.bf16 %v1243, %v1243
        %v1248 = vunpack.c.l.bf16 %v1244
        %v1249 = vunpack.c.h.bf16 %v1244
        %v1250 = vunpack.c.l.bf16 %v1245
        %v1251 = vunpack.c.l.bf16 %v1246
        %v1252 = vunpack.c.h.bf16 %v1246
        %v1253 = vunpack.c.l.bf16 %v1247
        %1254 = vrot.lane.b32.xlu0 %v1203, 92
        %v1255 = vpop.permute.xlu0 %1254
        %1256 = vrot.lane.b32.xlu0 %v1204, 92
        %v1257 = vpop.permute.xlu0 %1256
        %1258 = vrot.lane.b32.xlu0 %v1205, 92
        %v1259 = vpop.permute.xlu0 %1258
        %1260 = vrot.lane.b32.xlu0 %v1206, 92
        %v1261 = vpop.permute.xlu0 %1260
        %1262 = vrot.lane.b32.xlu0 %v1207, 92
        %v1263 = vpop.permute.xlu0 %1262
        %1264 = vrot.lane.b32.xlu0 %v1208, 92
        %v1265 = vpop.permute.xlu0 %1264
        %vm1266 = vcmask 752640
        %v1267 = vsel %vm1266, %v1255, %v1257
        %v1268 = vsel %vm1266, %v1257, %v1259
        %v1269 = vsel %vm1266, %v1261, %v1263
        %v1270 = vsel %vm1266, %v1263, %v1265
        %v1277 = vmax.f32 %v1248, %v1267
        %v1278 = vmax.f32 %v1249, %v1268
        %v1279 = vmax.f32 %v1250, %v1259
        %v1280 = vmax.f32 %v1251, %v1269
        %v1281 = vmax.f32 %v1252, %v1270
        %v1282 = vmax.f32 %v1253, %v1265
        %v1283 = vpack.c.bf16 %v1280, %v1277
        %v1284 = vpack.c.bf16 %v1281, %v1278
        %v1285 = vpack.c.bf16 %v1282, %v1279
        %v1286 = vld [vmem:[#allocation6] sm:$0xf]
        %v1287 = vld [vmem:[#allocation6 + $0x4] sm:$0xf]
        %v1288 = vld [vmem:[#allocation6 + $0x8] sm:$0xf]
        %v1289 = vld [vmem:[#allocation6 + $0xc] sm:$0xf]
        %v1290 = vld [vmem:[#allocation6 + $0x10] sm:$0xf]
        %v1291 = vld [vmem:[#allocation6 + $0x14] sm:$0xf]
        %v1292 = vld [vmem:[#allocation6 + $0x18] sm:$0xf]
        %v1293 = vld [vmem:[#allocation6 + $0x1c] sm:$0xf]
        %v1294 = vld [vmem:[#allocation6 + $0x20] sm:$0xf]
        %v1295 = vld [vmem:[#allocation6 + $0x24] sm:$0xf]
        %v1296 = vld [vmem:[#allocation6 + $0x28] sm:$0xf]
        %v1297 = vld [vmem:[#allocation6 + $0x2c] sm:$0xf]
        %v1298 = vld [vmem:[#allocation6 + $0x30] sm:$0xf]
        %v1299 = vld [vmem:[#allocation6 + $0x34] sm:$0xf]
        %v1300 = vld [vmem:[#allocation6 + $0x38] sm:$0xf]
        %v1301 = vld [vmem:[#allocation6 + $0x3c] sm:$0xf]
        %v1302 = vld [vmem:[#allocation6 + $0x40] sm:$0xf]
        %v1303 = vld [vmem:[#allocation6 + $0x44] sm:$0xf]
        %v1304 = vld [vmem:[#allocation6 + $0x48] sm:$0xf]
        %v1305 = vld [vmem:[#allocation6 + $0x4c] sm:$0xf]
        %v1306 = vld [vmem:[#allocation6 + $0x50] sm:$0xf]
        %v1307 = vld [vmem:[#allocation6 + $0x54] sm:$0xf]
        %v1308 = vld [vmem:[#allocation6 + $0x58] sm:$0xf]
        %v1309 = vld [vmem:[#allocation6 + $0x5c] sm:$0xf]
        %v1310 = vld [vmem:[#allocation6 + $0x60] sm:$0xf]
        %v1311 = vld [vmem:[#allocation6 + $0x64] sm:$0xf]
        %v1312 = vld [vmem:[#allocation6 + $0x68] sm:$0xf]
        %v1313 = vld [vmem:[#allocation6 + $0x6c] sm:$0xf]
        %v1314 = vld [vmem:[#allocation6 + $0x70] sm:$0xf]
        %v1315 = vld [vmem:[#allocation6 + $0x74] sm:$0xf]
        %v1316 = vld [vmem:[#allocation6 + $0x78] sm:$0xf]
        %v1317 = vld [vmem:[#allocation6 + $0x7c] sm:$0xf]
        %v1318 = vld [vmem:[#allocation6 + $0x80] sm:$0xf]
        %v1319 = vld [vmem:[#allocation6 + $0x84] sm:$0xf]
        %v1320 = vld [vmem:[#allocation6 + $0x88] sm:$0xf]
        %v1321 = vld [vmem:[#allocation6 + $0x8c] sm:$0x7]
        %v1358 = vunpack.c.l.b16 %v1286
        %v1359 = vunpack.c.l.b16 %v1287
        %v1360 = vunpack.c.l.b16 %v1288
        %v1361 = vunpack.c.l.b16 %v1289
        %v1362 = vunpack.c.l.b16 %v1290
        %v1363 = vunpack.c.l.b16 %v1291
        %v1364 = vunpack.c.l.b16 %v1292
        %v1365 = vunpack.c.l.b16 %v1293
        %v1366 = vunpack.c.l.b16 %v1294
        %v1367 = vunpack.c.l.b16 %v1295
        %v1368 = vunpack.c.l.b16 %v1296
        %v1369 = vunpack.c.l.b16 %v1297
        %v1370 = vunpack.c.l.b16 %v1298
        %v1371 = vunpack.c.l.b16 %v1299
        %v1372 = vunpack.c.l.b16 %v1300
        %v1373 = vunpack.c.l.b16 %v1301
        %v1374 = vunpack.c.l.b16 %v1302
        %v1375 = vunpack.c.l.b16 %v1303
        %v1376 = vunpack.c.l.b16 %v1304
        %v1377 = vunpack.c.l.b16 %v1305
        %v1378 = vunpack.c.l.b16 %v1306
        %v1379 = vunpack.c.l.b16 %v1307
        %v1380 = vunpack.c.l.b16 %v1308
        %v1381 = vunpack.c.l.b16 %v1309
        %v1382 = vunpack.c.l.b16 %v1310
        %v1383 = vunpack.c.l.b16 %v1311
        %v1384 = vunpack.c.l.b16 %v1312
        %v1385 = vunpack.c.l.b16 %v1313
        %v1386 = vunpack.c.l.b16 %v1314
        %v1387 = vunpack.c.l.b16 %v1315
        %v1388 = vunpack.c.l.b16 %v1316
        %v1389 = vunpack.c.l.b16 %v1317
        %v1390 = vunpack.c.l.b16 %v1318
        %v1391 = vunpack.c.l.b16 %v1319
        %v1392 = vunpack.c.l.b16 %v1320
        %v1393 = vunpack.c.l.b16 %v1321
        %v1394 = vpack.c.b16 %v1359, %v1358
        %v1395 = vpack.c.b16 %v1361, %v1360
        %v1396 = vpack.c.b16 %v1363, %v1362
        %v1397 = vpack.c.b16 %v1365, %v1364
        %v1398 = vpack.c.b16 %v1367, %v1366
        %v1399 = vpack.c.b16 %v1369, %v1368
        %v1400 = vpack.c.b16 %v1371, %v1370
        %v1401 = vpack.c.b16 %v1373, %v1372
        %v1402 = vpack.c.b16 %v1375, %v1374
        %v1403 = vpack.c.b16 %v1377, %v1376
        %v1404 = vpack.c.b16 %v1379, %v1378
        %v1405 = vpack.c.b16 %v1381, %v1380
        %v1406 = vpack.c.b16 %v1383, %v1382
        %v1407 = vpack.c.b16 %v1385, %v1384
        %v1408 = vpack.c.b16 %v1387, %v1386
        %v1409 = vpack.c.b16 %v1389, %v1388
        %v1410 = vpack.c.b16 %v1391, %v1390
        %v1411 = vpack.c.b16 %v1393, %v1392
        %v1430 = vsel %vm1114, %v1285, 0
        %vm1432 = vcmask 1046528
        %v1434 = vsel %vm1432, %v1411, 0
        %1436 = vmatpush.bf16.msra.mxu0 %v1401
        %1437 = vmatpush.bf16.msra.mxu0 %v1400
        %1438 = vmatpush.bf16.msra.mxu0 %v1399
        %1439 = vmatpush.bf16.msra.mxu0 %v1398
        %1440 = vmatpush.bf16.msra.mxu0 %v1397
        %1441 = vmatpush.bf16.msra.mxu0 %v1396
        %1442 = vmatpush.bf16.msra.mxu0 %v1395
        %1443 = vmatpush.bf16.msra.mxu0 %v1394
        %1444 = vmatmul.bf16.gmra.mxu0 %v1283
        %v1445 = vpop.f32.mrf.mxu0
        %v1446 = vadd.f32 0.0, %v1445
        %v1447 = vpop.f32.mrf.mxu0
        %v1448 = vadd.f32 0.0, %v1447
        %1449 = vdwg.mxu0
        %1450 = vmatpush.bf16.msra.mxu0 %v1409
        %1451 = vmatpush.bf16.msra.mxu0 %v1408
        %1452 = vmatpush.bf16.msra.mxu0 %v1407
        %1453 = vmatpush.bf16.msra.mxu0 %v1406
        %1454 = vmatpush.bf16.msra.mxu0 %v1405
        %1455 = vmatpush.bf16.msra.mxu0 %v1404
        %1456 = vmatpush.bf16.msra.mxu0 %v1403
        %1457 = vmatpush.bf16.msra.mxu0 %v1402
        %1458 = vmatmul.bf16.gmra.mxu0 %v1284
        %v1459 = vpop.f32.mrf.mxu0
        %v1460 = vadd.f32 %v1446, %v1459
        %v1461 = vpop.f32.mrf.mxu0
        %v1462 = vadd.f32 %v1448, %v1461
        %1463 = vdwg.mxu0
        %1464 = vmatpush.bf16.msra.mxu0 0
        %1465 = vmatpush.bf16.msra.mxu0 0
        %1466 = vmatpush.bf16.msra.mxu0 0
        %1467 = vmatpush.bf16.msra.mxu0 0
        %1468 = vmatpush.bf16.msra.mxu0 0
        %1469 = vmatpush.bf16.msra.mxu0 0
        %1470 = vmatpush.bf16.msra.mxu0 %v1434
        %1471 = vmatpush.bf16.msra.mxu0 %v1410
        %1472 = vmatmul.bf16.gmra.mxu0 %v1430
        %v1473 = vpop.f32.mrf.mxu0
        %v1474 = vadd.f32 %v1460, %v1473
        %v1475 = vpop.f32.mrf.mxu0
        %v1476 = vadd.f32 %v1462, %v1475
        %1477 = vdwg.mxu0
        %v1478 = vpack.c.bf16 %v1474, %v1474
        %v1479 = vpack.c.bf16 %v1476, %v1476
        %v1480 = vld [vmem:[#allocation7] sm:$0xff]
        %v1481 = vld [vmem:[#allocation7 + $0x8] sm:$0xff]
        %s1482 = scalar_lea.vmem [#allocation7], 16
        %v1483 = vld [vmem:[%s1482] sm:$0xff]
        %v1484 = vld [vmem:[%s1482 + $0x8] sm:$0xff]
        %v1485 = vld [vmem:[%s7] sm:$0xff]
        %v1486 = vld [vmem:[%s7 + $0x8] sm:$0xff]
        %s1487 = scalar_lea.vmem %s7, 16
        %v1488 = vld [vmem:[%s1487] sm:$0xff]
        %v1489 = vld [vmem:[%s1487 + $0x8] sm:$0xff]
        %v1490 = vunpack.c.l.bf16 %v1478
        %v1491 = vunpack.c.l.bf16 %v1479
        %v1492 = vmax.f32 %v1490, 0.0
        %v1493 = vmax.f32 %v1491, 0.0
        %v1494 = vpack.c.bf16 %v1492, %v1492
        %v1495 = vpack.c.bf16 %v1493, %v1493
        %v1498 = vunpack.c.l.b16 %v1494
        %v1499 = vunpack.c.l.b16 %v1495
        %v1500 = vpack.c.b16 %v1499, %v1498
        %1502 = vrot.lane.b32.xlu0 %v1500, 127
        %v1503 = vpop.permute.xlu0 %1502
        %1505 = vrot.lane.b32.xlu0 %v1500, 126
        %v1506 = vpop.permute.xlu0 %1505
        %1508 = vrot.lane.b32.xlu0 %v1500, 118
        %v1509 = vpop.permute.xlu0 %1508
        %1511 = vrot.lane.b32.xlu0 %v1500, 117
        %v1512 = vpop.permute.xlu0 %1511
        %1514 = vrot.lane.b32.xlu0 %v1500, 116
        %v1515 = vpop.permute.xlu0 %1514
        %1517 = vrot.lane.b32.xlu0 %v1500, 108
        %v1518 = vpop.permute.xlu0 %1517
        %1520 = vrot.lane.b32.xlu0 %v1500, 107
        %v1521 = vpop.permute.xlu0 %1520
        %1523 = vrot.lane.b32.xlu0 %v1500, 106
        %v1524 = vpop.permute.xlu0 %1523
        %1527 = vset.pattern.permute.xlu0 0
        %1528 = vperm.xlu0 %1527, %v1485
        %v1529 = vpop.permute.xlu0 %1528
        %1532 = vset.pattern.permute.xlu0 0
        %1533 = vperm.xlu0 %1532, %v1486
        %v1534 = vpop.permute.xlu0 %1533
        %v1538 = vunpack.c.l.b16 %v1480
        %v1539 = vunpack.c.h.b16 %v1480
        %v1540 = vunpack.c.l.b16 %v1481
        %v1541 = vunpack.c.h.b16 %v1481
        %v1542 = vpack.c.b16 %v1540, %v1538
        %v1543 = vpack.c.b16 %v1541, %v1539
        %vm1545 = vcmask 130048
        %v1547 = vsel %vm1545, %v1543, 0
        %1549 = vmatpush.bf16.msra.mxu0 %v1521
        %1550 = vmatpush.bf16.msra.mxu0 %v1518
        %1551 = vmatpush.bf16.msra.mxu0 %v1515
        %1552 = vmatpush.bf16.msra.mxu0 %v1512
        %1553 = vmatpush.bf16.msra.mxu0 %v1509
        %1554 = vmatpush.bf16.msra.mxu0 %v1506
        %1555 = vmatpush.bf16.msra.mxu0 %v1503
        %1556 = vmatpush.bf16.msra.mxu0 %v1500
        %1557 = vmatmul.bf16.gmra.mxu0 %v1542
        %v1558 = vpop.f32.mrf.mxu0
        %v1559 = vadd.f32 %v1529, %v1558
        %v1560 = vpop.f32.mrf.mxu0
        %v1561 = vadd.f32 %v1534, %v1560
        %1562 = vdwg.mxu0
        %1563 = vmatpush.bf16.msra.mxu0 0
        %1564 = vmatpush.bf16.msra.mxu0 0
        %1565 = vmatpush.bf16.msra.mxu0 0
        %1566 = vmatpush.bf16.msra.mxu0 0
        %1567 = vmatpush.bf16.msra.mxu0 0
        %1568 = vmatpush.bf16.msra.mxu0 0
        %1569 = vmatpush.bf16.msra.mxu0 0
        %1570 = vmatpush.bf16.msra.mxu0 %v1524
        %1571 = vmatmul.bf16.gmra.mxu0 %v1547
        %v1572 = vpop.f32.mrf.mxu0
        %v1573 = vadd.f32 %v1559, %v1572
        %v1574 = vpop.f32.mrf.mxu0
        %v1575 = vadd.f32 %v1561, %v1574
        %1576 = vdwg.mxu0
        %v1577 = vmax.f32 %v1573, 0.0
        %v1578 = vmax.f32 %v1575, 0.0
        %v1579 = vpack.c.bf16 %v1578, %v1577
        %v1580 = vld [vmem:[#allocation9] sm:$0xf]
        %v1581 = vld [vmem:[#allocation9 + $0x4] sm:$0xf]
        %v1582 = vld [vmem:[#allocation9 + $0x8] sm:$0xf]
        %v1583 = vld [vmem:[#allocation9 + $0xc] sm:$0xf]
        %v1584 = vld [vmem:[#allocation9 + $0x10] sm:$0xf]
        %v1585 = vld [vmem:[#allocation9 + $0x14] sm:$0xf]
        %v1586 = vld [vmem:[#allocation9 + $0x18] sm:$0xf]
        %v1587 = vld [vmem:[#allocation9 + $0x1c] sm:$0xf]
        %v1588 = vld [vmem:[#allocation9 + $0x20] sm:$0xf]
        %v1589 = vld [vmem:[#allocation9 + $0x24] sm:$0x7]
        %v1600 = vunpack.c.l.b16 %v1580
        %v1601 = vunpack.c.l.b16 %v1581
        %v1602 = vunpack.c.l.b16 %v1582
        %v1603 = vunpack.c.l.b16 %v1583
        %v1604 = vunpack.c.l.b16 %v1584
        %v1605 = vunpack.c.l.b16 %v1585
        %v1606 = vunpack.c.l.b16 %v1586
        %v1607 = vunpack.c.l.b16 %v1587
        %v1608 = vunpack.c.l.b16 %v1588
        %v1609 = vunpack.c.l.b16 %v1589
        %v1610 = vpack.c.b16 %v1601, %v1600
        %v1611 = vpack.c.b16 %v1603, %v1602
        %v1612 = vpack.c.b16 %v1605, %v1604
        %v1613 = vpack.c.b16 %v1607, %v1606
        %v1614 = vpack.c.b16 %v1609, %v1608
        %vm1619 = vcmask 637952
        %v1621 = vsel %vm1619, %v1579, 0
        %v1624 = vsel %vm1432, %v1614, 0
        %1626 = vmatpush.bf16.msra.mxu0 0
        %1627 = vmatpush.bf16.msra.mxu0 0
        %1628 = vmatpush.bf16.msra.mxu0 0
        %1629 = vmatpush.bf16.msra.mxu0 %v1624
        %1630 = vmatpush.bf16.msra.mxu0 %v1613
        %1631 = vmatpush.bf16.msra.mxu0 %v1612
        %1632 = vmatpush.bf16.msra.mxu0 %v1611
        %1633 = vmatpush.bf16.msra.mxu0 %v1610
        %1634 = vmatmul.bf16.gmra.mxu0 %v1621
        %v1635 = vpop.f32.mrf.mxu0
        %v1636 = vadd.f32 0.0, %v1635
        %v1637 = vpop.f32.mrf.mxu0
        %v1638 = vadd.f32 0.0, %v1637
        %1639 = vdwg.mxu0
        %v1640 = vpack.c.bf16 %v1636, %v1636
        %v1641 = vpack.c.bf16 %v1638, %v1638
        %v1644 = vunpack.c.l.b16 %v1640
        %v1645 = vunpack.c.l.b16 %v1641
        %v1646 = vpack.c.b16 %v1645, %v1644
        %1648 = vrot.lane.b32.xlu0 %v1646, 127
        %v1649 = vpop.permute.xlu0 %1648
        %1651 = vrot.lane.b32.xlu0 %v1646, 126
        %v1652 = vpop.permute.xlu0 %1651
        %1654 = vrot.lane.b32.xlu0 %v1646, 118
        %v1655 = vpop.permute.xlu0 %1654
        %1657 = vrot.lane.b32.xlu0 %v1646, 117
        %v1658 = vpop.permute.xlu0 %1657
        %1660 = vrot.lane.b32.xlu0 %v1646, 116
        %v1661 = vpop.permute.xlu0 %1660
        %1663 = vrot.lane.b32.xlu0 %v1646, 108
        %v1664 = vpop.permute.xlu0 %1663
        %1666 = vrot.lane.b32.xlu0 %v1646, 107
        %v1667 = vpop.permute.xlu0 %1666
        %1669 = vrot.lane.b32.xlu0 %v1646, 106
        %v1670 = vpop.permute.xlu0 %1669
        %1673 = vset.pattern.permute.xlu0 0
        %1674 = vperm.xlu0 %1673, %v1488
        %v1675 = vpop.permute.xlu0 %1674
        %1678 = vset.pattern.permute.xlu0 0
        %1679 = vperm.xlu0 %1678, %v1489
        %v1680 = vpop.permute.xlu0 %1679
        %v1684 = vunpack.c.l.b16 %v1483
        %v1685 = vunpack.c.h.b16 %v1483
        %v1686 = vunpack.c.l.b16 %v1484
        %v1687 = vunpack.c.h.b16 %v1484
        %v1688 = vpack.c.b16 %v1686, %v1684
        %v1689 = vpack.c.b16 %v1687, %v1685
        %v1692 = vsel %vm1545, %v1689, 0
        %1694 = vmatpush.bf16.msra.mxu0 %v1667
        %1695 = vmatpush.bf16.msra.mxu0 %v1664
        %1696 = vmatpush.bf16.msra.mxu0 %v1661
        %1697 = vmatpush.bf16.msra.mxu0 %v1658
        %1698 = vmatpush.bf16.msra.mxu0 %v1655
        %1699 = vmatpush.bf16.msra.mxu0 %v1652
        %1700 = vmatpush.bf16.msra.mxu0 %v1649
        %1701 = vmatpush.bf16.msra.mxu0 %v1646
        %1702 = vmatmul.bf16.gmra.mxu0 %v1688
        %v1703 = vpop.f32.mrf.mxu0
        %v1704 = vadd.f32 %v1675, %v1703
        %v1705 = vpop.f32.mrf.mxu0
        %v1706 = vadd.f32 %v1680, %v1705
        %1707 = vdwg.mxu0
        %1708 = vmatpush.bf16.msra.mxu0 0
        %1709 = vmatpush.bf16.msra.mxu0 0
        %1710 = vmatpush.bf16.msra.mxu0 0
        %1711 = vmatpush.bf16.msra.mxu0 0
        %1712 = vmatpush.bf16.msra.mxu0 0
        %1713 = vmatpush.bf16.msra.mxu0 0
        %1714 = vmatpush.bf16.msra.mxu0 0
        %1715 = vmatpush.bf16.msra.mxu0 %v1670
        %1716 = vmatmul.bf16.gmra.mxu0 %v1692
        %v1717 = vpop.f32.mrf.mxu0
        %v1718 = vadd.f32 %v1704, %v1717
        %v1719 = vpop.f32.mrf.mxu0
        %v1720 = vadd.f32 %v1706, %v1719
        %1721 = vdwg.mxu0
        %1724 = vrot.lane.b32.xlu0 %v1490, 117
        %v1725 = vpop.permute.xlu0 %1724
        %1726 = vrot.lane.b32.xlu0 %v1491, 117
        %v1727 = vpop.permute.xlu0 %1726
        %v1730 = vadd.f32 %v1718, %v1725
        %v1731 = vadd.f32 %v1720, %v1727
        %v1732 = vpack.c.bf16 %v1731, %v1730
        %v1734 = vsel %vm1619, %v1732, 0
        %1736 = vmatpush.bf16.msra.mxu0 0
        %1737 = vmatpush.bf16.msra.mxu0 0
        %1738 = vmatpush.bf16.msra.mxu0 0
        %1739 = vmatpush.bf16.msra.mxu0 %v1624
        %1740 = vmatpush.bf16.msra.mxu0 %v1613
        %1741 = vmatpush.bf16.msra.mxu0 %v1612
        %1742 = vmatpush.bf16.msra.mxu0 %v1611
        %1743 = vmatpush.bf16.msra.mxu0 %v1610
        %1744 = vmatmul.bf16.gmra.mxu0 %v1734
        %v1745 = vpop.f32.mrf.mxu0
        %v1746 = vadd.f32 0.0, %v1745
        %v1747 = vpop.f32.mrf.mxu0
        %v1748 = vadd.f32 0.0, %v1747
        %1749 = vdwg.mxu0
        %v1750 = vpack.c.bf16 %v1746, %v1746
        %v1751 = vpack.c.bf16 %v1748, %v1748
        %s1752 = scalar_lea.vmem [#allocation7], 32
        %v1753 = vld [vmem:[%s1752] sm:$0xff]
        %v1754 = vld [vmem:[%s1752 + $0x8] sm:$0xff]
        %s1755 = scalar_lea.vmem [#allocation7], 48
        %v1756 = vld [vmem:[%s1755] sm:$0xff]
        %v1757 = vld [vmem:[%s1755 + $0x8] sm:$0xff]
        %s1758 = scalar_lea.vmem %s7, 32
        %v1759 = vld [vmem:[%s1758] sm:$0xff]
        %v1760 = vld [vmem:[%s1758 + $0x8] sm:$0xff]
        %s1761 = scalar_lea.vmem %s7, 48
        %v1762 = vld [vmem:[%s1761] sm:$0xff]
        %v1763 = vld [vmem:[%s1761 + $0x8] sm:$0xff]
        %v1764 = vunpack.c.l.bf16 %v1750
        %v1765 = vunpack.c.l.bf16 %v1751
        %v1766 = vmax.f32 %v1764, 0.0
        %v1767 = vmax.f32 %v1765, 0.0
        %v1768 = vpack.c.bf16 %v1766, %v1766
        %v1769 = vpack.c.bf16 %v1767, %v1767
        %v1772 = vunpack.c.l.b16 %v1768
        %v1773 = vunpack.c.l.b16 %v1769
        %v1774 = vpack.c.b16 %v1773, %v1772
        %1776 = vrot.lane.b32.xlu0 %v1774, 127
        %v1777 = vpop.permute.xlu0 %1776
        %1779 = vrot.lane.b32.xlu0 %v1774, 126
        %v1780 = vpop.permute.xlu0 %1779
        %1782 = vrot.lane.b32.xlu0 %v1774, 118
        %v1783 = vpop.permute.xlu0 %1782
        %1785 = vrot.lane.b32.xlu0 %v1774, 117
        %v1786 = vpop.permute.xlu0 %1785
        %1788 = vrot.lane.b32.xlu0 %v1774, 116
        %v1789 = vpop.permute.xlu0 %1788
        %1791 = vrot.lane.b32.xlu0 %v1774, 108
        %v1792 = vpop.permute.xlu0 %1791
        %1794 = vrot.lane.b32.xlu0 %v1774, 107
        %v1795 = vpop.permute.xlu0 %1794
        %1797 = vrot.lane.b32.xlu0 %v1774, 106
        %v1798 = vpop.permute.xlu0 %1797
        %1801 = vset.pattern.permute.xlu0 0
        %1802 = vperm.xlu0 %1801, %v1759
        %v1803 = vpop.permute.xlu0 %1802
        %1806 = vset.pattern.permute.xlu0 0
        %1807 = vperm.xlu0 %1806, %v1760
        %v1808 = vpop.permute.xlu0 %1807
        %v1812 = vunpack.c.l.b16 %v1753
        %v1813 = vunpack.c.h.b16 %v1753
        %v1814 = vunpack.c.l.b16 %v1754
        %v1815 = vunpack.c.h.b16 %v1754
        %v1816 = vpack.c.b16 %v1814, %v1812
        %v1817 = vpack.c.b16 %v1815, %v1813
        %v1820 = vsel %vm1545, %v1817, 0
        %1822 = vmatpush.bf16.msra.mxu0 %v1795
        %1823 = vmatpush.bf16.msra.mxu0 %v1792
        %1824 = vmatpush.bf16.msra.mxu0 %v1789
        %1825 = vmatpush.bf16.msra.mxu0 %v1786
        %1826 = vmatpush.bf16.msra.mxu0 %v1783
        %1827 = vmatpush.bf16.msra.mxu0 %v1780
        %1828 = vmatpush.bf16.msra.mxu0 %v1777
        %1829 = vmatpush.bf16.msra.mxu0 %v1774
        %1830 = vmatmul.bf16.gmra.mxu0 %v1816
        %v1831 = vpop.f32.mrf.mxu0
        %v1832 = vadd.f32 %v1803, %v1831
        %v1833 = vpop.f32.mrf.mxu0
        %v1834 = vadd.f32 %v1808, %v1833
        %1835 = vdwg.mxu0
        %1836 = vmatpush.bf16.msra.mxu0 0
        %1837 = vmatpush.bf16.msra.mxu0 0
        %1838 = vmatpush.bf16.msra.mxu0 0
        %1839 = vmatpush.bf16.msra.mxu0 0
        %1840 = vmatpush.bf16.msra.mxu0 0
        %1841 = vmatpush.bf16.msra.mxu0 0
        %1842 = vmatpush.bf16.msra.mxu0 0
        %1843 = vmatpush.bf16.msra.mxu0 %v1798
        %1844 = vmatmul.bf16.gmra.mxu0 %v1820
        %v1845 = vpop.f32.mrf.mxu0
        %v1846 = vadd.f32 %v1832, %v1845
        %v1847 = vpop.f32.mrf.mxu0
        %v1848 = vadd.f32 %v1834, %v1847
        %1849 = vdwg.mxu0
        %v1850 = vmax.f32 %v1846, 0.0
        %v1851 = vmax.f32 %v1848, 0.0
        %v1852 = vpack.c.bf16 %v1851, %v1850
        %v1854 = vsel %vm1619, %v1852, 0
        %1856 = vmatpush.bf16.msra.mxu0 0
        %1857 = vmatpush.bf16.msra.mxu0 0
        %1858 = vmatpush.bf16.msra.mxu0 0
        %1859 = vmatpush.bf16.msra.mxu0 %v1624
        %1860 = vmatpush.bf16.msra.mxu0 %v1613
        %1861 = vmatpush.bf16.msra.mxu0 %v1612
        %1862 = vmatpush.bf16.msra.mxu0 %v1611
        %1863 = vmatpush.bf16.msra.mxu0 %v1610
        %1864 = vmatmul.bf16.gmra.mxu0 %v1854
        %v1865 = vpop.f32.mrf.mxu0
        %v1866 = vadd.f32 0.0, %v1865
        %v1867 = vpop.f32.mrf.mxu0
        %v1868 = vadd.f32 0.0, %v1867
        %1869 = vdwg.mxu0
        %v1870 = vpack.c.bf16 %v1866, %v1866
        %v1871 = vpack.c.bf16 %v1868, %v1868
        %v1874 = vunpack.c.l.b16 %v1870
        %v1875 = vunpack.c.l.b16 %v1871
        %v1876 = vpack.c.b16 %v1875, %v1874
        %1878 = vrot.lane.b32.xlu0 %v1876, 127
        %v1879 = vpop.permute.xlu0 %1878
        %1881 = vrot.lane.b32.xlu0 %v1876, 126
        %v1882 = vpop.permute.xlu0 %1881
        %1884 = vrot.lane.b32.xlu0 %v1876, 118
        %v1885 = vpop.permute.xlu0 %1884
        %1887 = vrot.lane.b32.xlu0 %v1876, 117
        %v1888 = vpop.permute.xlu0 %1887
        %1890 = vrot.lane.b32.xlu0 %v1876, 116
        %v1891 = vpop.permute.xlu0 %1890
        %1893 = vrot.lane.b32.xlu0 %v1876, 108
        %v1894 = vpop.permute.xlu0 %1893
        %1896 = vrot.lane.b32.xlu0 %v1876, 107
        %v1897 = vpop.permute.xlu0 %1896
        %1899 = vrot.lane.b32.xlu0 %v1876, 106
        %v1900 = vpop.permute.xlu0 %1899
        %1903 = vset.pattern.permute.xlu0 0
        %1904 = vperm.xlu0 %1903, %v1762
        %v1905 = vpop.permute.xlu0 %1904
        %1908 = vset.pattern.permute.xlu0 0
        %1909 = vperm.xlu0 %1908, %v1763
        %v1910 = vpop.permute.xlu0 %1909
        %v1914 = vunpack.c.l.b16 %v1756
        %v1915 = vunpack.c.h.b16 %v1756
        %v1916 = vunpack.c.l.b16 %v1757
        %v1917 = vunpack.c.h.b16 %v1757
        %v1918 = vpack.c.b16 %v1916, %v1914
        %v1919 = vpack.c.b16 %v1917, %v1915
        %v1922 = vsel %vm1545, %v1919, 0
        %1924 = vmatpush.bf16.msra.mxu0 %v1897
        %1925 = vmatpush.bf16.msra.mxu0 %v1894
        %1926 = vmatpush.bf16.msra.mxu0 %v1891
        %1927 = vmatpush.bf16.msra.mxu0 %v1888
        %1928 = vmatpush.bf16.msra.mxu0 %v1885
        %1929 = vmatpush.bf16.msra.mxu0 %v1882
        %1930 = vmatpush.bf16.msra.mxu0 %v1879
        %1931 = vmatpush.bf16.msra.mxu0 %v1876
        %1932 = vmatmul.bf16.gmra.mxu0 %v1918
        %v1933 = vpop.f32.mrf.mxu0
        %v1934 = vadd.f32 %v1905, %v1933
        %v1935 = vpop.f32.mrf.mxu0
        %v1936 = vadd.f32 %v1910, %v1935
        %1937 = vdwg.mxu0
        %1938 = vmatpush.bf16.msra.mxu0 0
        %1939 = vmatpush.bf16.msra.mxu0 0
        %1940 = vmatpush.bf16.msra.mxu0 0
        %1941 = vmatpush.bf16.msra.mxu0 0
        %1942 = vmatpush.bf16.msra.mxu0 0
        %1943 = vmatpush.bf16.msra.mxu0 0
        %1944 = vmatpush.bf16.msra.mxu0 0
        %1945 = vmatpush.bf16.msra.mxu0 %v1900
        %1946 = vmatmul.bf16.gmra.mxu0 %v1922
        %v1947 = vpop.f32.mrf.mxu0
        %v1948 = vadd.f32 %v1934, %v1947
        %v1949 = vpop.f32.mrf.mxu0
        %v1950 = vadd.f32 %v1936, %v1949
        %1951 = vdwg.mxu0
        %1954 = vrot.lane.b32.xlu0 %v1764, 117
        %v1955 = vpop.permute.xlu0 %1954
        %1956 = vrot.lane.b32.xlu0 %v1765, 117
        %v1957 = vpop.permute.xlu0 %1956
        %v1960 = vadd.f32 %v1948, %v1955
        %v1961 = vadd.f32 %v1950, %v1957
        %v1962 = vpack.c.bf16 %v1961, %v1960
        %v1964 = vsel %vm1619, %v1962, 0
        %1966 = vmatpush.bf16.msra.mxu0 0
        %1967 = vmatpush.bf16.msra.mxu0 0
        %1968 = vmatpush.bf16.msra.mxu0 0
        %1969 = vmatpush.bf16.msra.mxu0 %v1624
        %1970 = vmatpush.bf16.msra.mxu0 %v1613
        %1971 = vmatpush.bf16.msra.mxu0 %v1612
        %1972 = vmatpush.bf16.msra.mxu0 %v1611
        %1973 = vmatpush.bf16.msra.mxu0 %v1610
        %1974 = vmatmul.bf16.gmra.mxu0 %v1964
        %v1975 = vpop.f32.mrf.mxu0
        %v1976 = vadd.f32 0.0, %v1975
        %v1977 = vpop.f32.mrf.mxu0
        %v1978 = vadd.f32 0.0, %v1977
        %1979 = vdwg.mxu0
        %v1980 = vpack.c.bf16 %v1978, %v1976
        %v1981 = vld [vmem:[#allocation10] sm:$0xf]
        %v1982 = vld [vmem:[#allocation10 + $0x4] sm:$0xf]
        %v1983 = vld [vmem:[#allocation10 + $0x8] sm:$0xf]
        %v1984 = vld [vmem:[#allocation10 + $0xc] sm:$0xf]
        %v1985 = vld [vmem:[#allocation10 + $0x10] sm:$0xf]
        %v1986 = vld [vmem:[#allocation10 + $0x14] sm:$0xf]
        %v1987 = vld [vmem:[#allocation10 + $0x18] sm:$0xf]
        %v1988 = vld [vmem:[#allocation10 + $0x1c] sm:$0xf]
        %v1989 = vld [vmem:[#allocation10 + $0x20] sm:$0xf]
        %v1990 = vld [vmem:[#allocation10 + $0x24] sm:$0xf]
        %v1991 = vld [vmem:[#allocation10 + $0x28] sm:$0xf]
        %v1992 = vld [vmem:[#allocation10 + $0x2c] sm:$0xf]
        %v1993 = vld [vmem:[#allocation10 + $0x30] sm:$0x3]
        %v2007 = vunpack.c.l.b16 %v1981
        %v2008 = vunpack.c.l.b16 %v1982
        %v2009 = vunpack.c.l.b16 %v1983
        %v2010 = vunpack.c.l.b16 %v1984
        %v2011 = vunpack.c.l.b16 %v1985
        %v2012 = vunpack.c.l.b16 %v1986
        %v2013 = vunpack.c.l.b16 %v1987
        %v2014 = vunpack.c.l.b16 %v1988
        %v2015 = vunpack.c.l.b16 %v1989
        %v2016 = vunpack.c.l.b16 %v1990
        %v2017 = vunpack.c.l.b16 %v1991
        %v2018 = vunpack.c.l.b16 %v1992
        %v2019 = vunpack.c.l.b16 %v1993
        %v2020 = vpack.c.b16 %v2008, %v2007
        %v2021 = vpack.c.b16 %v2010, %v2009
        %v2022 = vpack.c.b16 %v2012, %v2011
        %v2023 = vpack.c.b16 %v2014, %v2013
        %v2024 = vpack.c.b16 %v2016, %v2015
        %v2025 = vpack.c.b16 %v2018, %v2017
        %v2026 = vpack.c.b16 %v2019, %v2019
        %vm2033 = vcmask 818176
        %v2035 = vsel %vm2033, %v1980, 0
        %v2038 = vsel %vm956, %v2026, 0
        %2040 = vmatpush.bf16.msra.mxu0 0
        %2041 = vmatpush.bf16.msra.mxu0 %v2038
        %2042 = vmatpush.bf16.msra.mxu0 %v2025
        %2043 = vmatpush.bf16.msra.mxu0 %v2024
        %2044 = vmatpush.bf16.msra.mxu0 %v2023
        %2045 = vmatpush.bf16.msra.mxu0 %v2022
        %2046 = vmatpush.bf16.msra.mxu0 %v2021
        %2047 = vmatpush.bf16.msra.mxu0 %v2020
        %2048 = vmatmul.bf16.gmra.mxu0 %v2035
        %v2049 = vpop.f32.mrf.mxu0
        %v2050 = vadd.f32 0.0, %v2049
        %v2051 = vpop.f32.mrf.mxu0
        %v2052 = vadd.f32 0.0, %v2051
        %2053 = vdwg.mxu0
        %vm2054 = vcmask 523264
        %2055 = vst.msk [vmem:[%s459] sm:$0xff] %vm2054, %v2050
        %2056 = vst.msk [vmem:[%s459 + $0x8] sm:$0xff] %vm2054, %v2052
        %p2057 = scmp.lt.s32.totalorder %s25, 1
        %s2058 = scalar_select %p2057, %s25, 1
        %s2059 = smul.addr %s2058, 2
        %s2060 = smul.addr %s2059, 8
        %s2061 = scalar_lea.vmem %s10, %s2060
        // Predicated region
        $region85: #{_lambda_.3} parent=59 // pred_check
          %p2062 = pneg %p258
        $region86: #{_lambda_.3} parent=59 // pred_check_branch
          %2064 = sbr.rel (%p2062) target = $region88
        $region87: #{_lambda_.3} parent=59 // pred_region
          _
        $region88: #{_lambda_.3} parent=59 // pred_fallthru
          _
      $region60: #{_lambda_.3} parent=5 // pred_fallthru
        _
      %p2065 = scmp.le.s32.totalorder 2, %s20
      // Predicated region
      $region89: #{_lambda_.3} parent=5 // pred_check
        %p2066 = pneg %p2065
      $region90: #{_lambda_.3} parent=5 // pred_check_branch
        %2068 = sbr.rel (%p2066) target = $region92
      $region91: #{_lambda_.3} parent=5 // pred_region
        %s2069 = ssub.s32 %s20, 2
        // Predicated region
        $region93: #{_lambda_.3} parent=91 // pred_check
          %p2070 = pneg %p264
        $region94: #{_lambda_.3} parent=91 // pred_check_branch
          %2072 = sbr.rel (%p2070) target = $region96
        $region95: #{_lambda_.3} parent=91 // pred_region
          %p2073 = scmp.lt.s32.totalorder %s26, 1
          %s2074 = scalar_select %p2073, %s26, 1
          %s2075 = smul.addr %s2074, 2
          %s2076 = smul.addr %s2075, 8
          %s2077 = scalar_lea.vmem %s10, %s2076
        $region96: #{_lambda_.3} parent=91 // pred_fallthru
          _
      $region92: #{_lambda_.3} parent=5 // pred_fallthru
        _
    $region6: #{_lambda_.3} parent=1 // loop_footer
      %s24 = sadd.s32 1, %s20
    $region7: #{_lambda_.3} parent=1 // loop_footer_branch
      %19 = sbr.rel target = $region3
    $region8: #{_lambda_.3} parent=1 // loop_exit
      _
    %2078 = vsyncpa [#allocation3], 1
    %s2079 = scalar_lea.sflag [#allocation3], 1
    %2080 = vsyncpa %s2079, 1
    %2081 = vsyncpa [#allocation5], 1
    %2082 = vsyncpa [#allocation8], 1
    %2083 = vsyncpa [#allocation11], 1

</llo_original>
